<compile_context>
chip_gen: v5e
topology: v5e:2x2
jax: 0.10.0
libtpu: 0.0.40
codegen_flags: <defaults>
</compile_context>

<pallas_src>
import functools

import jax
import jax.numpy as jnp
from jax.experimental import pallas as pl
from jax.experimental.pallas import tpu as pltpu

LRELU_SLOPE = 0.2
BN_EPS = 1e-5


def _leaky_relu(x):
    return jnp.where(x > 0, x, LRELU_SLOPE * x)


def _softplus(x):
    # numerically-stable softplus using only exp/log (guaranteed Mosaic lowerings)
    return jnp.maximum(x, 0.0) + jnp.log(1.0 + jnp.exp(-jnp.abs(x)))


@functools.lru_cache(maxsize=None)
def _vmem_limit_bytes():
    """Per-generation scoped-VMEM budget: half of physical, clamped to [16, 64] MiB.

    v7x has 64 MiB of VMEM per TensorCore, v5e/v6e have 128 MiB."""
    try:
        cap = int(pltpu.get_tpu_info().vmem_capacity_bytes)
    except Exception:  # interpret mode / older jax: fall back to a safe budget
        cap = 64 * 1024 * 1024
    return int(min(max(cap // 2, 16 * 1024 * 1024), 64 * 1024 * 1024))


# ----------------------------- Pallas kernels ------------------------------

def _matmul_lrelu_kernel(cols_ref, w_ref, o_ref):
    """o = leaky_relu(cols @ w) for one (tm, K) row tile (layer 1)."""
    y = jnp.dot(cols_ref[...], w_ref[...], preferred_element_type=jnp.float32)
    o_ref[...] = _leaky_relu(y).astype(o_ref.dtype)


def _matmul_bn_lrelu_kernel(cols_ref, w_ref, g_ref, b_ref, o_ref, acc_ref):
    """K-blocked matmul with f32 accumulator; BN (batch stats) + LeakyReLU epilogue.

    Grid = (Cout tiles [parallel], K tiles [arbitrary]).  M is not tiled, so the
    mean/var over axis 0 is the full B*H*W batch statistic per channel."""
    k = pl.program_id(1)

    @pl.when(k == 0)
    def _():
        acc_ref[...] = jnp.zeros_like(acc_ref)

    acc_ref[...] += jnp.dot(cols_ref[...], w_ref[...],
                            preferred_element_type=jnp.float32)

    @pl.when(k == pl.num_programs(1) - 1)
    def _():
        y = acc_ref[...]
        mean = jnp.mean(y, axis=0, keepdims=True)
        var = jnp.mean(jnp.square(y - mean), axis=0, keepdims=True)  # biased, as torch
        y = (y - mean) * jax.lax.rsqrt(var + BN_EPS)
        y = y * g_ref[...] + b_ref[...]
        o_ref[...] = _leaky_relu(y).astype(o_ref.dtype)


def _matmul_bn_lrelu_head_softplus_kernel(cols_ref, w_ref, g_ref, b_ref, w5_ref,
                                          o_ref, acc_ref):
    """Layer 4 + head, fused.

    K-blocked conv matmul into an f32 accumulator; at the last K step run
    BatchNorm (batch stats) + LeakyReLU, then contract the (B, 16, 512)
    activation with w5 (4x4 valid head conv) and apply Softplus -> (B, 1)."""
    k = pl.program_id(0)

    @pl.when(k == 0)
    def _():
        acc_ref[...] = jnp.zeros_like(acc_ref)

    acc_ref[...] += jnp.dot(cols_ref[...], w_ref[...],
                            preferred_element_type=jnp.float32)

    @pl.when(k == pl.num_programs(0) - 1)
    def _():
        y = acc_ref[...]                                     # (M = B*16, 512) f32
        mean = jnp.mean(y, axis=0, keepdims=True)
        var = jnp.mean(jnp.square(y - mean), axis=0, keepdims=True)
        y = (y - mean) * jax.lax.rsqrt(var + BN_EPS)
        y = _leaky_relu(y * g_ref[...] + b_ref[...])
        m, c = y.shape
        ntap = w5_ref.shape[0]                               # 16 head taps
        act = y.reshape(m // ntap, ntap, c)                  # (B, 16, 512)
        w5f = w5_ref[...].astype(jnp.float32)                # (16, 512)
        part = jnp.sum(act * w5f[None, :, :], axis=-1)       # (B, 16)
        head = jnp.sum(part, axis=-1, keepdims=True)         # (B, 1)
        o_ref[...] = _softplus(head).astype(o_ref.dtype)


# ------------------------------ layer wrappers ------------------------------

def _im2col_k4s2p1(x):
    """NHWC (B,H,W,C) -> (B*Ho*Wo, 16*C) patch matrix for a 4x4 / stride-2 / pad-1 conv."""
    B, H, W, C = x.shape
    Ho, Wo = H // 2, W // 2
    xp = jnp.pad(x, ((0, 0), (1, 1), (1, 1), (0, 0)))
    taps = [xp[:, kh:kh + 2 * Ho:2, kw:kw + 2 * Wo:2, :]
            for kh in range(4) for kw in range(4)]
    cols = jnp.concatenate(taps, axis=-1)                    # (B, Ho, Wo, 16*C)
    return cols.reshape(B * Ho * Wo, 16 * C), (B, Ho, Wo)


def conv4x4_s2_lrelu(x, w, *, tm=512):
    """Layer 1: Conv2d(3, 64, 4, 2, 1, bias=False) + LeakyReLU(0.2); NHWC, bf16 out."""
    B, H, W, C = x.shape
    Cout = w.shape[-1]
    cpad = (-C) % 8                      # pad channels 3 -> 8 so K = 128 (lane aligned)
    xpad = jnp.pad(x, ((0, 0), (0, 0), (0, 0), (0, cpad))).astype(jnp.bfloat16)
    wpad = jnp.pad(w, ((0, 0), (0, 0), (0, cpad), (0, 0)))
    cols, (B, Ho, Wo) = _im2col_k4s2p1(xpad)
    M, K = cols.shape
    w2 = wpad.reshape(K, Cout).astype(jnp.bfloat16)
    if M % tm != 0:
        tm = M
    cost = pl.CostEstimate(flops=2 * M * K * Cout, transcendentals=0,
                           bytes_accessed=2 * (M * K + K * Cout + M * Cout))
    out = pl.pallas_call(
        _matmul_lrelu_kernel,
        out_shape=jax.ShapeDtypeStruct((M, Cout), jnp.bfloat16),
        grid_spec=pltpu.PrefetchScalarGridSpec(
            num_scalar_prefetch=0,
            grid=(M // tm,),
            in_specs=[pl.BlockSpec((tm, K), lambda i: (i, 0)),
                      pl.BlockSpec((K, Cout), lambda i: (0, 0))],
            out_specs=pl.BlockSpec((tm, Cout), lambda i: (i, 0)),
        ),
        compiler_params=pltpu.CompilerParams(
            dimension_semantics=("parallel",),
            vmem_limit_bytes=_vmem_limit_bytes()),
        cost_estimate=cost,
    )(cols, w2)
    return out.reshape(B, Ho, Wo, Cout)


def conv4x4_s2_bn_lrelu(x, w, gamma, beta, *, tk, tn=128):
    """Conv2d(Cin, Cout, 4, 2, 1) + BatchNorm2d (batch stats) + LeakyReLU; NHWC bf16."""
    cols, (B, Ho, Wo) = _im2col_k4s2p1(x.astype(jnp.bfloat16))
    M, K = cols.shape
    Cout = w.shape[-1]
    assert K % tk == 0 and Cout % tn == 0
    w2 = w.reshape(K, Cout).astype(jnp.bfloat16)
    g2 = gamma.reshape(1, Cout).astype(jnp.float32)
    b2 = beta.reshape(1, Cout).astype(jnp.float32)
    cost = pl.CostEstimate(
        flops=2 * M * K * Cout + 10 * M * Cout,
        transcendentals=Cout,
        bytes_accessed=2 * (M * K * (Cout // tn) + K * Cout + M * Cout) + 8 * Cout)
    out = pl.pallas_call(
        _matmul_bn_lrelu_kernel,
        out_shape=jax.ShapeDtypeStruct((M, Cout), jnp.bfloat16),
        grid_spec=pltpu.PrefetchScalarGridSpec(
            num_scalar_prefetch=0,
            grid=(Cout // tn, K // tk),          # Cout parallel, K reduction last
            in_specs=[pl.BlockSpec((M, tk), lambda j, k: (0, k)),
                      pl.BlockSpec((tk, tn), lambda j, k: (k, j)),
                      pl.BlockSpec((1, tn), lambda j, k: (0, j)),
                      pl.BlockSpec((1, tn), lambda j, k: (0, j))],
            out_specs=pl.BlockSpec((M, tn), lambda j, k: (0, j)),
            scratch_shapes=[pltpu.VMEM((M, tn), jnp.float32)],
        ),
        compiler_params=pltpu.CompilerParams(
            dimension_semantics=("parallel", "arbitrary"),
            vmem_limit_bytes=_vmem_limit_bytes()),
        cost_estimate=cost,
    )(cols, w2, g2, b2)
    return out.reshape(B, Ho, Wo, Cout)


def conv4x4_s2_bn_lrelu_head_softplus(x, w, gamma, beta, w5, *, tk=1024):
    """Layer 4 + head fused: Conv2d(256,512,4,2,1)+BN+LeakyReLU, then
    Conv2d(512,1,4,1,0)+Softplus, all inside one kernel.  Returns (B,) f32."""
    cols, (B, Ho, Wo) = _im2col_k4s2p1(x.astype(jnp.bfloat16))
    M, K = cols.shape                        # M = B * 16
    Cout = w.shape[-1]                       # 512
    assert K % tk == 0
    w2 = w.reshape(K, Cout).astype(jnp.bfloat16)
    g2 = gamma.reshape(1, Cout).astype(jnp.float32)
    b2 = beta.reshape(1, Cout).astype(jnp.float32)
    w5_2d = w5.reshape(Ho * Wo, Cout).astype(jnp.bfloat16)   # (16, 512)
    cost = pl.CostEstimate(
        flops=2 * M * K * Cout + 12 * M * Cout,
        transcendentals=Cout + 2 * B,
        bytes_accessed=2 * (M * K + K * Cout + Ho * Wo * Cout) + 8 * Cout + 4 * B)
    out = pl.pallas_call(
        _matmul_bn_lrelu_head_softplus_kernel,
        out_shape=jax.ShapeDtypeStruct((B, 1), jnp.float32),
        grid_spec=pltpu.PrefetchScalarGridSpec(
            num_scalar_prefetch=0,
            grid=(K // tk,),
            in_specs=[pl.BlockSpec((M, tk), lambda k: (0, k)),
                      pl.BlockSpec((tk, Cout), lambda k: (k, 0)),
                      pl.BlockSpec((1, Cout), lambda k: (0, 0)),
                      pl.BlockSpec((1, Cout), lambda k: (0, 0)),
                      pl.BlockSpec((Ho * Wo, Cout), lambda k: (0, 0))],
            out_specs=pl.BlockSpec((B, 1), lambda k: (0, 0)),
            scratch_shapes=[pltpu.VMEM((M, Cout), jnp.float32)],
        ),
        compiler_params=pltpu.CompilerParams(
            dimension_semantics=("arbitrary",),
            vmem_limit_bytes=_vmem_limit_bytes()),
        cost_estimate=cost,
    )(cols, w2, g2, b2, w5_2d)
    return out.reshape(-1)  # matches output.view(-1, 1).squeeze(1)


def net_d_forward(params, x_nchw):
    """Pallas forward of _netD (training-mode BN). Input NCHW; output shape (B,)."""
    h = jnp.transpose(x_nchw, (0, 2, 3, 1))                                    # NHWC
    h = conv4x4_s2_lrelu(h, params["w1"])                                      # (B,32,32, 64)
    h = conv4x4_s2_bn_lrelu(h, params["w2"], params["g2"], params["b2"],
                            tk=512, tn=128)                                    # (B,16,16,128)
    h = conv4x4_s2_bn_lrelu(h, params["w3"], params["g3"], params["b3"],
                            tk=512, tn=128)                                    # (B, 8, 8,256)
    return conv4x4_s2_bn_lrelu_head_softplus(
        h, params["w4"], params["g4"], params["b4"], params["w5"], tk=1024)    # (B,)


# ------------------------- pure-JAX reference (check) ------------------------

def _conv_ref(x, w, stride, pad):
    return jax.lax.conv_general_dilated(
        x, w, window_strides=(stride, stride),
        padding=[(pad, pad), (pad, pad)],
        dimension_numbers=("NHWC", "HWIO", "NHWC"))


def _bn_ref(y, gamma, beta):
    mean = jnp.mean(y, axis=(0, 1, 2), keepdims=True)
    var = jnp.mean(jnp.square(y - mean), axis=(0, 1, 2), keepdims=True)
    return (y - mean) * jax.lax.rsqrt(var + BN_EPS) * gamma + beta


def net_d_reference(params, x_nchw):
    h = jnp.transpose(x_nchw, (0, 2, 3, 1)).astype(jnp.float32)
    h = _leaky_relu(_conv_ref(h, params["w1"], 2, 1))
    h = _leaky_relu(_bn_ref(_conv_ref(h, params["w2"], 2, 1), params["g2"], params["b2"]))
    h = _leaky_relu(_bn_ref(_conv_ref(h, params["w3"], 2, 1), params["g3"], params["b3"]))
    h = _leaky_relu(_bn_ref(_conv_ref(h, params["w4"], 2, 1), params["g4"], params["b4"]))
    y = _conv_ref(h, params["w5"], 1, 0)  # (B, 1, 1, 1)
    return _softplus(y).reshape(-1)


if __name__ == "__main__":
    key = jax.random.PRNGKey(0)
    kx, k1, k2, k3, k4, k5, kg, kb = jax.random.split(key, 8)

    # nc=3 and spatial=64 are required by the module (the 4x4 valid head conv).
    B, NC, NDF, HW = 2, 3, 64, 64
    x = jax.random.normal(kx, (B, NC, HW, HW), dtype=jnp.float32)

    def winit(k, shape):
        return 0.02 * jax.random.normal(k, shape, dtype=jnp.float32)  # DCGAN-style init

    gkeys = jax.random.split(kg, 3)
    bkeys = jax.random.split(kb, 3)
    params = {
        "w1": winit(k1, (4, 4, NC, NDF)),
        "w2": winit(k2, (4, 4, NDF, NDF * 2)),
        "g2": 1.0 + 0.1 * jax.random.normal(gkeys[0], (NDF * 2,), jnp.float32),
        "b2": 0.05 * jax.random.normal(bkeys[0], (NDF * 2,), jnp.float32),
        "w3": winit(k3, (4, 4, NDF * 2, NDF * 4)),
        "g3": 1.0 + 0.1 * jax.random.normal(gkeys[1], (NDF * 4,), jnp.float32),
        "b3": 0.05 * jax.random.normal(bkeys[1], (NDF * 4,), jnp.float32),
        "w4": winit(k4, (4, 4, NDF * 4, NDF * 8)),
        "g4": 1.0 + 0.1 * jax.random.normal(gkeys[2], (NDF * 8,), jnp.float32),
        "b4": 0.05 * jax.random.normal(bkeys[2], (NDF * 8,), jnp.float32),
        "w5": winit(k5, (4, 4, NDF * 8, 1)),
    }

    fwd = jax.jit(net_d_forward)
    out = jax.block_until_ready(fwd(params, x))
    assert out.shape == (B,), out.shape
    assert bool(jnp.all(jnp.isfinite(out)))

    ref = jax.block_until_ready(jax.jit(net_d_reference)(params, x))
    # bf16 MXU path vs f32 reference -> relaxed tolerance.
    assert jnp.allclose(out, ref, atol=8e-2, rtol=8e-2), (out, ref)

    print("KERNEL_OK")
</pallas_src>

<mosaic_0001>
module attributes {stable_mosaic.version = 11 : i64} {
  func.func @_matmul_lrelu_kernel(%arg0: i32, %arg1: memref<512x128xbf16, #tpu.memory_space<vmem>>, %arg2: memref<128x64xbf16, #tpu.memory_space<vmem>>, %arg3: memref<512x64xbf16, #tpu.memory_space<vmem>>) attributes {dimension_semantics = [#tpu.dimension_semantics<parallel>], iteration_bounds = array<i64: 4>, scalar_prefetch = 0 : i64, scratch_operands = 0 : i64, tpu.core_type = #tpu.core_type<tc>, window_params = [{transform_indices = @transform_0, window_bounds = array<i64: 512, 128>}, {pipeline_mode = #tpu.pipeline_mode<synchronous>, transform_indices = @transform_1, window_bounds = array<i64: 128, 64>}, {transform_indices = @transform_2, window_bounds = array<i64: 512, 64>}]} {
    %c0 = arith.constant 0 : index
    %c0_0 = arith.constant 0 : index
    %0 = vector.load %arg1[%c0, %c0_0] : memref<512x128xbf16, #tpu.memory_space<vmem>>, vector<512x128xbf16>
    %c0_1 = arith.constant 0 : index
    %c0_2 = arith.constant 0 : index
    %1 = vector.load %arg2[%c0_1, %c0_2] : memref<128x64xbf16, #tpu.memory_space<vmem>>, vector<128x64xbf16>
    %cst = arith.constant dense<0.000000e+00> : vector<512x64xf32>
    %2 = tpu.matmul %0, %1, %cst {dimension_numbers = #tpu.dot_dimension_numbers<[1], [0], [0], [1], [0, 0, 1, 1], [], []>} : vector<512x128xbf16>, vector<128x64xbf16>, vector<512x64xf32> -> vector<512x64xf32>
    %cst_3 = arith.constant 0.000000e+00 : f32
    %3 = vector.broadcast %cst_3 : f32 to vector<512x64xf32>
    %4 = arith.cmpf ogt, %2, %3 : vector<512x64xf32>
    %cst_4 = arith.constant 2.000000e-01 : f32
    %5 = vector.broadcast %cst_4 : f32 to vector<512x64xf32>
    %6 = arith.mulf %5, %2 : vector<512x64xf32>
    %7 = arith.select %4, %2, %6 : vector<512x64xi1>, vector<512x64xf32>
    %8 = arith.truncf %7 : vector<512x64xf32> to vector<512x64xbf16>
    %c0_5 = arith.constant 0 : index
    %c0_6 = arith.constant 0 : index
    %9 = vector.load %arg3[%c0_5, %c0_6] : memref<512x64xbf16, #tpu.memory_space<vmem>>, vector<512x64xbf16>
    tpu.vector_store %arg3[%c0_5, %c0_6], %8 {strides = array<i32>} : memref<512x64xbf16, #tpu.memory_space<vmem>>, vector<512x64xbf16>,
    return
  }
  func.func @transform_0(%arg0: i32) -> (i32, i32) {
    %c0_i32 = arith.constant 0 : i32
    %c0_i32_0 = arith.constant 0 : i32
    return %arg0, %c0_i32 : i32, i32
  }
  func.func @transform_1(%arg0: i32) -> (i32, i32) {
    %c0_i32 = arith.constant 0 : i32
    %c0_i32_0 = arith.constant 0 : i32
    %c0_i32_1 = arith.constant 0 : i32
    return %c0_i32, %c0_i32_0 : i32, i32
  }
  func.func @transform_2(%arg0: i32) -> (i32, i32) {
    %c0_i32 = arith.constant 0 : i32
    %c0_i32_0 = arith.constant 0 : i32
    return %arg0, %c0_i32 : i32, i32
  }
}

module attributes {stable_mosaic.version = 11 : i64} {
  func.func @_matmul_bn_lrelu_kernel(%arg0: i32, %arg1: i32, %arg2: memref<512x512xbf16, #tpu.memory_space<vmem>>, %arg3: memref<512x128xbf16, #tpu.memory_space<vmem>>, %arg4: memref<1x128xf32, #tpu.memory_space<vmem>>, %arg5: memref<1x128xf32, #tpu.memory_space<vmem>>, %arg6: memref<512x128xbf16, #tpu.memory_space<vmem>>, %arg7: memref<512x128xf32, #tpu.memory_space<vmem>>) attributes {dimension_semantics = [#tpu.dimension_semantics<parallel>, #tpu.dimension_semantics<arbitrary>], iteration_bounds = array<i64: 1, 2>, scalar_prefetch = 0 : i64, scratch_operands = 1 : i64, tpu.core_type = #tpu.core_type<tc>, window_params = [{transform_indices = @transform_0, window_bounds = array<i64: 512, 512>}, {transform_indices = @transform_1, window_bounds = array<i64: 512, 128>}, {transform_indices = @transform_2, window_bounds = array<i64: 1, 128>}, {transform_indices = @transform_3, window_bounds = array<i64: 1, 128>}, {transform_indices = @transform_4, window_bounds = array<i64: 512, 128>}]} {
    %c0_i32 = arith.constant 0 : i32
    %0 = arith.cmpi eq, %arg1, %c0_i32 : i32
    %1 = arith.extui %0 : i1 to i32
    %c0_i32_0 = arith.constant 0 : i32
    %2 = arith.cmpi ne, %1, %c0_i32_0 : i32
    scf.if %2 {
      %cst_9 = arith.constant 0.000000e+00 : f32
      %12 = vector.broadcast %cst_9 : f32 to vector<512x128xf32>
      %c0_10 = arith.constant 0 : index
      %c0_11 = arith.constant 0 : index
      %13 = vector.load %arg7[%c0_10, %c0_11] : memref<512x128xf32, #tpu.memory_space<vmem>>, vector<512x128xf32>
      tpu.vector_store %arg7[%c0_10, %c0_11], %12 {strides = array<i32>} : memref<512x128xf32, #tpu.memory_space<vmem>>, vector<512x128xf32>,
    } else {
    }
    %c0 = arith.constant 0 : index
    %c0_1 = arith.constant 0 : index
    %3 = vector.load %arg7[%c0, %c0_1] : memref<512x128xf32, #tpu.memory_space<vmem>>, vector<512x128xf32>
    %c0_2 = arith.constant 0 : index
    %c0_3 = arith.constant 0 : index
    %4 = vector.load %arg2[%c0_2, %c0_3] : memref<512x512xbf16, #tpu.memory_space<vmem>>, vector<512x512xbf16>
    %c0_4 = arith.constant 0 : index
    %c0_5 = arith.constant 0 : index
    %5 = vector.load %arg3[%c0_4, %c0_5] : memref<512x128xbf16, #tpu.memory_space<vmem>>, vector<512x128xbf16>
    %cst = arith.constant dense<0.000000e+00> : vector<512x128xf32>
    %6 = tpu.matmul %4, %5, %cst {dimension_numbers = #tpu.dot_dimension_numbers<[1], [0], [0], [1], [0, 0, 1, 1], [], []>} : vector<512x512xbf16>, vector<512x128xbf16>, vector<512x128xf32> -> vector<512x128xf32>
    %7 = arith.addf %3, %6 : vector<512x128xf32>
    %c0_6 = arith.constant 0 : index
    %c0_7 = arith.constant 0 : index
    %8 = vector.load %arg7[%c0_6, %c0_7] : memref<512x128xf32, #tpu.memory_space<vmem>>, vector<512x128xf32>
    tpu.vector_store %arg7[%c0_6, %c0_7], %7 {strides = array<i32>} : memref<512x128xf32, #tpu.memory_space<vmem>>, vector<512x128xf32>,
    %c1_i32 = arith.constant 1 : i32
    %9 = arith.cmpi eq, %arg1, %c1_i32 : i32
    %10 = arith.extui %9 : i1 to i32
    %c0_i32_8 = arith.constant 0 : i32
    %11 = arith.cmpi ne, %10, %c0_i32_8 : i32
    scf.if %11 {
      %c0_9 = arith.constant 0 : index
      %c0_10 = arith.constant 0 : index
      %12 = vector.load %arg7[%c0_9, %c0_10] : memref<512x128xf32, #tpu.memory_space<vmem>>, vector<512x128xf32>
      %cst_11 = arith.constant dense<0.000000e+00> : vector<128xf32>
      %13 = vector.multi_reduction <add>, %12, %cst_11 [0] : vector<512x128xf32> to vector<128xf32>
      %14 = vector.shape_cast %13 : vector<128xf32> to vector<1x128xf32>
      %cst_12 = arith.constant 5.120000e+02 : f32
      %15 = vector.broadcast %cst_12 : f32 to vector<1x128xf32>
      %16 = arith.divf %14, %15 : vector<1x128xf32>
      %17 = vector.broadcast %16 : vector<1x128xf32> to vector<512x128xf32>
      %18 = arith.subf %12, %17 : vector<512x128xf32>
      %19 = arith.mulf %18, %18 : vector<512x128xf32>
      %cst_13 = arith.constant dense<0.000000e+00> : vector<128xf32>
      %20 = vector.multi_reduction <add>, %19, %cst_13 [0] : vector<512x128xf32> to vector<128xf32>
      %21 = vector.shape_cast %20 : vector<128xf32> to vector<1x128xf32>
      %cst_14 = arith.constant 5.120000e+02 : f32
      %22 = vector.broadcast %cst_14 : f32 to vector<1x128xf32>
      %23 = arith.divf %21, %22 : vector<1x128xf32>
      %24 = vector.broadcast %16 : vector<1x128xf32> to vector<512x128xf32>
      %25 = arith.subf %12, %24 : vector<512x128xf32>
      %cst_15 = arith.constant 9.99999974E-6 : f32
      %26 = vector.broadcast %cst_15 : f32 to vector<1x128xf32>
      %27 = arith.addf %23, %26 : vector<1x128xf32>
      %28 = math.rsqrt %27 : vector<1x128xf32>
      %29 = vector.broadcast %28 : vector<1x128xf32> to vector<512x128xf32>
      %30 = arith.mulf %25, %29 : vector<512x128xf32>
      %c0_16 = arith.constant 0 : index
      %c0_17 = arith.constant 0 : index
      %31 = vector.load %arg4[%c0_16, %c0_17] : memref<1x128xf32, #tpu.memory_space<vmem>>, vector<1x128xf32>
      %32 = vector.broadcast %31 : vector<1x128xf32> to vector<512x128xf32>
      %33 = arith.mulf %30, %32 : vector<512x128xf32>
      %c0_18 = arith.constant 0 : index
      %c0_19 = arith.constant 0 : index
      %34 = vector.load %arg5[%c0_18, %c0_19] : memref<1x128xf32, #tpu.memory_space<vmem>>, vector<1x128xf32>
      %35 = vector.broadcast %34 : vector<1x128xf32> to vector<512x128xf32>
      %36 = arith.addf %33, %35 : vector<512x128xf32>
      %cst_20 = arith.constant 0.000000e+00 : f32
      %37 = vector.broadcast %cst_20 : f32 to vector<512x128xf32>
      %38 = arith.cmpf ogt, %36, %37 : vector<512x128xf32>
      %cst_21 = arith.constant 2.000000e-01 : f32
      %39 = vector.broadcast %cst_21 : f32 to vector<512x128xf32>
      %40 = arith.mulf %39, %36 : vector<512x128xf32>
      %41 = arith.select %38, %36, %40 : vector<512x128xi1>, vector<512x128xf32>
      %42 = arith.truncf %41 : vector<512x128xf32> to vector<512x128xbf16>
      %c0_22 = arith.constant 0 : index
      %c0_23 = arith.constant 0 : index
      %43 = vector.load %arg6[%c0_22, %c0_23] : memref<512x128xbf16, #tpu.memory_space<vmem>>, vector<512x128xbf16>
      tpu.vector_store %arg6[%c0_22, %c0_23], %42 {strides = array<i32>} : memref<512x128xbf16, #tpu.memory_space<vmem>>, vector<512x128xbf16>,
    } else {
    }
    return
  }
  func.func @transform_0(%arg0: i32, %arg1: i32) -> (i32, i32) {
    %c0_i32 = arith.constant 0 : i32
    %c0_i32_0 = arith.constant 0 : i32
    return %c0_i32, %arg1 : i32, i32
  }
  func.func @transform_1(%arg0: i32, %arg1: i32) -> (i32, i32) {
    %c0_i32 = arith.constant 0 : i32
    return %arg1, %arg0 : i32, i32
  }
  func.func @transform_2(%arg0: i32, %arg1: i32) -> (i32, i32) {
    %c0_i32 = arith.constant 0 : i32
    %c0_i32_0 = arith.constant 0 : i32
    return %c0_i32, %arg0 : i32, i32
  }
  func.func @transform_3(%arg0: i32, %arg1: i32) -> (i32, i32) {
    %c0_i32 = arith.constant 0 : i32
    %c0_i32_0 = arith.constant 0 : i32
    return %c0_i32, %arg0 : i32, i32
  }
  func.func @transform_4(%arg0: i32, %arg1: i32) -> (i32, i32) {
    %c0_i32 = arith.constant 0 : i32
    %c0_i32_0 = arith.constant 0 : i32
    return %c0_i32, %arg0 : i32, i32
  }
}

module attributes {stable_mosaic.version = 11 : i64} {
  func.func @_matmul_bn_lrelu_kernel(%arg0: i32, %arg1: i32, %arg2: memref<128x512xbf16, #tpu.memory_space<vmem>>, %arg3: memref<512x128xbf16, #tpu.memory_space<vmem>>, %arg4: memref<1x128xf32, #tpu.memory_space<vmem>>, %arg5: memref<1x128xf32, #tpu.memory_space<vmem>>, %arg6: memref<128x128xbf16, #tpu.memory_space<vmem>>, %arg7: memref<128x128xf32, #tpu.memory_space<vmem>>) attributes {dimension_semantics = [#tpu.dimension_semantics<parallel>, #tpu.dimension_semantics<arbitrary>], iteration_bounds = array<i64: 2, 4>, scalar_prefetch = 0 : i64, scratch_operands = 1 : i64, tpu.core_type = #tpu.core_type<tc>, window_params = [{transform_indices = @transform_0, window_bounds = array<i64: 128, 512>}, {transform_indices = @transform_1, window_bounds = array<i64: 512, 128>}, {transform_indices = @transform_2, window_bounds = array<i64: 1, 128>}, {transform_indices = @transform_3, window_bounds = array<i64: 1, 128>}, {transform_indices = @transform_4, window_bounds = array<i64: 128, 128>}]} {
    %c0_i32 = arith.constant 0 : i32
    %0 = arith.cmpi eq, %arg1, %c0_i32 : i32
    %1 = arith.extui %0 : i1 to i32
    %c0_i32_0 = arith.constant 0 : i32
    %2 = arith.cmpi ne, %1, %c0_i32_0 : i32
    scf.if %2 {
      %cst_9 = arith.constant 0.000000e+00 : f32
      %12 = vector.broadcast %cst_9 : f32 to vector<128x128xf32>
      %c0_10 = arith.constant 0 : index
      %c0_11 = arith.constant 0 : index
      %13 = vector.load %arg7[%c0_10, %c0_11] : memref<128x128xf32, #tpu.memory_space<vmem>>, vector<128x128xf32>
      tpu.vector_store %arg7[%c0_10, %c0_11], %12 {strides = array<i32>} : memref<128x128xf32, #tpu.memory_space<vmem>>, vector<128x128xf32>,
    } else {
    }
    %c0 = arith.constant 0 : index
    %c0_1 = arith.constant 0 : index
    %3 = vector.load %arg7[%c0, %c0_1] : memref<128x128xf32, #tpu.memory_space<vmem>>, vector<128x128xf32>
    %c0_2 = arith.constant 0 : index
    %c0_3 = arith.constant 0 : index
    %4 = vector.load %arg2[%c0_2, %c0_3] : memref<128x512xbf16, #tpu.memory_space<vmem>>, vector<128x512xbf16>
    %c0_4 = arith.constant 0 : index
    %c0_5 = arith.constant 0 : index
    %5 = vector.load %arg3[%c0_4, %c0_5] : memref<512x128xbf16, #tpu.memory_space<vmem>>, vector<512x128xbf16>
    %cst = arith.constant dense<0.000000e+00> : vector<128x128xf32>
    %6 = tpu.matmul %4, %5, %cst {dimension_numbers = #tpu.dot_dimension_numbers<[1], [0], [0], [1], [0, 0, 1, 1], [], []>} : vector<128x512xbf16>, vector<512x128xbf16>, vector<128x128xf32> -> vector<128x128xf32>
    %7 = arith.addf %3, %6 : vector<128x128xf32>
    %c0_6 = arith.constant 0 : index
    %c0_7 = arith.constant 0 : index
    %8 = vector.load %arg7[%c0_6, %c0_7] : memref<128x128xf32, #tpu.memory_space<vmem>>, vector<128x128xf32>
    tpu.vector_store %arg7[%c0_6, %c0_7], %7 {strides = array<i32>} : memref<128x128xf32, #tpu.memory_space<vmem>>, vector<128x128xf32>,
    %c3_i32 = arith.constant 3 : i32
    %9 = arith.cmpi eq, %arg1, %c3_i32 : i32
    %10 = arith.extui %9 : i1 to i32
    %c0_i32_8 = arith.constant 0 : i32
    %11 = arith.cmpi ne, %10, %c0_i32_8 : i32
    scf.if %11 {
      %c0_9 = arith.constant 0 : index
      %c0_10 = arith.constant 0 : index
      %12 = vector.load %arg7[%c0_9, %c0_10] : memref<128x128xf32, #tpu.memory_space<vmem>>, vector<128x128xf32>
      %cst_11 = arith.constant dense<0.000000e+00> : vector<128xf32>
      %13 = vector.multi_reduction <add>, %12, %cst_11 [0] : vector<128x128xf32> to vector<128xf32>
      %14 = vector.shape_cast %13 : vector<128xf32> to vector<1x128xf32>
      %cst_12 = arith.constant 1.280000e+02 : f32
      %15 = vector.broadcast %cst_12 : f32 to vector<1x128xf32>
      %16 = arith.divf %14, %15 : vector<1x128xf32>
      %17 = vector.broadcast %16 : vector<1x128xf32> to vector<128x128xf32>
      %18 = arith.subf %12, %17 : vector<128x128xf32>
      %19 = arith.mulf %18, %18 : vector<128x128xf32>
      %cst_13 = arith.constant dense<0.000000e+00> : vector<128xf32>
      %20 = vector.multi_reduction <add>, %19, %cst_13 [0] : vector<128x128xf32> to vector<128xf32>
      %21 = vector.shape_cast %20 : vector<128xf32> to vector<1x128xf32>
      %cst_14 = arith.constant 1.280000e+02 : f32
      %22 = vector.broadcast %cst_14 : f32 to vector<1x128xf32>
      %23 = arith.divf %21, %22 : vector<1x128xf32>
      %24 = vector.broadcast %16 : vector<1x128xf32> to vector<128x128xf32>
      %25 = arith.subf %12, %24 : vector<128x128xf32>
      %cst_15 = arith.constant 9.99999974E-6 : f32
      %26 = vector.broadcast %cst_15 : f32 to vector<1x128xf32>
      %27 = arith.addf %23, %26 : vector<1x128xf32>
      %28 = math.rsqrt %27 : vector<1x128xf32>
      %29 = vector.broadcast %28 : vector<1x128xf32> to vector<128x128xf32>
      %30 = arith.mulf %25, %29 : vector<128x128xf32>
      %c0_16 = arith.constant 0 : index
      %c0_17 = arith.constant 0 : index
      %31 = vector.load %arg4[%c0_16, %c0_17] : memref<1x128xf32, #tpu.memory_space<vmem>>, vector<1x128xf32>
      %32 = vector.broadcast %31 : vector<1x128xf32> to vector<128x128xf32>
      %33 = arith.mulf %30, %32 : vector<128x128xf32>
      %c0_18 = arith.constant 0 : index
      %c0_19 = arith.constant 0 : index
      %34 = vector.load %arg5[%c0_18, %c0_19] : memref<1x128xf32, #tpu.memory_space<vmem>>, vector<1x128xf32>
      %35 = vector.broadcast %34 : vector<1x128xf32> to vector<128x128xf32>
      %36 = arith.addf %33, %35 : vector<128x128xf32>
      %cst_20 = arith.constant 0.000000e+00 : f32
      %37 = vector.broadcast %cst_20 : f32 to vector<128x128xf32>
      %38 = arith.cmpf ogt, %36, %37 : vector<128x128xf32>
      %cst_21 = arith.constant 2.000000e-01 : f32
      %39 = vector.broadcast %cst_21 : f32 to vector<128x128xf32>
      %40 = arith.mulf %39, %36 : vector<128x128xf32>
      %41 = arith.select %38, %36, %40 : vector<128x128xi1>, vector<128x128xf32>
      %42 = arith.truncf %41 : vector<128x128xf32> to vector<128x128xbf16>
      %c0_22 = arith.constant 0 : index
      %c0_23 = arith.constant 0 : index
      %43 = vector.load %arg6[%c0_22, %c0_23] : memref<128x128xbf16, #tpu.memory_space<vmem>>, vector<128x128xbf16>
      tpu.vector_store %arg6[%c0_22, %c0_23], %42 {strides = array<i32>} : memref<128x128xbf16, #tpu.memory_space<vmem>>, vector<128x128xbf16>,
    } else {
    }
    return
  }
  func.func @transform_0(%arg0: i32, %arg1: i32) -> (i32, i32) {
    %c0_i32 = arith.constant 0 : i32
    %c0_i32_0 = arith.constant 0 : i32
    return %c0_i32, %arg1 : i32, i32
  }
  func.func @transform_1(%arg0: i32, %arg1: i32) -> (i32, i32) {
    %c0_i32 = arith.constant 0 : i32
    return %arg1, %arg0 : i32, i32
  }
  func.func @transform_2(%arg0: i32, %arg1: i32) -> (i32, i32) {
    %c0_i32 = arith.constant 0 : i32
    %c0_i32_0 = arith.constant 0 : i32
    return %c0_i32, %arg0 : i32, i32
  }
  func.func @transform_3(%arg0: i32, %arg1: i32) -> (i32, i32) {
    %c0_i32 = arith.constant 0 : i32
    %c0_i32_0 = arith.constant 0 : i32
    return %c0_i32, %arg0 : i32, i32
  }
  func.func @transform_4(%arg0: i32, %arg1: i32) -> (i32, i32) {
    %c0_i32 = arith.constant 0 : i32
    %c0_i32_0 = arith.constant 0 : i32
    return %c0_i32, %arg0 : i32, i32
  }
}

module attributes {stable_mosaic.version = 11 : i64} {
  func.func @_matmul_bn_lrelu_head_softplus_kernel(%arg0: i32, %arg1: memref<32x1024xbf16, #tpu.memory_space<vmem>>, %arg2: memref<1024x512xbf16, #tpu.memory_space<vmem>>, %arg3: memref<1x512xf32, #tpu.memory_space<vmem>>, %arg4: memref<1x512xf32, #tpu.memory_space<vmem>>, %arg5: memref<16x512xbf16, #tpu.memory_space<vmem>>, %arg6: memref<2x1xf32, #tpu.memory_space<vmem>>, %arg7: memref<32x512xf32, #tpu.memory_space<vmem>>) attributes {dimension_semantics = [#tpu.dimension_semantics<arbitrary>], iteration_bounds = array<i64: 4>, scalar_prefetch = 0 : i64, scratch_operands = 1 : i64, tpu.core_type = #tpu.core_type<tc>, window_params = [{transform_indices = @transform_0, window_bounds = array<i64: 32, 1024>}, {transform_indices = @transform_1, window_bounds = array<i64: 1024, 512>}, {pipeline_mode = #tpu.pipeline_mode<synchronous>, transform_indices = @transform_2, window_bounds = array<i64: 1, 512>}, {pipeline_mode = #tpu.pipeline_mode<synchronous>, transform_indices = @transform_3, window_bounds = array<i64: 1, 512>}, {pipeline_mode = #tpu.pipeline_mode<synchronous>, transform_indices = @transform_4, window_bounds = array<i64: 16, 512>}, {pipeline_mode = #tpu.pipeline_mode<synchronous>, transform_indices = @transform_5, window_bounds = array<i64: 2, 1>}]} {
    %c0_i32 = arith.constant 0 : i32
    %0 = arith.cmpi eq, %arg0, %c0_i32 : i32
    %1 = arith.extui %0 : i1 to i32
    %c0_i32_0 = arith.constant 0 : i32
    %2 = arith.cmpi ne, %1, %c0_i32_0 : i32
    scf.if %2 {
      %cst_9 = arith.constant 0.000000e+00 : f32
      %12 = vector.broadcast %cst_9 : f32 to vector<32x512xf32>
      %c0_10 = arith.constant 0 : index
      %c0_11 = arith.constant 0 : index
      %13 = vector.load %arg7[%c0_10, %c0_11] : memref<32x512xf32, #tpu.memory_space<vmem>>, vector<32x512xf32>
      tpu.vector_store %arg7[%c0_10, %c0_11], %12 {strides = array<i32>} : memref<32x512xf32, #tpu.memory_space<vmem>>, vector<32x512xf32>,
    } else {
    }
    %c0 = arith.constant 0 : index
    %c0_1 = arith.constant 0 : index
    %3 = vector.load %arg7[%c0, %c0_1] : memref<32x512xf32, #tpu.memory_space<vmem>>, vector<32x512xf32>
    %c0_2 = arith.constant 0 : index
    %c0_3 = arith.constant 0 : index
    %4 = vector.load %arg1[%c0_2, %c0_3] : memref<32x1024xbf16, #tpu.memory_space<vmem>>, vector<32x1024xbf16>
    %c0_4 = arith.constant 0 : index
    %c0_5 = arith.constant 0 : index
    %5 = vector.load %arg2[%c0_4, %c0_5] : memref<1024x512xbf16, #tpu.memory_space<vmem>>, vector<1024x512xbf16>
    %cst = arith.constant dense<0.000000e+00> : vector<32x512xf32>
    %6 = tpu.matmul %4, %5, %cst {dimension_numbers = #tpu.dot_dimension_numbers<[1], [0], [0], [1], [0, 0, 1, 1], [], []>} : vector<32x1024xbf16>, vector<1024x512xbf16>, vector<32x512xf32> -> vector<32x512xf32>
    %7 = arith.addf %3, %6 : vector<32x512xf32>
    %c0_6 = arith.constant 0 : index
    %c0_7 = arith.constant 0 : index
    %8 = vector.load %arg7[%c0_6, %c0_7] : memref<32x512xf32, #tpu.memory_space<vmem>>, vector<32x512xf32>
    tpu.vector_store %arg7[%c0_6, %c0_7], %7 {strides = array<i32>} : memref<32x512xf32, #tpu.memory_space<vmem>>, vector<32x512xf32>,
    %c3_i32 = arith.constant 3 : i32
    %9 = arith.cmpi eq, %arg0, %c3_i32 : i32
    %10 = arith.extui %9 : i1 to i32
    %c0_i32_8 = arith.constant 0 : i32
    %11 = arith.cmpi ne, %10, %c0_i32_8 : i32
    scf.if %11 {
      %c0_9 = arith.constant 0 : index
      %c0_10 = arith.constant 0 : index
      %12 = vector.load %arg7[%c0_9, %c0_10] : memref<32x512xf32, #tpu.memory_space<vmem>>, vector<32x512xf32>
      %cst_11 = arith.constant dense<0.000000e+00> : vector<512xf32>
      %13 = vector.multi_reduction <add>, %12, %cst_11 [0] : vector<32x512xf32> to vector<512xf32>
      %14 = vector.shape_cast %13 : vector<512xf32> to vector<1x512xf32>
      %cst_12 = arith.constant 3.200000e+01 : f32
      %15 = vector.broadcast %cst_12 : f32 to vector<1x512xf32>
      %16 = arith.divf %14, %15 : vector<1x512xf32>
      %17 = vector.broadcast %16 : vector<1x512xf32> to vector<32x512xf32>
      %18 = arith.subf %12, %17 : vector<32x512xf32>
      %19 = arith.mulf %18, %18 : vector<32x512xf32>
      %cst_13 = arith.constant dense<0.000000e+00> : vector<512xf32>
      %20 = vector.multi_reduction <add>, %19, %cst_13 [0] : vector<32x512xf32> to vector<512xf32>
      %21 = vector.shape_cast %20 : vector<512xf32> to vector<1x512xf32>
      %cst_14 = arith.constant 3.200000e+01 : f32
      %22 = vector.broadcast %cst_14 : f32 to vector<1x512xf32>
      %23 = arith.divf %21, %22 : vector<1x512xf32>
      %24 = vector.broadcast %16 : vector<1x512xf32> to vector<32x512xf32>
      %25 = arith.subf %12, %24 : vector<32x512xf32>
      %cst_15 = arith.constant 9.99999974E-6 : f32
      %26 = vector.broadcast %cst_15 : f32 to vector<1x512xf32>
      %27 = arith.addf %23, %26 : vector<1x512xf32>
      %28 = math.rsqrt %27 : vector<1x512xf32>
      %29 = vector.broadcast %28 : vector<1x512xf32> to vector<32x512xf32>
      %30 = arith.mulf %25, %29 : vector<32x512xf32>
      %c0_16 = arith.constant 0 : index
      %c0_17 = arith.constant 0 : index
      %31 = vector.load %arg3[%c0_16, %c0_17] : memref<1x512xf32, #tpu.memory_space<vmem>>, vector<1x512xf32>
      %32 = vector.broadcast %31 : vector<1x512xf32> to vector<32x512xf32>
      %33 = arith.mulf %30, %32 : vector<32x512xf32>
      %c0_18 = arith.constant 0 : index
      %c0_19 = arith.constant 0 : index
      %34 = vector.load %arg4[%c0_18, %c0_19] : memref<1x512xf32, #tpu.memory_space<vmem>>, vector<1x512xf32>
      %35 = vector.broadcast %34 : vector<1x512xf32> to vector<32x512xf32>
      %36 = arith.addf %33, %35 : vector<32x512xf32>
      %cst_20 = arith.constant 0.000000e+00 : f32
      %37 = vector.broadcast %cst_20 : f32 to vector<32x512xf32>
      %38 = arith.cmpf ogt, %36, %37 : vector<32x512xf32>
      %cst_21 = arith.constant 2.000000e-01 : f32
      %39 = vector.broadcast %cst_21 : f32 to vector<32x512xf32>
      %40 = arith.mulf %39, %36 : vector<32x512xf32>
      %41 = arith.select %38, %36, %40 : vector<32x512xi1>, vector<32x512xf32>
      %42 = vector.shape_cast %41 : vector<32x512xf32> to vector<2x16x512xf32>
      %c0_22 = arith.constant 0 : index
      %c0_23 = arith.constant 0 : index
      %43 = vector.load %arg5[%c0_22, %c0_23] : memref<16x512xbf16, #tpu.memory_space<vmem>>, vector<16x512xbf16>
      %44 = arith.extf %43 : vector<16x512xbf16> to vector<16x512xf32>
      %45 = vector.shape_cast %44 : vector<16x512xf32> to vector<1x16x512xf32>
      %46 = vector.broadcast %45 : vector<1x16x512xf32> to vector<2x16x512xf32>
      %47 = arith.mulf %42, %46 : vector<2x16x512xf32>
      %cst_24 = arith.constant dense<0.000000e+00> : vector<2x16xf32>
      %48 = vector.multi_reduction <add>, %47, %cst_24 [2] : vector<2x16x512xf32> to vector<2x16xf32>
      %cst_25 = arith.constant dense<0.000000e+00> : vector<2xf32>
      %49 = vector.multi_reduction <add>, %48, %cst_25 [1] : vector<2x16xf32> to vector<2xf32>
      %50 = vector.shape_cast %49 : vector<2xf32> to vector<2x1xf32>
      %cst_26 = arith.constant 0.000000e+00 : f32
      %51 = vector.broadcast %cst_26 : f32 to vector<2x1xf32>
      %52 = arith.maximumf %50, %51 : vector<2x1xf32>
      %53 = math.absf %50 : vector<2x1xf32>
      %cst_27 = arith.constant 0.000000e+00 : f32
      %54 = vector.broadcast %cst_27 : f32 to vector<2x1xf32>
      %55 = arith.subf %54, %53 : vector<2x1xf32>
      %56 = math.exp %55 : vector<2x1xf32>
      %cst_28 = arith.constant 1.000000e+00 : f32
      %57 = vector.broadcast %cst_28 : f32 to vector<2x1xf32>
      %58 = arith.addf %57, %56 : vector<2x1xf32>
      %59 = math.log %58 : vector<2x1xf32>
      %60 = arith.addf %52, %59 : vector<2x1xf32>
      %c0_29 = arith.constant 0 : index
      %c0_30 = arith.constant 0 : index
      %61 = vector.load %arg6[%c0_29, %c0_30] : memref<2x1xf32, #tpu.memory_space<vmem>>, vector<2x1xf32>
      tpu.vector_store %arg6[%c0_29, %c0_30], %60 {strides = array<i32>} : memref<2x1xf32, #tpu.memory_space<vmem>>, vector<2x1xf32>,
    } else {
    }
    return
  }
  func.func @transform_0(%arg0: i32) -> (i32, i32) {
    %c0_i32 = arith.constant 0 : i32
    %c0_i32_0 = arith.constant 0 : i32
    return %c0_i32, %arg0 : i32, i32
  }
  func.func @transform_1(%arg0: i32) -> (i32, i32) {
    %c0_i32 = arith.constant 0 : i32
    %c0_i32_0 = arith.constant 0 : i32
    return %arg0, %c0_i32 : i32, i32
  }
  func.func @transform_2(%arg0: i32) -> (i32, i32) {
    %c0_i32 = arith.constant 0 : i32
    %c0_i32_0 = arith.constant 0 : i32
    %c0_i32_1 = arith.constant 0 : i32
    return %c0_i32, %c0_i32_0 : i32, i32
  }
  func.func @transform_3(%arg0: i32) -> (i32, i32) {
    %c0_i32 = arith.constant 0 : i32
    %c0_i32_0 = arith.constant 0 : i32
    %c0_i32_1 = arith.constant 0 : i32
    return %c0_i32, %c0_i32_0 : i32, i32
  }
  func.func @transform_4(%arg0: i32) -> (i32, i32) {
    %c0_i32 = arith.constant 0 : i32
    %c0_i32_0 = arith.constant 0 : i32
    %c0_i32_1 = arith.constant 0 : i32
    return %c0_i32, %c0_i32_0 : i32, i32
  }
  func.func @transform_5(%arg0: i32) -> (i32, i32) {
    %c0_i32 = arith.constant 0 : i32
    %c0_i32_0 = arith.constant 0 : i32
    %c0_i32_1 = arith.constant 0 : i32
    return %c0_i32, %c0_i32_0 : i32, i32
  }
}

</mosaic_0001>

<llo_original>
// kernel: net_d_forward.4
$region0: #{net_d_forward.4}
  #allocation0 [shape = 'u32[]', space=smem, size = 0x4, offset = 0x4, fixed_abs, tag = 'smem constant byte address 0x4 - core index']
  #allocation1 [shape = 'u32[72,128]{1,0:T(1,128)}', space=vmem, size = 0x9000, scoped, tag = 'internal scratch']
  %s0 = inlined_call_operand.vmem [shape: bf16[2048,128], index: 0, kind: input, shape index: {}]
  %s1 = inlined_call_operand.vmem [shape: bf16[128,64], index: 1, kind: input, shape index: {}]
  %s2 = inlined_call_operand.vmem [shape: bf16[2048,64], index: 2, kind: output, shape index: {}]
  %s3 = sld [smem:[#allocation0]]
  $region41: #{net_d_forward.4} parent=0
    _
  %s5 = ssub.s32 1, %s3
  %s6 = scalar_select 0, %s5, %s3
  loop: start=0, step=1, limit=6
  $region2: #{net_d_forward.4} parent=0 // loop_pre_header
    _
  $region3: #{net_d_forward.4} parent=0 // loop_header
    %s8 = sphi 0, %s12
    %p9 = scmp.ge.s32.totalorder %s8, 6
    %s18 = sphi 0, %s20
    %s21 = sphi 0, %s18
    %s22 = sphi 0, %s21
    %s38 = sphi 0, %s22
    %s42 = sphi 0, %s42
    %s44 = sphi 0, %s42
    %s45 = sphi 0, %s44
    %s59 = sphi 0, %s45
    %s65 = sphi 0, %s67
    %s68 = sphi 0, %s65
    %s69 = sphi 0, %s68
    %s85 = sphi 0, %s69
  $region4: #{net_d_forward.4} parent=0 // loop_header_branch
    %11 = sbr.rel (%p9) target = $region8
  $region5: #{net_d_forward.4} parent=0 // loop_body
    %s13 = ssub.s32 %s8, 1
    %s14 = ssub.s32 %s8, 2
    %s15 = sadd.s32 %s8, 1
    %s16 = ssub.s32 %s8, %s15
    %p17 = scmp.eq.s32.totalorder %s16, 0
    %s19 = sadd.s32 %s18, 1
    %s20 = scalar_select %p17, %s18, %s19
    %p23 = pneg %p17
    %p24 = scmp.eq.s32.totalorder %s8, 3
    %p25 = por %p23, %p24
    %p26 = scmp.ne.s32.totalorder %s18, %s21
    %p27 = scmp.eq.s32.totalorder %s8, 0
    %p28 = por %p26, %p27
    %p29 = scmp.ne.s32.totalorder %s18, %s21
    %p30 = scmp.eq.s32.totalorder %s13, 3
    %p31 = por %p29, %p30
    %p32 = scmp.ne.s32.totalorder %s21, %s22
    %p33 = scmp.eq.s32.totalorder %s13, 0
    %p34 = por %p32, %p33
    %p35 = scmp.ne.s32.totalorder %s21, %s22
    %p36 = scmp.eq.s32.totalorder %s14, 3
    %p37 = por %p35, %p36
    %p39 = scmp.ne.s32.totalorder %s22, %s38
    %p40 = scmp.eq.s32.totalorder %s14, 0
    %p41 = por %p39, %p40
    %s43 = sadd.s32 %s42, 1
    %p46 = scmp.eq.s32.totalorder %s8, 3
    %p47 = scmp.ne.s32.totalorder %s42, %s44
    %p48 = scmp.eq.s32.totalorder %s8, 0
    %p49 = por %p47, %p48
    %p50 = scmp.ne.s32.totalorder %s42, %s44
    %p51 = scmp.eq.s32.totalorder %s13, 3
    %p52 = por %p50, %p51
    %p53 = scmp.ne.s32.totalorder %s44, %s45
    %p54 = scmp.eq.s32.totalorder %s13, 0
    %p55 = por %p53, %p54
    %p56 = scmp.ne.s32.totalorder %s44, %s45
    %p57 = scmp.eq.s32.totalorder %s14, 3
    %p58 = por %p56, %p57
    %p60 = scmp.ne.s32.totalorder %s45, %s59
    %p61 = scmp.eq.s32.totalorder %s14, 0
    %p62 = por %p60, %p61
    %s63 = ssub.s32 %s8, %s15
    %p64 = scmp.eq.s32.totalorder %s63, 0
    %s66 = sadd.s32 %s65, 1
    %s67 = scalar_select %p64, %s65, %s66
    %p70 = pneg %p64
    %p71 = scmp.eq.s32.totalorder %s8, 3
    %p72 = por %p70, %p71
    %p73 = scmp.ne.s32.totalorder %s65, %s68
    %p74 = scmp.eq.s32.totalorder %s8, 0
    %p75 = por %p73, %p74
    %p76 = scmp.ne.s32.totalorder %s65, %s68
    %p77 = scmp.eq.s32.totalorder %s13, 3
    %p78 = por %p76, %p77
    %p79 = scmp.ne.s32.totalorder %s68, %s69
    %p80 = scmp.eq.s32.totalorder %s13, 0
    %p81 = por %p79, %p80
    %p82 = scmp.ne.s32.totalorder %s68, %s69
    %p83 = scmp.eq.s32.totalorder %s14, 3
    %p84 = por %p82, %p83
    %p86 = scmp.ne.s32.totalorder %s69, %s85
    %p87 = scmp.eq.s32.totalorder %s14, 0
    %p88 = por %p86, %p87
    %p89 = scmp.le.s32.totalorder 1, %s8
    %p90 = scmp.lt.s32.totalorder %s8, 5
    %p91 = pnand %p89, %p90
    %p92 = pneg %p91
    // Predicated region
    $region9: #{net_d_forward.4} parent=5 // pred_check
      _
    $region10: #{net_d_forward.4} parent=5 // pred_check_branch
      %94 = sbr.rel (%p91) target = $region12
    $region11: #{net_d_forward.4} parent=5 // pred_region
      %s95 = ssub.s32 %s8, 1
      // Predicated region
      $region13: #{net_d_forward.4} parent=11 // pred_check
        %p96 = pneg %p55
      $region14: #{net_d_forward.4} parent=11 // pred_check_branch
        %98 = sbr.rel (%p96) target = $region16
      $region15: #{net_d_forward.4} parent=11 // pred_region
        _
      $region16: #{net_d_forward.4} parent=11 // pred_fallthru
        _
    $region12: #{net_d_forward.4} parent=5 // pred_fallthru
      _
    %p99 = scmp.lt.s32.totalorder %s8, 4
    // Predicated region
    $region17: #{net_d_forward.4} parent=5 // pred_check
      %p100 = pneg %p99
    $region18: #{net_d_forward.4} parent=5 // pred_check_branch
      %102 = sbr.rel (%p100) target = $region20
    $region19: #{net_d_forward.4} parent=5 // pred_region
      // Predicated region
      $region21: #{net_d_forward.4} parent=19 // pred_check
        %p103 = pneg %p28
      $region22: #{net_d_forward.4} parent=19 // pred_check_branch
        %105 = sbr.rel (%p103) target = $region24
      $region23: #{net_d_forward.4} parent=19 // pred_region
        %s106 = smul.u32 64, %s8
        %p107 = scmp.lt.s32.totalorder %s106, 255
        %s108 = scalar_select %p107, %s106, 255
        %s109 = smul.addr %s108, 4
        %s110 = scalar_lea.vmem %s0, %s109
        %s111 = smul.u32 64, %s8
      $region24: #{net_d_forward.4} parent=19 // pred_fallthru
        _
    $region20: #{net_d_forward.4} parent=5 // pred_fallthru
      _
    %p112 = scmp.le.s32.totalorder 1, %s8
    %p113 = scmp.lt.s32.totalorder %s8, 5
    %p114 = pnand %p112, %p113
    %p115 = pneg %p114
    // Predicated region
    $region25: #{net_d_forward.4} parent=5 // pred_check
      _
    $region26: #{net_d_forward.4} parent=5 // pred_check_branch
      %117 = sbr.rel (%p114) target = $region28
    $region27: #{net_d_forward.4} parent=5 // pred_region
      %s118 = ssub.s32 %s8, 1
      %s119 = smul.u32 64, %s13
      %p120 = scmp.lt.s32.totalorder %s119, 255
      %s121 = scalar_select %p120, %s119, 255
      %s122 = smul.addr %s121, 4
      %s123 = scalar_lea.vmem %s0, %s122
      %p124 = pneg %p34
      %p125 = pneg %p31
      %p126 = pneg %p55
      %p127 = pneg %p52
      %p128 = pneg %p81
      %p129 = pneg %p78
      %s130 = smul.u32 64, %s13
      %p131 = scmp.lt.s32.totalorder %s130, 255
      %s132 = scalar_select %p131, %s130, 255
      %s133 = smul.addr %s132, 4
      %s134 = scalar_lea.vmem %s2, %s133
      %s135 = smul.u32 64, %s13
      %p136 = scmp.lt.s32.totalorder %s135, 255
      %s137 = scalar_select %p136, %s135, 255
      %s138 = smul.addr %s137, 4
      %s139 = scalar_lea.vmem %s0, %s138
      %s140 = smul.u32 64, %s13
      %s141 = smul.u32 64, %s13
      %p142 = scmp.lt.s32.totalorder %s141, 255
      %s143 = scalar_select %p142, %s141, 255
      %s144 = smul.addr %s143, 4
      %s145 = scalar_lea.vmem %s2, %s144
      %s146 = smul.u32 64, %s13
      %v147 = vld [vmem:[%s139] sm:$0xf]
      %v148 = vld [vmem:[%s139 + $0x4] sm:$0xf]
      %v149 = vld [vmem:[%s139 + $0x8] sm:$0xf]
      %v150 = vld [vmem:[%s139 + $0xc] sm:$0xf]
      %v151 = vld [vmem:[%s139 + $0x10] sm:$0xf]
      %v152 = vld [vmem:[%s139 + $0x14] sm:$0xf]
      %v153 = vld [vmem:[%s139 + $0x18] sm:$0xf]
      %v154 = vld [vmem:[%s139 + $0x1c] sm:$0xf]
      %v155 = vld [vmem:[%s139 + $0x20] sm:$0xf]
      %v156 = vld [vmem:[%s139 + $0x24] sm:$0xf]
      %v157 = vld [vmem:[%s139 + $0x28] sm:$0xf]
      %v158 = vld [vmem:[%s139 + $0x2c] sm:$0xf]
      %v159 = vld [vmem:[%s139 + $0x30] sm:$0xf]
      %v160 = vld [vmem:[%s139 + $0x34] sm:$0xf]
      %v161 = vld [vmem:[%s139 + $0x38] sm:$0xf]
      %v162 = vld [vmem:[%s139 + $0x3c] sm:$0xf]
      %v163 = vld [vmem:[%s139 + $0x40] sm:$0xf]
      %v164 = vld [vmem:[%s139 + $0x44] sm:$0xf]
      %v165 = vld [vmem:[%s139 + $0x48] sm:$0xf]
      %v166 = vld [vmem:[%s139 + $0x4c] sm:$0xf]
      %v167 = vld [vmem:[%s139 + $0x50] sm:$0xf]
      %v168 = vld [vmem:[%s139 + $0x54] sm:$0xf]
      %v169 = vld [vmem:[%s139 + $0x58] sm:$0xf]
      %v170 = vld [vmem:[%s139 + $0x5c] sm:$0xf]
      %v171 = vld [vmem:[%s139 + $0x60] sm:$0xf]
      %v172 = vld [vmem:[%s139 + $0x64] sm:$0xf]
      %v173 = vld [vmem:[%s139 + $0x68] sm:$0xf]
      %v174 = vld [vmem:[%s139 + $0x6c] sm:$0xf]
      %v175 = vld [vmem:[%s139 + $0x70] sm:$0xf]
      %v176 = vld [vmem:[%s139 + $0x74] sm:$0xf]
      %v177 = vld [vmem:[%s139 + $0x78] sm:$0xf]
      %v178 = vld [vmem:[%s139 + $0x7c] sm:$0xf]
      %v179 = vld [vmem:[%s139 + $0x80] sm:$0xf]
      %v180 = vld [vmem:[%s139 + $0x84] sm:$0xf]
      %v181 = vld [vmem:[%s139 + $0x88] sm:$0xf]
      %v182 = vld [vmem:[%s139 + $0x8c] sm:$0xf]
      %v183 = vld [vmem:[%s139 + $0x90] sm:$0xf]
      %v184 = vld [vmem:[%s139 + $0x94] sm:$0xf]
      %v185 = vld [vmem:[%s139 + $0x98] sm:$0xf]
      %v186 = vld [vmem:[%s139 + $0x9c] sm:$0xf]
      %v187 = vld [vmem:[%s139 + $0xa0] sm:$0xf]
      %v188 = vld [vmem:[%s139 + $0xa4] sm:$0xf]
      %v189 = vld [vmem:[%s139 + $0xa8] sm:$0xf]
      %v190 = vld [vmem:[%s139 + $0xac] sm:$0xf]
      %v191 = vld [vmem:[%s139 + $0xb0] sm:$0xf]
      %v192 = vld [vmem:[%s139 + $0xb4] sm:$0xf]
      %v193 = vld [vmem:[%s139 + $0xb8] sm:$0xf]
      %v194 = vld [vmem:[%s139 + $0xbc] sm:$0xf]
      %v195 = vld [vmem:[%s139 + $0xc0] sm:$0xf]
      %v196 = vld [vmem:[%s139 + $0xc4] sm:$0xf]
      %v197 = vld [vmem:[%s139 + $0xc8] sm:$0xf]
      %v198 = vld [vmem:[%s139 + $0xcc] sm:$0xf]
      %v199 = vld [vmem:[%s139 + $0xd0] sm:$0xf]
      %v200 = vld [vmem:[%s139 + $0xd4] sm:$0xf]
      %v201 = vld [vmem:[%s139 + $0xd8] sm:$0xf]
      %v202 = vld [vmem:[%s139 + $0xdc] sm:$0xf]
      %v203 = vld [vmem:[%s139 + $0xe0] sm:$0xf]
      %v204 = vld [vmem:[%s139 + $0xe4] sm:$0xf]
      %v205 = vld [vmem:[%s139 + $0xe8] sm:$0xf]
      %v206 = vld [vmem:[%s139 + $0xec] sm:$0xf]
      %v207 = vld [vmem:[%s139 + $0xf0] sm:$0xf]
      %v208 = vld [vmem:[%s139 + $0xf4] sm:$0xf]
      %v209 = vld [vmem:[%s139 + $0xf8] sm:$0xf]
      %v210 = vld [vmem:[%s139 + $0xfc] sm:$0xf]
      %v211 = vld [vmem:[%s1] sm:$0xf]
      %v212 = vld [vmem:[%s1 + $0x4] sm:$0xf]
      %v213 = vld [vmem:[%s1 + $0x8] sm:$0xf]
      %v214 = vld [vmem:[%s1 + $0xc] sm:$0xf]
      %v215 = vld [vmem:[%s1 + $0x10] sm:$0xf]
      %v216 = vld [vmem:[%s1 + $0x14] sm:$0xf]
      %v217 = vld [vmem:[%s1 + $0x18] sm:$0xf]
      %v218 = vld [vmem:[%s1 + $0x1c] sm:$0xf]
      %v219 = vld [vmem:[%s1 + $0x20] sm:$0xf]
      %v220 = vld [vmem:[%s1 + $0x24] sm:$0xf]
      %v221 = vld [vmem:[%s1 + $0x28] sm:$0xf]
      %v222 = vld [vmem:[%s1 + $0x2c] sm:$0xf]
      %v223 = vld [vmem:[%s1 + $0x30] sm:$0xf]
      %v224 = vld [vmem:[%s1 + $0x34] sm:$0xf]
      %v225 = vld [vmem:[%s1 + $0x38] sm:$0xf]
      %v226 = vld [vmem:[%s1 + $0x3c] sm:$0xf]
      %v291 = vunpack.c.l.b16 %v147
      %v292 = vunpack.c.l.b16 %v148
      %v293 = vunpack.c.l.b16 %v149
      %v294 = vunpack.c.l.b16 %v150
      %v295 = vunpack.c.l.b16 %v151
      %v296 = vunpack.c.l.b16 %v152
      %v297 = vunpack.c.l.b16 %v153
      %v298 = vunpack.c.l.b16 %v154
      %v299 = vunpack.c.l.b16 %v155
      %v300 = vunpack.c.l.b16 %v156
      %v301 = vunpack.c.l.b16 %v157
      %v302 = vunpack.c.l.b16 %v158
      %v303 = vunpack.c.l.b16 %v159
      %v304 = vunpack.c.l.b16 %v160
      %v305 = vunpack.c.l.b16 %v161
      %v306 = vunpack.c.l.b16 %v162
      %v307 = vunpack.c.l.b16 %v163
      %v308 = vunpack.c.l.b16 %v164
      %v309 = vunpack.c.l.b16 %v165
      %v310 = vunpack.c.l.b16 %v166
      %v311 = vunpack.c.l.b16 %v167
      %v312 = vunpack.c.l.b16 %v168
      %v313 = vunpack.c.l.b16 %v169
      %v314 = vunpack.c.l.b16 %v170
      %v315 = vunpack.c.l.b16 %v171
      %v316 = vunpack.c.l.b16 %v172
      %v317 = vunpack.c.l.b16 %v173
      %v318 = vunpack.c.l.b16 %v174
      %v319 = vunpack.c.l.b16 %v175
      %v320 = vunpack.c.l.b16 %v176
      %v321 = vunpack.c.l.b16 %v177
      %v322 = vunpack.c.l.b16 %v178
      %v323 = vunpack.c.l.b16 %v179
      %v324 = vunpack.c.l.b16 %v180
      %v325 = vunpack.c.l.b16 %v181
      %v326 = vunpack.c.l.b16 %v182
      %v327 = vunpack.c.l.b16 %v183
      %v328 = vunpack.c.l.b16 %v184
      %v329 = vunpack.c.l.b16 %v185
      %v330 = vunpack.c.l.b16 %v186
      %v331 = vunpack.c.l.b16 %v187
      %v332 = vunpack.c.l.b16 %v188
      %v333 = vunpack.c.l.b16 %v189
      %v334 = vunpack.c.l.b16 %v190
      %v335 = vunpack.c.l.b16 %v191
      %v336 = vunpack.c.l.b16 %v192
      %v337 = vunpack.c.l.b16 %v193
      %v338 = vunpack.c.l.b16 %v194
      %v339 = vunpack.c.l.b16 %v195
      %v340 = vunpack.c.l.b16 %v196
      %v341 = vunpack.c.l.b16 %v197
      %v342 = vunpack.c.l.b16 %v198
      %v343 = vunpack.c.l.b16 %v199
      %v344 = vunpack.c.l.b16 %v200
      %v345 = vunpack.c.l.b16 %v201
      %v346 = vunpack.c.l.b16 %v202
      %v347 = vunpack.c.l.b16 %v203
      %v348 = vunpack.c.l.b16 %v204
      %v349 = vunpack.c.l.b16 %v205
      %v350 = vunpack.c.l.b16 %v206
      %v351 = vunpack.c.l.b16 %v207
      %v352 = vunpack.c.l.b16 %v208
      %v353 = vunpack.c.l.b16 %v209
      %v354 = vunpack.c.l.b16 %v210
      %v355 = vpack.c.b16 %v292, %v291
      %v356 = vpack.c.b16 %v294, %v293
      %v357 = vpack.c.b16 %v296, %v295
      %v358 = vpack.c.b16 %v298, %v297
      %v359 = vpack.c.b16 %v300, %v299
      %v360 = vpack.c.b16 %v302, %v301
      %v361 = vpack.c.b16 %v304, %v303
      %v362 = vpack.c.b16 %v306, %v305
      %v363 = vpack.c.b16 %v308, %v307
      %v364 = vpack.c.b16 %v310, %v309
      %v365 = vpack.c.b16 %v312, %v311
      %v366 = vpack.c.b16 %v314, %v313
      %v367 = vpack.c.b16 %v316, %v315
      %v368 = vpack.c.b16 %v318, %v317
      %v369 = vpack.c.b16 %v320, %v319
      %v370 = vpack.c.b16 %v322, %v321
      %v371 = vpack.c.b16 %v324, %v323
      %v372 = vpack.c.b16 %v326, %v325
      %v373 = vpack.c.b16 %v328, %v327
      %v374 = vpack.c.b16 %v330, %v329
      %v375 = vpack.c.b16 %v332, %v331
      %v376 = vpack.c.b16 %v334, %v333
      %v377 = vpack.c.b16 %v336, %v335
      %v378 = vpack.c.b16 %v338, %v337
      %v379 = vpack.c.b16 %v340, %v339
      %v380 = vpack.c.b16 %v342, %v341
      %v381 = vpack.c.b16 %v344, %v343
      %v382 = vpack.c.b16 %v346, %v345
      %v383 = vpack.c.b16 %v348, %v347
      %v384 = vpack.c.b16 %v350, %v349
      %v385 = vpack.c.b16 %v352, %v351
      %v386 = vpack.c.b16 %v354, %v353
      %v435 = vunpack.c.l.b16 %v211
      %v436 = vunpack.c.l.b16 %v212
      %v437 = vunpack.c.l.b16 %v213
      %v438 = vunpack.c.l.b16 %v214
      %v439 = vunpack.c.l.b16 %v215
      %v440 = vunpack.c.l.b16 %v216
      %v441 = vunpack.c.l.b16 %v217
      %v442 = vunpack.c.l.b16 %v218
      %v443 = vunpack.c.l.b16 %v219
      %v444 = vunpack.c.l.b16 %v220
      %v445 = vunpack.c.l.b16 %v221
      %v446 = vunpack.c.l.b16 %v222
      %v447 = vunpack.c.l.b16 %v223
      %v448 = vunpack.c.l.b16 %v224
      %v449 = vunpack.c.l.b16 %v225
      %v450 = vunpack.c.l.b16 %v226
      %v451 = vpack.c.b16 %v436, %v435
      %v452 = vpack.c.b16 %v438, %v437
      %v453 = vpack.c.b16 %v440, %v439
      %v454 = vpack.c.b16 %v442, %v441
      %v455 = vpack.c.b16 %v444, %v443
      %v456 = vpack.c.b16 %v446, %v445
      %v457 = vpack.c.b16 %v448, %v447
      %v458 = vpack.c.b16 %v450, %v449
      %467 = vmatpush.bf16.msra.mxu0 %v458
      %468 = vmatpush.bf16.msra.mxu0 %v457
      %469 = vmatpush.bf16.msra.mxu0 %v456
      %470 = vmatpush.bf16.msra.mxu0 %v455
      %471 = vmatpush.bf16.msra.mxu0 %v454
      %472 = vmatpush.bf16.msra.mxu0 %v453
      %473 = vmatpush.bf16.msra.mxu0 %v452
      %474 = vmatpush.bf16.msra.mxu0 %v451
      %475 = vmatmul.bf16.gmra.mxu0 %v355
      %v476 = vpop.f32.mrf.mxu0
      %v477 = vadd.f32 0.0, %v476
      %v478 = vpop.f32.mrf.mxu0
      %v479 = vadd.f32 0.0, %v478
      %480 = vmatmul.bf16.gmra.mxu0 %v356
      %v481 = vpop.f32.mrf.mxu0
      %v482 = vadd.f32 0.0, %v481
      %v483 = vpop.f32.mrf.mxu0
      %v484 = vadd.f32 0.0, %v483
      %485 = vmatmul.bf16.gmra.mxu0 %v357
      %v486 = vpop.f32.mrf.mxu0
      %v487 = vadd.f32 0.0, %v486
      %v488 = vpop.f32.mrf.mxu0
      %v489 = vadd.f32 0.0, %v488
      %490 = vmatmul.bf16.gmra.mxu0 %v358
      %v491 = vpop.f32.mrf.mxu0
      %v492 = vadd.f32 0.0, %v491
      %v493 = vpop.f32.mrf.mxu0
      %v494 = vadd.f32 0.0, %v493
      %495 = vmatmul.bf16.gmra.mxu0 %v359
      %v496 = vpop.f32.mrf.mxu0
      %v497 = vadd.f32 0.0, %v496
      %v498 = vpop.f32.mrf.mxu0
      %v499 = vadd.f32 0.0, %v498
      %500 = vmatmul.bf16.gmra.mxu0 %v360
      %v501 = vpop.f32.mrf.mxu0
      %v502 = vadd.f32 0.0, %v501
      %v503 = vpop.f32.mrf.mxu0
      %v504 = vadd.f32 0.0, %v503
      %505 = vmatmul.bf16.gmra.mxu0 %v361
      %v506 = vpop.f32.mrf.mxu0
      %v507 = vadd.f32 0.0, %v506
      %v508 = vpop.f32.mrf.mxu0
      %v509 = vadd.f32 0.0, %v508
      %510 = vmatmul.bf16.gmra.mxu0 %v362
      %v511 = vpop.f32.mrf.mxu0
      %v512 = vadd.f32 0.0, %v511
      %v513 = vpop.f32.mrf.mxu0
      %v514 = vadd.f32 0.0, %v513
      %515 = vmatmul.bf16.gmra.mxu0 %v363
      %v516 = vpop.f32.mrf.mxu0
      %v517 = vadd.f32 0.0, %v516
      %v518 = vpop.f32.mrf.mxu0
      %v519 = vadd.f32 0.0, %v518
      %520 = vmatmul.bf16.gmra.mxu0 %v364
      %v521 = vpop.f32.mrf.mxu0
      %v522 = vadd.f32 0.0, %v521
      %v523 = vpop.f32.mrf.mxu0
      %v524 = vadd.f32 0.0, %v523
      %525 = vmatmul.bf16.gmra.mxu0 %v365
      %v526 = vpop.f32.mrf.mxu0
      %v527 = vadd.f32 0.0, %v526
      %v528 = vpop.f32.mrf.mxu0
      %v529 = vadd.f32 0.0, %v528
      %530 = vmatmul.bf16.gmra.mxu0 %v366
      %v531 = vpop.f32.mrf.mxu0
      %v532 = vadd.f32 0.0, %v531
      %v533 = vpop.f32.mrf.mxu0
      %v534 = vadd.f32 0.0, %v533
      %535 = vmatmul.bf16.gmra.mxu0 %v367
      %v536 = vpop.f32.mrf.mxu0
      %v537 = vadd.f32 0.0, %v536
      %v538 = vpop.f32.mrf.mxu0
      %v539 = vadd.f32 0.0, %v538
      %540 = vmatmul.bf16.gmra.mxu0 %v368
      %v541 = vpop.f32.mrf.mxu0
      %v542 = vadd.f32 0.0, %v541
      %v543 = vpop.f32.mrf.mxu0
      %v544 = vadd.f32 0.0, %v543
      %545 = vmatmul.bf16.gmra.mxu0 %v369
      %v546 = vpop.f32.mrf.mxu0
      %v547 = vadd.f32 0.0, %v546
      %v548 = vpop.f32.mrf.mxu0
      %v549 = vadd.f32 0.0, %v548
      %550 = vmatmul.bf16.gmra.mxu0 %v370
      %v551 = vpop.f32.mrf.mxu0
      %v552 = vadd.f32 0.0, %v551
      %v553 = vpop.f32.mrf.mxu0
      %v554 = vadd.f32 0.0, %v553
      %555 = vmatmul.bf16.gmra.mxu0 %v371
      %v556 = vpop.f32.mrf.mxu0
      %v557 = vadd.f32 0.0, %v556
      %v558 = vpop.f32.mrf.mxu0
      %v559 = vadd.f32 0.0, %v558
      %560 = vmatmul.bf16.gmra.mxu0 %v372
      %v561 = vpop.f32.mrf.mxu0
      %v562 = vadd.f32 0.0, %v561
      %v563 = vpop.f32.mrf.mxu0
      %v564 = vadd.f32 0.0, %v563
      %565 = vmatmul.bf16.gmra.mxu0 %v373
      %v566 = vpop.f32.mrf.mxu0
      %v567 = vadd.f32 0.0, %v566
      %v568 = vpop.f32.mrf.mxu0
      %v569 = vadd.f32 0.0, %v568
      %570 = vmatmul.bf16.gmra.mxu0 %v374
      %v571 = vpop.f32.mrf.mxu0
      %v572 = vadd.f32 0.0, %v571
      %v573 = vpop.f32.mrf.mxu0
      %v574 = vadd.f32 0.0, %v573
      %575 = vmatmul.bf16.gmra.mxu0 %v375
      %v576 = vpop.f32.mrf.mxu0
      %v577 = vadd.f32 0.0, %v576
      %v578 = vpop.f32.mrf.mxu0
      %v579 = vadd.f32 0.0, %v578
      %580 = vmatmul.bf16.gmra.mxu0 %v376
      %v581 = vpop.f32.mrf.mxu0
      %v582 = vadd.f32 0.0, %v581
      %v583 = vpop.f32.mrf.mxu0
      %v584 = vadd.f32 0.0, %v583
      %585 = vmatmul.bf16.gmra.mxu0 %v377
      %v586 = vpop.f32.mrf.mxu0
      %v587 = vadd.f32 0.0, %v586
      %v588 = vpop.f32.mrf.mxu0
      %v589 = vadd.f32 0.0, %v588
      %590 = vmatmul.bf16.gmra.mxu0 %v378
      %v591 = vpop.f32.mrf.mxu0
      %v592 = vadd.f32 0.0, %v591
      %v593 = vpop.f32.mrf.mxu0
      %v594 = vadd.f32 0.0, %v593
      %595 = vmatmul.bf16.gmra.mxu0 %v379
      %v596 = vpop.f32.mrf.mxu0
      %v597 = vadd.f32 0.0, %v596
      %v598 = vpop.f32.mrf.mxu0
      %v599 = vadd.f32 0.0, %v598
      %600 = vmatmul.bf16.gmra.mxu0 %v380
      %v601 = vpop.f32.mrf.mxu0
      %v602 = vadd.f32 0.0, %v601
      %v603 = vpop.f32.mrf.mxu0
      %v604 = vadd.f32 0.0, %v603
      %605 = vmatmul.bf16.gmra.mxu0 %v381
      %v606 = vpop.f32.mrf.mxu0
      %v607 = vadd.f32 0.0, %v606
      %v608 = vpop.f32.mrf.mxu0
      %v609 = vadd.f32 0.0, %v608
      %610 = vmatmul.bf16.gmra.mxu0 %v382
      %v611 = vpop.f32.mrf.mxu0
      %v612 = vadd.f32 0.0, %v611
      %v613 = vpop.f32.mrf.mxu0
      %v614 = vadd.f32 0.0, %v613
      %615 = vmatmul.bf16.gmra.mxu0 %v383
      %v616 = vpop.f32.mrf.mxu0
      %v617 = vadd.f32 0.0, %v616
      %v618 = vpop.f32.mrf.mxu0
      %v619 = vadd.f32 0.0, %v618
      %620 = vmatmul.bf16.gmra.mxu0 %v384
      %v621 = vpop.f32.mrf.mxu0
      %v622 = vadd.f32 0.0, %v621
      %v623 = vpop.f32.mrf.mxu0
      %v624 = vadd.f32 0.0, %v623
      %625 = vmatmul.bf16.gmra.mxu0 %v385
      %v626 = vpop.f32.mrf.mxu0
      %v627 = vadd.f32 0.0, %v626
      %v628 = vpop.f32.mrf.mxu0
      %v629 = vadd.f32 0.0, %v628
      %630 = vmatmul.bf16.gmra.mxu0 %v386
      %v631 = vpop.f32.mrf.mxu0
      %v632 = vadd.f32 0.0, %v631
      %v633 = vpop.f32.mrf.mxu0
      %v634 = vadd.f32 0.0, %v633
      %635 = vdwg.mxu0
      %vm636 = vcmp.gt.f32.partialorder %v477, 0.0
      %vm637 = vcmp.gt.f32.partialorder %v479, 0.0
      %vm638 = vcmp.gt.f32.partialorder %v482, 0.0
      %vm639 = vcmp.gt.f32.partialorder %v484, 0.0
      %vm640 = vcmp.gt.f32.partialorder %v487, 0.0
      %vm641 = vcmp.gt.f32.partialorder %v489, 0.0
      %vm642 = vcmp.gt.f32.partialorder %v492, 0.0
      %vm643 = vcmp.gt.f32.partialorder %v494, 0.0
      %vm644 = vcmp.gt.f32.partialorder %v497, 0.0
      %vm645 = vcmp.gt.f32.partialorder %v499, 0.0
      %vm646 = vcmp.gt.f32.partialorder %v502, 0.0
      %vm647 = vcmp.gt.f32.partialorder %v504, 0.0
      %vm648 = vcmp.gt.f32.partialorder %v507, 0.0
      %vm649 = vcmp.gt.f32.partialorder %v509, 0.0
      %vm650 = vcmp.gt.f32.partialorder %v512, 0.0
      %vm651 = vcmp.gt.f32.partialorder %v514, 0.0
      %vm652 = vcmp.gt.f32.partialorder %v517, 0.0
      %vm653 = vcmp.gt.f32.partialorder %v519, 0.0
      %vm654 = vcmp.gt.f32.partialorder %v522, 0.0
      %vm655 = vcmp.gt.f32.partialorder %v524, 0.0
      %vm656 = vcmp.gt.f32.partialorder %v527, 0.0
      %vm657 = vcmp.gt.f32.partialorder %v529, 0.0
      %vm658 = vcmp.gt.f32.partialorder %v532, 0.0
      %vm659 = vcmp.gt.f32.partialorder %v534, 0.0
      %vm660 = vcmp.gt.f32.partialorder %v537, 0.0
      %vm661 = vcmp.gt.f32.partialorder %v539, 0.0
      %vm662 = vcmp.gt.f32.partialorder %v542, 0.0
      %vm663 = vcmp.gt.f32.partialorder %v544, 0.0
      %vm664 = vcmp.gt.f32.partialorder %v547, 0.0
      %vm665 = vcmp.gt.f32.partialorder %v549, 0.0
      %vm666 = vcmp.gt.f32.partialorder %v552, 0.0
      %vm667 = vcmp.gt.f32.partialorder %v554, 0.0
      %vm668 = vcmp.gt.f32.partialorder %v557, 0.0
      %vm669 = vcmp.gt.f32.partialorder %v559, 0.0
      %vm670 = vcmp.gt.f32.partialorder %v562, 0.0
      %vm671 = vcmp.gt.f32.partialorder %v564, 0.0
      %vm672 = vcmp.gt.f32.partialorder %v567, 0.0
      %vm673 = vcmp.gt.f32.partialorder %v569, 0.0
      %vm674 = vcmp.gt.f32.partialorder %v572, 0.0
      %vm675 = vcmp.gt.f32.partialorder %v574, 0.0
      %vm676 = vcmp.gt.f32.partialorder %v577, 0.0
      %vm677 = vcmp.gt.f32.partialorder %v579, 0.0
      %vm678 = vcmp.gt.f32.partialorder %v582, 0.0
      %vm679 = vcmp.gt.f32.partialorder %v584, 0.0
      %vm680 = vcmp.gt.f32.partialorder %v587, 0.0
      %vm681 = vcmp.gt.f32.partialorder %v589, 0.0
      %vm682 = vcmp.gt.f32.partialorder %v592, 0.0
      %vm683 = vcmp.gt.f32.partialorder %v594, 0.0
      %vm684 = vcmp.gt.f32.partialorder %v597, 0.0
      %vm685 = vcmp.gt.f32.partialorder %v599, 0.0
      %vm686 = vcmp.gt.f32.partialorder %v602, 0.0
      %vm687 = vcmp.gt.f32.partialorder %v604, 0.0
      %vm688 = vcmp.gt.f32.partialorder %v607, 0.0
      %vm689 = vcmp.gt.f32.partialorder %v609, 0.0
      %vm690 = vcmp.gt.f32.partialorder %v612, 0.0
      %vm691 = vcmp.gt.f32.partialorder %v614, 0.0
      %vm692 = vcmp.gt.f32.partialorder %v617, 0.0
      %vm693 = vcmp.gt.f32.partialorder %v619, 0.0
      %vm694 = vcmp.gt.f32.partialorder %v622, 0.0
      %vm695 = vcmp.gt.f32.partialorder %v624, 0.0
      %vm696 = vcmp.gt.f32.partialorder %v627, 0.0
      %vm697 = vcmp.gt.f32.partialorder %v629, 0.0
      %vm698 = vcmp.gt.f32.partialorder %v632, 0.0
      %vm699 = vcmp.gt.f32.partialorder %v634, 0.0
      %v700 = vmul.f32 %v477, 0.2
      %v701 = vmul.f32 %v479, 0.2
      %v702 = vmul.f32 %v482, 0.2
      %v703 = vmul.f32 %v484, 0.2
      %v704 = vmul.f32 %v487, 0.2
      %v705 = vmul.f32 %v489, 0.2
      %v706 = vmul.f32 %v492, 0.2
      %v707 = vmul.f32 %v494, 0.2
      %v708 = vmul.f32 %v497, 0.2
      %v709 = vmul.f32 %v499, 0.2
      %v710 = vmul.f32 %v502, 0.2
      %v711 = vmul.f32 %v504, 0.2
      %v712 = vmul.f32 %v507, 0.2
      %v713 = vmul.f32 %v509, 0.2
      %v714 = vmul.f32 %v512, 0.2
      %v715 = vmul.f32 %v514, 0.2
      %v716 = vmul.f32 %v517, 0.2
      %v717 = vmul.f32 %v519, 0.2
      %v718 = vmul.f32 %v522, 0.2
      %v719 = vmul.f32 %v524, 0.2
      %v720 = vmul.f32 %v527, 0.2
      %v721 = vmul.f32 %v529, 0.2
      %v722 = vmul.f32 %v532, 0.2
      %v723 = vmul.f32 %v534, 0.2
      %v724 = vmul.f32 %v537, 0.2
      %v725 = vmul.f32 %v539, 0.2
      %v726 = vmul.f32 %v542, 0.2
      %v727 = vmul.f32 %v544, 0.2
      %v728 = vmul.f32 %v547, 0.2
      %v729 = vmul.f32 %v549, 0.2
      %v730 = vmul.f32 %v552, 0.2
      %v731 = vmul.f32 %v554, 0.2
      %v732 = vmul.f32 %v557, 0.2
      %v733 = vmul.f32 %v559, 0.2
      %v734 = vmul.f32 %v562, 0.2
      %v735 = vmul.f32 %v564, 0.2
      %v736 = vmul.f32 %v567, 0.2
      %v737 = vmul.f32 %v569, 0.2
      %v738 = vmul.f32 %v572, 0.2
      %v739 = vmul.f32 %v574, 0.2
      %v740 = vmul.f32 %v577, 0.2
      %v741 = vmul.f32 %v579, 0.2
      %v742 = vmul.f32 %v582, 0.2
      %v743 = vmul.f32 %v584, 0.2
      %v744 = vmul.f32 %v587, 0.2
      %v745 = vmul.f32 %v589, 0.2
      %v746 = vmul.f32 %v592, 0.2
      %v747 = vmul.f32 %v594, 0.2
      %v748 = vmul.f32 %v597, 0.2
      %v749 = vmul.f32 %v599, 0.2
      %v750 = vmul.f32 %v602, 0.2
      %v751 = vmul.f32 %v604, 0.2
      %v752 = vmul.f32 %v607, 0.2
      %v753 = vmul.f32 %v609, 0.2
      %v754 = vmul.f32 %v612, 0.2
      %v755 = vmul.f32 %v614, 0.2
      %v756 = vmul.f32 %v617, 0.2
      %v757 = vmul.f32 %v619, 0.2
      %v758 = vmul.f32 %v622, 0.2
      %v759 = vmul.f32 %v624, 0.2
      %v760 = vmul.f32 %v627, 0.2
      %v761 = vmul.f32 %v629, 0.2
      %v762 = vmul.f32 %v632, 0.2
      %v763 = vmul.f32 %v634, 0.2
      %v764 = vsel %vm636, %v477, %v700
      %v765 = vsel %vm637, %v479, %v701
      %v766 = vsel %vm638, %v482, %v702
      %v767 = vsel %vm639, %v484, %v703
      %v768 = vsel %vm640, %v487, %v704
      %v769 = vsel %vm641, %v489, %v705
      %v770 = vsel %vm642, %v492, %v706
      %v771 = vsel %vm643, %v494, %v707
      %v772 = vsel %vm644, %v497, %v708
      %v773 = vsel %vm645, %v499, %v709
      %v774 = vsel %vm646, %v502, %v710
      %v775 = vsel %vm647, %v504, %v711
      %v776 = vsel %vm648, %v507, %v712
      %v777 = vsel %vm649, %v509, %v713
      %v778 = vsel %vm650, %v512, %v714
      %v779 = vsel %vm651, %v514, %v715
      %v780 = vsel %vm652, %v517, %v716
      %v781 = vsel %vm653, %v519, %v717
      %v782 = vsel %vm654, %v522, %v718
      %v783 = vsel %vm655, %v524, %v719
      %v784 = vsel %vm656, %v527, %v720
      %v785 = vsel %vm657, %v529, %v721
      %v786 = vsel %vm658, %v532, %v722
      %v787 = vsel %vm659, %v534, %v723
      %v788 = vsel %vm660, %v537, %v724
      %v789 = vsel %vm661, %v539, %v725
      %v790 = vsel %vm662, %v542, %v726
      %v791 = vsel %vm663, %v544, %v727
      %v792 = vsel %vm664, %v547, %v728
      %v793 = vsel %vm665, %v549, %v729
      %v794 = vsel %vm666, %v552, %v730
      %v795 = vsel %vm667, %v554, %v731
      %v796 = vsel %vm668, %v557, %v732
      %v797 = vsel %vm669, %v559, %v733
      %v798 = vsel %vm670, %v562, %v734
      %v799 = vsel %vm671, %v564, %v735
      %v800 = vsel %vm672, %v567, %v736
      %v801 = vsel %vm673, %v569, %v737
      %v802 = vsel %vm674, %v572, %v738
      %v803 = vsel %vm675, %v574, %v739
      %v804 = vsel %vm676, %v577, %v740
      %v805 = vsel %vm677, %v579, %v741
      %v806 = vsel %vm678, %v582, %v742
      %v807 = vsel %vm679, %v584, %v743
      %v808 = vsel %vm680, %v587, %v744
      %v809 = vsel %vm681, %v589, %v745
      %v810 = vsel %vm682, %v592, %v746
      %v811 = vsel %vm683, %v594, %v747
      %v812 = vsel %vm684, %v597, %v748
      %v813 = vsel %vm685, %v599, %v749
      %v814 = vsel %vm686, %v602, %v750
      %v815 = vsel %vm687, %v604, %v751
      %v816 = vsel %vm688, %v607, %v752
      %v817 = vsel %vm689, %v609, %v753
      %v818 = vsel %vm690, %v612, %v754
      %v819 = vsel %vm691, %v614, %v755
      %v820 = vsel %vm692, %v617, %v756
      %v821 = vsel %vm693, %v619, %v757
      %v822 = vsel %vm694, %v622, %v758
      %v823 = vsel %vm695, %v624, %v759
      %v824 = vsel %vm696, %v627, %v760
      %v825 = vsel %vm697, %v629, %v761
      %v826 = vsel %vm698, %v632, %v762
      %v827 = vsel %vm699, %v634, %v763
      %v828 = vpack.c.bf16 %v764, %v764
      %v829 = vpack.c.bf16 %v765, %v765
      %v830 = vpack.c.bf16 %v766, %v766
      %v831 = vpack.c.bf16 %v767, %v767
      %v832 = vpack.c.bf16 %v768, %v768
      %v833 = vpack.c.bf16 %v769, %v769
      %v834 = vpack.c.bf16 %v770, %v770
      %v835 = vpack.c.bf16 %v771, %v771
      %v836 = vpack.c.bf16 %v772, %v772
      %v837 = vpack.c.bf16 %v773, %v773
      %v838 = vpack.c.bf16 %v774, %v774
      %v839 = vpack.c.bf16 %v775, %v775
      %v840 = vpack.c.bf16 %v776, %v776
      %v841 = vpack.c.bf16 %v777, %v777
      %v842 = vpack.c.bf16 %v778, %v778
      %v843 = vpack.c.bf16 %v779, %v779
      %v844 = vpack.c.bf16 %v780, %v780
      %v845 = vpack.c.bf16 %v781, %v781
      %v846 = vpack.c.bf16 %v782, %v782
      %v847 = vpack.c.bf16 %v783, %v783
      %v848 = vpack.c.bf16 %v784, %v784
      %v849 = vpack.c.bf16 %v785, %v785
      %v850 = vpack.c.bf16 %v786, %v786
      %v851 = vpack.c.bf16 %v787, %v787
      %v852 = vpack.c.bf16 %v788, %v788
      %v853 = vpack.c.bf16 %v789, %v789
      %v854 = vpack.c.bf16 %v790, %v790
      %v855 = vpack.c.bf16 %v791, %v791
      %v856 = vpack.c.bf16 %v792, %v792
      %v857 = vpack.c.bf16 %v793, %v793
      %v858 = vpack.c.bf16 %v794, %v794
      %v859 = vpack.c.bf16 %v795, %v795
      %v860 = vpack.c.bf16 %v796, %v796
      %v861 = vpack.c.bf16 %v797, %v797
      %v862 = vpack.c.bf16 %v798, %v798
      %v863 = vpack.c.bf16 %v799, %v799
      %v864 = vpack.c.bf16 %v800, %v800
      %v865 = vpack.c.bf16 %v801, %v801
      %v866 = vpack.c.bf16 %v802, %v802
      %v867 = vpack.c.bf16 %v803, %v803
      %v868 = vpack.c.bf16 %v804, %v804
      %v869 = vpack.c.bf16 %v805, %v805
      %v870 = vpack.c.bf16 %v806, %v806
      %v871 = vpack.c.bf16 %v807, %v807
      %v872 = vpack.c.bf16 %v808, %v808
      %v873 = vpack.c.bf16 %v809, %v809
      %v874 = vpack.c.bf16 %v810, %v810
      %v875 = vpack.c.bf16 %v811, %v811
      %v876 = vpack.c.bf16 %v812, %v812
      %v877 = vpack.c.bf16 %v813, %v813
      %v878 = vpack.c.bf16 %v814, %v814
      %v879 = vpack.c.bf16 %v815, %v815
      %v880 = vpack.c.bf16 %v816, %v816
      %v881 = vpack.c.bf16 %v817, %v817
      %v882 = vpack.c.bf16 %v818, %v818
      %v883 = vpack.c.bf16 %v819, %v819
      %v884 = vpack.c.bf16 %v820, %v820
      %v885 = vpack.c.bf16 %v821, %v821
      %v886 = vpack.c.bf16 %v822, %v822
      %v887 = vpack.c.bf16 %v823, %v823
      %v888 = vpack.c.bf16 %v824, %v824
      %v889 = vpack.c.bf16 %v825, %v825
      %v890 = vpack.c.bf16 %v826, %v826
      %v891 = vpack.c.bf16 %v827, %v827
      %vm892 = vcmask 519168
      %893 = vst.msk [vmem:[%s145] sm:$0xf] %vm892, %v828
      %894 = vst.msk [vmem:[%s145 + $0x4] sm:$0xf] %vm892, %v829
      %895 = vst.msk [vmem:[%s145 + $0x8] sm:$0xf] %vm892, %v830
      %896 = vst.msk [vmem:[%s145 + $0xc] sm:$0xf] %vm892, %v831
      %897 = vst.msk [vmem:[%s145 + $0x10] sm:$0xf] %vm892, %v832
      %898 = vst.msk [vmem:[%s145 + $0x14] sm:$0xf] %vm892, %v833
      %899 = vst.msk [vmem:[%s145 + $0x18] sm:$0xf] %vm892, %v834
      %900 = vst.msk [vmem:[%s145 + $0x1c] sm:$0xf] %vm892, %v835
      %901 = vst.msk [vmem:[%s145 + $0x20] sm:$0xf] %vm892, %v836
      %902 = vst.msk [vmem:[%s145 + $0x24] sm:$0xf] %vm892, %v837
      %903 = vst.msk [vmem:[%s145 + $0x28] sm:$0xf] %vm892, %v838
      %904 = vst.msk [vmem:[%s145 + $0x2c] sm:$0xf] %vm892, %v839
      %905 = vst.msk [vmem:[%s145 + $0x30] sm:$0xf] %vm892, %v840
      %906 = vst.msk [vmem:[%s145 + $0x34] sm:$0xf] %vm892, %v841
      %907 = vst.msk [vmem:[%s145 + $0x38] sm:$0xf] %vm892, %v842
      %908 = vst.msk [vmem:[%s145 + $0x3c] sm:$0xf] %vm892, %v843
      %909 = vst.msk [vmem:[%s145 + $0x40] sm:$0xf] %vm892, %v844
      %910 = vst.msk [vmem:[%s145 + $0x44] sm:$0xf] %vm892, %v845
      %911 = vst.msk [vmem:[%s145 + $0x48] sm:$0xf] %vm892, %v846
      %912 = vst.msk [vmem:[%s145 + $0x4c] sm:$0xf] %vm892, %v847
      %913 = vst.msk [vmem:[%s145 + $0x50] sm:$0xf] %vm892, %v848
      %914 = vst.msk [vmem:[%s145 + $0x54] sm:$0xf] %vm892, %v849
      %915 = vst.msk [vmem:[%s145 + $0x58] sm:$0xf] %vm892, %v850
      %916 = vst.msk [vmem:[%s145 + $0x5c] sm:$0xf] %vm892, %v851
      %917 = vst.msk [vmem:[%s145 + $0x60] sm:$0xf] %vm892, %v852
      %918 = vst.msk [vmem:[%s145 + $0x64] sm:$0xf] %vm892, %v853
      %919 = vst.msk [vmem:[%s145 + $0x68] sm:$0xf] %vm892, %v854
      %920 = vst.msk [vmem:[%s145 + $0x6c] sm:$0xf] %vm892, %v855
      %921 = vst.msk [vmem:[%s145 + $0x70] sm:$0xf] %vm892, %v856
      %922 = vst.msk [vmem:[%s145 + $0x74] sm:$0xf] %vm892, %v857
      %923 = vst.msk [vmem:[%s145 + $0x78] sm:$0xf] %vm892, %v858
      %924 = vst.msk [vmem:[%s145 + $0x7c] sm:$0xf] %vm892, %v859
      %925 = vst.msk [vmem:[%s145 + $0x80] sm:$0xf] %vm892, %v860
      %926 = vst.msk [vmem:[%s145 + $0x84] sm:$0xf] %vm892, %v861
      %927 = vst.msk [vmem:[%s145 + $0x88] sm:$0xf] %vm892, %v862
      %928 = vst.msk [vmem:[%s145 + $0x8c] sm:$0xf] %vm892, %v863
      %929 = vst.msk [vmem:[%s145 + $0x90] sm:$0xf] %vm892, %v864
      %930 = vst.msk [vmem:[%s145 + $0x94] sm:$0xf] %vm892, %v865
      %931 = vst.msk [vmem:[%s145 + $0x98] sm:$0xf] %vm892, %v866
      %932 = vst.msk [vmem:[%s145 + $0x9c] sm:$0xf] %vm892, %v867
      %933 = vst.msk [vmem:[%s145 + $0xa0] sm:$0xf] %vm892, %v868
      %934 = vst.msk [vmem:[%s145 + $0xa4] sm:$0xf] %vm892, %v869
      %935 = vst.msk [vmem:[%s145 + $0xa8] sm:$0xf] %vm892, %v870
      %936 = vst.msk [vmem:[%s145 + $0xac] sm:$0xf] %vm892, %v871
      %937 = vst.msk [vmem:[%s145 + $0xb0] sm:$0xf] %vm892, %v872
      %938 = vst.msk [vmem:[%s145 + $0xb4] sm:$0xf] %vm892, %v873
      %939 = vst.msk [vmem:[%s145 + $0xb8] sm:$0xf] %vm892, %v874
      %940 = vst.msk [vmem:[%s145 + $0xbc] sm:$0xf] %vm892, %v875
      %941 = vst.msk [vmem:[%s145 + $0xc0] sm:$0xf] %vm892, %v876
      %942 = vst.msk [vmem:[%s145 + $0xc4] sm:$0xf] %vm892, %v877
      %943 = vst.msk [vmem:[%s145 + $0xc8] sm:$0xf] %vm892, %v878
      %944 = vst.msk [vmem:[%s145 + $0xcc] sm:$0xf] %vm892, %v879
      %945 = vst.msk [vmem:[%s145 + $0xd0] sm:$0xf] %vm892, %v880
      %946 = vst.msk [vmem:[%s145 + $0xd4] sm:$0xf] %vm892, %v881
      %947 = vst.msk [vmem:[%s145 + $0xd8] sm:$0xf] %vm892, %v882
      %948 = vst.msk [vmem:[%s145 + $0xdc] sm:$0xf] %vm892, %v883
      %949 = vst.msk [vmem:[%s145 + $0xe0] sm:$0xf] %vm892, %v884
      %950 = vst.msk [vmem:[%s145 + $0xe4] sm:$0xf] %vm892, %v885
      %951 = vst.msk [vmem:[%s145 + $0xe8] sm:$0xf] %vm892, %v886
      %952 = vst.msk [vmem:[%s145 + $0xec] sm:$0xf] %vm892, %v887
      %953 = vst.msk [vmem:[%s145 + $0xf0] sm:$0xf] %vm892, %v888
      %954 = vst.msk [vmem:[%s145 + $0xf4] sm:$0xf] %vm892, %v889
      %955 = vst.msk [vmem:[%s145 + $0xf8] sm:$0xf] %vm892, %v890
      %956 = vst.msk [vmem:[%s145 + $0xfc] sm:$0xf] %vm892, %v891
      %s957 = smul.u32 64, %s13
      %p958 = scmp.lt.s32.totalorder %s957, 255
      %s959 = scalar_select %p958, %s957, 255
      %s960 = smul.addr %s959, 4
      %s961 = scalar_lea.vmem %s2, %s960
      // Predicated region
      $region29: #{net_d_forward.4} parent=27 // pred_check
        %p962 = pneg %p78
      $region30: #{net_d_forward.4} parent=27 // pred_check_branch
        %964 = sbr.rel (%p962) target = $region32
      $region31: #{net_d_forward.4} parent=27 // pred_region
        %s965 = smul.u32 64, %s13
      $region32: #{net_d_forward.4} parent=27 // pred_fallthru
        _
    $region28: #{net_d_forward.4} parent=5 // pred_fallthru
      _
    %p966 = scmp.le.s32.totalorder 2, %s8
    // Predicated region
    $region33: #{net_d_forward.4} parent=5 // pred_check
      %p967 = pneg %p966
    $region34: #{net_d_forward.4} parent=5 // pred_check_branch
      %969 = sbr.rel (%p967) target = $region36
    $region35: #{net_d_forward.4} parent=5 // pred_region
      %s970 = ssub.s32 %s8, 2
      // Predicated region
      $region37: #{net_d_forward.4} parent=35 // pred_check
        %p971 = pneg %p84
      $region38: #{net_d_forward.4} parent=35 // pred_check_branch
        %973 = sbr.rel (%p971) target = $region40
      $region39: #{net_d_forward.4} parent=35 // pred_region
        %s974 = smul.u32 64, %s14
        %p975 = scmp.lt.s32.totalorder %s974, 255
        %s976 = scalar_select %p975, %s974, 255
        %s977 = smul.addr %s976, 4
        %s978 = scalar_lea.vmem %s2, %s977
      $region40: #{net_d_forward.4} parent=35 // pred_fallthru
        _
    $region36: #{net_d_forward.4} parent=5 // pred_fallthru
      _
  $region6: #{net_d_forward.4} parent=0 // loop_footer
    %s12 = sadd.s32 1, %s8
  $region7: #{net_d_forward.4} parent=0 // loop_footer_branch
    %7 = sbr.rel target = $region3
  $region8: #{net_d_forward.4} parent=0 // loop_exit
    _

// kernel: net_d_forward.5
$region0: #{net_d_forward.5}
  #allocation0 [shape = 'u32[]', space=smem, size = 0x4, offset = 0x4, fixed_abs, tag = 'smem constant byte address 0x4 - core index']
  #allocation1 [shape = 'u32[72,128]{1,0:T(1,128)}', space=vmem, size = 0x9000, scoped, tag = 'internal scratch']
  #allocation2 [shape = 'f32[512,128]{1,0:T(8,128)}', space=vmem, size = 0x40000, scoped, tag = 'scratch operand']
  %s0 = inlined_call_operand.vmem [shape: bf16[512,1024], index: 0, kind: input, shape index: {}]
  %s1 = inlined_call_operand.vmem [shape: bf16[1024,128], index: 1, kind: input, shape index: {}]
  %s2 = inlined_call_operand.vmem [shape: f32[1,128], index: 2, kind: input, shape index: {}]
  %s3 = inlined_call_operand.vmem [shape: f32[1,128], index: 3, kind: input, shape index: {}]
  %s4 = inlined_call_operand.vmem [shape: bf16[512,128], index: 4, kind: output, shape index: {}]
  %s5 = sld [smem:[#allocation0]]
  $region80: #{net_d_forward.5} parent=0
    _
  %s7 = ssub.s32 1, %s5
  %s8 = scalar_select 0, %s7, %s5
  $region1: #{net_d_forward.5} parent=0
    #allocation3 [shape = 'u8[1048576]{0}', space=vmem, size = 0x100000, scoped, tag = 'input window, operand 0']
    loop: start=0, step=1, limit=4
    $region2: #{net_d_forward.5} parent=1 // loop_pre_header
      _
    $region3: #{net_d_forward.5} parent=1 // loop_header
      %s10 = sphi 0, %s14
      %p11 = scmp.ge.s32.totalorder %s10, 4
      %s17 = sphi 0, %s29
      %s18 = sphi 0, %s25
      %s19 = sphi 0, %s17
      %s20 = sphi 0, %s18
      %s21 = sphi 0, %s19
      %s22 = sphi 0, %s20
      %s32 = sphi 0, %s34
      %s35 = sphi 0, %s32
      %s36 = sphi 0, %s35
      %s52 = sphi 0, %s36
      %s60 = sphi 0, %s62
      %s63 = sphi 0, %s60
      %s64 = sphi 0, %s63
      %s80 = sphi 0, %s64
      %s86 = sphi 0, %s88
      %s89 = sphi 0, %s86
      %s90 = sphi 0, %s89
      %s106 = sphi 0, %s90
      %s112 = sphi 0, %s114
      %s115 = sphi 0, %s112
      %s116 = sphi 0, %s115
      %s132 = sphi 0, %s116
      %s138 = sphi 0, %s140
      %s141 = sphi 0, %s138
      %s142 = sphi 0, %s141
      %s158 = sphi 0, %s142
    $region4: #{net_d_forward.5} parent=1 // loop_header_branch
      %13 = sbr.rel (%p11) target = $region8
    $region5: #{net_d_forward.5} parent=1 // loop_body
      %s15 = ssub.s32 %s10, 1
      %s16 = ssub.s32 %s10, 2
      %s23 = sadd.s32 1, %s18
      %p24 = scmp.ge.s32.totalorder %s23, 2
      %s25 = scalar_select %p24, 0, %s23
      %s26 = sadd.s32 1, %s17
      %s27 = scalar_select %p24, %s26, %s17
      %p28 = scmp.ge.s32.totalorder %s27, 1
      %s29 = scalar_select %p28, 0, %s27
      %s30 = ssub.s32 %s18, %s25
      %p31 = scmp.eq.s32.totalorder %s30, 0
      %s33 = sadd.s32 %s32, 1
      %s34 = scalar_select %p31, %s32, %s33
      %p37 = pneg %p31
      %p38 = scmp.eq.s32.totalorder %s10, 1
      %p39 = por %p37, %p38
      %p40 = scmp.ne.s32.totalorder %s32, %s35
      %p41 = scmp.eq.s32.totalorder %s10, 0
      %p42 = por %p40, %p41
      %p43 = scmp.ne.s32.totalorder %s32, %s35
      %p44 = scmp.eq.s32.totalorder %s15, 1
      %p45 = por %p43, %p44
      %p46 = scmp.ne.s32.totalorder %s35, %s36
      %p47 = scmp.eq.s32.totalorder %s15, 0
      %p48 = por %p46, %p47
      %p49 = scmp.ne.s32.totalorder %s35, %s36
      %p50 = scmp.eq.s32.totalorder %s16, 1
      %p51 = por %p49, %p50
      %p53 = scmp.ne.s32.totalorder %s36, %s52
      %p54 = scmp.eq.s32.totalorder %s16, 0
      %p55 = por %p53, %p54
      %s56 = ssub.s32 %s18, %s25
      %s57 = ssub.s32 %s17, %s29
      %s58 = sor.u32 %s56, %s57
      %p59 = scmp.eq.s32.totalorder %s58, 0
      %s61 = sadd.s32 %s60, 1
      %s62 = scalar_select %p59, %s60, %s61
      %p65 = pneg %p59
      %p66 = scmp.eq.s32.totalorder %s10, 1
      %p67 = por %p65, %p66
      %p68 = scmp.ne.s32.totalorder %s60, %s63
      %p69 = scmp.eq.s32.totalorder %s10, 0
      %p70 = por %p68, %p69
      %p71 = scmp.ne.s32.totalorder %s60, %s63
      %p72 = scmp.eq.s32.totalorder %s15, 1
      %p73 = por %p71, %p72
      %p74 = scmp.ne.s32.totalorder %s63, %s64
      %p75 = scmp.eq.s32.totalorder %s15, 0
      %p76 = por %p74, %p75
      %p77 = scmp.ne.s32.totalorder %s63, %s64
      %p78 = scmp.eq.s32.totalorder %s16, 1
      %p79 = por %p77, %p78
      %p81 = scmp.ne.s32.totalorder %s64, %s80
      %p82 = scmp.eq.s32.totalorder %s16, 0
      %p83 = por %p81, %p82
      %s84 = ssub.s32 %s17, %s29
      %p85 = scmp.eq.s32.totalorder %s84, 0
      %s87 = sadd.s32 %s86, 1
      %s88 = scalar_select %p85, %s86, %s87
      %p91 = pneg %p85
      %p92 = scmp.eq.s32.totalorder %s10, 1
      %p93 = por %p91, %p92
      %p94 = scmp.ne.s32.totalorder %s86, %s89
      %p95 = scmp.eq.s32.totalorder %s10, 0
      %p96 = por %p94, %p95
      %p97 = scmp.ne.s32.totalorder %s86, %s89
      %p98 = scmp.eq.s32.totalorder %s15, 1
      %p99 = por %p97, %p98
      %p100 = scmp.ne.s32.totalorder %s89, %s90
      %p101 = scmp.eq.s32.totalorder %s15, 0
      %p102 = por %p100, %p101
      %p103 = scmp.ne.s32.totalorder %s89, %s90
      %p104 = scmp.eq.s32.totalorder %s16, 1
      %p105 = por %p103, %p104
      %p107 = scmp.ne.s32.totalorder %s90, %s106
      %p108 = scmp.eq.s32.totalorder %s16, 0
      %p109 = por %p107, %p108
      %s110 = ssub.s32 %s17, %s29
      %p111 = scmp.eq.s32.totalorder %s110, 0
      %s113 = sadd.s32 %s112, 1
      %s114 = scalar_select %p111, %s112, %s113
      %p117 = pneg %p111
      %p118 = scmp.eq.s32.totalorder %s10, 1
      %p119 = por %p117, %p118
      %p120 = scmp.ne.s32.totalorder %s112, %s115
      %p121 = scmp.eq.s32.totalorder %s10, 0
      %p122 = por %p120, %p121
      %p123 = scmp.ne.s32.totalorder %s112, %s115
      %p124 = scmp.eq.s32.totalorder %s15, 1
      %p125 = por %p123, %p124
      %p126 = scmp.ne.s32.totalorder %s115, %s116
      %p127 = scmp.eq.s32.totalorder %s15, 0
      %p128 = por %p126, %p127
      %p129 = scmp.ne.s32.totalorder %s115, %s116
      %p130 = scmp.eq.s32.totalorder %s16, 1
      %p131 = por %p129, %p130
      %p133 = scmp.ne.s32.totalorder %s116, %s132
      %p134 = scmp.eq.s32.totalorder %s16, 0
      %p135 = por %p133, %p134
      %s136 = ssub.s32 %s17, %s29
      %p137 = scmp.eq.s32.totalorder %s136, 0
      %s139 = sadd.s32 %s138, 1
      %s140 = scalar_select %p137, %s138, %s139
      %p143 = pneg %p137
      %p144 = scmp.eq.s32.totalorder %s10, 1
      %p145 = por %p143, %p144
      %p146 = scmp.ne.s32.totalorder %s138, %s141
      %p147 = scmp.eq.s32.totalorder %s10, 0
      %p148 = por %p146, %p147
      %p149 = scmp.ne.s32.totalorder %s138, %s141
      %p150 = scmp.eq.s32.totalorder %s15, 1
      %p151 = por %p149, %p150
      %p152 = scmp.ne.s32.totalorder %s141, %s142
      %p153 = scmp.eq.s32.totalorder %s15, 0
      %p154 = por %p152, %p153
      %p155 = scmp.ne.s32.totalorder %s141, %s142
      %p156 = scmp.eq.s32.totalorder %s16, 1
      %p157 = por %p155, %p156
      %p159 = scmp.ne.s32.totalorder %s142, %s158
      %p160 = scmp.eq.s32.totalorder %s16, 0
      %p161 = por %p159, %p160
      %p162 = scmp.le.s32.totalorder 1, %s10
      %p163 = scmp.lt.s32.totalorder %s10, 3
      %p164 = pnand %p162, %p163
      %p165 = pneg %p164
      // Predicated region
      $region9: #{net_d_forward.5} parent=5 // pred_check
        _
      $region10: #{net_d_forward.5} parent=5 // pred_check_branch
        %167 = sbr.rel (%p164) target = $region12
      $region11: #{net_d_forward.5} parent=5 // pred_region
        %s168 = ssub.s32 %s10, 1
        // Predicated region
        $region13: #{net_d_forward.5} parent=11 // pred_check
          %p169 = pneg %p102
        $region14: #{net_d_forward.5} parent=11 // pred_check_branch
          %171 = sbr.rel (%p169) target = $region16
        $region15: #{net_d_forward.5} parent=11 // pred_region
          %p172 = scmp.lt.s32.totalorder %s19, 0
          %s173 = scalar_select %p172, %s19, 0
          %s174 = scalar_lea.vmem %s2, %s173
        $region16: #{net_d_forward.5} parent=11 // pred_fallthru
          _
        // Predicated region
        $region17: #{net_d_forward.5} parent=11 // pred_check
          %p175 = pneg %p128
        $region18: #{net_d_forward.5} parent=11 // pred_check_branch
          %177 = sbr.rel (%p175) target = $region20
        $region19: #{net_d_forward.5} parent=11 // pred_region
          %p178 = scmp.lt.s32.totalorder %s19, 0
          %s179 = scalar_select %p178, %s19, 0
          %s180 = scalar_lea.vmem %s3, %s179
        $region20: #{net_d_forward.5} parent=11 // pred_fallthru
          _
      $region12: #{net_d_forward.5} parent=5 // pred_fallthru
        _
      %p181 = scmp.lt.s32.totalorder %s10, 2
      // Predicated region
      $region21: #{net_d_forward.5} parent=5 // pred_check
        %p182 = pneg %p181
      $region22: #{net_d_forward.5} parent=5 // pred_check_branch
        %184 = sbr.rel (%p182) target = $region24
      $region23: #{net_d_forward.5} parent=5 // pred_region
        // Predicated region
        $region25: #{net_d_forward.5} parent=23 // pred_check
          %p185 = pneg %p42
        $region26: #{net_d_forward.5} parent=23 // pred_check_branch
          %187 = sbr.rel (%p185) target = $region28
        $region27: #{net_d_forward.5} parent=23 // pred_region
          %s188 = sand.u32 %s32, 1
          %s189 = sand.u32 %s32, 1
          %s190 = smul.addr %s189, 1024
          %s191 = scalar_lea.vmem [#allocation3], %s190
          %s192 = smul.u32 4, %s18
          %s193 = smul.addr %s192, 4
          %s194 = scalar_lea.vmem %s0, %s193
          // Predicated region
          $region29: #{net_d_forward.5} parent=27 // pred_check
            _
          $region30: #{net_d_forward.5} parent=27 // pred_check_branch
            %196 = sbr.rel (0) target = $region32
          $region31: #{net_d_forward.5} parent=27 // pred_region
            // Predicated region
            $region33: #{net_d_forward.5} parent=31 // pred_check
              _
            $region34: #{net_d_forward.5} parent=31 // pred_check_branch
              %198 = sbr.rel (0) target = $region36
            $region35: #{net_d_forward.5} parent=31 // pred_region
              loop: start=0, step=1, limit=1
              $region37: #{net_d_forward.5} parent=35 // loop_pre_header
                _
              $region38: #{net_d_forward.5} parent=35 // loop_header
                %s200 = sphi 0, %s204
                %p201 = scmp.ge.s32.totalorder %s200, 1
                %s205 = sphi %s194, %s194
                %s206 = sphi %s191, %s191
              $region39: #{net_d_forward.5} parent=35 // loop_header_branch
                %203 = sbr.rel (%p201) target = $region43
              $region40: #{net_d_forward.5} parent=35 // loop_body
                %v207 = vld [vmem:[%s205] sm:$0xff]
                %208 = vst [vmem:[%s206] sm:$0xff] %v207
                %v209 = vld [vmem:[%s205 + $0x8] sm:$0xff]
                %210 = vst [vmem:[%s206 + $0x8] sm:$0xff] %v209
                %v211 = vld [vmem:[%s205 + $0x20] sm:$0xff]
                %212 = vst [vmem:[%s206 + $0x10] sm:$0xff] %v211
                %v213 = vld [vmem:[%s205 + $0x28] sm:$0xff]
                %214 = vst [vmem:[%s206 + $0x18] sm:$0xff] %v213
                %v215 = vld [vmem:[%s205 + $0x40] sm:$0xff]
                %216 = vst [vmem:[%s206 + $0x20] sm:$0xff] %v215
                %v217 = vld [vmem:[%s205 + $0x48] sm:$0xff]
                %218 = vst [vmem:[%s206 + $0x28] sm:$0xff] %v217
                %v219 = vld [vmem:[%s205 + $0x60] sm:$0xff]
                %220 = vst [vmem:[%s206 + $0x30] sm:$0xff] %v219
                %v221 = vld [vmem:[%s205 + $0x68] sm:$0xff]
                %222 = vst [vmem:[%s206 + $0x38] sm:$0xff] %v221
                %v223 = vld [vmem:[%s205 + $0x80] sm:$0xff]
                %224 = vst [vmem:[%s206 + $0x40] sm:$0xff] %v223
                %v225 = vld [vmem:[%s205 + $0x88] sm:$0xff]
                %226 = vst [vmem:[%s206 + $0x48] sm:$0xff] %v225
                %v227 = vld [vmem:[%s205 + $0xa0] sm:$0xff]
                %228 = vst [vmem:[%s206 + $0x50] sm:$0xff] %v227
                %v229 = vld [vmem:[%s205 + $0xa8] sm:$0xff]
                %230 = vst [vmem:[%s206 + $0x58] sm:$0xff] %v229
                %v231 = vld [vmem:[%s205 + $0xc0] sm:$0xff]
                %232 = vst [vmem:[%s206 + $0x60] sm:$0xff] %v231
                %v233 = vld [vmem:[%s205 + $0xc8] sm:$0xff]
                %234 = vst [vmem:[%s206 + $0x68] sm:$0xff] %v233
                %v235 = vld [vmem:[%s205 + $0xe0] sm:$0xff]
                %236 = vst [vmem:[%s206 + $0x70] sm:$0xff] %v235
                %v237 = vld [vmem:[%s205 + $0xe8] sm:$0xff]
                %238 = vst [vmem:[%s206 + $0x78] sm:$0xff] %v237
                %v239 = vld [vmem:[%s205 + $0x100] sm:$0xff]
                %240 = vst [vmem:[%s206 + $0x80] sm:$0xff] %v239
                %v241 = vld [vmem:[%s205 + $0x108] sm:$0xff]
                %242 = vst [vmem:[%s206 + $0x88] sm:$0xff] %v241
                %v243 = vld [vmem:[%s205 + $0x120] sm:$0xff]
                %244 = vst [vmem:[%s206 + $0x90] sm:$0xff] %v243
                %v245 = vld [vmem:[%s205 + $0x128] sm:$0xff]
                %246 = vst [vmem:[%s206 + $0x98] sm:$0xff] %v245
                %v247 = vld [vmem:[%s205 + $0x140] sm:$0xff]
                %248 = vst [vmem:[%s206 + $0xa0] sm:$0xff] %v247
                %v249 = vld [vmem:[%s205 + $0x148] sm:$0xff]
                %250 = vst [vmem:[%s206 + $0xa8] sm:$0xff] %v249
                %v251 = vld [vmem:[%s205 + $0x160] sm:$0xff]
                %252 = vst [vmem:[%s206 + $0xb0] sm:$0xff] %v251
                %v253 = vld [vmem:[%s205 + $0x168] sm:$0xff]
                %254 = vst [vmem:[%s206 + $0xb8] sm:$0xff] %v253
                %v255 = vld [vmem:[%s205 + $0x180] sm:$0xff]
                %256 = vst [vmem:[%s206 + $0xc0] sm:$0xff] %v255
                %v257 = vld [vmem:[%s205 + $0x188] sm:$0xff]
                %258 = vst [vmem:[%s206 + $0xc8] sm:$0xff] %v257
                %v259 = vld [vmem:[%s205 + $0x1a0] sm:$0xff]
                %260 = vst [vmem:[%s206 + $0xd0] sm:$0xff] %v259
                %v261 = vld [vmem:[%s205 + $0x1a8] sm:$0xff]
                %262 = vst [vmem:[%s206 + $0xd8] sm:$0xff] %v261
                %v263 = vld [vmem:[%s205 + $0x1c0] sm:$0xff]
                %264 = vst [vmem:[%s206 + $0xe0] sm:$0xff] %v263
                %v265 = vld [vmem:[%s205 + $0x1c8] sm:$0xff]
                %266 = vst [vmem:[%s206 + $0xe8] sm:$0xff] %v265
                %v267 = vld [vmem:[%s205 + $0x1e0] sm:$0xff]
                %268 = vst [vmem:[%s206 + $0xf0] sm:$0xff] %v267
                %v269 = vld [vmem:[%s205 + $0x1e8] sm:$0xff]
                %270 = vst [vmem:[%s206 + $0xf8] sm:$0xff] %v269
                %v271 = vld [vmem:[%s205 + $0x200] sm:$0xff]
                %272 = vst [vmem:[%s206 + $0x100] sm:$0xff] %v271
                %v273 = vld [vmem:[%s205 + $0x208] sm:$0xff]
                %274 = vst [vmem:[%s206 + $0x108] sm:$0xff] %v273
                %v275 = vld [vmem:[%s205 + $0x220] sm:$0xff]
                %276 = vst [vmem:[%s206 + $0x110] sm:$0xff] %v275
                %v277 = vld [vmem:[%s205 + $0x228] sm:$0xff]
                %278 = vst [vmem:[%s206 + $0x118] sm:$0xff] %v277
                %v279 = vld [vmem:[%s205 + $0x240] sm:$0xff]
                %280 = vst [vmem:[%s206 + $0x120] sm:$0xff] %v279
                %v281 = vld [vmem:[%s205 + $0x248] sm:$0xff]
                %282 = vst [vmem:[%s206 + $0x128] sm:$0xff] %v281
                %v283 = vld [vmem:[%s205 + $0x260] sm:$0xff]
                %284 = vst [vmem:[%s206 + $0x130] sm:$0xff] %v283
                %v285 = vld [vmem:[%s205 + $0x268] sm:$0xff]
                %286 = vst [vmem:[%s206 + $0x138] sm:$0xff] %v285
                %v287 = vld [vmem:[%s205 + $0x280] sm:$0xff]
                %288 = vst [vmem:[%s206 + $0x140] sm:$0xff] %v287
                %v289 = vld [vmem:[%s205 + $0x288] sm:$0xff]
                %290 = vst [vmem:[%s206 + $0x148] sm:$0xff] %v289
                %v291 = vld [vmem:[%s205 + $0x2a0] sm:$0xff]
                %292 = vst [vmem:[%s206 + $0x150] sm:$0xff] %v291
                %v293 = vld [vmem:[%s205 + $0x2a8] sm:$0xff]
                %294 = vst [vmem:[%s206 + $0x158] sm:$0xff] %v293
                %v295 = vld [vmem:[%s205 + $0x2c0] sm:$0xff]
                %296 = vst [vmem:[%s206 + $0x160] sm:$0xff] %v295
                %v297 = vld [vmem:[%s205 + $0x2c8] sm:$0xff]
                %298 = vst [vmem:[%s206 + $0x168] sm:$0xff] %v297
                %v299 = vld [vmem:[%s205 + $0x2e0] sm:$0xff]
                %300 = vst [vmem:[%s206 + $0x170] sm:$0xff] %v299
                %v301 = vld [vmem:[%s205 + $0x2e8] sm:$0xff]
                %302 = vst [vmem:[%s206 + $0x178] sm:$0xff] %v301
                %v303 = vld [vmem:[%s205 + $0x300] sm:$0xff]
                %304 = vst [vmem:[%s206 + $0x180] sm:$0xff] %v303
                %v305 = vld [vmem:[%s205 + $0x308] sm:$0xff]
                %306 = vst [vmem:[%s206 + $0x188] sm:$0xff] %v305
                %v307 = vld [vmem:[%s205 + $0x320] sm:$0xff]
                %308 = vst [vmem:[%s206 + $0x190] sm:$0xff] %v307
                %v309 = vld [vmem:[%s205 + $0x328] sm:$0xff]
                %310 = vst [vmem:[%s206 + $0x198] sm:$0xff] %v309
                %v311 = vld [vmem:[%s205 + $0x340] sm:$0xff]
                %312 = vst [vmem:[%s206 + $0x1a0] sm:$0xff] %v311
                %v313 = vld [vmem:[%s205 + $0x348] sm:$0xff]
                %314 = vst [vmem:[%s206 + $0x1a8] sm:$0xff] %v313
                %v315 = vld [vmem:[%s205 + $0x360] sm:$0xff]
                %316 = vst [vmem:[%s206 + $0x1b0] sm:$0xff] %v315
                %v317 = vld [vmem:[%s205 + $0x368] sm:$0xff]
                %318 = vst [vmem:[%s206 + $0x1b8] sm:$0xff] %v317
                %v319 = vld [vmem:[%s205 + $0x380] sm:$0xff]
                %320 = vst [vmem:[%s206 + $0x1c0] sm:$0xff] %v319
                %v321 = vld [vmem:[%s205 + $0x388] sm:$0xff]
                %322 = vst [vmem:[%s206 + $0x1c8] sm:$0xff] %v321
                %v323 = vld [vmem:[%s205 + $0x3a0] sm:$0xff]
                %324 = vst [vmem:[%s206 + $0x1d0] sm:$0xff] %v323
                %v325 = vld [vmem:[%s205 + $0x3a8] sm:$0xff]
                %326 = vst [vmem:[%s206 + $0x1d8] sm:$0xff] %v325
                %v327 = vld [vmem:[%s205 + $0x3c0] sm:$0xff]
                %328 = vst [vmem:[%s206 + $0x1e0] sm:$0xff] %v327
                %v329 = vld [vmem:[%s205 + $0x3c8] sm:$0xff]
                %330 = vst [vmem:[%s206 + $0x1e8] sm:$0xff] %v329
                %v331 = vld [vmem:[%s205 + $0x3e0] sm:$0xff]
                %332 = vst [vmem:[%s206 + $0x1f0] sm:$0xff] %v331
                %v333 = vld [vmem:[%s205 + $0x3e8] sm:$0xff]
                %334 = vst [vmem:[%s206 + $0x1f8] sm:$0xff] %v333
                %v335 = vld [vmem:[%s205 + $0x400] sm:$0xff]
                %336 = vst [vmem:[%s206 + $0x200] sm:$0xff] %v335
                %v337 = vld [vmem:[%s205 + $0x408] sm:$0xff]
                %338 = vst [vmem:[%s206 + $0x208] sm:$0xff] %v337
                %v339 = vld [vmem:[%s205 + $0x420] sm:$0xff]
                %340 = vst [vmem:[%s206 + $0x210] sm:$0xff] %v339
                %v341 = vld [vmem:[%s205 + $0x428] sm:$0xff]
                %342 = vst [vmem:[%s206 + $0x218] sm:$0xff] %v341
                %v343 = vld [vmem:[%s205 + $0x440] sm:$0xff]
                %344 = vst [vmem:[%s206 + $0x220] sm:$0xff] %v343
                %v345 = vld [vmem:[%s205 + $0x448] sm:$0xff]
                %346 = vst [vmem:[%s206 + $0x228] sm:$0xff] %v345
                %v347 = vld [vmem:[%s205 + $0x460] sm:$0xff]
                %348 = vst [vmem:[%s206 + $0x230] sm:$0xff] %v347
                %v349 = vld [vmem:[%s205 + $0x468] sm:$0xff]
                %350 = vst [vmem:[%s206 + $0x238] sm:$0xff] %v349
                %v351 = vld [vmem:[%s205 + $0x480] sm:$0xff]
                %352 = vst [vmem:[%s206 + $0x240] sm:$0xff] %v351
                %v353 = vld [vmem:[%s205 + $0x488] sm:$0xff]
                %354 = vst [vmem:[%s206 + $0x248] sm:$0xff] %v353
                %v355 = vld [vmem:[%s205 + $0x4a0] sm:$0xff]
                %356 = vst [vmem:[%s206 + $0x250] sm:$0xff] %v355
                %v357 = vld [vmem:[%s205 + $0x4a8] sm:$0xff]
                %358 = vst [vmem:[%s206 + $0x258] sm:$0xff] %v357
                %v359 = vld [vmem:[%s205 + $0x4c0] sm:$0xff]
                %360 = vst [vmem:[%s206 + $0x260] sm:$0xff] %v359
                %v361 = vld [vmem:[%s205 + $0x4c8] sm:$0xff]
                %362 = vst [vmem:[%s206 + $0x268] sm:$0xff] %v361
                %v363 = vld [vmem:[%s205 + $0x4e0] sm:$0xff]
                %364 = vst [vmem:[%s206 + $0x270] sm:$0xff] %v363
                %v365 = vld [vmem:[%s205 + $0x4e8] sm:$0xff]
                %366 = vst [vmem:[%s206 + $0x278] sm:$0xff] %v365
                %v367 = vld [vmem:[%s205 + $0x500] sm:$0xff]
                %368 = vst [vmem:[%s206 + $0x280] sm:$0xff] %v367
                %v369 = vld [vmem:[%s205 + $0x508] sm:$0xff]
                %370 = vst [vmem:[%s206 + $0x288] sm:$0xff] %v369
                %v371 = vld [vmem:[%s205 + $0x520] sm:$0xff]
                %372 = vst [vmem:[%s206 + $0x290] sm:$0xff] %v371
                %v373 = vld [vmem:[%s205 + $0x528] sm:$0xff]
                %374 = vst [vmem:[%s206 + $0x298] sm:$0xff] %v373
                %v375 = vld [vmem:[%s205 + $0x540] sm:$0xff]
                %376 = vst [vmem:[%s206 + $0x2a0] sm:$0xff] %v375
                %v377 = vld [vmem:[%s205 + $0x548] sm:$0xff]
                %378 = vst [vmem:[%s206 + $0x2a8] sm:$0xff] %v377
                %v379 = vld [vmem:[%s205 + $0x560] sm:$0xff]
                %380 = vst [vmem:[%s206 + $0x2b0] sm:$0xff] %v379
                %v381 = vld [vmem:[%s205 + $0x568] sm:$0xff]
                %382 = vst [vmem:[%s206 + $0x2b8] sm:$0xff] %v381
                %v383 = vld [vmem:[%s205 + $0x580] sm:$0xff]
                %384 = vst [vmem:[%s206 + $0x2c0] sm:$0xff] %v383
                %v385 = vld [vmem:[%s205 + $0x588] sm:$0xff]
                %386 = vst [vmem:[%s206 + $0x2c8] sm:$0xff] %v385
                %v387 = vld [vmem:[%s205 + $0x5a0] sm:$0xff]
                %388 = vst [vmem:[%s206 + $0x2d0] sm:$0xff] %v387
                %v389 = vld [vmem:[%s205 + $0x5a8] sm:$0xff]
                %390 = vst [vmem:[%s206 + $0x2d8] sm:$0xff] %v389
                %v391 = vld [vmem:[%s205 + $0x5c0] sm:$0xff]
                %392 = vst [vmem:[%s206 + $0x2e0] sm:$0xff] %v391
                %v393 = vld [vmem:[%s205 + $0x5c8] sm:$0xff]
                %394 = vst [vmem:[%s206 + $0x2e8] sm:$0xff] %v393
                %v395 = vld [vmem:[%s205 + $0x5e0] sm:$0xff]
                %396 = vst [vmem:[%s206 + $0x2f0] sm:$0xff] %v395
                %v397 = vld [vmem:[%s205 + $0x5e8] sm:$0xff]
                %398 = vst [vmem:[%s206 + $0x2f8] sm:$0xff] %v397
                %v399 = vld [vmem:[%s205 + $0x600] sm:$0xff]
                %400 = vst [vmem:[%s206 + $0x300] sm:$0xff] %v399
                %v401 = vld [vmem:[%s205 + $0x608] sm:$0xff]
                %402 = vst [vmem:[%s206 + $0x308] sm:$0xff] %v401
                %v403 = vld [vmem:[%s205 + $0x620] sm:$0xff]
                %404 = vst [vmem:[%s206 + $0x310] sm:$0xff] %v403
                %v405 = vld [vmem:[%s205 + $0x628] sm:$0xff]
                %406 = vst [vmem:[%s206 + $0x318] sm:$0xff] %v405
                %v407 = vld [vmem:[%s205 + $0x640] sm:$0xff]
                %408 = vst [vmem:[%s206 + $0x320] sm:$0xff] %v407
                %v409 = vld [vmem:[%s205 + $0x648] sm:$0xff]
                %410 = vst [vmem:[%s206 + $0x328] sm:$0xff] %v409
                %v411 = vld [vmem:[%s205 + $0x660] sm:$0xff]
                %412 = vst [vmem:[%s206 + $0x330] sm:$0xff] %v411
                %v413 = vld [vmem:[%s205 + $0x668] sm:$0xff]
                %414 = vst [vmem:[%s206 + $0x338] sm:$0xff] %v413
                %v415 = vld [vmem:[%s205 + $0x680] sm:$0xff]
                %416 = vst [vmem:[%s206 + $0x340] sm:$0xff] %v415
                %v417 = vld [vmem:[%s205 + $0x688] sm:$0xff]
                %418 = vst [vmem:[%s206 + $0x348] sm:$0xff] %v417
                %v419 = vld [vmem:[%s205 + $0x6a0] sm:$0xff]
                %420 = vst [vmem:[%s206 + $0x350] sm:$0xff] %v419
                %v421 = vld [vmem:[%s205 + $0x6a8] sm:$0xff]
                %422 = vst [vmem:[%s206 + $0x358] sm:$0xff] %v421
                %v423 = vld [vmem:[%s205 + $0x6c0] sm:$0xff]
                %424 = vst [vmem:[%s206 + $0x360] sm:$0xff] %v423
                %v425 = vld [vmem:[%s205 + $0x6c8] sm:$0xff]
                %426 = vst [vmem:[%s206 + $0x368] sm:$0xff] %v425
                %v427 = vld [vmem:[%s205 + $0x6e0] sm:$0xff]
                %428 = vst [vmem:[%s206 + $0x370] sm:$0xff] %v427
                %v429 = vld [vmem:[%s205 + $0x6e8] sm:$0xff]
                %430 = vst [vmem:[%s206 + $0x378] sm:$0xff] %v429
                %v431 = vld [vmem:[%s205 + $0x700] sm:$0xff]
                %432 = vst [vmem:[%s206 + $0x380] sm:$0xff] %v431
                %v433 = vld [vmem:[%s205 + $0x708] sm:$0xff]
                %434 = vst [vmem:[%s206 + $0x388] sm:$0xff] %v433
                %v435 = vld [vmem:[%s205 + $0x720] sm:$0xff]
                %436 = vst [vmem:[%s206 + $0x390] sm:$0xff] %v435
                %v437 = vld [vmem:[%s205 + $0x728] sm:$0xff]
                %438 = vst [vmem:[%s206 + $0x398] sm:$0xff] %v437
                %v439 = vld [vmem:[%s205 + $0x740] sm:$0xff]
                %440 = vst [vmem:[%s206 + $0x3a0] sm:$0xff] %v439
                %v441 = vld [vmem:[%s205 + $0x748] sm:$0xff]
                %442 = vst [vmem:[%s206 + $0x3a8] sm:$0xff] %v441
                %v443 = vld [vmem:[%s205 + $0x760] sm:$0xff]
                %444 = vst [vmem:[%s206 + $0x3b0] sm:$0xff] %v443
                %v445 = vld [vmem:[%s205 + $0x768] sm:$0xff]
                %446 = vst [vmem:[%s206 + $0x3b8] sm:$0xff] %v445
                %v447 = vld [vmem:[%s205 + $0x780] sm:$0xff]
                %448 = vst [vmem:[%s206 + $0x3c0] sm:$0xff] %v447
                %v449 = vld [vmem:[%s205 + $0x788] sm:$0xff]
                %450 = vst [vmem:[%s206 + $0x3c8] sm:$0xff] %v449
                %v451 = vld [vmem:[%s205 + $0x7a0] sm:$0xff]
                %452 = vst [vmem:[%s206 + $0x3d0] sm:$0xff] %v451
                %v453 = vld [vmem:[%s205 + $0x7a8] sm:$0xff]
                %454 = vst [vmem:[%s206 + $0x3d8] sm:$0xff] %v453
                %v455 = vld [vmem:[%s205 + $0x7c0] sm:$0xff]
                %456 = vst [vmem:[%s206 + $0x3e0] sm:$0xff] %v455
                %v457 = vld [vmem:[%s205 + $0x7c8] sm:$0xff]
                %458 = vst [vmem:[%s206 + $0x3e8] sm:$0xff] %v457
                %v459 = vld [vmem:[%s205 + $0x7e0] sm:$0xff]
                %460 = vst [vmem:[%s206 + $0x3f0] sm:$0xff] %v459
                %v461 = vld [vmem:[%s205 + $0x7e8] sm:$0xff]
                %462 = vst [vmem:[%s206 + $0x3f8] sm:$0xff] %v461
              $region41: #{net_d_forward.5} parent=35 // loop_footer
                %s204 = sadd.s32 1, %s200
              $region42: #{net_d_forward.5} parent=35 // loop_footer_branch
                %199 = sbr.rel target = $region38
              $region43: #{net_d_forward.5} parent=35 // loop_exit
                _
            $region36: #{net_d_forward.5} parent=31 // pred_fallthru
              _
            // Predicated region
            $region44: #{net_d_forward.5} parent=31 // pred_check
              _
            $region45: #{net_d_forward.5} parent=31 // pred_check_branch
              %464 = sbr.rel target = $region47
            $region46: #{net_d_forward.5} parent=31 // pred_region
              _
            $region47: #{net_d_forward.5} parent=31 // pred_fallthru
              _
          $region32: #{net_d_forward.5} parent=27 // pred_fallthru
            _
          %465 = vnop
        $region28: #{net_d_forward.5} parent=23 // pred_fallthru
          _
        // Predicated region
        $region48: #{net_d_forward.5} parent=23 // pred_check
          %p466 = pneg %p70
        $region49: #{net_d_forward.5} parent=23 // pred_check_branch
          %468 = sbr.rel (%p466) target = $region51
        $region50: #{net_d_forward.5} parent=23 // pred_region
          %s469 = smul.u32 64, %s18
          %p470 = scmp.lt.s32.totalorder %s469, 127
          %s471 = scalar_select %p470, %s469, 127
          %p472 = scmp.lt.s32.totalorder %s17, 0
          %s473 = scalar_select %p472, %s17, 0
          %s474 = sadd.s32 %s473, %s471
          %s475 = smul.addr %s474, 4
          %s476 = scalar_lea.vmem %s1, %s475
          %s477 = smul.u32 64, %s18
        $region51: #{net_d_forward.5} parent=23 // pred_fallthru
          _
      $region24: #{net_d_forward.5} parent=5 // pred_fallthru
        _
      %p478 = scmp.le.s32.totalorder 1, %s10
      %p479 = scmp.lt.s32.totalorder %s10, 3
      %p480 = pnand %p478, %p479
      %p481 = pneg %p480
      // Predicated region
      $region52: #{net_d_forward.5} parent=5 // pred_check
        _
      $region53: #{net_d_forward.5} parent=5 // pred_check_branch
        %483 = sbr.rel (%p480) target = $region55
      $region54: #{net_d_forward.5} parent=5 // pred_region
        %s484 = ssub.s32 %s10, 1
        %s485 = sand.u32 %s35, 1
        %s486 = sand.u32 %s35, 1
        %s487 = smul.addr %s486, 1024
        %s488 = scalar_lea.vmem [#allocation3], %s487
        // Predicated region
        $region56: #{net_d_forward.5} parent=54 // pred_check
          %p489 = pneg %p48
        $region57: #{net_d_forward.5} parent=54 // pred_check_branch
          %491 = sbr.rel (%p489) target = $region59
        $region58: #{net_d_forward.5} parent=54 // pred_region
          _
        $region59: #{net_d_forward.5} parent=54 // pred_fallthru
          _
        %s492 = sand.u32 %s35, 1
        %s493 = sand.u32 %s35, 1
        %s494 = smul.addr %s493, 1024
        %s495 = scalar_lea.vmem [#allocation3], %s494
        %p496 = pneg %p48
        %p497 = pneg %p45
        %s498 = smul.u32 64, %s20
        %p499 = scmp.lt.s32.totalorder %s498, 127
        %s500 = scalar_select %p499, %s498, 127
        %p501 = scmp.lt.s32.totalorder %s19, 0
        %s502 = scalar_select %p501, %s19, 0
        %s503 = sadd.s32 %s502, %s500
        %s504 = smul.addr %s503, 4
        %s505 = scalar_lea.vmem %s1, %s504
        %p506 = pneg %p76
        %p507 = pneg %p73
        %p508 = scmp.lt.s32.totalorder %s19, 0
        %s509 = scalar_select %p508, %s19, 0
        %s510 = scalar_lea.vmem %s2, %s509
        %p511 = pneg %p102
        %p512 = pneg %p99
        %p513 = scmp.lt.s32.totalorder %s19, 0
        %s514 = scalar_select %p513, %s19, 0
        %s515 = scalar_lea.vmem %s3, %s514
        %p516 = pneg %p128
        %p517 = pneg %p125
        %p518 = pneg %p154
        %p519 = pneg %p151
        %p520 = scmp.lt.s32.totalorder %s19, 0
        %s521 = scalar_select %p520, %s19, 0
        %s522 = smul.addr %s521, 4
        %s523 = scalar_lea.vmem %s4, %s522
        %s524 = smul.u32 4, %s20
        %s525 = smul.u32 64, %s20
        %p526 = scmp.lt.s32.totalorder %s525, 127
        %s527 = scalar_select %p526, %s525, 127
        %p528 = scmp.lt.s32.totalorder %s19, 0
        %s529 = scalar_select %p528, %s19, 0
        %s530 = sadd.s32 %s529, %s527
        %s531 = smul.addr %s530, 4
        %s532 = scalar_lea.vmem %s1, %s531
        %s533 = smul.u32 64, %s20
        %p534 = scmp.lt.s32.totalorder %s19, 0
        %s535 = scalar_select %p534, %s19, 0
        %s536 = scalar_lea.vmem %s2, %s535
        %p537 = scmp.lt.s32.totalorder %s19, 0
        %s538 = scalar_select %p537, %s19, 0
        %s539 = scalar_lea.vmem %s3, %s538
        %p540 = scmp.lt.s32.totalorder %s19, 0
        %s541 = scalar_select %p540, %s19, 0
        %s542 = smul.addr %s541, 4
        %s543 = scalar_lea.vmem %s4, %s542
        %p544 = scmp.eq.s32.totalorder %s20, 0
        // Predicated region
        $region60: #{net_d_forward.5} parent=54 // pred_check
          %p545 = pneg %p544
        $region61: #{net_d_forward.5} parent=54 // pred_check_branch
          %547 = sbr.rel (%p545) target = $region63
        $region62: #{net_d_forward.5} parent=54 // pred_region
          %548 = vst [vmem:[#allocation2] sm:$0xff] 0.0
          %549 = vst [vmem:[#allocation2 + $0x8] sm:$0xff] 0.0
          %550 = vst [vmem:[#allocation2 + $0x10] sm:$0xff] 0.0
          %551 = vst [vmem:[#allocation2 + $0x18] sm:$0xff] 0.0
          %552 = vst [vmem:[#allocation2 + $0x20] sm:$0xff] 0.0
          %553 = vst [vmem:[#allocation2 + $0x28] sm:$0xff] 0.0
          %554 = vst [vmem:[#allocation2 + $0x30] sm:$0xff] 0.0
          %555 = vst [vmem:[#allocation2 + $0x38] sm:$0xff] 0.0
          %556 = vst [vmem:[#allocation2 + $0x40] sm:$0xff] 0.0
          %557 = vst [vmem:[#allocation2 + $0x48] sm:$0xff] 0.0
          %558 = vst [vmem:[#allocation2 + $0x50] sm:$0xff] 0.0
          %559 = vst [vmem:[#allocation2 + $0x58] sm:$0xff] 0.0
          %560 = vst [vmem:[#allocation2 + $0x60] sm:$0xff] 0.0
          %561 = vst [vmem:[#allocation2 + $0x68] sm:$0xff] 0.0
          %562 = vst [vmem:[#allocation2 + $0x70] sm:$0xff] 0.0
          %563 = vst [vmem:[#allocation2 + $0x78] sm:$0xff] 0.0
          %564 = vst [vmem:[#allocation2 + $0x80] sm:$0xff] 0.0
          %565 = vst [vmem:[#allocation2 + $0x88] sm:$0xff] 0.0
          %566 = vst [vmem:[#allocation2 + $0x90] sm:$0xff] 0.0
          %567 = vst [vmem:[#allocation2 + $0x98] sm:$0xff] 0.0
          %568 = vst [vmem:[#allocation2 + $0xa0] sm:$0xff] 0.0
          %569 = vst [vmem:[#allocation2 + $0xa8] sm:$0xff] 0.0
          %570 = vst [vmem:[#allocation2 + $0xb0] sm:$0xff] 0.0
          %571 = vst [vmem:[#allocation2 + $0xb8] sm:$0xff] 0.0
          %572 = vst [vmem:[#allocation2 + $0xc0] sm:$0xff] 0.0
          %573 = vst [vmem:[#allocation2 + $0xc8] sm:$0xff] 0.0
          %574 = vst [vmem:[#allocation2 + $0xd0] sm:$0xff] 0.0
          %575 = vst [vmem:[#allocation2 + $0xd8] sm:$0xff] 0.0
          %576 = vst [vmem:[#allocation2 + $0xe0] sm:$0xff] 0.0
          %577 = vst [vmem:[#allocation2 + $0xe8] sm:$0xff] 0.0
          %578 = vst [vmem:[#allocation2 + $0xf0] sm:$0xff] 0.0
          %579 = vst [vmem:[#allocation2 + $0xf8] sm:$0xff] 0.0
          %580 = vst [vmem:[#allocation2 + $0x100] sm:$0xff] 0.0
          %581 = vst [vmem:[#allocation2 + $0x108] sm:$0xff] 0.0
          %582 = vst [vmem:[#allocation2 + $0x110] sm:$0xff] 0.0
          %583 = vst [vmem:[#allocation2 + $0x118] sm:$0xff] 0.0
          %584 = vst [vmem:[#allocation2 + $0x120] sm:$0xff] 0.0
          %585 = vst [vmem:[#allocation2 + $0x128] sm:$0xff] 0.0
          %586 = vst [vmem:[#allocation2 + $0x130] sm:$0xff] 0.0
          %587 = vst [vmem:[#allocation2 + $0x138] sm:$0xff] 0.0
          %588 = vst [vmem:[#allocation2 + $0x140] sm:$0xff] 0.0
          %589 = vst [vmem:[#allocation2 + $0x148] sm:$0xff] 0.0
          %590 = vst [vmem:[#allocation2 + $0x150] sm:$0xff] 0.0
          %591 = vst [vmem:[#allocation2 + $0x158] sm:$0xff] 0.0
          %592 = vst [vmem:[#allocation2 + $0x160] sm:$0xff] 0.0
          %593 = vst [vmem:[#allocation2 + $0x168] sm:$0xff] 0.0
          %594 = vst [vmem:[#allocation2 + $0x170] sm:$0xff] 0.0
          %595 = vst [vmem:[#allocation2 + $0x178] sm:$0xff] 0.0
          %596 = vst [vmem:[#allocation2 + $0x180] sm:$0xff] 0.0
          %597 = vst [vmem:[#allocation2 + $0x188] sm:$0xff] 0.0
          %598 = vst [vmem:[#allocation2 + $0x190] sm:$0xff] 0.0
          %599 = vst [vmem:[#allocation2 + $0x198] sm:$0xff] 0.0
          %600 = vst [vmem:[#allocation2 + $0x1a0] sm:$0xff] 0.0
          %601 = vst [vmem:[#allocation2 + $0x1a8] sm:$0xff] 0.0
          %602 = vst [vmem:[#allocation2 + $0x1b0] sm:$0xff] 0.0
          %603 = vst [vmem:[#allocation2 + $0x1b8] sm:$0xff] 0.0
          %604 = vst [vmem:[#allocation2 + $0x1c0] sm:$0xff] 0.0
          %605 = vst [vmem:[#allocation2 + $0x1c8] sm:$0xff] 0.0
          %606 = vst [vmem:[#allocation2 + $0x1d0] sm:$0xff] 0.0
          %607 = vst [vmem:[#allocation2 + $0x1d8] sm:$0xff] 0.0
          %608 = vst [vmem:[#allocation2 + $0x1e0] sm:$0xff] 0.0
          %609 = vst [vmem:[#allocation2 + $0x1e8] sm:$0xff] 0.0
          %610 = vst [vmem:[#allocation2 + $0x1f0] sm:$0xff] 0.0
          %611 = vst [vmem:[#allocation2 + $0x1f8] sm:$0xff] 0.0
        $region63: #{net_d_forward.5} parent=54 // pred_fallthru
          _
        %v612 = vld [vmem:[#allocation2] sm:$0xff]
        %v613 = vld [vmem:[#allocation2 + $0x8] sm:$0xff]
        %v614 = vld [vmem:[#allocation2 + $0x10] sm:$0xff]
        %v615 = vld [vmem:[#allocation2 + $0x18] sm:$0xff]
        %v616 = vld [vmem:[#allocation2 + $0x20] sm:$0xff]
        %v617 = vld [vmem:[#allocation2 + $0x28] sm:$0xff]
        %v618 = vld [vmem:[#allocation2 + $0x30] sm:$0xff]
        %v619 = vld [vmem:[#allocation2 + $0x38] sm:$0xff]
        %v620 = vld [vmem:[#allocation2 + $0x40] sm:$0xff]
        %v621 = vld [vmem:[#allocation2 + $0x48] sm:$0xff]
        %v622 = vld [vmem:[#allocation2 + $0x50] sm:$0xff]
        %v623 = vld [vmem:[#allocation2 + $0x58] sm:$0xff]
        %v624 = vld [vmem:[#allocation2 + $0x60] sm:$0xff]
        %v625 = vld [vmem:[#allocation2 + $0x68] sm:$0xff]
        %v626 = vld [vmem:[#allocation2 + $0x70] sm:$0xff]
        %v627 = vld [vmem:[#allocation2 + $0x78] sm:$0xff]
        %v628 = vld [vmem:[#allocation2 + $0x80] sm:$0xff]
        %v629 = vld [vmem:[#allocation2 + $0x88] sm:$0xff]
        %v630 = vld [vmem:[#allocation2 + $0x90] sm:$0xff]
        %v631 = vld [vmem:[#allocation2 + $0x98] sm:$0xff]
        %v632 = vld [vmem:[#allocation2 + $0xa0] sm:$0xff]
        %v633 = vld [vmem:[#allocation2 + $0xa8] sm:$0xff]
        %v634 = vld [vmem:[#allocation2 + $0xb0] sm:$0xff]
        %v635 = vld [vmem:[#allocation2 + $0xb8] sm:$0xff]
        %v636 = vld [vmem:[#allocation2 + $0xc0] sm:$0xff]
        %v637 = vld [vmem:[#allocation2 + $0xc8] sm:$0xff]
        %v638 = vld [vmem:[#allocation2 + $0xd0] sm:$0xff]
        %v639 = vld [vmem:[#allocation2 + $0xd8] sm:$0xff]
        %v640 = vld [vmem:[#allocation2 + $0xe0] sm:$0xff]
        %v641 = vld [vmem:[#allocation2 + $0xe8] sm:$0xff]
        %v642 = vld [vmem:[#allocation2 + $0xf0] sm:$0xff]
        %v643 = vld [vmem:[#allocation2 + $0xf8] sm:$0xff]
        %v644 = vld [vmem:[#allocation2 + $0x100] sm:$0xff]
        %v645 = vld [vmem:[#allocation2 + $0x108] sm:$0xff]
        %v646 = vld [vmem:[#allocation2 + $0x110] sm:$0xff]
        %v647 = vld [vmem:[#allocation2 + $0x118] sm:$0xff]
        %v648 = vld [vmem:[#allocation2 + $0x120] sm:$0xff]
        %v649 = vld [vmem:[#allocation2 + $0x128] sm:$0xff]
        %v650 = vld [vmem:[#allocation2 + $0x130] sm:$0xff]
        %v651 = vld [vmem:[#allocation2 + $0x138] sm:$0xff]
        %v652 = vld [vmem:[#allocation2 + $0x140] sm:$0xff]
        %v653 = vld [vmem:[#allocation2 + $0x148] sm:$0xff]
        %v654 = vld [vmem:[#allocation2 + $0x150] sm:$0xff]
        %v655 = vld [vmem:[#allocation2 + $0x158] sm:$0xff]
        %v656 = vld [vmem:[#allocation2 + $0x160] sm:$0xff]
        %v657 = vld [vmem:[#allocation2 + $0x168] sm:$0xff]
        %v658 = vld [vmem:[#allocation2 + $0x170] sm:$0xff]
        %v659 = vld [vmem:[#allocation2 + $0x178] sm:$0xff]
        %v660 = vld [vmem:[#allocation2 + $0x180] sm:$0xff]
        %v661 = vld [vmem:[#allocation2 + $0x188] sm:$0xff]
        %v662 = vld [vmem:[#allocation2 + $0x190] sm:$0xff]
        %v663 = vld [vmem:[#allocation2 + $0x198] sm:$0xff]
        %v664 = vld [vmem:[#allocation2 + $0x1a0] sm:$0xff]
        %v665 = vld [vmem:[#allocation2 + $0x1a8] sm:$0xff]
        %v666 = vld [vmem:[#allocation2 + $0x1b0] sm:$0xff]
        %v667 = vld [vmem:[#allocation2 + $0x1b8] sm:$0xff]
        %v668 = vld [vmem:[#allocation2 + $0x1c0] sm:$0xff]
        %v669 = vld [vmem:[#allocation2 + $0x1c8] sm:$0xff]
        %v670 = vld [vmem:[#allocation2 + $0x1d0] sm:$0xff]
        %v671 = vld [vmem:[#allocation2 + $0x1d8] sm:$0xff]
        %v672 = vld [vmem:[#allocation2 + $0x1e0] sm:$0xff]
        %v673 = vld [vmem:[#allocation2 + $0x1e8] sm:$0xff]
        %v674 = vld [vmem:[#allocation2 + $0x1f0] sm:$0xff]
        %v675 = vld [vmem:[#allocation2 + $0x1f8] sm:$0xff]
        %v676 = vld [vmem:[%s488] sm:$0xff]
        %v677 = vld [vmem:[%s488 + $0x8] sm:$0xff]
        %v678 = vld [vmem:[%s488 + $0x10] sm:$0xff]
        %v679 = vld [vmem:[%s488 + $0x18] sm:$0xff]
        %v680 = vld [vmem:[%s488 + $0x20] sm:$0xff]
        %v681 = vld [vmem:[%s488 + $0x28] sm:$0xff]
        %v682 = vld [vmem:[%s488 + $0x30] sm:$0xff]
        %v683 = vld [vmem:[%s488 + $0x38] sm:$0xff]
        %v684 = vld [vmem:[%s488 + $0x40] sm:$0xff]
        %v685 = vld [vmem:[%s488 + $0x48] sm:$0xff]
        %v686 = vld [vmem:[%s488 + $0x50] sm:$0xff]
        %v687 = vld [vmem:[%s488 + $0x58] sm:$0xff]
        %v688 = vld [vmem:[%s488 + $0x60] sm:$0xff]
        %v689 = vld [vmem:[%s488 + $0x68] sm:$0xff]
        %v690 = vld [vmem:[%s488 + $0x70] sm:$0xff]
        %v691 = vld [vmem:[%s488 + $0x78] sm:$0xff]
        %v692 = vld [vmem:[%s488 + $0x80] sm:$0xff]
        %v693 = vld [vmem:[%s488 + $0x88] sm:$0xff]
        %v694 = vld [vmem:[%s488 + $0x90] sm:$0xff]
        %v695 = vld [vmem:[%s488 + $0x98] sm:$0xff]
        %v696 = vld [vmem:[%s488 + $0xa0] sm:$0xff]
        %v697 = vld [vmem:[%s488 + $0xa8] sm:$0xff]
        %v698 = vld [vmem:[%s488 + $0xb0] sm:$0xff]
        %v699 = vld [vmem:[%s488 + $0xb8] sm:$0xff]
        %v700 = vld [vmem:[%s488 + $0xc0] sm:$0xff]
        %v701 = vld [vmem:[%s488 + $0xc8] sm:$0xff]
        %v702 = vld [vmem:[%s488 + $0xd0] sm:$0xff]
        %v703 = vld [vmem:[%s488 + $0xd8] sm:$0xff]
        %v704 = vld [vmem:[%s488 + $0xe0] sm:$0xff]
        %v705 = vld [vmem:[%s488 + $0xe8] sm:$0xff]
        %v706 = vld [vmem:[%s488 + $0xf0] sm:$0xff]
        %v707 = vld [vmem:[%s488 + $0xf8] sm:$0xff]
        %v708 = vld [vmem:[%s488 + $0x100] sm:$0xff]
        %v709 = vld [vmem:[%s488 + $0x108] sm:$0xff]
        %v710 = vld [vmem:[%s488 + $0x110] sm:$0xff]
        %v711 = vld [vmem:[%s488 + $0x118] sm:$0xff]
        %v712 = vld [vmem:[%s488 + $0x120] sm:$0xff]
        %v713 = vld [vmem:[%s488 + $0x128] sm:$0xff]
        %v714 = vld [vmem:[%s488 + $0x130] sm:$0xff]
        %v715 = vld [vmem:[%s488 + $0x138] sm:$0xff]
        %v716 = vld [vmem:[%s488 + $0x140] sm:$0xff]
        %v717 = vld [vmem:[%s488 + $0x148] sm:$0xff]
        %v718 = vld [vmem:[%s488 + $0x150] sm:$0xff]
        %v719 = vld [vmem:[%s488 + $0x158] sm:$0xff]
        %v720 = vld [vmem:[%s488 + $0x160] sm:$0xff]
        %v721 = vld [vmem:[%s488 + $0x168] sm:$0xff]
        %v722 = vld [vmem:[%s488 + $0x170] sm:$0xff]
        %v723 = vld [vmem:[%s488 + $0x178] sm:$0xff]
        %v724 = vld [vmem:[%s488 + $0x180] sm:$0xff]
        %v725 = vld [vmem:[%s488 + $0x188] sm:$0xff]
        %v726 = vld [vmem:[%s488 + $0x190] sm:$0xff]
        %v727 = vld [vmem:[%s488 + $0x198] sm:$0xff]
        %v728 = vld [vmem:[%s488 + $0x1a0] sm:$0xff]
        %v729 = vld [vmem:[%s488 + $0x1a8] sm:$0xff]
        %v730 = vld [vmem:[%s488 + $0x1b0] sm:$0xff]
        %v731 = vld [vmem:[%s488 + $0x1b8] sm:$0xff]
        %v732 = vld [vmem:[%s488 + $0x1c0] sm:$0xff]
        %v733 = vld [vmem:[%s488 + $0x1c8] sm:$0xff]
        %v734 = vld [vmem:[%s488 + $0x1d0] sm:$0xff]
        %v735 = vld [vmem:[%s488 + $0x1d8] sm:$0xff]
        %v736 = vld [vmem:[%s488 + $0x1e0] sm:$0xff]
        %v737 = vld [vmem:[%s488 + $0x1e8] sm:$0xff]
        %v738 = vld [vmem:[%s488 + $0x1f0] sm:$0xff]
        %v739 = vld [vmem:[%s488 + $0x1f8] sm:$0xff]
        %v740 = vld [vmem:[%s488 + $0x200] sm:$0xff]
        %v741 = vld [vmem:[%s488 + $0x208] sm:$0xff]
        %v742 = vld [vmem:[%s488 + $0x210] sm:$0xff]
        %v743 = vld [vmem:[%s488 + $0x218] sm:$0xff]
        %v744 = vld [vmem:[%s488 + $0x220] sm:$0xff]
        %v745 = vld [vmem:[%s488 + $0x228] sm:$0xff]
        %v746 = vld [vmem:[%s488 + $0x230] sm:$0xff]
        %v747 = vld [vmem:[%s488 + $0x238] sm:$0xff]
        %v748 = vld [vmem:[%s488 + $0x240] sm:$0xff]
        %v749 = vld [vmem:[%s488 + $0x248] sm:$0xff]
        %v750 = vld [vmem:[%s488 + $0x250] sm:$0xff]
        %v751 = vld [vmem:[%s488 + $0x258] sm:$0xff]
        %v752 = vld [vmem:[%s488 + $0x260] sm:$0xff]
        %v753 = vld [vmem:[%s488 + $0x268] sm:$0xff]
        %v754 = vld [vmem:[%s488 + $0x270] sm:$0xff]
        %v755 = vld [vmem:[%s488 + $0x278] sm:$0xff]
        %v756 = vld [vmem:[%s488 + $0x280] sm:$0xff]
        %v757 = vld [vmem:[%s488 + $0x288] sm:$0xff]
        %v758 = vld [vmem:[%s488 + $0x290] sm:$0xff]
        %v759 = vld [vmem:[%s488 + $0x298] sm:$0xff]
        %v760 = vld [vmem:[%s488 + $0x2a0] sm:$0xff]
        %v761 = vld [vmem:[%s488 + $0x2a8] sm:$0xff]
        %v762 = vld [vmem:[%s488 + $0x2b0] sm:$0xff]
        %v763 = vld [vmem:[%s488 + $0x2b8] sm:$0xff]
        %v764 = vld [vmem:[%s488 + $0x2c0] sm:$0xff]
        %v765 = vld [vmem:[%s488 + $0x2c8] sm:$0xff]
        %v766 = vld [vmem:[%s488 + $0x2d0] sm:$0xff]
        %v767 = vld [vmem:[%s488 + $0x2d8] sm:$0xff]
        %v768 = vld [vmem:[%s488 + $0x2e0] sm:$0xff]
        %v769 = vld [vmem:[%s488 + $0x2e8] sm:$0xff]
        %v770 = vld [vmem:[%s488 + $0x2f0] sm:$0xff]
        %v771 = vld [vmem:[%s488 + $0x2f8] sm:$0xff]
        %v772 = vld [vmem:[%s488 + $0x300] sm:$0xff]
        %v773 = vld [vmem:[%s488 + $0x308] sm:$0xff]
        %v774 = vld [vmem:[%s488 + $0x310] sm:$0xff]
        %v775 = vld [vmem:[%s488 + $0x318] sm:$0xff]
        %v776 = vld [vmem:[%s488 + $0x320] sm:$0xff]
        %v777 = vld [vmem:[%s488 + $0x328] sm:$0xff]
        %v778 = vld [vmem:[%s488 + $0x330] sm:$0xff]
        %v779 = vld [vmem:[%s488 + $0x338] sm:$0xff]
        %v780 = vld [vmem:[%s488 + $0x340] sm:$0xff]
        %v781 = vld [vmem:[%s488 + $0x348] sm:$0xff]
        %v782 = vld [vmem:[%s488 + $0x350] sm:$0xff]
        %v783 = vld [vmem:[%s488 + $0x358] sm:$0xff]
        %v784 = vld [vmem:[%s488 + $0x360] sm:$0xff]
        %v785 = vld [vmem:[%s488 + $0x368] sm:$0xff]
        %v786 = vld [vmem:[%s488 + $0x370] sm:$0xff]
        %v787 = vld [vmem:[%s488 + $0x378] sm:$0xff]
        %v788 = vld [vmem:[%s488 + $0x380] sm:$0xff]
        %v789 = vld [vmem:[%s488 + $0x388] sm:$0xff]
        %v790 = vld [vmem:[%s488 + $0x390] sm:$0xff]
        %v791 = vld [vmem:[%s488 + $0x398] sm:$0xff]
        %v792 = vld [vmem:[%s488 + $0x3a0] sm:$0xff]
        %v793 = vld [vmem:[%s488 + $0x3a8] sm:$0xff]
        %v794 = vld [vmem:[%s488 + $0x3b0] sm:$0xff]
        %v795 = vld [vmem:[%s488 + $0x3b8] sm:$0xff]
        %v796 = vld [vmem:[%s488 + $0x3c0] sm:$0xff]
        %v797 = vld [vmem:[%s488 + $0x3c8] sm:$0xff]
        %v798 = vld [vmem:[%s488 + $0x3d0] sm:$0xff]
        %v799 = vld [vmem:[%s488 + $0x3d8] sm:$0xff]
        %v800 = vld [vmem:[%s488 + $0x3e0] sm:$0xff]
        %v801 = vld [vmem:[%s488 + $0x3e8] sm:$0xff]
        %v802 = vld [vmem:[%s488 + $0x3f0] sm:$0xff]
        %v803 = vld [vmem:[%s488 + $0x3f8] sm:$0xff]
        %v804 = vld [vmem:[%s532] sm:$0xf]
        %v805 = vld [vmem:[%s532 + $0x4] sm:$0xf]
        %v806 = vld [vmem:[%s532 + $0x8] sm:$0xf]
        %v807 = vld [vmem:[%s532 + $0xc] sm:$0xf]
        %v808 = vld [vmem:[%s532 + $0x10] sm:$0xf]
        %v809 = vld [vmem:[%s532 + $0x14] sm:$0xf]
        %v810 = vld [vmem:[%s532 + $0x18] sm:$0xf]
        %v811 = vld [vmem:[%s532 + $0x1c] sm:$0xf]
        %v812 = vld [vmem:[%s532 + $0x20] sm:$0xf]
        %v813 = vld [vmem:[%s532 + $0x24] sm:$0xf]
        %v814 = vld [vmem:[%s532 + $0x28] sm:$0xf]
        %v815 = vld [vmem:[%s532 + $0x2c] sm:$0xf]
        %v816 = vld [vmem:[%s532 + $0x30] sm:$0xf]
        %v817 = vld [vmem:[%s532 + $0x34] sm:$0xf]
        %v818 = vld [vmem:[%s532 + $0x38] sm:$0xf]
        %v819 = vld [vmem:[%s532 + $0x3c] sm:$0xf]
        %v820 = vld [vmem:[%s532 + $0x40] sm:$0xf]
        %v821 = vld [vmem:[%s532 + $0x44] sm:$0xf]
        %v822 = vld [vmem:[%s532 + $0x48] sm:$0xf]
        %v823 = vld [vmem:[%s532 + $0x4c] sm:$0xf]
        %v824 = vld [vmem:[%s532 + $0x50] sm:$0xf]
        %v825 = vld [vmem:[%s532 + $0x54] sm:$0xf]
        %v826 = vld [vmem:[%s532 + $0x58] sm:$0xf]
        %v827 = vld [vmem:[%s532 + $0x5c] sm:$0xf]
        %v828 = vld [vmem:[%s532 + $0x60] sm:$0xf]
        %v829 = vld [vmem:[%s532 + $0x64] sm:$0xf]
        %v830 = vld [vmem:[%s532 + $0x68] sm:$0xf]
        %v831 = vld [vmem:[%s532 + $0x6c] sm:$0xf]
        %v832 = vld [vmem:[%s532 + $0x70] sm:$0xf]
        %v833 = vld [vmem:[%s532 + $0x74] sm:$0xf]
        %v834 = vld [vmem:[%s532 + $0x78] sm:$0xf]
        %v835 = vld [vmem:[%s532 + $0x7c] sm:$0xf]
        %v836 = vld [vmem:[%s532 + $0x80] sm:$0xf]
        %v837 = vld [vmem:[%s532 + $0x84] sm:$0xf]
        %v838 = vld [vmem:[%s532 + $0x88] sm:$0xf]
        %v839 = vld [vmem:[%s532 + $0x8c] sm:$0xf]
        %v840 = vld [vmem:[%s532 + $0x90] sm:$0xf]
        %v841 = vld [vmem:[%s532 + $0x94] sm:$0xf]
        %v842 = vld [vmem:[%s532 + $0x98] sm:$0xf]
        %v843 = vld [vmem:[%s532 + $0x9c] sm:$0xf]
        %v844 = vld [vmem:[%s532 + $0xa0] sm:$0xf]
        %v845 = vld [vmem:[%s532 + $0xa4] sm:$0xf]
        %v846 = vld [vmem:[%s532 + $0xa8] sm:$0xf]
        %v847 = vld [vmem:[%s532 + $0xac] sm:$0xf]
        %v848 = vld [vmem:[%s532 + $0xb0] sm:$0xf]
        %v849 = vld [vmem:[%s532 + $0xb4] sm:$0xf]
        %v850 = vld [vmem:[%s532 + $0xb8] sm:$0xf]
        %v851 = vld [vmem:[%s532 + $0xbc] sm:$0xf]
        %v852 = vld [vmem:[%s532 + $0xc0] sm:$0xf]
        %v853 = vld [vmem:[%s532 + $0xc4] sm:$0xf]
        %v854 = vld [vmem:[%s532 + $0xc8] sm:$0xf]
        %v855 = vld [vmem:[%s532 + $0xcc] sm:$0xf]
        %v856 = vld [vmem:[%s532 + $0xd0] sm:$0xf]
        %v857 = vld [vmem:[%s532 + $0xd4] sm:$0xf]
        %v858 = vld [vmem:[%s532 + $0xd8] sm:$0xf]
        %v859 = vld [vmem:[%s532 + $0xdc] sm:$0xf]
        %v860 = vld [vmem:[%s532 + $0xe0] sm:$0xf]
        %v861 = vld [vmem:[%s532 + $0xe4] sm:$0xf]
        %v862 = vld [vmem:[%s532 + $0xe8] sm:$0xf]
        %v863 = vld [vmem:[%s532 + $0xec] sm:$0xf]
        %v864 = vld [vmem:[%s532 + $0xf0] sm:$0xf]
        %v865 = vld [vmem:[%s532 + $0xf4] sm:$0xf]
        %v866 = vld [vmem:[%s532 + $0xf8] sm:$0xf]
        %v867 = vld [vmem:[%s532 + $0xfc] sm:$0xf]
        %v996 = vunpack.c.l.b16 %v676
        %v997 = vunpack.c.h.b16 %v676
        %v998 = vunpack.c.l.b16 %v677
        %v999 = vunpack.c.h.b16 %v677
        %v1000 = vunpack.c.l.b16 %v678
        %v1001 = vunpack.c.h.b16 %v678
        %v1002 = vunpack.c.l.b16 %v679
        %v1003 = vunpack.c.h.b16 %v679
        %v1004 = vunpack.c.l.b16 %v680
        %v1005 = vunpack.c.h.b16 %v680
        %v1006 = vunpack.c.l.b16 %v681
        %v1007 = vunpack.c.h.b16 %v681
        %v1008 = vunpack.c.l.b16 %v682
        %v1009 = vunpack.c.h.b16 %v682
        %v1010 = vunpack.c.l.b16 %v683
        %v1011 = vunpack.c.h.b16 %v683
        %v1012 = vunpack.c.l.b16 %v684
        %v1013 = vunpack.c.h.b16 %v684
        %v1014 = vunpack.c.l.b16 %v685
        %v1015 = vunpack.c.h.b16 %v685
        %v1016 = vunpack.c.l.b16 %v686
        %v1017 = vunpack.c.h.b16 %v686
        %v1018 = vunpack.c.l.b16 %v687
        %v1019 = vunpack.c.h.b16 %v687
        %v1020 = vunpack.c.l.b16 %v688
        %v1021 = vunpack.c.h.b16 %v688
        %v1022 = vunpack.c.l.b16 %v689
        %v1023 = vunpack.c.h.b16 %v689
        %v1024 = vunpack.c.l.b16 %v690
        %v1025 = vunpack.c.h.b16 %v690
        %v1026 = vunpack.c.l.b16 %v691
        %v1027 = vunpack.c.h.b16 %v691
        %v1028 = vunpack.c.l.b16 %v692
        %v1029 = vunpack.c.h.b16 %v692
        %v1030 = vunpack.c.l.b16 %v693
        %v1031 = vunpack.c.h.b16 %v693
        %v1032 = vunpack.c.l.b16 %v694
        %v1033 = vunpack.c.h.b16 %v694
        %v1034 = vunpack.c.l.b16 %v695
        %v1035 = vunpack.c.h.b16 %v695
        %v1036 = vunpack.c.l.b16 %v696
        %v1037 = vunpack.c.h.b16 %v696
        %v1038 = vunpack.c.l.b16 %v697
        %v1039 = vunpack.c.h.b16 %v697
        %v1040 = vunpack.c.l.b16 %v698
        %v1041 = vunpack.c.h.b16 %v698
        %v1042 = vunpack.c.l.b16 %v699
        %v1043 = vunpack.c.h.b16 %v699
        %v1044 = vunpack.c.l.b16 %v700
        %v1045 = vunpack.c.h.b16 %v700
        %v1046 = vunpack.c.l.b16 %v701
        %v1047 = vunpack.c.h.b16 %v701
        %v1048 = vunpack.c.l.b16 %v702
        %v1049 = vunpack.c.h.b16 %v702
        %v1050 = vunpack.c.l.b16 %v703
        %v1051 = vunpack.c.h.b16 %v703
        %v1052 = vunpack.c.l.b16 %v704
        %v1053 = vunpack.c.h.b16 %v704
        %v1054 = vunpack.c.l.b16 %v705
        %v1055 = vunpack.c.h.b16 %v705
        %v1056 = vunpack.c.l.b16 %v706
        %v1057 = vunpack.c.h.b16 %v706
        %v1058 = vunpack.c.l.b16 %v707
        %v1059 = vunpack.c.h.b16 %v707
        %v1060 = vunpack.c.l.b16 %v708
        %v1061 = vunpack.c.h.b16 %v708
        %v1062 = vunpack.c.l.b16 %v709
        %v1063 = vunpack.c.h.b16 %v709
        %v1064 = vunpack.c.l.b16 %v710
        %v1065 = vunpack.c.h.b16 %v710
        %v1066 = vunpack.c.l.b16 %v711
        %v1067 = vunpack.c.h.b16 %v711
        %v1068 = vunpack.c.l.b16 %v712
        %v1069 = vunpack.c.h.b16 %v712
        %v1070 = vunpack.c.l.b16 %v713
        %v1071 = vunpack.c.h.b16 %v713
        %v1072 = vunpack.c.l.b16 %v714
        %v1073 = vunpack.c.h.b16 %v714
        %v1074 = vunpack.c.l.b16 %v715
        %v1075 = vunpack.c.h.b16 %v715
        %v1076 = vunpack.c.l.b16 %v716
        %v1077 = vunpack.c.h.b16 %v716
        %v1078 = vunpack.c.l.b16 %v717
        %v1079 = vunpack.c.h.b16 %v717
        %v1080 = vunpack.c.l.b16 %v718
        %v1081 = vunpack.c.h.b16 %v718
        %v1082 = vunpack.c.l.b16 %v719
        %v1083 = vunpack.c.h.b16 %v719
        %v1084 = vunpack.c.l.b16 %v720
        %v1085 = vunpack.c.h.b16 %v720
        %v1086 = vunpack.c.l.b16 %v721
        %v1087 = vunpack.c.h.b16 %v721
        %v1088 = vunpack.c.l.b16 %v722
        %v1089 = vunpack.c.h.b16 %v722
        %v1090 = vunpack.c.l.b16 %v723
        %v1091 = vunpack.c.h.b16 %v723
        %v1092 = vunpack.c.l.b16 %v724
        %v1093 = vunpack.c.h.b16 %v724
        %v1094 = vunpack.c.l.b16 %v725
        %v1095 = vunpack.c.h.b16 %v725
        %v1096 = vunpack.c.l.b16 %v726
        %v1097 = vunpack.c.h.b16 %v726
        %v1098 = vunpack.c.l.b16 %v727
        %v1099 = vunpack.c.h.b16 %v727
        %v1100 = vunpack.c.l.b16 %v728
        %v1101 = vunpack.c.h.b16 %v728
        %v1102 = vunpack.c.l.b16 %v729
        %v1103 = vunpack.c.h.b16 %v729
        %v1104 = vunpack.c.l.b16 %v730
        %v1105 = vunpack.c.h.b16 %v730
        %v1106 = vunpack.c.l.b16 %v731
        %v1107 = vunpack.c.h.b16 %v731
        %v1108 = vunpack.c.l.b16 %v732
        %v1109 = vunpack.c.h.b16 %v732
        %v1110 = vunpack.c.l.b16 %v733
        %v1111 = vunpack.c.h.b16 %v733
        %v1112 = vunpack.c.l.b16 %v734
        %v1113 = vunpack.c.h.b16 %v734
        %v1114 = vunpack.c.l.b16 %v735
        %v1115 = vunpack.c.h.b16 %v735
        %v1116 = vunpack.c.l.b16 %v736
        %v1117 = vunpack.c.h.b16 %v736
        %v1118 = vunpack.c.l.b16 %v737
        %v1119 = vunpack.c.h.b16 %v737
        %v1120 = vunpack.c.l.b16 %v738
        %v1121 = vunpack.c.h.b16 %v738
        %v1122 = vunpack.c.l.b16 %v739
        %v1123 = vunpack.c.h.b16 %v739
        %v1124 = vunpack.c.l.b16 %v740
        %v1125 = vunpack.c.h.b16 %v740
        %v1126 = vunpack.c.l.b16 %v741
        %v1127 = vunpack.c.h.b16 %v741
        %v1128 = vunpack.c.l.b16 %v742
        %v1129 = vunpack.c.h.b16 %v742
        %v1130 = vunpack.c.l.b16 %v743
        %v1131 = vunpack.c.h.b16 %v743
        %v1132 = vunpack.c.l.b16 %v744
        %v1133 = vunpack.c.h.b16 %v744
        %v1134 = vunpack.c.l.b16 %v745
        %v1135 = vunpack.c.h.b16 %v745
        %v1136 = vunpack.c.l.b16 %v746
        %v1137 = vunpack.c.h.b16 %v746
        %v1138 = vunpack.c.l.b16 %v747
        %v1139 = vunpack.c.h.b16 %v747
        %v1140 = vunpack.c.l.b16 %v748
        %v1141 = vunpack.c.h.b16 %v748
        %v1142 = vunpack.c.l.b16 %v749
        %v1143 = vunpack.c.h.b16 %v749
        %v1144 = vunpack.c.l.b16 %v750
        %v1145 = vunpack.c.h.b16 %v750
        %v1146 = vunpack.c.l.b16 %v751
        %v1147 = vunpack.c.h.b16 %v751
        %v1148 = vunpack.c.l.b16 %v752
        %v1149 = vunpack.c.h.b16 %v752
        %v1150 = vunpack.c.l.b16 %v753
        %v1151 = vunpack.c.h.b16 %v753
        %v1152 = vunpack.c.l.b16 %v754
        %v1153 = vunpack.c.h.b16 %v754
        %v1154 = vunpack.c.l.b16 %v755
        %v1155 = vunpack.c.h.b16 %v755
        %v1156 = vunpack.c.l.b16 %v756
        %v1157 = vunpack.c.h.b16 %v756
        %v1158 = vunpack.c.l.b16 %v757
        %v1159 = vunpack.c.h.b16 %v757
        %v1160 = vunpack.c.l.b16 %v758
        %v1161 = vunpack.c.h.b16 %v758
        %v1162 = vunpack.c.l.b16 %v759
        %v1163 = vunpack.c.h.b16 %v759
        %v1164 = vunpack.c.l.b16 %v760
        %v1165 = vunpack.c.h.b16 %v760
        %v1166 = vunpack.c.l.b16 %v761
        %v1167 = vunpack.c.h.b16 %v761
        %v1168 = vunpack.c.l.b16 %v762
        %v1169 = vunpack.c.h.b16 %v762
        %v1170 = vunpack.c.l.b16 %v763
        %v1171 = vunpack.c.h.b16 %v763
        %v1172 = vunpack.c.l.b16 %v764
        %v1173 = vunpack.c.h.b16 %v764
        %v1174 = vunpack.c.l.b16 %v765
        %v1175 = vunpack.c.h.b16 %v765
        %v1176 = vunpack.c.l.b16 %v766
        %v1177 = vunpack.c.h.b16 %v766
        %v1178 = vunpack.c.l.b16 %v767
        %v1179 = vunpack.c.h.b16 %v767
        %v1180 = vunpack.c.l.b16 %v768
        %v1181 = vunpack.c.h.b16 %v768
        %v1182 = vunpack.c.l.b16 %v769
        %v1183 = vunpack.c.h.b16 %v769
        %v1184 = vunpack.c.l.b16 %v770
        %v1185 = vunpack.c.h.b16 %v770
        %v1186 = vunpack.c.l.b16 %v771
        %v1187 = vunpack.c.h.b16 %v771
        %v1188 = vunpack.c.l.b16 %v772
        %v1189 = vunpack.c.h.b16 %v772
        %v1190 = vunpack.c.l.b16 %v773
        %v1191 = vunpack.c.h.b16 %v773
        %v1192 = vunpack.c.l.b16 %v774
        %v1193 = vunpack.c.h.b16 %v774
        %v1194 = vunpack.c.l.b16 %v775
        %v1195 = vunpack.c.h.b16 %v775
        %v1196 = vunpack.c.l.b16 %v776
        %v1197 = vunpack.c.h.b16 %v776
        %v1198 = vunpack.c.l.b16 %v777
        %v1199 = vunpack.c.h.b16 %v777
        %v1200 = vunpack.c.l.b16 %v778
        %v1201 = vunpack.c.h.b16 %v778
        %v1202 = vunpack.c.l.b16 %v779
        %v1203 = vunpack.c.h.b16 %v779
        %v1204 = vunpack.c.l.b16 %v780
        %v1205 = vunpack.c.h.b16 %v780
        %v1206 = vunpack.c.l.b16 %v781
        %v1207 = vunpack.c.h.b16 %v781
        %v1208 = vunpack.c.l.b16 %v782
        %v1209 = vunpack.c.h.b16 %v782
        %v1210 = vunpack.c.l.b16 %v783
        %v1211 = vunpack.c.h.b16 %v783
        %v1212 = vunpack.c.l.b16 %v784
        %v1213 = vunpack.c.h.b16 %v784
        %v1214 = vunpack.c.l.b16 %v785
        %v1215 = vunpack.c.h.b16 %v785
        %v1216 = vunpack.c.l.b16 %v786
        %v1217 = vunpack.c.h.b16 %v786
        %v1218 = vunpack.c.l.b16 %v787
        %v1219 = vunpack.c.h.b16 %v787
        %v1220 = vunpack.c.l.b16 %v788
        %v1221 = vunpack.c.h.b16 %v788
        %v1222 = vunpack.c.l.b16 %v789
        %v1223 = vunpack.c.h.b16 %v789
        %v1224 = vunpack.c.l.b16 %v790
        %v1225 = vunpack.c.h.b16 %v790
        %v1226 = vunpack.c.l.b16 %v791
        %v1227 = vunpack.c.h.b16 %v791
        %v1228 = vunpack.c.l.b16 %v792
        %v1229 = vunpack.c.h.b16 %v792
        %v1230 = vunpack.c.l.b16 %v793
        %v1231 = vunpack.c.h.b16 %v793
        %v1232 = vunpack.c.l.b16 %v794
        %v1233 = vunpack.c.h.b16 %v794
        %v1234 = vunpack.c.l.b16 %v795
        %v1235 = vunpack.c.h.b16 %v795
        %v1236 = vunpack.c.l.b16 %v796
        %v1237 = vunpack.c.h.b16 %v796
        %v1238 = vunpack.c.l.b16 %v797
        %v1239 = vunpack.c.h.b16 %v797
        %v1240 = vunpack.c.l.b16 %v798
        %v1241 = vunpack.c.h.b16 %v798
        %v1242 = vunpack.c.l.b16 %v799
        %v1243 = vunpack.c.h.b16 %v799
        %v1244 = vunpack.c.l.b16 %v800
        %v1245 = vunpack.c.h.b16 %v800
        %v1246 = vunpack.c.l.b16 %v801
        %v1247 = vunpack.c.h.b16 %v801
        %v1248 = vunpack.c.l.b16 %v802
        %v1249 = vunpack.c.h.b16 %v802
        %v1250 = vunpack.c.l.b16 %v803
        %v1251 = vunpack.c.h.b16 %v803
        %v1252 = vpack.c.b16 %v1000, %v996
        %v1253 = vpack.c.b16 %v1001, %v997
        %v1254 = vpack.c.b16 %v1002, %v998
        %v1255 = vpack.c.b16 %v1003, %v999
        %v1256 = vpack.c.b16 %v1008, %v1004
        %v1257 = vpack.c.b16 %v1009, %v1005
        %v1258 = vpack.c.b16 %v1010, %v1006
        %v1259 = vpack.c.b16 %v1011, %v1007
        %v1260 = vpack.c.b16 %v1016, %v1012
        %v1261 = vpack.c.b16 %v1017, %v1013
        %v1262 = vpack.c.b16 %v1018, %v1014
        %v1263 = vpack.c.b16 %v1019, %v1015
        %v1264 = vpack.c.b16 %v1024, %v1020
        %v1265 = vpack.c.b16 %v1025, %v1021
        %v1266 = vpack.c.b16 %v1026, %v1022
        %v1267 = vpack.c.b16 %v1027, %v1023
        %v1268 = vpack.c.b16 %v1032, %v1028
        %v1269 = vpack.c.b16 %v1033, %v1029
        %v1270 = vpack.c.b16 %v1034, %v1030
        %v1271 = vpack.c.b16 %v1035, %v1031
        %v1272 = vpack.c.b16 %v1040, %v1036
        %v1273 = vpack.c.b16 %v1041, %v1037
        %v1274 = vpack.c.b16 %v1042, %v1038
        %v1275 = vpack.c.b16 %v1043, %v1039
        %v1276 = vpack.c.b16 %v1048, %v1044
        %v1277 = vpack.c.b16 %v1049, %v1045
        %v1278 = vpack.c.b16 %v1050, %v1046
        %v1279 = vpack.c.b16 %v1051, %v1047
        %v1280 = vpack.c.b16 %v1056, %v1052
        %v1281 = vpack.c.b16 %v1057, %v1053
        %v1282 = vpack.c.b16 %v1058, %v1054
        %v1283 = vpack.c.b16 %v1059, %v1055
        %v1284 = vpack.c.b16 %v1064, %v1060
        %v1285 = vpack.c.b16 %v1065, %v1061
        %v1286 = vpack.c.b16 %v1066, %v1062
        %v1287 = vpack.c.b16 %v1067, %v1063
        %v1288 = vpack.c.b16 %v1072, %v1068
        %v1289 = vpack.c.b16 %v1073, %v1069
        %v1290 = vpack.c.b16 %v1074, %v1070
        %v1291 = vpack.c.b16 %v1075, %v1071
        %v1292 = vpack.c.b16 %v1080, %v1076
        %v1293 = vpack.c.b16 %v1081, %v1077
        %v1294 = vpack.c.b16 %v1082, %v1078
        %v1295 = vpack.c.b16 %v1083, %v1079
        %v1296 = vpack.c.b16 %v1088, %v1084
        %v1297 = vpack.c.b16 %v1089, %v1085
        %v1298 = vpack.c.b16 %v1090, %v1086
        %v1299 = vpack.c.b16 %v1091, %v1087
        %v1300 = vpack.c.b16 %v1096, %v1092
        %v1301 = vpack.c.b16 %v1097, %v1093
        %v1302 = vpack.c.b16 %v1098, %v1094
        %v1303 = vpack.c.b16 %v1099, %v1095
        %v1304 = vpack.c.b16 %v1104, %v1100
        %v1305 = vpack.c.b16 %v1105, %v1101
        %v1306 = vpack.c.b16 %v1106, %v1102
        %v1307 = vpack.c.b16 %v1107, %v1103
        %v1308 = vpack.c.b16 %v1112, %v1108
        %v1309 = vpack.c.b16 %v1113, %v1109
        %v1310 = vpack.c.b16 %v1114, %v1110
        %v1311 = vpack.c.b16 %v1115, %v1111
        %v1312 = vpack.c.b16 %v1120, %v1116
        %v1313 = vpack.c.b16 %v1121, %v1117
        %v1314 = vpack.c.b16 %v1122, %v1118
        %v1315 = vpack.c.b16 %v1123, %v1119
        %v1316 = vpack.c.b16 %v1128, %v1124
        %v1317 = vpack.c.b16 %v1129, %v1125
        %v1318 = vpack.c.b16 %v1130, %v1126
        %v1319 = vpack.c.b16 %v1131, %v1127
        %v1320 = vpack.c.b16 %v1136, %v1132
        %v1321 = vpack.c.b16 %v1137, %v1133
        %v1322 = vpack.c.b16 %v1138, %v1134
        %v1323 = vpack.c.b16 %v1139, %v1135
        %v1324 = vpack.c.b16 %v1144, %v1140
        %v1325 = vpack.c.b16 %v1145, %v1141
        %v1326 = vpack.c.b16 %v1146, %v1142
        %v1327 = vpack.c.b16 %v1147, %v1143
        %v1328 = vpack.c.b16 %v1152, %v1148
        %v1329 = vpack.c.b16 %v1153, %v1149
        %v1330 = vpack.c.b16 %v1154, %v1150
        %v1331 = vpack.c.b16 %v1155, %v1151
        %v1332 = vpack.c.b16 %v1160, %v1156
        %v1333 = vpack.c.b16 %v1161, %v1157
        %v1334 = vpack.c.b16 %v1162, %v1158
        %v1335 = vpack.c.b16 %v1163, %v1159
        %v1336 = vpack.c.b16 %v1168, %v1164
        %v1337 = vpack.c.b16 %v1169, %v1165
        %v1338 = vpack.c.b16 %v1170, %v1166
        %v1339 = vpack.c.b16 %v1171, %v1167
        %v1340 = vpack.c.b16 %v1176, %v1172
        %v1341 = vpack.c.b16 %v1177, %v1173
        %v1342 = vpack.c.b16 %v1178, %v1174
        %v1343 = vpack.c.b16 %v1179, %v1175
        %v1344 = vpack.c.b16 %v1184, %v1180
        %v1345 = vpack.c.b16 %v1185, %v1181
        %v1346 = vpack.c.b16 %v1186, %v1182
        %v1347 = vpack.c.b16 %v1187, %v1183
        %v1348 = vpack.c.b16 %v1192, %v1188
        %v1349 = vpack.c.b16 %v1193, %v1189
        %v1350 = vpack.c.b16 %v1194, %v1190
        %v1351 = vpack.c.b16 %v1195, %v1191
        %v1352 = vpack.c.b16 %v1200, %v1196
        %v1353 = vpack.c.b16 %v1201, %v1197
        %v1354 = vpack.c.b16 %v1202, %v1198
        %v1355 = vpack.c.b16 %v1203, %v1199
        %v1356 = vpack.c.b16 %v1208, %v1204
        %v1357 = vpack.c.b16 %v1209, %v1205
        %v1358 = vpack.c.b16 %v1210, %v1206
        %v1359 = vpack.c.b16 %v1211, %v1207
        %v1360 = vpack.c.b16 %v1216, %v1212
        %v1361 = vpack.c.b16 %v1217, %v1213
        %v1362 = vpack.c.b16 %v1218, %v1214
        %v1363 = vpack.c.b16 %v1219, %v1215
        %v1364 = vpack.c.b16 %v1224, %v1220
        %v1365 = vpack.c.b16 %v1225, %v1221
        %v1366 = vpack.c.b16 %v1226, %v1222
        %v1367 = vpack.c.b16 %v1227, %v1223
        %v1368 = vpack.c.b16 %v1232, %v1228
        %v1369 = vpack.c.b16 %v1233, %v1229
        %v1370 = vpack.c.b16 %v1234, %v1230
        %v1371 = vpack.c.b16 %v1235, %v1231
        %v1372 = vpack.c.b16 %v1240, %v1236
        %v1373 = vpack.c.b16 %v1241, %v1237
        %v1374 = vpack.c.b16 %v1242, %v1238
        %v1375 = vpack.c.b16 %v1243, %v1239
        %v1376 = vpack.c.b16 %v1248, %v1244
        %v1377 = vpack.c.b16 %v1249, %v1245
        %v1378 = vpack.c.b16 %v1250, %v1246
        %v1379 = vpack.c.b16 %v1251, %v1247
        %v1572 = vunpack.c.l.b16 %v804
        %v1573 = vunpack.c.l.b16 %v805
        %v1574 = vunpack.c.l.b16 %v806
        %v1575 = vunpack.c.l.b16 %v807
        %v1576 = vunpack.c.l.b16 %v808
        %v1577 = vunpack.c.l.b16 %v809
        %v1578 = vunpack.c.l.b16 %v810
        %v1579 = vunpack.c.l.b16 %v811
        %v1580 = vunpack.c.l.b16 %v812
        %v1581 = vunpack.c.l.b16 %v813
        %v1582 = vunpack.c.l.b16 %v814
        %v1583 = vunpack.c.l.b16 %v815
        %v1584 = vunpack.c.l.b16 %v816
        %v1585 = vunpack.c.l.b16 %v817
        %v1586 = vunpack.c.l.b16 %v818
        %v1587 = vunpack.c.l.b16 %v819
        %v1588 = vunpack.c.l.b16 %v820
        %v1589 = vunpack.c.l.b16 %v821
        %v1590 = vunpack.c.l.b16 %v822
        %v1591 = vunpack.c.l.b16 %v823
        %v1592 = vunpack.c.l.b16 %v824
        %v1593 = vunpack.c.l.b16 %v825
        %v1594 = vunpack.c.l.b16 %v826
        %v1595 = vunpack.c.l.b16 %v827
        %v1596 = vunpack.c.l.b16 %v828
        %v1597 = vunpack.c.l.b16 %v829
        %v1598 = vunpack.c.l.b16 %v830
        %v1599 = vunpack.c.l.b16 %v831
        %v1600 = vunpack.c.l.b16 %v832
        %v1601 = vunpack.c.l.b16 %v833
        %v1602 = vunpack.c.l.b16 %v834
        %v1603 = vunpack.c.l.b16 %v835
        %v1604 = vunpack.c.l.b16 %v836
        %v1605 = vunpack.c.l.b16 %v837
        %v1606 = vunpack.c.l.b16 %v838
        %v1607 = vunpack.c.l.b16 %v839
        %v1608 = vunpack.c.l.b16 %v840
        %v1609 = vunpack.c.l.b16 %v841
        %v1610 = vunpack.c.l.b16 %v842
        %v1611 = vunpack.c.l.b16 %v843
        %v1612 = vunpack.c.l.b16 %v844
        %v1613 = vunpack.c.l.b16 %v845
        %v1614 = vunpack.c.l.b16 %v846
        %v1615 = vunpack.c.l.b16 %v847
        %v1616 = vunpack.c.l.b16 %v848
        %v1617 = vunpack.c.l.b16 %v849
        %v1618 = vunpack.c.l.b16 %v850
        %v1619 = vunpack.c.l.b16 %v851
        %v1620 = vunpack.c.l.b16 %v852
        %v1621 = vunpack.c.l.b16 %v853
        %v1622 = vunpack.c.l.b16 %v854
        %v1623 = vunpack.c.l.b16 %v855
        %v1624 = vunpack.c.l.b16 %v856
        %v1625 = vunpack.c.l.b16 %v857
        %v1626 = vunpack.c.l.b16 %v858
        %v1627 = vunpack.c.l.b16 %v859
        %v1628 = vunpack.c.l.b16 %v860
        %v1629 = vunpack.c.l.b16 %v861
        %v1630 = vunpack.c.l.b16 %v862
        %v1631 = vunpack.c.l.b16 %v863
        %v1632 = vunpack.c.l.b16 %v864
        %v1633 = vunpack.c.l.b16 %v865
        %v1634 = vunpack.c.l.b16 %v866
        %v1635 = vunpack.c.l.b16 %v867
        %v1636 = vpack.c.b16 %v1573, %v1572
        %v1637 = vpack.c.b16 %v1575, %v1574
        %v1638 = vpack.c.b16 %v1577, %v1576
        %v1639 = vpack.c.b16 %v1579, %v1578
        %v1640 = vpack.c.b16 %v1581, %v1580
        %v1641 = vpack.c.b16 %v1583, %v1582
        %v1642 = vpack.c.b16 %v1585, %v1584
        %v1643 = vpack.c.b16 %v1587, %v1586
        %v1644 = vpack.c.b16 %v1589, %v1588
        %v1645 = vpack.c.b16 %v1591, %v1590
        %v1646 = vpack.c.b16 %v1593, %v1592
        %v1647 = vpack.c.b16 %v1595, %v1594
        %v1648 = vpack.c.b16 %v1597, %v1596
        %v1649 = vpack.c.b16 %v1599, %v1598
        %v1650 = vpack.c.b16 %v1601, %v1600
        %v1651 = vpack.c.b16 %v1603, %v1602
        %v1652 = vpack.c.b16 %v1605, %v1604
        %v1653 = vpack.c.b16 %v1607, %v1606
        %v1654 = vpack.c.b16 %v1609, %v1608
        %v1655 = vpack.c.b16 %v1611, %v1610
        %v1656 = vpack.c.b16 %v1613, %v1612
        %v1657 = vpack.c.b16 %v1615, %v1614
        %v1658 = vpack.c.b16 %v1617, %v1616
        %v1659 = vpack.c.b16 %v1619, %v1618
        %v1660 = vpack.c.b16 %v1621, %v1620
        %v1661 = vpack.c.b16 %v1623, %v1622
        %v1662 = vpack.c.b16 %v1625, %v1624
        %v1663 = vpack.c.b16 %v1627, %v1626
        %v1664 = vpack.c.b16 %v1629, %v1628
        %v1665 = vpack.c.b16 %v1631, %v1630
        %v1666 = vpack.c.b16 %v1633, %v1632
        %v1667 = vpack.c.b16 %v1635, %v1634
        %1700 = vmatpush.bf16.msra.mxu0 %v1643
        %1701 = vmatpush.bf16.msra.mxu0 %v1642
        %1702 = vmatpush.bf16.msra.mxu0 %v1641
        %1703 = vmatpush.bf16.msra.mxu0 %v1640
        %1704 = vmatpush.bf16.msra.mxu0 %v1639
        %1705 = vmatpush.bf16.msra.mxu0 %v1638
        %1706 = vmatpush.bf16.msra.mxu0 %v1637
        %1707 = vmatpush.bf16.msra.mxu0 %v1636
        %1708 = vmatmul.bf16.gmra.mxu0 %v1252
        %v1709 = vpop.f32.mrf.mxu0
        %v1710 = vadd.f32 0.0, %v1709
        %v1711 = vpop.f32.mrf.mxu0
        %v1712 = vadd.f32 0.0, %v1711
        %1713 = vmatmul.bf16.gmra.mxu0 %v1256
        %v1714 = vpop.f32.mrf.mxu0
        %v1715 = vadd.f32 0.0, %v1714
        %v1716 = vpop.f32.mrf.mxu0
        %v1717 = vadd.f32 0.0, %v1716
        %1718 = vmatmul.bf16.gmra.mxu0 %v1260
        %v1719 = vpop.f32.mrf.mxu0
        %v1720 = vadd.f32 0.0, %v1719
        %v1721 = vpop.f32.mrf.mxu0
        %v1722 = vadd.f32 0.0, %v1721
        %1723 = vmatmul.bf16.gmra.mxu0 %v1264
        %v1724 = vpop.f32.mrf.mxu0
        %v1725 = vadd.f32 0.0, %v1724
        %v1726 = vpop.f32.mrf.mxu0
        %v1727 = vadd.f32 0.0, %v1726
        %1728 = vmatmul.bf16.gmra.mxu0 %v1268
        %v1729 = vpop.f32.mrf.mxu0
        %v1730 = vadd.f32 0.0, %v1729
        %v1731 = vpop.f32.mrf.mxu0
        %v1732 = vadd.f32 0.0, %v1731
        %1733 = vmatmul.bf16.gmra.mxu0 %v1272
        %v1734 = vpop.f32.mrf.mxu0
        %v1735 = vadd.f32 0.0, %v1734
        %v1736 = vpop.f32.mrf.mxu0
        %v1737 = vadd.f32 0.0, %v1736
        %1738 = vmatmul.bf16.gmra.mxu0 %v1276
        %v1739 = vpop.f32.mrf.mxu0
        %v1740 = vadd.f32 0.0, %v1739
        %v1741 = vpop.f32.mrf.mxu0
        %v1742 = vadd.f32 0.0, %v1741
        %1743 = vmatmul.bf16.gmra.mxu0 %v1280
        %v1744 = vpop.f32.mrf.mxu0
        %v1745 = vadd.f32 0.0, %v1744
        %v1746 = vpop.f32.mrf.mxu0
        %v1747 = vadd.f32 0.0, %v1746
        %1748 = vmatmul.bf16.gmra.mxu0 %v1284
        %v1749 = vpop.f32.mrf.mxu0
        %v1750 = vadd.f32 0.0, %v1749
        %v1751 = vpop.f32.mrf.mxu0
        %v1752 = vadd.f32 0.0, %v1751
        %1753 = vmatmul.bf16.gmra.mxu0 %v1288
        %v1754 = vpop.f32.mrf.mxu0
        %v1755 = vadd.f32 0.0, %v1754
        %v1756 = vpop.f32.mrf.mxu0
        %v1757 = vadd.f32 0.0, %v1756
        %1758 = vmatmul.bf16.gmra.mxu0 %v1292
        %v1759 = vpop.f32.mrf.mxu0
        %v1760 = vadd.f32 0.0, %v1759
        %v1761 = vpop.f32.mrf.mxu0
        %v1762 = vadd.f32 0.0, %v1761
        %1763 = vmatmul.bf16.gmra.mxu0 %v1296
        %v1764 = vpop.f32.mrf.mxu0
        %v1765 = vadd.f32 0.0, %v1764
        %v1766 = vpop.f32.mrf.mxu0
        %v1767 = vadd.f32 0.0, %v1766
        %1768 = vmatmul.bf16.gmra.mxu0 %v1300
        %v1769 = vpop.f32.mrf.mxu0
        %v1770 = vadd.f32 0.0, %v1769
        %v1771 = vpop.f32.mrf.mxu0
        %v1772 = vadd.f32 0.0, %v1771
        %1773 = vmatmul.bf16.gmra.mxu0 %v1304
        %v1774 = vpop.f32.mrf.mxu0
        %v1775 = vadd.f32 0.0, %v1774
        %v1776 = vpop.f32.mrf.mxu0
        %v1777 = vadd.f32 0.0, %v1776
        %1778 = vmatmul.bf16.gmra.mxu0 %v1308
        %v1779 = vpop.f32.mrf.mxu0
        %v1780 = vadd.f32 0.0, %v1779
        %v1781 = vpop.f32.mrf.mxu0
        %v1782 = vadd.f32 0.0, %v1781
        %1783 = vmatmul.bf16.gmra.mxu0 %v1312
        %v1784 = vpop.f32.mrf.mxu0
        %v1785 = vadd.f32 0.0, %v1784
        %v1786 = vpop.f32.mrf.mxu0
        %v1787 = vadd.f32 0.0, %v1786
        %1788 = vmatmul.bf16.gmra.mxu0 %v1316
        %v1789 = vpop.f32.mrf.mxu0
        %v1790 = vadd.f32 0.0, %v1789
        %v1791 = vpop.f32.mrf.mxu0
        %v1792 = vadd.f32 0.0, %v1791
        %1793 = vmatmul.bf16.gmra.mxu0 %v1320
        %v1794 = vpop.f32.mrf.mxu0
        %v1795 = vadd.f32 0.0, %v1794
        %v1796 = vpop.f32.mrf.mxu0
        %v1797 = vadd.f32 0.0, %v1796
        %1798 = vmatmul.bf16.gmra.mxu0 %v1324
        %v1799 = vpop.f32.mrf.mxu0
        %v1800 = vadd.f32 0.0, %v1799
        %v1801 = vpop.f32.mrf.mxu0
        %v1802 = vadd.f32 0.0, %v1801
        %1803 = vmatmul.bf16.gmra.mxu0 %v1328
        %v1804 = vpop.f32.mrf.mxu0
        %v1805 = vadd.f32 0.0, %v1804
        %v1806 = vpop.f32.mrf.mxu0
        %v1807 = vadd.f32 0.0, %v1806
        %1808 = vmatmul.bf16.gmra.mxu0 %v1332
        %v1809 = vpop.f32.mrf.mxu0
        %v1810 = vadd.f32 0.0, %v1809
        %v1811 = vpop.f32.mrf.mxu0
        %v1812 = vadd.f32 0.0, %v1811
        %1813 = vmatmul.bf16.gmra.mxu0 %v1336
        %v1814 = vpop.f32.mrf.mxu0
        %v1815 = vadd.f32 0.0, %v1814
        %v1816 = vpop.f32.mrf.mxu0
        %v1817 = vadd.f32 0.0, %v1816
        %1818 = vmatmul.bf16.gmra.mxu0 %v1340
        %v1819 = vpop.f32.mrf.mxu0
        %v1820 = vadd.f32 0.0, %v1819
        %v1821 = vpop.f32.mrf.mxu0
        %v1822 = vadd.f32 0.0, %v1821
        %1823 = vmatmul.bf16.gmra.mxu0 %v1344
        %v1824 = vpop.f32.mrf.mxu0
        %v1825 = vadd.f32 0.0, %v1824
        %v1826 = vpop.f32.mrf.mxu0
        %v1827 = vadd.f32 0.0, %v1826
        %1828 = vmatmul.bf16.gmra.mxu0 %v1348
        %v1829 = vpop.f32.mrf.mxu0
        %v1830 = vadd.f32 0.0, %v1829
        %v1831 = vpop.f32.mrf.mxu0
        %v1832 = vadd.f32 0.0, %v1831
        %1833 = vmatmul.bf16.gmra.mxu0 %v1352
        %v1834 = vpop.f32.mrf.mxu0
        %v1835 = vadd.f32 0.0, %v1834
        %v1836 = vpop.f32.mrf.mxu0
        %v1837 = vadd.f32 0.0, %v1836
        %1838 = vmatmul.bf16.gmra.mxu0 %v1356
        %v1839 = vpop.f32.mrf.mxu0
        %v1840 = vadd.f32 0.0, %v1839
        %v1841 = vpop.f32.mrf.mxu0
        %v1842 = vadd.f32 0.0, %v1841
        %1843 = vmatmul.bf16.gmra.mxu0 %v1360
        %v1844 = vpop.f32.mrf.mxu0
        %v1845 = vadd.f32 0.0, %v1844
        %v1846 = vpop.f32.mrf.mxu0
        %v1847 = vadd.f32 0.0, %v1846
        %1848 = vmatmul.bf16.gmra.mxu0 %v1364
        %v1849 = vpop.f32.mrf.mxu0
        %v1850 = vadd.f32 0.0, %v1849
        %v1851 = vpop.f32.mrf.mxu0
        %v1852 = vadd.f32 0.0, %v1851
        %1853 = vmatmul.bf16.gmra.mxu0 %v1368
        %v1854 = vpop.f32.mrf.mxu0
        %v1855 = vadd.f32 0.0, %v1854
        %v1856 = vpop.f32.mrf.mxu0
        %v1857 = vadd.f32 0.0, %v1856
        %1858 = vmatmul.bf16.gmra.mxu0 %v1372
        %v1859 = vpop.f32.mrf.mxu0
        %v1860 = vadd.f32 0.0, %v1859
        %v1861 = vpop.f32.mrf.mxu0
        %v1862 = vadd.f32 0.0, %v1861
        %1863 = vmatmul.bf16.gmra.mxu0 %v1376
        %v1864 = vpop.f32.mrf.mxu0
        %v1865 = vadd.f32 0.0, %v1864
        %v1866 = vpop.f32.mrf.mxu0
        %v1867 = vadd.f32 0.0, %v1866
        %1868 = vdwg.mxu0
        %1869 = vmatpush.bf16.msra.mxu0 %v1651
        %1870 = vmatpush.bf16.msra.mxu0 %v1650
        %1871 = vmatpush.bf16.msra.mxu0 %v1649
        %1872 = vmatpush.bf16.msra.mxu0 %v1648
        %1873 = vmatpush.bf16.msra.mxu0 %v1647
        %1874 = vmatpush.bf16.msra.mxu0 %v1646
        %1875 = vmatpush.bf16.msra.mxu0 %v1645
        %1876 = vmatpush.bf16.msra.mxu0 %v1644
        %1877 = vmatmul.bf16.gmra.mxu0 %v1253
        %v1878 = vpop.f32.mrf.mxu0
        %v1879 = vadd.f32 %v1710, %v1878
        %v1880 = vpop.f32.mrf.mxu0
        %v1881 = vadd.f32 %v1712, %v1880
        %1882 = vmatmul.bf16.gmra.mxu0 %v1257
        %v1883 = vpop.f32.mrf.mxu0
        %v1884 = vadd.f32 %v1715, %v1883
        %v1885 = vpop.f32.mrf.mxu0
        %v1886 = vadd.f32 %v1717, %v1885
        %1887 = vmatmul.bf16.gmra.mxu0 %v1261
        %v1888 = vpop.f32.mrf.mxu0
        %v1889 = vadd.f32 %v1720, %v1888
        %v1890 = vpop.f32.mrf.mxu0
        %v1891 = vadd.f32 %v1722, %v1890
        %1892 = vmatmul.bf16.gmra.mxu0 %v1265
        %v1893 = vpop.f32.mrf.mxu0
        %v1894 = vadd.f32 %v1725, %v1893
        %v1895 = vpop.f32.mrf.mxu0
        %v1896 = vadd.f32 %v1727, %v1895
        %1897 = vmatmul.bf16.gmra.mxu0 %v1269
        %v1898 = vpop.f32.mrf.mxu0
        %v1899 = vadd.f32 %v1730, %v1898
        %v1900 = vpop.f32.mrf.mxu0
        %v1901 = vadd.f32 %v1732, %v1900
        %1902 = vmatmul.bf16.gmra.mxu0 %v1273
        %v1903 = vpop.f32.mrf.mxu0
        %v1904 = vadd.f32 %v1735, %v1903
        %v1905 = vpop.f32.mrf.mxu0
        %v1906 = vadd.f32 %v1737, %v1905
        %1907 = vmatmul.bf16.gmra.mxu0 %v1277
        %v1908 = vpop.f32.mrf.mxu0
        %v1909 = vadd.f32 %v1740, %v1908
        %v1910 = vpop.f32.mrf.mxu0
        %v1911 = vadd.f32 %v1742, %v1910
        %1912 = vmatmul.bf16.gmra.mxu0 %v1281
        %v1913 = vpop.f32.mrf.mxu0
        %v1914 = vadd.f32 %v1745, %v1913
        %v1915 = vpop.f32.mrf.mxu0
        %v1916 = vadd.f32 %v1747, %v1915
        %1917 = vmatmul.bf16.gmra.mxu0 %v1285
        %v1918 = vpop.f32.mrf.mxu0
        %v1919 = vadd.f32 %v1750, %v1918
        %v1920 = vpop.f32.mrf.mxu0
        %v1921 = vadd.f32 %v1752, %v1920
        %1922 = vmatmul.bf16.gmra.mxu0 %v1289
        %v1923 = vpop.f32.mrf.mxu0
        %v1924 = vadd.f32 %v1755, %v1923
        %v1925 = vpop.f32.mrf.mxu0
        %v1926 = vadd.f32 %v1757, %v1925
        %1927 = vmatmul.bf16.gmra.mxu0 %v1293
        %v1928 = vpop.f32.mrf.mxu0
        %v1929 = vadd.f32 %v1760, %v1928
        %v1930 = vpop.f32.mrf.mxu0
        %v1931 = vadd.f32 %v1762, %v1930
        %1932 = vmatmul.bf16.gmra.mxu0 %v1297
        %v1933 = vpop.f32.mrf.mxu0
        %v1934 = vadd.f32 %v1765, %v1933
        %v1935 = vpop.f32.mrf.mxu0
        %v1936 = vadd.f32 %v1767, %v1935
        %1937 = vmatmul.bf16.gmra.mxu0 %v1301
        %v1938 = vpop.f32.mrf.mxu0
        %v1939 = vadd.f32 %v1770, %v1938
        %v1940 = vpop.f32.mrf.mxu0
        %v1941 = vadd.f32 %v1772, %v1940
        %1942 = vmatmul.bf16.gmra.mxu0 %v1305
        %v1943 = vpop.f32.mrf.mxu0
        %v1944 = vadd.f32 %v1775, %v1943
        %v1945 = vpop.f32.mrf.mxu0
        %v1946 = vadd.f32 %v1777, %v1945
        %1947 = vmatmul.bf16.gmra.mxu0 %v1309
        %v1948 = vpop.f32.mrf.mxu0
        %v1949 = vadd.f32 %v1780, %v1948
        %v1950 = vpop.f32.mrf.mxu0
        %v1951 = vadd.f32 %v1782, %v1950
        %1952 = vmatmul.bf16.gmra.mxu0 %v1313
        %v1953 = vpop.f32.mrf.mxu0
        %v1954 = vadd.f32 %v1785, %v1953
        %v1955 = vpop.f32.mrf.mxu0
        %v1956 = vadd.f32 %v1787, %v1955
        %1957 = vmatmul.bf16.gmra.mxu0 %v1317
        %v1958 = vpop.f32.mrf.mxu0
        %v1959 = vadd.f32 %v1790, %v1958
        %v1960 = vpop.f32.mrf.mxu0
        %v1961 = vadd.f32 %v1792, %v1960
        %1962 = vmatmul.bf16.gmra.mxu0 %v1321
        %v1963 = vpop.f32.mrf.mxu0
        %v1964 = vadd.f32 %v1795, %v1963
        %v1965 = vpop.f32.mrf.mxu0
        %v1966 = vadd.f32 %v1797, %v1965
        %1967 = vmatmul.bf16.gmra.mxu0 %v1325
        %v1968 = vpop.f32.mrf.mxu0
        %v1969 = vadd.f32 %v1800, %v1968
        %v1970 = vpop.f32.mrf.mxu0
        %v1971 = vadd.f32 %v1802, %v1970
        %1972 = vmatmul.bf16.gmra.mxu0 %v1329
        %v1973 = vpop.f32.mrf.mxu0
        %v1974 = vadd.f32 %v1805, %v1973
        %v1975 = vpop.f32.mrf.mxu0
        %v1976 = vadd.f32 %v1807, %v1975
        %1977 = vmatmul.bf16.gmra.mxu0 %v1333
        %v1978 = vpop.f32.mrf.mxu0
        %v1979 = vadd.f32 %v1810, %v1978
        %v1980 = vpop.f32.mrf.mxu0
        %v1981 = vadd.f32 %v1812, %v1980
        %1982 = vmatmul.bf16.gmra.mxu0 %v1337
        %v1983 = vpop.f32.mrf.mxu0
        %v1984 = vadd.f32 %v1815, %v1983
        %v1985 = vpop.f32.mrf.mxu0
        %v1986 = vadd.f32 %v1817, %v1985
        %1987 = vmatmul.bf16.gmra.mxu0 %v1341
        %v1988 = vpop.f32.mrf.mxu0
        %v1989 = vadd.f32 %v1820, %v1988
        %v1990 = vpop.f32.mrf.mxu0
        %v1991 = vadd.f32 %v1822, %v1990
        %1992 = vmatmul.bf16.gmra.mxu0 %v1345
        %v1993 = vpop.f32.mrf.mxu0
        %v1994 = vadd.f32 %v1825, %v1993
        %v1995 = vpop.f32.mrf.mxu0
        %v1996 = vadd.f32 %v1827, %v1995
        %1997 = vmatmul.bf16.gmra.mxu0 %v1349
        %v1998 = vpop.f32.mrf.mxu0
        %v1999 = vadd.f32 %v1830, %v1998
        %v2000 = vpop.f32.mrf.mxu0
        %v2001 = vadd.f32 %v1832, %v2000
        %2002 = vmatmul.bf16.gmra.mxu0 %v1353
        %v2003 = vpop.f32.mrf.mxu0
        %v2004 = vadd.f32 %v1835, %v2003
        %v2005 = vpop.f32.mrf.mxu0
        %v2006 = vadd.f32 %v1837, %v2005
        %2007 = vmatmul.bf16.gmra.mxu0 %v1357
        %v2008 = vpop.f32.mrf.mxu0
        %v2009 = vadd.f32 %v1840, %v2008
        %v2010 = vpop.f32.mrf.mxu0
        %v2011 = vadd.f32 %v1842, %v2010
        %2012 = vmatmul.bf16.gmra.mxu0 %v1361
        %v2013 = vpop.f32.mrf.mxu0
        %v2014 = vadd.f32 %v1845, %v2013
        %v2015 = vpop.f32.mrf.mxu0
        %v2016 = vadd.f32 %v1847, %v2015
        %2017 = vmatmul.bf16.gmra.mxu0 %v1365
        %v2018 = vpop.f32.mrf.mxu0
        %v2019 = vadd.f32 %v1850, %v2018
        %v2020 = vpop.f32.mrf.mxu0
        %v2021 = vadd.f32 %v1852, %v2020
        %2022 = vmatmul.bf16.gmra.mxu0 %v1369
        %v2023 = vpop.f32.mrf.mxu0
        %v2024 = vadd.f32 %v1855, %v2023
        %v2025 = vpop.f32.mrf.mxu0
        %v2026 = vadd.f32 %v1857, %v2025
        %2027 = vmatmul.bf16.gmra.mxu0 %v1373
        %v2028 = vpop.f32.mrf.mxu0
        %v2029 = vadd.f32 %v1860, %v2028
        %v2030 = vpop.f32.mrf.mxu0
        %v2031 = vadd.f32 %v1862, %v2030
        %2032 = vmatmul.bf16.gmra.mxu0 %v1377
        %v2033 = vpop.f32.mrf.mxu0
        %v2034 = vadd.f32 %v1865, %v2033
        %v2035 = vpop.f32.mrf.mxu0
        %v2036 = vadd.f32 %v1867, %v2035
        %2037 = vdwg.mxu0
        %2038 = vmatpush.bf16.msra.mxu0 %v1659
        %2039 = vmatpush.bf16.msra.mxu0 %v1658
        %2040 = vmatpush.bf16.msra.mxu0 %v1657
        %2041 = vmatpush.bf16.msra.mxu0 %v1656
        %2042 = vmatpush.bf16.msra.mxu0 %v1655
        %2043 = vmatpush.bf16.msra.mxu0 %v1654
        %2044 = vmatpush.bf16.msra.mxu0 %v1653
        %2045 = vmatpush.bf16.msra.mxu0 %v1652
        %2046 = vmatmul.bf16.gmra.mxu0 %v1254
        %v2047 = vpop.f32.mrf.mxu0
        %v2048 = vadd.f32 %v1879, %v2047
        %v2049 = vpop.f32.mrf.mxu0
        %v2050 = vadd.f32 %v1881, %v2049
        %2051 = vmatmul.bf16.gmra.mxu0 %v1258
        %v2052 = vpop.f32.mrf.mxu0
        %v2053 = vadd.f32 %v1884, %v2052
        %v2054 = vpop.f32.mrf.mxu0
        %v2055 = vadd.f32 %v1886, %v2054
        %2056 = vmatmul.bf16.gmra.mxu0 %v1262
        %v2057 = vpop.f32.mrf.mxu0
        %v2058 = vadd.f32 %v1889, %v2057
        %v2059 = vpop.f32.mrf.mxu0
        %v2060 = vadd.f32 %v1891, %v2059
        %2061 = vmatmul.bf16.gmra.mxu0 %v1266
        %v2062 = vpop.f32.mrf.mxu0
        %v2063 = vadd.f32 %v1894, %v2062
        %v2064 = vpop.f32.mrf.mxu0
        %v2065 = vadd.f32 %v1896, %v2064
        %2066 = vmatmul.bf16.gmra.mxu0 %v1270
        %v2067 = vpop.f32.mrf.mxu0
        %v2068 = vadd.f32 %v1899, %v2067
        %v2069 = vpop.f32.mrf.mxu0
        %v2070 = vadd.f32 %v1901, %v2069
        %2071 = vmatmul.bf16.gmra.mxu0 %v1274
        %v2072 = vpop.f32.mrf.mxu0
        %v2073 = vadd.f32 %v1904, %v2072
        %v2074 = vpop.f32.mrf.mxu0
        %v2075 = vadd.f32 %v1906, %v2074
        %2076 = vmatmul.bf16.gmra.mxu0 %v1278
        %v2077 = vpop.f32.mrf.mxu0
        %v2078 = vadd.f32 %v1909, %v2077
        %v2079 = vpop.f32.mrf.mxu0
        %v2080 = vadd.f32 %v1911, %v2079
        %2081 = vmatmul.bf16.gmra.mxu0 %v1282
        %v2082 = vpop.f32.mrf.mxu0
        %v2083 = vadd.f32 %v1914, %v2082
        %v2084 = vpop.f32.mrf.mxu0
        %v2085 = vadd.f32 %v1916, %v2084
        %2086 = vmatmul.bf16.gmra.mxu0 %v1286
        %v2087 = vpop.f32.mrf.mxu0
        %v2088 = vadd.f32 %v1919, %v2087
        %v2089 = vpop.f32.mrf.mxu0
        %v2090 = vadd.f32 %v1921, %v2089
        %2091 = vmatmul.bf16.gmra.mxu0 %v1290
        %v2092 = vpop.f32.mrf.mxu0
        %v2093 = vadd.f32 %v1924, %v2092
        %v2094 = vpop.f32.mrf.mxu0
        %v2095 = vadd.f32 %v1926, %v2094
        %2096 = vmatmul.bf16.gmra.mxu0 %v1294
        %v2097 = vpop.f32.mrf.mxu0
        %v2098 = vadd.f32 %v1929, %v2097
        %v2099 = vpop.f32.mrf.mxu0
        %v2100 = vadd.f32 %v1931, %v2099
        %2101 = vmatmul.bf16.gmra.mxu0 %v1298
        %v2102 = vpop.f32.mrf.mxu0
        %v2103 = vadd.f32 %v1934, %v2102
        %v2104 = vpop.f32.mrf.mxu0
        %v2105 = vadd.f32 %v1936, %v2104
        %2106 = vmatmul.bf16.gmra.mxu0 %v1302
        %v2107 = vpop.f32.mrf.mxu0
        %v2108 = vadd.f32 %v1939, %v2107
        %v2109 = vpop.f32.mrf.mxu0
        %v2110 = vadd.f32 %v1941, %v2109
        %2111 = vmatmul.bf16.gmra.mxu0 %v1306
        %v2112 = vpop.f32.mrf.mxu0
        %v2113 = vadd.f32 %v1944, %v2112
        %v2114 = vpop.f32.mrf.mxu0
        %v2115 = vadd.f32 %v1946, %v2114
        %2116 = vmatmul.bf16.gmra.mxu0 %v1310
        %v2117 = vpop.f32.mrf.mxu0
        %v2118 = vadd.f32 %v1949, %v2117
        %v2119 = vpop.f32.mrf.mxu0
        %v2120 = vadd.f32 %v1951, %v2119
        %2121 = vmatmul.bf16.gmra.mxu0 %v1314
        %v2122 = vpop.f32.mrf.mxu0
        %v2123 = vadd.f32 %v1954, %v2122
        %v2124 = vpop.f32.mrf.mxu0
        %v2125 = vadd.f32 %v1956, %v2124
        %2126 = vmatmul.bf16.gmra.mxu0 %v1318
        %v2127 = vpop.f32.mrf.mxu0
        %v2128 = vadd.f32 %v1959, %v2127
        %v2129 = vpop.f32.mrf.mxu0
        %v2130 = vadd.f32 %v1961, %v2129
        %2131 = vmatmul.bf16.gmra.mxu0 %v1322
        %v2132 = vpop.f32.mrf.mxu0
        %v2133 = vadd.f32 %v1964, %v2132
        %v2134 = vpop.f32.mrf.mxu0
        %v2135 = vadd.f32 %v1966, %v2134
        %2136 = vmatmul.bf16.gmra.mxu0 %v1326
        %v2137 = vpop.f32.mrf.mxu0
        %v2138 = vadd.f32 %v1969, %v2137
        %v2139 = vpop.f32.mrf.mxu0
        %v2140 = vadd.f32 %v1971, %v2139
        %2141 = vmatmul.bf16.gmra.mxu0 %v1330
        %v2142 = vpop.f32.mrf.mxu0
        %v2143 = vadd.f32 %v1974, %v2142
        %v2144 = vpop.f32.mrf.mxu0
        %v2145 = vadd.f32 %v1976, %v2144
        %2146 = vmatmul.bf16.gmra.mxu0 %v1334
        %v2147 = vpop.f32.mrf.mxu0
        %v2148 = vadd.f32 %v1979, %v2147
        %v2149 = vpop.f32.mrf.mxu0
        %v2150 = vadd.f32 %v1981, %v2149
        %2151 = vmatmul.bf16.gmra.mxu0 %v1338
        %v2152 = vpop.f32.mrf.mxu0
        %v2153 = vadd.f32 %v1984, %v2152
        %v2154 = vpop.f32.mrf.mxu0
        %v2155 = vadd.f32 %v1986, %v2154
        %2156 = vmatmul.bf16.gmra.mxu0 %v1342
        %v2157 = vpop.f32.mrf.mxu0
        %v2158 = vadd.f32 %v1989, %v2157
        %v2159 = vpop.f32.mrf.mxu0
        %v2160 = vadd.f32 %v1991, %v2159
        %2161 = vmatmul.bf16.gmra.mxu0 %v1346
        %v2162 = vpop.f32.mrf.mxu0
        %v2163 = vadd.f32 %v1994, %v2162
        %v2164 = vpop.f32.mrf.mxu0
        %v2165 = vadd.f32 %v1996, %v2164
        %2166 = vmatmul.bf16.gmra.mxu0 %v1350
        %v2167 = vpop.f32.mrf.mxu0
        %v2168 = vadd.f32 %v1999, %v2167
        %v2169 = vpop.f32.mrf.mxu0
        %v2170 = vadd.f32 %v2001, %v2169
        %2171 = vmatmul.bf16.gmra.mxu0 %v1354
        %v2172 = vpop.f32.mrf.mxu0
        %v2173 = vadd.f32 %v2004, %v2172
        %v2174 = vpop.f32.mrf.mxu0
        %v2175 = vadd.f32 %v2006, %v2174
        %2176 = vmatmul.bf16.gmra.mxu0 %v1358
        %v2177 = vpop.f32.mrf.mxu0
        %v2178 = vadd.f32 %v2009, %v2177
        %v2179 = vpop.f32.mrf.mxu0
        %v2180 = vadd.f32 %v2011, %v2179
        %2181 = vmatmul.bf16.gmra.mxu0 %v1362
        %v2182 = vpop.f32.mrf.mxu0
        %v2183 = vadd.f32 %v2014, %v2182
        %v2184 = vpop.f32.mrf.mxu0
        %v2185 = vadd.f32 %v2016, %v2184
        %2186 = vmatmul.bf16.gmra.mxu0 %v1366
        %v2187 = vpop.f32.mrf.mxu0
        %v2188 = vadd.f32 %v2019, %v2187
        %v2189 = vpop.f32.mrf.mxu0
        %v2190 = vadd.f32 %v2021, %v2189
        %2191 = vmatmul.bf16.gmra.mxu0 %v1370
        %v2192 = vpop.f32.mrf.mxu0
        %v2193 = vadd.f32 %v2024, %v2192
        %v2194 = vpop.f32.mrf.mxu0
        %v2195 = vadd.f32 %v2026, %v2194
        %2196 = vmatmul.bf16.gmra.mxu0 %v1374
        %v2197 = vpop.f32.mrf.mxu0
        %v2198 = vadd.f32 %v2029, %v2197
        %v2199 = vpop.f32.mrf.mxu0
        %v2200 = vadd.f32 %v2031, %v2199
        %2201 = vmatmul.bf16.gmra.mxu0 %v1378
        %v2202 = vpop.f32.mrf.mxu0
        %v2203 = vadd.f32 %v2034, %v2202
        %v2204 = vpop.f32.mrf.mxu0
        %v2205 = vadd.f32 %v2036, %v2204
        %2206 = vdwg.mxu0
        %2207 = vmatpush.bf16.msra.mxu0 %v1667
        %2208 = vmatpush.bf16.msra.mxu0 %v1666
        %2209 = vmatpush.bf16.msra.mxu0 %v1665
        %2210 = vmatpush.bf16.msra.mxu0 %v1664
        %2211 = vmatpush.bf16.msra.mxu0 %v1663
        %2212 = vmatpush.bf16.msra.mxu0 %v1662
        %2213 = vmatpush.bf16.msra.mxu0 %v1661
        %2214 = vmatpush.bf16.msra.mxu0 %v1660
        %2215 = vmatmul.bf16.gmra.mxu0 %v1255
        %v2216 = vpop.f32.mrf.mxu0
        %v2217 = vadd.f32 %v2048, %v2216
        %v2218 = vpop.f32.mrf.mxu0
        %v2219 = vadd.f32 %v2050, %v2218
        %2220 = vmatmul.bf16.gmra.mxu0 %v1259
        %v2221 = vpop.f32.mrf.mxu0
        %v2222 = vadd.f32 %v2053, %v2221
        %v2223 = vpop.f32.mrf.mxu0
        %v2224 = vadd.f32 %v2055, %v2223
        %2225 = vmatmul.bf16.gmra.mxu0 %v1263
        %v2226 = vpop.f32.mrf.mxu0
        %v2227 = vadd.f32 %v2058, %v2226
        %v2228 = vpop.f32.mrf.mxu0
        %v2229 = vadd.f32 %v2060, %v2228
        %2230 = vmatmul.bf16.gmra.mxu0 %v1267
        %v2231 = vpop.f32.mrf.mxu0
        %v2232 = vadd.f32 %v2063, %v2231
        %v2233 = vpop.f32.mrf.mxu0
        %v2234 = vadd.f32 %v2065, %v2233
        %2235 = vmatmul.bf16.gmra.mxu0 %v1271
        %v2236 = vpop.f32.mrf.mxu0
        %v2237 = vadd.f32 %v2068, %v2236
        %v2238 = vpop.f32.mrf.mxu0
        %v2239 = vadd.f32 %v2070, %v2238
        %2240 = vmatmul.bf16.gmra.mxu0 %v1275
        %v2241 = vpop.f32.mrf.mxu0
        %v2242 = vadd.f32 %v2073, %v2241
        %v2243 = vpop.f32.mrf.mxu0
        %v2244 = vadd.f32 %v2075, %v2243
        %2245 = vmatmul.bf16.gmra.mxu0 %v1279
        %v2246 = vpop.f32.mrf.mxu0
        %v2247 = vadd.f32 %v2078, %v2246
        %v2248 = vpop.f32.mrf.mxu0
        %v2249 = vadd.f32 %v2080, %v2248
        %2250 = vmatmul.bf16.gmra.mxu0 %v1283
        %v2251 = vpop.f32.mrf.mxu0
        %v2252 = vadd.f32 %v2083, %v2251
        %v2253 = vpop.f32.mrf.mxu0
        %v2254 = vadd.f32 %v2085, %v2253
        %2255 = vmatmul.bf16.gmra.mxu0 %v1287
        %v2256 = vpop.f32.mrf.mxu0
        %v2257 = vadd.f32 %v2088, %v2256
        %v2258 = vpop.f32.mrf.mxu0
        %v2259 = vadd.f32 %v2090, %v2258
        %2260 = vmatmul.bf16.gmra.mxu0 %v1291
        %v2261 = vpop.f32.mrf.mxu0
        %v2262 = vadd.f32 %v2093, %v2261
        %v2263 = vpop.f32.mrf.mxu0
        %v2264 = vadd.f32 %v2095, %v2263
        %2265 = vmatmul.bf16.gmra.mxu0 %v1295
        %v2266 = vpop.f32.mrf.mxu0
        %v2267 = vadd.f32 %v2098, %v2266
        %v2268 = vpop.f32.mrf.mxu0
        %v2269 = vadd.f32 %v2100, %v2268
        %2270 = vmatmul.bf16.gmra.mxu0 %v1299
        %v2271 = vpop.f32.mrf.mxu0
        %v2272 = vadd.f32 %v2103, %v2271
        %v2273 = vpop.f32.mrf.mxu0
        %v2274 = vadd.f32 %v2105, %v2273
        %2275 = vmatmul.bf16.gmra.mxu0 %v1303
        %v2276 = vpop.f32.mrf.mxu0
        %v2277 = vadd.f32 %v2108, %v2276
        %v2278 = vpop.f32.mrf.mxu0
        %v2279 = vadd.f32 %v2110, %v2278
        %2280 = vmatmul.bf16.gmra.mxu0 %v1307
        %v2281 = vpop.f32.mrf.mxu0
        %v2282 = vadd.f32 %v2113, %v2281
        %v2283 = vpop.f32.mrf.mxu0
        %v2284 = vadd.f32 %v2115, %v2283
        %2285 = vmatmul.bf16.gmra.mxu0 %v1311
        %v2286 = vpop.f32.mrf.mxu0
        %v2287 = vadd.f32 %v2118, %v2286
        %v2288 = vpop.f32.mrf.mxu0
        %v2289 = vadd.f32 %v2120, %v2288
        %2290 = vmatmul.bf16.gmra.mxu0 %v1315
        %v2291 = vpop.f32.mrf.mxu0
        %v2292 = vadd.f32 %v2123, %v2291
        %v2293 = vpop.f32.mrf.mxu0
        %v2294 = vadd.f32 %v2125, %v2293
        %2295 = vmatmul.bf16.gmra.mxu0 %v1319
        %v2296 = vpop.f32.mrf.mxu0
        %v2297 = vadd.f32 %v2128, %v2296
        %v2298 = vpop.f32.mrf.mxu0
        %v2299 = vadd.f32 %v2130, %v2298
        %2300 = vmatmul.bf16.gmra.mxu0 %v1323
        %v2301 = vpop.f32.mrf.mxu0
        %v2302 = vadd.f32 %v2133, %v2301
        %v2303 = vpop.f32.mrf.mxu0
        %v2304 = vadd.f32 %v2135, %v2303
        %2305 = vmatmul.bf16.gmra.mxu0 %v1327
        %v2306 = vpop.f32.mrf.mxu0
        %v2307 = vadd.f32 %v2138, %v2306
        %v2308 = vpop.f32.mrf.mxu0
        %v2309 = vadd.f32 %v2140, %v2308
        %2310 = vmatmul.bf16.gmra.mxu0 %v1331
        %v2311 = vpop.f32.mrf.mxu0
        %v2312 = vadd.f32 %v2143, %v2311
        %v2313 = vpop.f32.mrf.mxu0
        %v2314 = vadd.f32 %v2145, %v2313
        %2315 = vmatmul.bf16.gmra.mxu0 %v1335
        %v2316 = vpop.f32.mrf.mxu0
        %v2317 = vadd.f32 %v2148, %v2316
        %v2318 = vpop.f32.mrf.mxu0
        %v2319 = vadd.f32 %v2150, %v2318
        %2320 = vmatmul.bf16.gmra.mxu0 %v1339
        %v2321 = vpop.f32.mrf.mxu0
        %v2322 = vadd.f32 %v2153, %v2321
        %v2323 = vpop.f32.mrf.mxu0
        %v2324 = vadd.f32 %v2155, %v2323
        %2325 = vmatmul.bf16.gmra.mxu0 %v1343
        %v2326 = vpop.f32.mrf.mxu0
        %v2327 = vadd.f32 %v2158, %v2326
        %v2328 = vpop.f32.mrf.mxu0
        %v2329 = vadd.f32 %v2160, %v2328
        %2330 = vmatmul.bf16.gmra.mxu0 %v1347
        %v2331 = vpop.f32.mrf.mxu0
        %v2332 = vadd.f32 %v2163, %v2331
        %v2333 = vpop.f32.mrf.mxu0
        %v2334 = vadd.f32 %v2165, %v2333
        %2335 = vmatmul.bf16.gmra.mxu0 %v1351
        %v2336 = vpop.f32.mrf.mxu0
        %v2337 = vadd.f32 %v2168, %v2336
        %v2338 = vpop.f32.mrf.mxu0
        %v2339 = vadd.f32 %v2170, %v2338
        %2340 = vmatmul.bf16.gmra.mxu0 %v1355
        %v2341 = vpop.f32.mrf.mxu0
        %v2342 = vadd.f32 %v2173, %v2341
        %v2343 = vpop.f32.mrf.mxu0
        %v2344 = vadd.f32 %v2175, %v2343
        %2345 = vmatmul.bf16.gmra.mxu0 %v1359
        %v2346 = vpop.f32.mrf.mxu0
        %v2347 = vadd.f32 %v2178, %v2346
        %v2348 = vpop.f32.mrf.mxu0
        %v2349 = vadd.f32 %v2180, %v2348
        %2350 = vmatmul.bf16.gmra.mxu0 %v1363
        %v2351 = vpop.f32.mrf.mxu0
        %v2352 = vadd.f32 %v2183, %v2351
        %v2353 = vpop.f32.mrf.mxu0
        %v2354 = vadd.f32 %v2185, %v2353
        %2355 = vmatmul.bf16.gmra.mxu0 %v1367
        %v2356 = vpop.f32.mrf.mxu0
        %v2357 = vadd.f32 %v2188, %v2356
        %v2358 = vpop.f32.mrf.mxu0
        %v2359 = vadd.f32 %v2190, %v2358
        %2360 = vmatmul.bf16.gmra.mxu0 %v1371
        %v2361 = vpop.f32.mrf.mxu0
        %v2362 = vadd.f32 %v2193, %v2361
        %v2363 = vpop.f32.mrf.mxu0
        %v2364 = vadd.f32 %v2195, %v2363
        %2365 = vmatmul.bf16.gmra.mxu0 %v1375
        %v2366 = vpop.f32.mrf.mxu0
        %v2367 = vadd.f32 %v2198, %v2366
        %v2368 = vpop.f32.mrf.mxu0
        %v2369 = vadd.f32 %v2200, %v2368
        %2370 = vmatmul.bf16.gmra.mxu0 %v1379
        %v2371 = vpop.f32.mrf.mxu0
        %v2372 = vadd.f32 %v2203, %v2371
        %v2373 = vpop.f32.mrf.mxu0
        %v2374 = vadd.f32 %v2205, %v2373
        %2375 = vdwg.mxu0
        %v2376 = vadd.f32 %v612, %v2217
        %v2377 = vadd.f32 %v613, %v2219
        %v2378 = vadd.f32 %v614, %v2222
        %v2379 = vadd.f32 %v615, %v2224
        %v2380 = vadd.f32 %v616, %v2227
        %v2381 = vadd.f32 %v617, %v2229
        %v2382 = vadd.f32 %v618, %v2232
        %v2383 = vadd.f32 %v619, %v2234
        %v2384 = vadd.f32 %v620, %v2237
        %v2385 = vadd.f32 %v621, %v2239
        %v2386 = vadd.f32 %v622, %v2242
        %v2387 = vadd.f32 %v623, %v2244
        %v2388 = vadd.f32 %v624, %v2247
        %v2389 = vadd.f32 %v625, %v2249
        %v2390 = vadd.f32 %v626, %v2252
        %v2391 = vadd.f32 %v627, %v2254
        %v2392 = vadd.f32 %v628, %v2257
        %v2393 = vadd.f32 %v629, %v2259
        %v2394 = vadd.f32 %v630, %v2262
        %v2395 = vadd.f32 %v631, %v2264
        %v2396 = vadd.f32 %v632, %v2267
        %v2397 = vadd.f32 %v633, %v2269
        %v2398 = vadd.f32 %v634, %v2272
        %v2399 = vadd.f32 %v635, %v2274
        %v2400 = vadd.f32 %v636, %v2277
        %v2401 = vadd.f32 %v637, %v2279
        %v2402 = vadd.f32 %v638, %v2282
        %v2403 = vadd.f32 %v639, %v2284
        %v2404 = vadd.f32 %v640, %v2287
        %v2405 = vadd.f32 %v641, %v2289
        %v2406 = vadd.f32 %v642, %v2292
        %v2407 = vadd.f32 %v643, %v2294
        %v2408 = vadd.f32 %v644, %v2297
        %v2409 = vadd.f32 %v645, %v2299
        %v2410 = vadd.f32 %v646, %v2302
        %v2411 = vadd.f32 %v647, %v2304
        %v2412 = vadd.f32 %v648, %v2307
        %v2413 = vadd.f32 %v649, %v2309
        %v2414 = vadd.f32 %v650, %v2312
        %v2415 = vadd.f32 %v651, %v2314
        %v2416 = vadd.f32 %v652, %v2317
        %v2417 = vadd.f32 %v653, %v2319
        %v2418 = vadd.f32 %v654, %v2322
        %v2419 = vadd.f32 %v655, %v2324
        %v2420 = vadd.f32 %v656, %v2327
        %v2421 = vadd.f32 %v657, %v2329
        %v2422 = vadd.f32 %v658, %v2332
        %v2423 = vadd.f32 %v659, %v2334
        %v2424 = vadd.f32 %v660, %v2337
        %v2425 = vadd.f32 %v661, %v2339
        %v2426 = vadd.f32 %v662, %v2342
        %v2427 = vadd.f32 %v663, %v2344
        %v2428 = vadd.f32 %v664, %v2347
        %v2429 = vadd.f32 %v665, %v2349
        %v2430 = vadd.f32 %v666, %v2352
        %v2431 = vadd.f32 %v667, %v2354
        %v2432 = vadd.f32 %v668, %v2357
        %v2433 = vadd.f32 %v669, %v2359
        %v2434 = vadd.f32 %v670, %v2362
        %v2435 = vadd.f32 %v671, %v2364
        %v2436 = vadd.f32 %v672, %v2367
        %v2437 = vadd.f32 %v673, %v2369
        %v2438 = vadd.f32 %v674, %v2372
        %v2439 = vadd.f32 %v675, %v2374
        %2440 = vst [vmem:[#allocation2] sm:$0xff] %v2376
        %2441 = vst [vmem:[#allocation2 + $0x8] sm:$0xff] %v2377
        %2442 = vst [vmem:[#allocation2 + $0x10] sm:$0xff] %v2378
        %2443 = vst [vmem:[#allocation2 + $0x18] sm:$0xff] %v2379
        %2444 = vst [vmem:[#allocation2 + $0x20] sm:$0xff] %v2380
        %2445 = vst [vmem:[#allocation2 + $0x28] sm:$0xff] %v2381
        %2446 = vst [vmem:[#allocation2 + $0x30] sm:$0xff] %v2382
        %2447 = vst [vmem:[#allocation2 + $0x38] sm:$0xff] %v2383
        %2448 = vst [vmem:[#allocation2 + $0x40] sm:$0xff] %v2384
        %2449 = vst [vmem:[#allocation2 + $0x48] sm:$0xff] %v2385
        %2450 = vst [vmem:[#allocation2 + $0x50] sm:$0xff] %v2386
        %2451 = vst [vmem:[#allocation2 + $0x58] sm:$0xff] %v2387
        %2452 = vst [vmem:[#allocation2 + $0x60] sm:$0xff] %v2388
        %2453 = vst [vmem:[#allocation2 + $0x68] sm:$0xff] %v2389
        %2454 = vst [vmem:[#allocation2 + $0x70] sm:$0xff] %v2390
        %2455 = vst [vmem:[#allocation2 + $0x78] sm:$0xff] %v2391
        %2456 = vst [vmem:[#allocation2 + $0x80] sm:$0xff] %v2392
        %2457 = vst [vmem:[#allocation2 + $0x88] sm:$0xff] %v2393
        %2458 = vst [vmem:[#allocation2 + $0x90] sm:$0xff] %v2394
        %2459 = vst [vmem:[#allocation2 + $0x98] sm:$0xff] %v2395
        %2460 = vst [vmem:[#allocation2 + $0xa0] sm:$0xff] %v2396
        %2461 = vst [vmem:[#allocation2 + $0xa8] sm:$0xff] %v2397
        %2462 = vst [vmem:[#allocation2 + $0xb0] sm:$0xff] %v2398
        %2463 = vst [vmem:[#allocation2 + $0xb8] sm:$0xff] %v2399
        %2464 = vst [vmem:[#allocation2 + $0xc0] sm:$0xff] %v2400
        %2465 = vst [vmem:[#allocation2 + $0xc8] sm:$0xff] %v2401
        %2466 = vst [vmem:[#allocation2 + $0xd0] sm:$0xff] %v2402
        %2467 = vst [vmem:[#allocation2 + $0xd8] sm:$0xff] %v2403
        %2468 = vst [vmem:[#allocation2 + $0xe0] sm:$0xff] %v2404
        %2469 = vst [vmem:[#allocation2 + $0xe8] sm:$0xff] %v2405
        %2470 = vst [vmem:[#allocation2 + $0xf0] sm:$0xff] %v2406
        %2471 = vst [vmem:[#allocation2 + $0xf8] sm:$0xff] %v2407
        %2472 = vst [vmem:[#allocation2 + $0x100] sm:$0xff] %v2408
        %2473 = vst [vmem:[#allocation2 + $0x108] sm:$0xff] %v2409
        %2474 = vst [vmem:[#allocation2 + $0x110] sm:$0xff] %v2410
        %2475 = vst [vmem:[#allocation2 + $0x118] sm:$0xff] %v2411
        %2476 = vst [vmem:[#allocation2 + $0x120] sm:$0xff] %v2412
        %2477 = vst [vmem:[#allocation2 + $0x128] sm:$0xff] %v2413
        %2478 = vst [vmem:[#allocation2 + $0x130] sm:$0xff] %v2414
        %2479 = vst [vmem:[#allocation2 + $0x138] sm:$0xff] %v2415
        %2480 = vst [vmem:[#allocation2 + $0x140] sm:$0xff] %v2416
        %2481 = vst [vmem:[#allocation2 + $0x148] sm:$0xff] %v2417
        %2482 = vst [vmem:[#allocation2 + $0x150] sm:$0xff] %v2418
        %2483 = vst [vmem:[#allocation2 + $0x158] sm:$0xff] %v2419
        %2484 = vst [vmem:[#allocation2 + $0x160] sm:$0xff] %v2420
        %2485 = vst [vmem:[#allocation2 + $0x168] sm:$0xff] %v2421
        %2486 = vst [vmem:[#allocation2 + $0x170] sm:$0xff] %v2422
        %2487 = vst [vmem:[#allocation2 + $0x178] sm:$0xff] %v2423
        %2488 = vst [vmem:[#allocation2 + $0x180] sm:$0xff] %v2424
        %2489 = vst [vmem:[#allocation2 + $0x188] sm:$0xff] %v2425
        %2490 = vst [vmem:[#allocation2 + $0x190] sm:$0xff] %v2426
        %2491 = vst [vmem:[#allocation2 + $0x198] sm:$0xff] %v2427
        %2492 = vst [vmem:[#allocation2 + $0x1a0] sm:$0xff] %v2428
        %2493 = vst [vmem:[#allocation2 + $0x1a8] sm:$0xff] %v2429
        %2494 = vst [vmem:[#allocation2 + $0x1b0] sm:$0xff] %v2430
        %2495 = vst [vmem:[#allocation2 + $0x1b8] sm:$0xff] %v2431
        %2496 = vst [vmem:[#allocation2 + $0x1c0] sm:$0xff] %v2432
        %2497 = vst [vmem:[#allocation2 + $0x1c8] sm:$0xff] %v2433
        %2498 = vst [vmem:[#allocation2 + $0x1d0] sm:$0xff] %v2434
        %2499 = vst [vmem:[#allocation2 + $0x1d8] sm:$0xff] %v2435
        %2500 = vst [vmem:[#allocation2 + $0x1e0] sm:$0xff] %v2436
        %2501 = vst [vmem:[#allocation2 + $0x1e8] sm:$0xff] %v2437
        %2502 = vst [vmem:[#allocation2 + $0x1f0] sm:$0xff] %v2438
        %2503 = vst [vmem:[#allocation2 + $0x1f8] sm:$0xff] %v2439
        %p2504 = scmp.eq.s32.totalorder %s20, 1
        // Predicated region
        $region64: #{net_d_forward.5} parent=54 // pred_check
          %p2505 = pneg %p2504
        $region65: #{net_d_forward.5} parent=54 // pred_check_branch
          %2507 = sbr.rel (%p2505) target = $region67
        $region66: #{net_d_forward.5} parent=54 // pred_region
          %v2508 = vld [vmem:[#allocation2] sm:$0xff]
          %v2509 = vld [vmem:[#allocation2 + $0x8] sm:$0xff]
          %v2510 = vld [vmem:[#allocation2 + $0x10] sm:$0xff]
          %v2511 = vld [vmem:[#allocation2 + $0x18] sm:$0xff]
          %v2512 = vld [vmem:[#allocation2 + $0x20] sm:$0xff]
          %v2513 = vld [vmem:[#allocation2 + $0x28] sm:$0xff]
          %v2514 = vld [vmem:[#allocation2 + $0x30] sm:$0xff]
          %v2515 = vld [vmem:[#allocation2 + $0x38] sm:$0xff]
          %v2516 = vld [vmem:[#allocation2 + $0x40] sm:$0xff]
          %v2517 = vld [vmem:[#allocation2 + $0x48] sm:$0xff]
          %v2518 = vld [vmem:[#allocation2 + $0x50] sm:$0xff]
          %v2519 = vld [vmem:[#allocation2 + $0x58] sm:$0xff]
          %v2520 = vld [vmem:[#allocation2 + $0x60] sm:$0xff]
          %v2521 = vld [vmem:[#allocation2 + $0x68] sm:$0xff]
          %v2522 = vld [vmem:[#allocation2 + $0x70] sm:$0xff]
          %v2523 = vld [vmem:[#allocation2 + $0x78] sm:$0xff]
          %v2524 = vld [vmem:[#allocation2 + $0x80] sm:$0xff]
          %v2525 = vld [vmem:[#allocation2 + $0x88] sm:$0xff]
          %v2526 = vld [vmem:[#allocation2 + $0x90] sm:$0xff]
          %v2527 = vld [vmem:[#allocation2 + $0x98] sm:$0xff]
          %v2528 = vld [vmem:[#allocation2 + $0xa0] sm:$0xff]
          %v2529 = vld [vmem:[#allocation2 + $0xa8] sm:$0xff]
          %v2530 = vld [vmem:[#allocation2 + $0xb0] sm:$0xff]
          %v2531 = vld [vmem:[#allocation2 + $0xb8] sm:$0xff]
          %v2532 = vld [vmem:[#allocation2 + $0xc0] sm:$0xff]
          %v2533 = vld [vmem:[#allocation2 + $0xc8] sm:$0xff]
          %v2534 = vld [vmem:[#allocation2 + $0xd0] sm:$0xff]
          %v2535 = vld [vmem:[#allocation2 + $0xd8] sm:$0xff]
          %v2536 = vld [vmem:[#allocation2 + $0xe0] sm:$0xff]
          %v2537 = vld [vmem:[#allocation2 + $0xe8] sm:$0xff]
          %v2538 = vld [vmem:[#allocation2 + $0xf0] sm:$0xff]
          %v2539 = vld [vmem:[#allocation2 + $0xf8] sm:$0xff]
          %v2540 = vld [vmem:[#allocation2 + $0x100] sm:$0xff]
          %v2541 = vld [vmem:[#allocation2 + $0x108] sm:$0xff]
          %v2542 = vld [vmem:[#allocation2 + $0x110] sm:$0xff]
          %v2543 = vld [vmem:[#allocation2 + $0x118] sm:$0xff]
          %v2544 = vld [vmem:[#allocation2 + $0x120] sm:$0xff]
          %v2545 = vld [vmem:[#allocation2 + $0x128] sm:$0xff]
          %v2546 = vld [vmem:[#allocation2 + $0x130] sm:$0xff]
          %v2547 = vld [vmem:[#allocation2 + $0x138] sm:$0xff]
          %v2548 = vld [vmem:[#allocation2 + $0x140] sm:$0xff]
          %v2549 = vld [vmem:[#allocation2 + $0x148] sm:$0xff]
          %v2550 = vld [vmem:[#allocation2 + $0x150] sm:$0xff]
          %v2551 = vld [vmem:[#allocation2 + $0x158] sm:$0xff]
          %v2552 = vld [vmem:[#allocation2 + $0x160] sm:$0xff]
          %v2553 = vld [vmem:[#allocation2 + $0x168] sm:$0xff]
          %v2554 = vld [vmem:[#allocation2 + $0x170] sm:$0xff]
          %v2555 = vld [vmem:[#allocation2 + $0x178] sm:$0xff]
          %v2556 = vld [vmem:[#allocation2 + $0x180] sm:$0xff]
          %v2557 = vld [vmem:[#allocation2 + $0x188] sm:$0xff]
          %v2558 = vld [vmem:[#allocation2 + $0x190] sm:$0xff]
          %v2559 = vld [vmem:[#allocation2 + $0x198] sm:$0xff]
          %v2560 = vld [vmem:[#allocation2 + $0x1a0] sm:$0xff]
          %v2561 = vld [vmem:[#allocation2 + $0x1a8] sm:$0xff]
          %v2562 = vld [vmem:[#allocation2 + $0x1b0] sm:$0xff]
          %v2563 = vld [vmem:[#allocation2 + $0x1b8] sm:$0xff]
          %v2564 = vld [vmem:[#allocation2 + $0x1c0] sm:$0xff]
          %v2565 = vld [vmem:[#allocation2 + $0x1c8] sm:$0xff]
          %v2566 = vld [vmem:[#allocation2 + $0x1d0] sm:$0xff]
          %v2567 = vld [vmem:[#allocation2 + $0x1d8] sm:$0xff]
          %v2568 = vld [vmem:[#allocation2 + $0x1e0] sm:$0xff]
          %v2569 = vld [vmem:[#allocation2 + $0x1e8] sm:$0xff]
          %v2570 = vld [vmem:[#allocation2 + $0x1f0] sm:$0xff]
          %v2571 = vld [vmem:[#allocation2 + $0x1f8] sm:$0xff]
          %v2572 = vadd.f32 %v2508, %v2509
          %v2573 = vadd.f32 %v2572, %v2510
          %v2574 = vadd.f32 %v2573, %v2511
          %v2575 = vadd.f32 %v2574, %v2512
          %v2576 = vadd.f32 %v2575, %v2513
          %v2577 = vadd.f32 %v2576, %v2514
          %v2578 = vadd.f32 %v2577, %v2515
          %v2579 = vadd.f32 %v2578, %v2516
          %v2580 = vadd.f32 %v2579, %v2517
          %v2581 = vadd.f32 %v2580, %v2518
          %v2582 = vadd.f32 %v2581, %v2519
          %v2583 = vadd.f32 %v2582, %v2520
          %v2584 = vadd.f32 %v2583, %v2521
          %v2585 = vadd.f32 %v2584, %v2522
          %v2586 = vadd.f32 %v2585, %v2523
          %v2587 = vadd.f32 %v2586, %v2524
          %v2588 = vadd.f32 %v2587, %v2525
          %v2589 = vadd.f32 %v2588, %v2526
          %v2590 = vadd.f32 %v2589, %v2527
          %v2591 = vadd.f32 %v2590, %v2528
          %v2592 = vadd.f32 %v2591, %v2529
          %v2593 = vadd.f32 %v2592, %v2530
          %v2594 = vadd.f32 %v2593, %v2531
          %v2595 = vadd.f32 %v2594, %v2532
          %v2596 = vadd.f32 %v2595, %v2533
          %v2597 = vadd.f32 %v2596, %v2534
          %v2598 = vadd.f32 %v2597, %v2535
          %v2599 = vadd.f32 %v2598, %v2536
          %v2600 = vadd.f32 %v2599, %v2537
          %v2601 = vadd.f32 %v2600, %v2538
          %v2602 = vadd.f32 %v2601, %v2539
          %v2603 = vadd.f32 %v2602, %v2540
          %v2604 = vadd.f32 %v2603, %v2541
          %v2605 = vadd.f32 %v2604, %v2542
          %v2606 = vadd.f32 %v2605, %v2543
          %v2607 = vadd.f32 %v2606, %v2544
          %v2608 = vadd.f32 %v2607, %v2545
          %v2609 = vadd.f32 %v2608, %v2546
          %v2610 = vadd.f32 %v2609, %v2547
          %v2611 = vadd.f32 %v2610, %v2548
          %v2612 = vadd.f32 %v2611, %v2549
          %v2613 = vadd.f32 %v2612, %v2550
          %v2614 = vadd.f32 %v2613, %v2551
          %v2615 = vadd.f32 %v2614, %v2552
          %v2616 = vadd.f32 %v2615, %v2553
          %v2617 = vadd.f32 %v2616, %v2554
          %v2618 = vadd.f32 %v2617, %v2555
          %v2619 = vadd.f32 %v2618, %v2556
          %v2620 = vadd.f32 %v2619, %v2557
          %v2621 = vadd.f32 %v2620, %v2558
          %v2622 = vadd.f32 %v2621, %v2559
          %v2623 = vadd.f32 %v2622, %v2560
          %v2624 = vadd.f32 %v2623, %v2561
          %v2625 = vadd.f32 %v2624, %v2562
          %v2626 = vadd.f32 %v2625, %v2563
          %v2627 = vadd.f32 %v2626, %v2564
          %v2628 = vadd.f32 %v2627, %v2565
          %v2629 = vadd.f32 %v2628, %v2566
          %v2630 = vadd.f32 %v2629, %v2567
          %v2631 = vadd.f32 %v2630, %v2568
          %v2632 = vadd.f32 %v2631, %v2569
          %v2633 = vadd.f32 %v2632, %v2570
          %v2634 = vadd.f32 %v2633, %v2571
          %v2635 = vrot.slane %v2634, 4
          %v2636 = vadd.f32 %v2634, %v2635
          %v2637 = vrot.slane %v2636, 2
          %v2638 = vadd.f32 %v2636, %v2637
          %v2639 = vrot.slane %v2638, 1
          %v2640 = vadd.f32 %v2638, %v2639
          %v2641 = vrcp.pop 512.0
          %v2642 = vmul.f32 512.0, %v2641
          %v2643 = vsub.f32 1.0, %v2642
          %v2644 = vmul.f32 %v2641, %v2643
          %v2645 = vadd.f32 %v2641, %v2644
          %vm2646 = vweird.f32 %v2641
          %v2647 = vsel %vm2646, %v2641, %v2645
          %v2648 = vmul.f32 %v2640, %v2647
          %v2649 = vsub.f32 %v2508, %v2648
          %v2650 = vsub.f32 %v2509, %v2648
          %v2651 = vsub.f32 %v2510, %v2648
          %v2652 = vsub.f32 %v2511, %v2648
          %v2653 = vsub.f32 %v2512, %v2648
          %v2654 = vsub.f32 %v2513, %v2648
          %v2655 = vsub.f32 %v2514, %v2648
          %v2656 = vsub.f32 %v2515, %v2648
          %v2657 = vsub.f32 %v2516, %v2648
          %v2658 = vsub.f32 %v2517, %v2648
          %v2659 = vsub.f32 %v2518, %v2648
          %v2660 = vsub.f32 %v2519, %v2648
          %v2661 = vsub.f32 %v2520, %v2648
          %v2662 = vsub.f32 %v2521, %v2648
          %v2663 = vsub.f32 %v2522, %v2648
          %v2664 = vsub.f32 %v2523, %v2648
          %v2665 = vsub.f32 %v2524, %v2648
          %v2666 = vsub.f32 %v2525, %v2648
          %v2667 = vsub.f32 %v2526, %v2648
          %v2668 = vsub.f32 %v2527, %v2648
          %v2669 = vsub.f32 %v2528, %v2648
          %v2670 = vsub.f32 %v2529, %v2648
          %v2671 = vsub.f32 %v2530, %v2648
          %v2672 = vsub.f32 %v2531, %v2648
          %v2673 = vsub.f32 %v2532, %v2648
          %v2674 = vsub.f32 %v2533, %v2648
          %v2675 = vsub.f32 %v2534, %v2648
          %v2676 = vsub.f32 %v2535, %v2648
          %v2677 = vsub.f32 %v2536, %v2648
          %v2678 = vsub.f32 %v2537, %v2648
          %v2679 = vsub.f32 %v2538, %v2648
          %v2680 = vsub.f32 %v2539, %v2648
          %v2681 = vsub.f32 %v2540, %v2648
          %v2682 = vsub.f32 %v2541, %v2648
          %v2683 = vsub.f32 %v2542, %v2648
          %v2684 = vsub.f32 %v2543, %v2648
          %v2685 = vsub.f32 %v2544, %v2648
          %v2686 = vsub.f32 %v2545, %v2648
          %v2687 = vsub.f32 %v2546, %v2648
          %v2688 = vsub.f32 %v2547, %v2648
          %v2689 = vsub.f32 %v2548, %v2648
          %v2690 = vsub.f32 %v2549, %v2648
          %v2691 = vsub.f32 %v2550, %v2648
          %v2692 = vsub.f32 %v2551, %v2648
          %v2693 = vsub.f32 %v2552, %v2648
          %v2694 = vsub.f32 %v2553, %v2648
          %v2695 = vsub.f32 %v2554, %v2648
          %v2696 = vsub.f32 %v2555, %v2648
          %v2697 = vsub.f32 %v2556, %v2648
          %v2698 = vsub.f32 %v2557, %v2648
          %v2699 = vsub.f32 %v2558, %v2648
          %v2700 = vsub.f32 %v2559, %v2648
          %v2701 = vsub.f32 %v2560, %v2648
          %v2702 = vsub.f32 %v2561, %v2648
          %v2703 = vsub.f32 %v2562, %v2648
          %v2704 = vsub.f32 %v2563, %v2648
          %v2705 = vsub.f32 %v2564, %v2648
          %v2706 = vsub.f32 %v2565, %v2648
          %v2707 = vsub.f32 %v2566, %v2648
          %v2708 = vsub.f32 %v2567, %v2648
          %v2709 = vsub.f32 %v2568, %v2648
          %v2710 = vsub.f32 %v2569, %v2648
          %v2711 = vsub.f32 %v2570, %v2648
          %v2712 = vsub.f32 %v2571, %v2648
          %v2713 = vmul.f32 %v2649, %v2649
          %v2714 = vmul.f32 %v2650, %v2650
          %v2715 = vmul.f32 %v2651, %v2651
          %v2716 = vmul.f32 %v2652, %v2652
          %v2717 = vmul.f32 %v2653, %v2653
          %v2718 = vmul.f32 %v2654, %v2654
          %v2719 = vmul.f32 %v2655, %v2655
          %v2720 = vmul.f32 %v2656, %v2656
          %v2721 = vmul.f32 %v2657, %v2657
          %v2722 = vmul.f32 %v2658, %v2658
          %v2723 = vmul.f32 %v2659, %v2659
          %v2724 = vmul.f32 %v2660, %v2660
          %v2725 = vmul.f32 %v2661, %v2661
          %v2726 = vmul.f32 %v2662, %v2662
          %v2727 = vmul.f32 %v2663, %v2663
          %v2728 = vmul.f32 %v2664, %v2664
          %v2729 = vmul.f32 %v2665, %v2665
          %v2730 = vmul.f32 %v2666, %v2666
          %v2731 = vmul.f32 %v2667, %v2667
          %v2732 = vmul.f32 %v2668, %v2668
          %v2733 = vmul.f32 %v2669, %v2669
          %v2734 = vmul.f32 %v2670, %v2670
          %v2735 = vmul.f32 %v2671, %v2671
          %v2736 = vmul.f32 %v2672, %v2672
          %v2737 = vmul.f32 %v2673, %v2673
          %v2738 = vmul.f32 %v2674, %v2674
          %v2739 = vmul.f32 %v2675, %v2675
          %v2740 = vmul.f32 %v2676, %v2676
          %v2741 = vmul.f32 %v2677, %v2677
          %v2742 = vmul.f32 %v2678, %v2678
          %v2743 = vmul.f32 %v2679, %v2679
          %v2744 = vmul.f32 %v2680, %v2680
          %v2745 = vmul.f32 %v2681, %v2681
          %v2746 = vmul.f32 %v2682, %v2682
          %v2747 = vmul.f32 %v2683, %v2683
          %v2748 = vmul.f32 %v2684, %v2684
          %v2749 = vmul.f32 %v2685, %v2685
          %v2750 = vmul.f32 %v2686, %v2686
          %v2751 = vmul.f32 %v2687, %v2687
          %v2752 = vmul.f32 %v2688, %v2688
          %v2753 = vmul.f32 %v2689, %v2689
          %v2754 = vmul.f32 %v2690, %v2690
          %v2755 = vmul.f32 %v2691, %v2691
          %v2756 = vmul.f32 %v2692, %v2692
          %v2757 = vmul.f32 %v2693, %v2693
          %v2758 = vmul.f32 %v2694, %v2694
          %v2759 = vmul.f32 %v2695, %v2695
          %v2760 = vmul.f32 %v2696, %v2696
          %v2761 = vmul.f32 %v2697, %v2697
          %v2762 = vmul.f32 %v2698, %v2698
          %v2763 = vmul.f32 %v2699, %v2699
          %v2764 = vmul.f32 %v2700, %v2700
          %v2765 = vmul.f32 %v2701, %v2701
          %v2766 = vmul.f32 %v2702, %v2702
          %v2767 = vmul.f32 %v2703, %v2703
          %v2768 = vmul.f32 %v2704, %v2704
          %v2769 = vmul.f32 %v2705, %v2705
          %v2770 = vmul.f32 %v2706, %v2706
          %v2771 = vmul.f32 %v2707, %v2707
          %v2772 = vmul.f32 %v2708, %v2708
          %v2773 = vmul.f32 %v2709, %v2709
          %v2774 = vmul.f32 %v2710, %v2710
          %v2775 = vmul.f32 %v2711, %v2711
          %v2776 = vmul.f32 %v2712, %v2712
          %v2777 = vadd.f32 %v2713, %v2714
          %v2778 = vadd.f32 %v2777, %v2715
          %v2779 = vadd.f32 %v2778, %v2716
          %v2780 = vadd.f32 %v2779, %v2717
          %v2781 = vadd.f32 %v2780, %v2718
          %v2782 = vadd.f32 %v2781, %v2719
          %v2783 = vadd.f32 %v2782, %v2720
          %v2784 = vadd.f32 %v2783, %v2721
          %v2785 = vadd.f32 %v2784, %v2722
          %v2786 = vadd.f32 %v2785, %v2723
          %v2787 = vadd.f32 %v2786, %v2724
          %v2788 = vadd.f32 %v2787, %v2725
          %v2789 = vadd.f32 %v2788, %v2726
          %v2790 = vadd.f32 %v2789, %v2727
          %v2791 = vadd.f32 %v2790, %v2728
          %v2792 = vadd.f32 %v2791, %v2729
          %v2793 = vadd.f32 %v2792, %v2730
          %v2794 = vadd.f32 %v2793, %v2731
          %v2795 = vadd.f32 %v2794, %v2732
          %v2796 = vadd.f32 %v2795, %v2733
          %v2797 = vadd.f32 %v2796, %v2734
          %v2798 = vadd.f32 %v2797, %v2735
          %v2799 = vadd.f32 %v2798, %v2736
          %v2800 = vadd.f32 %v2799, %v2737
          %v2801 = vadd.f32 %v2800, %v2738
          %v2802 = vadd.f32 %v2801, %v2739
          %v2803 = vadd.f32 %v2802, %v2740
          %v2804 = vadd.f32 %v2803, %v2741
          %v2805 = vadd.f32 %v2804, %v2742
          %v2806 = vadd.f32 %v2805, %v2743
          %v2807 = vadd.f32 %v2806, %v2744
          %v2808 = vadd.f32 %v2807, %v2745
          %v2809 = vadd.f32 %v2808, %v2746
          %v2810 = vadd.f32 %v2809, %v2747
          %v2811 = vadd.f32 %v2810, %v2748
          %v2812 = vadd.f32 %v2811, %v2749
          %v2813 = vadd.f32 %v2812, %v2750
          %v2814 = vadd.f32 %v2813, %v2751
          %v2815 = vadd.f32 %v2814, %v2752
          %v2816 = vadd.f32 %v2815, %v2753
          %v2817 = vadd.f32 %v2816, %v2754
          %v2818 = vadd.f32 %v2817, %v2755
          %v2819 = vadd.f32 %v2818, %v2756
          %v2820 = vadd.f32 %v2819, %v2757
          %v2821 = vadd.f32 %v2820, %v2758
          %v2822 = vadd.f32 %v2821, %v2759
          %v2823 = vadd.f32 %v2822, %v2760
          %v2824 = vadd.f32 %v2823, %v2761
          %v2825 = vadd.f32 %v2824, %v2762
          %v2826 = vadd.f32 %v2825, %v2763
          %v2827 = vadd.f32 %v2826, %v2764
          %v2828 = vadd.f32 %v2827, %v2765
          %v2829 = vadd.f32 %v2828, %v2766
          %v2830 = vadd.f32 %v2829, %v2767
          %v2831 = vadd.f32 %v2830, %v2768
          %v2832 = vadd.f32 %v2831, %v2769
          %v2833 = vadd.f32 %v2832, %v2770
          %v2834 = vadd.f32 %v2833, %v2771
          %v2835 = vadd.f32 %v2834, %v2772
          %v2836 = vadd.f32 %v2835, %v2773
          %v2837 = vadd.f32 %v2836, %v2774
          %v2838 = vadd.f32 %v2837, %v2775
          %v2839 = vadd.f32 %v2838, %v2776
          %v2840 = vrot.slane %v2839, 4
          %v2841 = vadd.f32 %v2839, %v2840
          %v2842 = vrot.slane %v2841, 2
          %v2843 = vadd.f32 %v2841, %v2842
          %v2844 = vrot.slane %v2843, 1
          %v2845 = vadd.f32 %v2843, %v2844
          %v2846 = vmul.f32 %v2845, %v2647
          %v2847 = vadd.f32 %v2846, 1e-05
          %v2848 = vrsqrt.pop %v2847
          %v2849 = vmul.f32 %v2848, %v2847
          %v2850 = vmul.f32 %v2849, %v2848
          %v2851 = vmul.f32 0.5, %v2850
          %v2852 = vsub.f32 1.5, %v2851
          %v2853 = vmul.f32 %v2848, %v2852
          %vm2854 = vweird.f32 %v2847
          %vm2855 = vweird.f32 %v2848
          %vm2856 = vmor %vm2854, %vm2855
          %v2857 = vsel %vm2856, %v2848, %v2853
          %v2858 = vmul.f32 %v2649, %v2857
          %v2859 = vmul.f32 %v2650, %v2857
          %v2860 = vmul.f32 %v2651, %v2857
          %v2861 = vmul.f32 %v2652, %v2857
          %v2862 = vmul.f32 %v2653, %v2857
          %v2863 = vmul.f32 %v2654, %v2857
          %v2864 = vmul.f32 %v2655, %v2857
          %v2865 = vmul.f32 %v2656, %v2857
          %v2866 = vmul.f32 %v2657, %v2857
          %v2867 = vmul.f32 %v2658, %v2857
          %v2868 = vmul.f32 %v2659, %v2857
          %v2869 = vmul.f32 %v2660, %v2857
          %v2870 = vmul.f32 %v2661, %v2857
          %v2871 = vmul.f32 %v2662, %v2857
          %v2872 = vmul.f32 %v2663, %v2857
          %v2873 = vmul.f32 %v2664, %v2857
          %v2874 = vmul.f32 %v2665, %v2857
          %v2875 = vmul.f32 %v2666, %v2857
          %v2876 = vmul.f32 %v2667, %v2857
          %v2877 = vmul.f32 %v2668, %v2857
          %v2878 = vmul.f32 %v2669, %v2857
          %v2879 = vmul.f32 %v2670, %v2857
          %v2880 = vmul.f32 %v2671, %v2857
          %v2881 = vmul.f32 %v2672, %v2857
          %v2882 = vmul.f32 %v2673, %v2857
          %v2883 = vmul.f32 %v2674, %v2857
          %v2884 = vmul.f32 %v2675, %v2857
          %v2885 = vmul.f32 %v2676, %v2857
          %v2886 = vmul.f32 %v2677, %v2857
          %v2887 = vmul.f32 %v2678, %v2857
          %v2888 = vmul.f32 %v2679, %v2857
          %v2889 = vmul.f32 %v2680, %v2857
          %v2890 = vmul.f32 %v2681, %v2857
          %v2891 = vmul.f32 %v2682, %v2857
          %v2892 = vmul.f32 %v2683, %v2857
          %v2893 = vmul.f32 %v2684, %v2857
          %v2894 = vmul.f32 %v2685, %v2857
          %v2895 = vmul.f32 %v2686, %v2857
          %v2896 = vmul.f32 %v2687, %v2857
          %v2897 = vmul.f32 %v2688, %v2857
          %v2898 = vmul.f32 %v2689, %v2857
          %v2899 = vmul.f32 %v2690, %v2857
          %v2900 = vmul.f32 %v2691, %v2857
          %v2901 = vmul.f32 %v2692, %v2857
          %v2902 = vmul.f32 %v2693, %v2857
          %v2903 = vmul.f32 %v2694, %v2857
          %v2904 = vmul.f32 %v2695, %v2857
          %v2905 = vmul.f32 %v2696, %v2857
          %v2906 = vmul.f32 %v2697, %v2857
          %v2907 = vmul.f32 %v2698, %v2857
          %v2908 = vmul.f32 %v2699, %v2857
          %v2909 = vmul.f32 %v2700, %v2857
          %v2910 = vmul.f32 %v2701, %v2857
          %v2911 = vmul.f32 %v2702, %v2857
          %v2912 = vmul.f32 %v2703, %v2857
          %v2913 = vmul.f32 %v2704, %v2857
          %v2914 = vmul.f32 %v2705, %v2857
          %v2915 = vmul.f32 %v2706, %v2857
          %v2916 = vmul.f32 %v2707, %v2857
          %v2917 = vmul.f32 %v2708, %v2857
          %v2918 = vmul.f32 %v2709, %v2857
          %v2919 = vmul.f32 %v2710, %v2857
          %v2920 = vmul.f32 %v2711, %v2857
          %v2921 = vmul.f32 %v2712, %v2857
          %v2922 = vld [vmem:[%s536] sm:$0x1]
          %v2924 = vperm.slane %v2922, 0
          %v2926 = vmul.f32 %v2858, %v2924
          %v2927 = vmul.f32 %v2859, %v2924
          %v2928 = vmul.f32 %v2860, %v2924
          %v2929 = vmul.f32 %v2861, %v2924
          %v2930 = vmul.f32 %v2862, %v2924
          %v2931 = vmul.f32 %v2863, %v2924
          %v2932 = vmul.f32 %v2864, %v2924
          %v2933 = vmul.f32 %v2865, %v2924
          %v2934 = vmul.f32 %v2866, %v2924
          %v2935 = vmul.f32 %v2867, %v2924
          %v2936 = vmul.f32 %v2868, %v2924
          %v2937 = vmul.f32 %v2869, %v2924
          %v2938 = vmul.f32 %v2870, %v2924
          %v2939 = vmul.f32 %v2871, %v2924
          %v2940 = vmul.f32 %v2872, %v2924
          %v2941 = vmul.f32 %v2873, %v2924
          %v2942 = vmul.f32 %v2874, %v2924
          %v2943 = vmul.f32 %v2875, %v2924
          %v2944 = vmul.f32 %v2876, %v2924
          %v2945 = vmul.f32 %v2877, %v2924
          %v2946 = vmul.f32 %v2878, %v2924
          %v2947 = vmul.f32 %v2879, %v2924
          %v2948 = vmul.f32 %v2880, %v2924
          %v2949 = vmul.f32 %v2881, %v2924
          %v2950 = vmul.f32 %v2882, %v2924
          %v2951 = vmul.f32 %v2883, %v2924
          %v2952 = vmul.f32 %v2884, %v2924
          %v2953 = vmul.f32 %v2885, %v2924
          %v2954 = vmul.f32 %v2886, %v2924
          %v2955 = vmul.f32 %v2887, %v2924
          %v2956 = vmul.f32 %v2888, %v2924
          %v2957 = vmul.f32 %v2889, %v2924
          %v2958 = vmul.f32 %v2890, %v2924
          %v2959 = vmul.f32 %v2891, %v2924
          %v2960 = vmul.f32 %v2892, %v2924
          %v2961 = vmul.f32 %v2893, %v2924
          %v2962 = vmul.f32 %v2894, %v2924
          %v2963 = vmul.f32 %v2895, %v2924
          %v2964 = vmul.f32 %v2896, %v2924
          %v2965 = vmul.f32 %v2897, %v2924
          %v2966 = vmul.f32 %v2898, %v2924
          %v2967 = vmul.f32 %v2899, %v2924
          %v2968 = vmul.f32 %v2900, %v2924
          %v2969 = vmul.f32 %v2901, %v2924
          %v2970 = vmul.f32 %v2902, %v2924
          %v2971 = vmul.f32 %v2903, %v2924
          %v2972 = vmul.f32 %v2904, %v2924
          %v2973 = vmul.f32 %v2905, %v2924
          %v2974 = vmul.f32 %v2906, %v2924
          %v2975 = vmul.f32 %v2907, %v2924
          %v2976 = vmul.f32 %v2908, %v2924
          %v2977 = vmul.f32 %v2909, %v2924
          %v2978 = vmul.f32 %v2910, %v2924
          %v2979 = vmul.f32 %v2911, %v2924
          %v2980 = vmul.f32 %v2912, %v2924
          %v2981 = vmul.f32 %v2913, %v2924
          %v2982 = vmul.f32 %v2914, %v2924
          %v2983 = vmul.f32 %v2915, %v2924
          %v2984 = vmul.f32 %v2916, %v2924
          %v2985 = vmul.f32 %v2917, %v2924
          %v2986 = vmul.f32 %v2918, %v2924
          %v2987 = vmul.f32 %v2919, %v2924
          %v2988 = vmul.f32 %v2920, %v2924
          %v2989 = vmul.f32 %v2921, %v2924
          %v2990 = vld [vmem:[%s539] sm:$0x1]
          %v2992 = vperm.slane %v2990, 0
          %v2994 = vadd.f32 %v2926, %v2992
          %v2995 = vadd.f32 %v2927, %v2992
          %v2996 = vadd.f32 %v2928, %v2992
          %v2997 = vadd.f32 %v2929, %v2992
          %v2998 = vadd.f32 %v2930, %v2992
          %v2999 = vadd.f32 %v2931, %v2992
          %v3000 = vadd.f32 %v2932, %v2992
          %v3001 = vadd.f32 %v2933, %v2992
          %v3002 = vadd.f32 %v2934, %v2992
          %v3003 = vadd.f32 %v2935, %v2992
          %v3004 = vadd.f32 %v2936, %v2992
          %v3005 = vadd.f32 %v2937, %v2992
          %v3006 = vadd.f32 %v2938, %v2992
          %v3007 = vadd.f32 %v2939, %v2992
          %v3008 = vadd.f32 %v2940, %v2992
          %v3009 = vadd.f32 %v2941, %v2992
          %v3010 = vadd.f32 %v2942, %v2992
          %v3011 = vadd.f32 %v2943, %v2992
          %v3012 = vadd.f32 %v2944, %v2992
          %v3013 = vadd.f32 %v2945, %v2992
          %v3014 = vadd.f32 %v2946, %v2992
          %v3015 = vadd.f32 %v2947, %v2992
          %v3016 = vadd.f32 %v2948, %v2992
          %v3017 = vadd.f32 %v2949, %v2992
          %v3018 = vadd.f32 %v2950, %v2992
          %v3019 = vadd.f32 %v2951, %v2992
          %v3020 = vadd.f32 %v2952, %v2992
          %v3021 = vadd.f32 %v2953, %v2992
          %v3022 = vadd.f32 %v2954, %v2992
          %v3023 = vadd.f32 %v2955, %v2992
          %v3024 = vadd.f32 %v2956, %v2992
          %v3025 = vadd.f32 %v2957, %v2992
          %v3026 = vadd.f32 %v2958, %v2992
          %v3027 = vadd.f32 %v2959, %v2992
          %v3028 = vadd.f32 %v2960, %v2992
          %v3029 = vadd.f32 %v2961, %v2992
          %v3030 = vadd.f32 %v2962, %v2992
          %v3031 = vadd.f32 %v2963, %v2992
          %v3032 = vadd.f32 %v2964, %v2992
          %v3033 = vadd.f32 %v2965, %v2992
          %v3034 = vadd.f32 %v2966, %v2992
          %v3035 = vadd.f32 %v2967, %v2992
          %v3036 = vadd.f32 %v2968, %v2992
          %v3037 = vadd.f32 %v2969, %v2992
          %v3038 = vadd.f32 %v2970, %v2992
          %v3039 = vadd.f32 %v2971, %v2992
          %v3040 = vadd.f32 %v2972, %v2992
          %v3041 = vadd.f32 %v2973, %v2992
          %v3042 = vadd.f32 %v2974, %v2992
          %v3043 = vadd.f32 %v2975, %v2992
          %v3044 = vadd.f32 %v2976, %v2992
          %v3045 = vadd.f32 %v2977, %v2992
          %v3046 = vadd.f32 %v2978, %v2992
          %v3047 = vadd.f32 %v2979, %v2992
          %v3048 = vadd.f32 %v2980, %v2992
          %v3049 = vadd.f32 %v2981, %v2992
          %v3050 = vadd.f32 %v2982, %v2992
          %v3051 = vadd.f32 %v2983, %v2992
          %v3052 = vadd.f32 %v2984, %v2992
          %v3053 = vadd.f32 %v2985, %v2992
          %v3054 = vadd.f32 %v2986, %v2992
          %v3055 = vadd.f32 %v2987, %v2992
          %v3056 = vadd.f32 %v2988, %v2992
          %v3057 = vadd.f32 %v2989, %v2992
          %vm3058 = vcmp.gt.f32.partialorder %v2994, 0.0
          %vm3059 = vcmp.gt.f32.partialorder %v2995, 0.0
          %vm3060 = vcmp.gt.f32.partialorder %v2996, 0.0
          %vm3061 = vcmp.gt.f32.partialorder %v2997, 0.0
          %vm3062 = vcmp.gt.f32.partialorder %v2998, 0.0
          %vm3063 = vcmp.gt.f32.partialorder %v2999, 0.0
          %vm3064 = vcmp.gt.f32.partialorder %v3000, 0.0
          %vm3065 = vcmp.gt.f32.partialorder %v3001, 0.0
          %vm3066 = vcmp.gt.f32.partialorder %v3002, 0.0
          %vm3067 = vcmp.gt.f32.partialorder %v3003, 0.0
          %vm3068 = vcmp.gt.f32.partialorder %v3004, 0.0
          %vm3069 = vcmp.gt.f32.partialorder %v3005, 0.0
          %vm3070 = vcmp.gt.f32.partialorder %v3006, 0.0
          %vm3071 = vcmp.gt.f32.partialorder %v3007, 0.0
          %vm3072 = vcmp.gt.f32.partialorder %v3008, 0.0
          %vm3073 = vcmp.gt.f32.partialorder %v3009, 0.0
          %vm3074 = vcmp.gt.f32.partialorder %v3010, 0.0
          %vm3075 = vcmp.gt.f32.partialorder %v3011, 0.0
          %vm3076 = vcmp.gt.f32.partialorder %v3012, 0.0
          %vm3077 = vcmp.gt.f32.partialorder %v3013, 0.0
          %vm3078 = vcmp.gt.f32.partialorder %v3014, 0.0
          %vm3079 = vcmp.gt.f32.partialorder %v3015, 0.0
          %vm3080 = vcmp.gt.f32.partialorder %v3016, 0.0
          %vm3081 = vcmp.gt.f32.partialorder %v3017, 0.0
          %vm3082 = vcmp.gt.f32.partialorder %v3018, 0.0
          %vm3083 = vcmp.gt.f32.partialorder %v3019, 0.0
          %vm3084 = vcmp.gt.f32.partialorder %v3020, 0.0
          %vm3085 = vcmp.gt.f32.partialorder %v3021, 0.0
          %vm3086 = vcmp.gt.f32.partialorder %v3022, 0.0
          %vm3087 = vcmp.gt.f32.partialorder %v3023, 0.0
          %vm3088 = vcmp.gt.f32.partialorder %v3024, 0.0
          %vm3089 = vcmp.gt.f32.partialorder %v3025, 0.0
          %vm3090 = vcmp.gt.f32.partialorder %v3026, 0.0
          %vm3091 = vcmp.gt.f32.partialorder %v3027, 0.0
          %vm3092 = vcmp.gt.f32.partialorder %v3028, 0.0
          %vm3093 = vcmp.gt.f32.partialorder %v3029, 0.0
          %vm3094 = vcmp.gt.f32.partialorder %v3030, 0.0
          %vm3095 = vcmp.gt.f32.partialorder %v3031, 0.0
          %vm3096 = vcmp.gt.f32.partialorder %v3032, 0.0
          %vm3097 = vcmp.gt.f32.partialorder %v3033, 0.0
          %vm3098 = vcmp.gt.f32.partialorder %v3034, 0.0
          %vm3099 = vcmp.gt.f32.partialorder %v3035, 0.0
          %vm3100 = vcmp.gt.f32.partialorder %v3036, 0.0
          %vm3101 = vcmp.gt.f32.partialorder %v3037, 0.0
          %vm3102 = vcmp.gt.f32.partialorder %v3038, 0.0
          %vm3103 = vcmp.gt.f32.partialorder %v3039, 0.0
          %vm3104 = vcmp.gt.f32.partialorder %v3040, 0.0
          %vm3105 = vcmp.gt.f32.partialorder %v3041, 0.0
          %vm3106 = vcmp.gt.f32.partialorder %v3042, 0.0
          %vm3107 = vcmp.gt.f32.partialorder %v3043, 0.0
          %vm3108 = vcmp.gt.f32.partialorder %v3044, 0.0
          %vm3109 = vcmp.gt.f32.partialorder %v3045, 0.0
          %vm3110 = vcmp.gt.f32.partialorder %v3046, 0.0
          %vm3111 = vcmp.gt.f32.partialorder %v3047, 0.0
          %vm3112 = vcmp.gt.f32.partialorder %v3048, 0.0
          %vm3113 = vcmp.gt.f32.partialorder %v3049, 0.0
          %vm3114 = vcmp.gt.f32.partialorder %v3050, 0.0
          %vm3115 = vcmp.gt.f32.partialorder %v3051, 0.0
          %vm3116 = vcmp.gt.f32.partialorder %v3052, 0.0
          %vm3117 = vcmp.gt.f32.partialorder %v3053, 0.0
          %vm3118 = vcmp.gt.f32.partialorder %v3054, 0.0
          %vm3119 = vcmp.gt.f32.partialorder %v3055, 0.0
          %vm3120 = vcmp.gt.f32.partialorder %v3056, 0.0
          %vm3121 = vcmp.gt.f32.partialorder %v3057, 0.0
          %v3122 = vmul.f32 %v2994, 0.2
          %v3123 = vmul.f32 %v2995, 0.2
          %v3124 = vmul.f32 %v2996, 0.2
          %v3125 = vmul.f32 %v2997, 0.2
          %v3126 = vmul.f32 %v2998, 0.2
          %v3127 = vmul.f32 %v2999, 0.2
          %v3128 = vmul.f32 %v3000, 0.2
          %v3129 = vmul.f32 %v3001, 0.2
          %v3130 = vmul.f32 %v3002, 0.2
          %v3131 = vmul.f32 %v3003, 0.2
          %v3132 = vmul.f32 %v3004, 0.2
          %v3133 = vmul.f32 %v3005, 0.2
          %v3134 = vmul.f32 %v3006, 0.2
          %v3135 = vmul.f32 %v3007, 0.2
          %v3136 = vmul.f32 %v3008, 0.2
          %v3137 = vmul.f32 %v3009, 0.2
          %v3138 = vmul.f32 %v3010, 0.2
          %v3139 = vmul.f32 %v3011, 0.2
          %v3140 = vmul.f32 %v3012, 0.2
          %v3141 = vmul.f32 %v3013, 0.2
          %v3142 = vmul.f32 %v3014, 0.2
          %v3143 = vmul.f32 %v3015, 0.2
          %v3144 = vmul.f32 %v3016, 0.2
          %v3145 = vmul.f32 %v3017, 0.2
          %v3146 = vmul.f32 %v3018, 0.2
          %v3147 = vmul.f32 %v3019, 0.2
          %v3148 = vmul.f32 %v3020, 0.2
          %v3149 = vmul.f32 %v3021, 0.2
          %v3150 = vmul.f32 %v3022, 0.2
          %v3151 = vmul.f32 %v3023, 0.2
          %v3152 = vmul.f32 %v3024, 0.2
          %v3153 = vmul.f32 %v3025, 0.2
          %v3154 = vmul.f32 %v3026, 0.2
          %v3155 = vmul.f32 %v3027, 0.2
          %v3156 = vmul.f32 %v3028, 0.2
          %v3157 = vmul.f32 %v3029, 0.2
          %v3158 = vmul.f32 %v3030, 0.2
          %v3159 = vmul.f32 %v3031, 0.2
          %v3160 = vmul.f32 %v3032, 0.2
          %v3161 = vmul.f32 %v3033, 0.2
          %v3162 = vmul.f32 %v3034, 0.2
          %v3163 = vmul.f32 %v3035, 0.2
          %v3164 = vmul.f32 %v3036, 0.2
          %v3165 = vmul.f32 %v3037, 0.2
          %v3166 = vmul.f32 %v3038, 0.2
          %v3167 = vmul.f32 %v3039, 0.2
          %v3168 = vmul.f32 %v3040, 0.2
          %v3169 = vmul.f32 %v3041, 0.2
          %v3170 = vmul.f32 %v3042, 0.2
          %v3171 = vmul.f32 %v3043, 0.2
          %v3172 = vmul.f32 %v3044, 0.2
          %v3173 = vmul.f32 %v3045, 0.2
          %v3174 = vmul.f32 %v3046, 0.2
          %v3175 = vmul.f32 %v3047, 0.2
          %v3176 = vmul.f32 %v3048, 0.2
          %v3177 = vmul.f32 %v3049, 0.2
          %v3178 = vmul.f32 %v3050, 0.2
          %v3179 = vmul.f32 %v3051, 0.2
          %v3180 = vmul.f32 %v3052, 0.2
          %v3181 = vmul.f32 %v3053, 0.2
          %v3182 = vmul.f32 %v3054, 0.2
          %v3183 = vmul.f32 %v3055, 0.2
          %v3184 = vmul.f32 %v3056, 0.2
          %v3185 = vmul.f32 %v3057, 0.2
          %v3186 = vsel %vm3058, %v2994, %v3122
          %v3187 = vsel %vm3059, %v2995, %v3123
          %v3188 = vsel %vm3060, %v2996, %v3124
          %v3189 = vsel %vm3061, %v2997, %v3125
          %v3190 = vsel %vm3062, %v2998, %v3126
          %v3191 = vsel %vm3063, %v2999, %v3127
          %v3192 = vsel %vm3064, %v3000, %v3128
          %v3193 = vsel %vm3065, %v3001, %v3129
          %v3194 = vsel %vm3066, %v3002, %v3130
          %v3195 = vsel %vm3067, %v3003, %v3131
          %v3196 = vsel %vm3068, %v3004, %v3132
          %v3197 = vsel %vm3069, %v3005, %v3133
          %v3198 = vsel %vm3070, %v3006, %v3134
          %v3199 = vsel %vm3071, %v3007, %v3135
          %v3200 = vsel %vm3072, %v3008, %v3136
          %v3201 = vsel %vm3073, %v3009, %v3137
          %v3202 = vsel %vm3074, %v3010, %v3138
          %v3203 = vsel %vm3075, %v3011, %v3139
          %v3204 = vsel %vm3076, %v3012, %v3140
          %v3205 = vsel %vm3077, %v3013, %v3141
          %v3206 = vsel %vm3078, %v3014, %v3142
          %v3207 = vsel %vm3079, %v3015, %v3143
          %v3208 = vsel %vm3080, %v3016, %v3144
          %v3209 = vsel %vm3081, %v3017, %v3145
          %v3210 = vsel %vm3082, %v3018, %v3146
          %v3211 = vsel %vm3083, %v3019, %v3147
          %v3212 = vsel %vm3084, %v3020, %v3148
          %v3213 = vsel %vm3085, %v3021, %v3149
          %v3214 = vsel %vm3086, %v3022, %v3150
          %v3215 = vsel %vm3087, %v3023, %v3151
          %v3216 = vsel %vm3088, %v3024, %v3152
          %v3217 = vsel %vm3089, %v3025, %v3153
          %v3218 = vsel %vm3090, %v3026, %v3154
          %v3219 = vsel %vm3091, %v3027, %v3155
          %v3220 = vsel %vm3092, %v3028, %v3156
          %v3221 = vsel %vm3093, %v3029, %v3157
          %v3222 = vsel %vm3094, %v3030, %v3158
          %v3223 = vsel %vm3095, %v3031, %v3159
          %v3224 = vsel %vm3096, %v3032, %v3160
          %v3225 = vsel %vm3097, %v3033, %v3161
          %v3226 = vsel %vm3098, %v3034, %v3162
          %v3227 = vsel %vm3099, %v3035, %v3163
          %v3228 = vsel %vm3100, %v3036, %v3164
          %v3229 = vsel %vm3101, %v3037, %v3165
          %v3230 = vsel %vm3102, %v3038, %v3166
          %v3231 = vsel %vm3103, %v3039, %v3167
          %v3232 = vsel %vm3104, %v3040, %v3168
          %v3233 = vsel %vm3105, %v3041, %v3169
          %v3234 = vsel %vm3106, %v3042, %v3170
          %v3235 = vsel %vm3107, %v3043, %v3171
          %v3236 = vsel %vm3108, %v3044, %v3172
          %v3237 = vsel %vm3109, %v3045, %v3173
          %v3238 = vsel %vm3110, %v3046, %v3174
          %v3239 = vsel %vm3111, %v3047, %v3175
          %v3240 = vsel %vm3112, %v3048, %v3176
          %v3241 = vsel %vm3113, %v3049, %v3177
          %v3242 = vsel %vm3114, %v3050, %v3178
          %v3243 = vsel %vm3115, %v3051, %v3179
          %v3244 = vsel %vm3116, %v3052, %v3180
          %v3245 = vsel %vm3117, %v3053, %v3181
          %v3246 = vsel %vm3118, %v3054, %v3182
          %v3247 = vsel %vm3119, %v3055, %v3183
          %v3248 = vsel %vm3120, %v3056, %v3184
          %v3249 = vsel %vm3121, %v3057, %v3185
          %v3250 = vpack.c.bf16 %v3186, %v3186
          %v3251 = vpack.c.bf16 %v3187, %v3187
          %v3252 = vpack.c.bf16 %v3188, %v3188
          %v3253 = vpack.c.bf16 %v3189, %v3189
          %v3254 = vpack.c.bf16 %v3190, %v3190
          %v3255 = vpack.c.bf16 %v3191, %v3191
          %v3256 = vpack.c.bf16 %v3192, %v3192
          %v3257 = vpack.c.bf16 %v3193, %v3193
          %v3258 = vpack.c.bf16 %v3194, %v3194
          %v3259 = vpack.c.bf16 %v3195, %v3195
          %v3260 = vpack.c.bf16 %v3196, %v3196
          %v3261 = vpack.c.bf16 %v3197, %v3197
          %v3262 = vpack.c.bf16 %v3198, %v3198
          %v3263 = vpack.c.bf16 %v3199, %v3199
          %v3264 = vpack.c.bf16 %v3200, %v3200
          %v3265 = vpack.c.bf16 %v3201, %v3201
          %v3266 = vpack.c.bf16 %v3202, %v3202
          %v3267 = vpack.c.bf16 %v3203, %v3203
          %v3268 = vpack.c.bf16 %v3204, %v3204
          %v3269 = vpack.c.bf16 %v3205, %v3205
          %v3270 = vpack.c.bf16 %v3206, %v3206
          %v3271 = vpack.c.bf16 %v3207, %v3207
          %v3272 = vpack.c.bf16 %v3208, %v3208
          %v3273 = vpack.c.bf16 %v3209, %v3209
          %v3274 = vpack.c.bf16 %v3210, %v3210
          %v3275 = vpack.c.bf16 %v3211, %v3211
          %v3276 = vpack.c.bf16 %v3212, %v3212
          %v3277 = vpack.c.bf16 %v3213, %v3213
          %v3278 = vpack.c.bf16 %v3214, %v3214
          %v3279 = vpack.c.bf16 %v3215, %v3215
          %v3280 = vpack.c.bf16 %v3216, %v3216
          %v3281 = vpack.c.bf16 %v3217, %v3217
          %v3282 = vpack.c.bf16 %v3218, %v3218
          %v3283 = vpack.c.bf16 %v3219, %v3219
          %v3284 = vpack.c.bf16 %v3220, %v3220
          %v3285 = vpack.c.bf16 %v3221, %v3221
          %v3286 = vpack.c.bf16 %v3222, %v3222
          %v3287 = vpack.c.bf16 %v3223, %v3223
          %v3288 = vpack.c.bf16 %v3224, %v3224
          %v3289 = vpack.c.bf16 %v3225, %v3225
          %v3290 = vpack.c.bf16 %v3226, %v3226
          %v3291 = vpack.c.bf16 %v3227, %v3227
          %v3292 = vpack.c.bf16 %v3228, %v3228
          %v3293 = vpack.c.bf16 %v3229, %v3229
          %v3294 = vpack.c.bf16 %v3230, %v3230
          %v3295 = vpack.c.bf16 %v3231, %v3231
          %v3296 = vpack.c.bf16 %v3232, %v3232
          %v3297 = vpack.c.bf16 %v3233, %v3233
          %v3298 = vpack.c.bf16 %v3234, %v3234
          %v3299 = vpack.c.bf16 %v3235, %v3235
          %v3300 = vpack.c.bf16 %v3236, %v3236
          %v3301 = vpack.c.bf16 %v3237, %v3237
          %v3302 = vpack.c.bf16 %v3238, %v3238
          %v3303 = vpack.c.bf16 %v3239, %v3239
          %v3304 = vpack.c.bf16 %v3240, %v3240
          %v3305 = vpack.c.bf16 %v3241, %v3241
          %v3306 = vpack.c.bf16 %v3242, %v3242
          %v3307 = vpack.c.bf16 %v3243, %v3243
          %v3308 = vpack.c.bf16 %v3244, %v3244
          %v3309 = vpack.c.bf16 %v3245, %v3245
          %v3310 = vpack.c.bf16 %v3246, %v3246
          %v3311 = vpack.c.bf16 %v3247, %v3247
          %v3312 = vpack.c.bf16 %v3248, %v3248
          %v3313 = vpack.c.bf16 %v3249, %v3249
          %3314 = vst [vmem:[%s543] sm:$0xf] %v3250
          %3315 = vst [vmem:[%s543 + $0x4] sm:$0xf] %v3251
          %3316 = vst [vmem:[%s543 + $0x8] sm:$0xf] %v3252
          %3317 = vst [vmem:[%s543 + $0xc] sm:$0xf] %v3253
          %3318 = vst [vmem:[%s543 + $0x10] sm:$0xf] %v3254
          %3319 = vst [vmem:[%s543 + $0x14] sm:$0xf] %v3255
          %3320 = vst [vmem:[%s543 + $0x18] sm:$0xf] %v3256
          %3321 = vst [vmem:[%s543 + $0x1c] sm:$0xf] %v3257
          %3322 = vst [vmem:[%s543 + $0x20] sm:$0xf] %v3258
          %3323 = vst [vmem:[%s543 + $0x24] sm:$0xf] %v3259
          %3324 = vst [vmem:[%s543 + $0x28] sm:$0xf] %v3260
          %3325 = vst [vmem:[%s543 + $0x2c] sm:$0xf] %v3261
          %3326 = vst [vmem:[%s543 + $0x30] sm:$0xf] %v3262
          %3327 = vst [vmem:[%s543 + $0x34] sm:$0xf] %v3263
          %3328 = vst [vmem:[%s543 + $0x38] sm:$0xf] %v3264
          %3329 = vst [vmem:[%s543 + $0x3c] sm:$0xf] %v3265
          %3330 = vst [vmem:[%s543 + $0x40] sm:$0xf] %v3266
          %3331 = vst [vmem:[%s543 + $0x44] sm:$0xf] %v3267
          %3332 = vst [vmem:[%s543 + $0x48] sm:$0xf] %v3268
          %3333 = vst [vmem:[%s543 + $0x4c] sm:$0xf] %v3269
          %3334 = vst [vmem:[%s543 + $0x50] sm:$0xf] %v3270
          %3335 = vst [vmem:[%s543 + $0x54] sm:$0xf] %v3271
          %3336 = vst [vmem:[%s543 + $0x58] sm:$0xf] %v3272
          %3337 = vst [vmem:[%s543 + $0x5c] sm:$0xf] %v3273
          %3338 = vst [vmem:[%s543 + $0x60] sm:$0xf] %v3274
          %3339 = vst [vmem:[%s543 + $0x64] sm:$0xf] %v3275
          %3340 = vst [vmem:[%s543 + $0x68] sm:$0xf] %v3276
          %3341 = vst [vmem:[%s543 + $0x6c] sm:$0xf] %v3277
          %3342 = vst [vmem:[%s543 + $0x70] sm:$0xf] %v3278
          %3343 = vst [vmem:[%s543 + $0x74] sm:$0xf] %v3279
          %3344 = vst [vmem:[%s543 + $0x78] sm:$0xf] %v3280
          %3345 = vst [vmem:[%s543 + $0x7c] sm:$0xf] %v3281
          %3346 = vst [vmem:[%s543 + $0x80] sm:$0xf] %v3282
          %3347 = vst [vmem:[%s543 + $0x84] sm:$0xf] %v3283
          %3348 = vst [vmem:[%s543 + $0x88] sm:$0xf] %v3284
          %3349 = vst [vmem:[%s543 + $0x8c] sm:$0xf] %v3285
          %3350 = vst [vmem:[%s543 + $0x90] sm:$0xf] %v3286
          %3351 = vst [vmem:[%s543 + $0x94] sm:$0xf] %v3287
          %3352 = vst [vmem:[%s543 + $0x98] sm:$0xf] %v3288
          %3353 = vst [vmem:[%s543 + $0x9c] sm:$0xf] %v3289
          %3354 = vst [vmem:[%s543 + $0xa0] sm:$0xf] %v3290
          %3355 = vst [vmem:[%s543 + $0xa4] sm:$0xf] %v3291
          %3356 = vst [vmem:[%s543 + $0xa8] sm:$0xf] %v3292
          %3357 = vst [vmem:[%s543 + $0xac] sm:$0xf] %v3293
          %3358 = vst [vmem:[%s543 + $0xb0] sm:$0xf] %v3294
          %3359 = vst [vmem:[%s543 + $0xb4] sm:$0xf] %v3295
          %3360 = vst [vmem:[%s543 + $0xb8] sm:$0xf] %v3296
          %3361 = vst [vmem:[%s543 + $0xbc] sm:$0xf] %v3297
          %3362 = vst [vmem:[%s543 + $0xc0] sm:$0xf] %v3298
          %3363 = vst [vmem:[%s543 + $0xc4] sm:$0xf] %v3299
          %3364 = vst [vmem:[%s543 + $0xc8] sm:$0xf] %v3300
          %3365 = vst [vmem:[%s543 + $0xcc] sm:$0xf] %v3301
          %3366 = vst [vmem:[%s543 + $0xd0] sm:$0xf] %v3302
          %3367 = vst [vmem:[%s543 + $0xd4] sm:$0xf] %v3303
          %3368 = vst [vmem:[%s543 + $0xd8] sm:$0xf] %v3304
          %3369 = vst [vmem:[%s543 + $0xdc] sm:$0xf] %v3305
          %3370 = vst [vmem:[%s543 + $0xe0] sm:$0xf] %v3306
          %3371 = vst [vmem:[%s543 + $0xe4] sm:$0xf] %v3307
          %3372 = vst [vmem:[%s543 + $0xe8] sm:$0xf] %v3308
          %3373 = vst [vmem:[%s543 + $0xec] sm:$0xf] %v3309
          %3374 = vst [vmem:[%s543 + $0xf0] sm:$0xf] %v3310
          %3375 = vst [vmem:[%s543 + $0xf4] sm:$0xf] %v3311
          %3376 = vst [vmem:[%s543 + $0xf8] sm:$0xf] %v3312
          %3377 = vst [vmem:[%s543 + $0xfc] sm:$0xf] %v3313
        $region67: #{net_d_forward.5} parent=54 // pred_fallthru
          _
        %p3378 = scmp.lt.s32.totalorder %s19, 0
        %s3379 = scalar_select %p3378, %s19, 0
        %s3380 = smul.addr %s3379, 4
        %s3381 = scalar_lea.vmem %s4, %s3380
        // Predicated region
        $region68: #{net_d_forward.5} parent=54 // pred_check
          %p3382 = pneg %p151
        $region69: #{net_d_forward.5} parent=54 // pred_check_branch
          %3384 = sbr.rel (%p3382) target = $region71
        $region70: #{net_d_forward.5} parent=54 // pred_region
          _
        $region71: #{net_d_forward.5} parent=54 // pred_fallthru
          _
        // Predicated region
        $region72: #{net_d_forward.5} parent=54 // pred_check
          %p3385 = pneg %p151
        $region73: #{net_d_forward.5} parent=54 // pred_check_branch
          %3387 = sbr.rel (%p3385) target = $region75
        $region74: #{net_d_forward.5} parent=54 // pred_region
          %p3388 = scmp.lt.s32.totalorder %s19, 0
          %s3389 = scalar_select %p3388, %s19, 0
          %s3390 = smul.addr %s3389, 4
          %s3391 = scalar_lea.vmem %s4, %s3390
        $region75: #{net_d_forward.5} parent=54 // pred_fallthru
          _
      $region55: #{net_d_forward.5} parent=5 // pred_fallthru
        _
      %p3392 = scmp.le.s32.totalorder 2, %s10
      // Predicated region
      $region76: #{net_d_forward.5} parent=5 // pred_check
        %p3393 = pneg %p3392
      $region77: #{net_d_forward.5} parent=5 // pred_check_branch
        %3395 = sbr.rel (%p3393) target = $region79
      $region78: #{net_d_forward.5} parent=5 // pred_region
        %s3396 = ssub.s32 %s10, 2
      $region79: #{net_d_forward.5} parent=5 // pred_fallthru
        _
    $region6: #{net_d_forward.5} parent=1 // loop_footer
      %s14 = sadd.s32 1, %s10
    $region7: #{net_d_forward.5} parent=1 // loop_footer_branch
      %9 = sbr.rel target = $region3
    $region8: #{net_d_forward.5} parent=1 // loop_exit
      _

// kernel: net_d_forward.6
$region0: #{net_d_forward.6}
  #allocation0 [shape = 'u32[]', space=smem, size = 0x4, offset = 0x4, fixed_abs, tag = 'smem constant byte address 0x4 - core index']
  #allocation1 [shape = 'u32[72,128]{1,0:T(1,128)}', space=vmem, size = 0x9000, scoped, tag = 'internal scratch']
  #allocation2 [shape = 'f32[128,128]{1,0:T(8,128)}', space=vmem, size = 0x10000, scoped, tag = 'scratch operand']
  %s0 = inlined_call_operand.vmem [shape: bf16[128,2048], index: 0, kind: input, shape index: {}]
  %s1 = inlined_call_operand.vmem [shape: bf16[2048,256], index: 1, kind: input, shape index: {}]
  %s2 = inlined_call_operand.vmem [shape: f32[1,256], index: 2, kind: input, shape index: {}]
  %s3 = inlined_call_operand.vmem [shape: f32[1,256], index: 3, kind: input, shape index: {}]
  %s4 = inlined_call_operand.vmem [shape: bf16[128,256], index: 4, kind: output, shape index: {}]
  %s5 = sld [smem:[#allocation0]]
  $region158: #{net_d_forward.6} parent=0
    _
  %s7 = ssub.s32 1, %s5
  %s8 = scalar_select 0, %s7, %s5
  $region1: #{net_d_forward.6} parent=0
    #allocation3 [shape = 'u8[262144]{0}', space=vmem, size = 0x40000, scoped, tag = 'input window, operand 0']
    #allocation4 [shape = 'u8[262144]{0}', space=vmem, size = 0x40000, scoped, tag = 'input window, operand 1']
    #allocation5 [shape = 'u8[65536]{0}', space=vmem, size = 0x10000, scoped, tag = 'output window, operand 0']
    loop: start=0, step=1, limit=10
    $region2: #{net_d_forward.6} parent=1 // loop_pre_header
      _
    $region3: #{net_d_forward.6} parent=1 // loop_header
      %s10 = sphi 0, %s14
      %p11 = scmp.ge.s32.totalorder %s10, 10
      %s17 = sphi 0, %s29
      %s18 = sphi 0, %s25
      %s19 = sphi 0, %s17
      %s20 = sphi 0, %s18
      %s21 = sphi 0, %s19
      %s22 = sphi 0, %s20
      %s32 = sphi 0, %s34
      %s35 = sphi 0, %s32
      %s36 = sphi 0, %s35
      %s52 = sphi 0, %s36
      %s60 = sphi 0, %s62
      %s63 = sphi 0, %s60
      %s64 = sphi 0, %s63
      %s80 = sphi 0, %s64
      %s86 = sphi 0, %s88
      %s89 = sphi 0, %s86
      %s90 = sphi 0, %s89
      %s106 = sphi 0, %s90
      %s112 = sphi 0, %s114
      %s115 = sphi 0, %s112
      %s116 = sphi 0, %s115
      %s132 = sphi 0, %s116
      %s138 = sphi 0, %s140
      %s141 = sphi 0, %s138
      %s142 = sphi 0, %s141
      %s158 = sphi 0, %s142
    $region4: #{net_d_forward.6} parent=1 // loop_header_branch
      %13 = sbr.rel (%p11) target = $region8
    $region5: #{net_d_forward.6} parent=1 // loop_body
      %s15 = ssub.s32 %s10, 1
      %s16 = ssub.s32 %s10, 2
      %s23 = sadd.s32 1, %s18
      %p24 = scmp.ge.s32.totalorder %s23, 4
      %s25 = scalar_select %p24, 0, %s23
      %s26 = sadd.s32 1, %s17
      %s27 = scalar_select %p24, %s26, %s17
      %p28 = scmp.ge.s32.totalorder %s27, 2
      %s29 = scalar_select %p28, 0, %s27
      %s30 = ssub.s32 %s18, %s25
      %p31 = scmp.eq.s32.totalorder %s30, 0
      %s33 = sadd.s32 %s32, 1
      %s34 = scalar_select %p31, %s32, %s33
      %p37 = pneg %p31
      %p38 = scmp.eq.s32.totalorder %s10, 7
      %p39 = por %p37, %p38
      %p40 = scmp.ne.s32.totalorder %s32, %s35
      %p41 = scmp.eq.s32.totalorder %s10, 0
      %p42 = por %p40, %p41
      %p43 = scmp.ne.s32.totalorder %s32, %s35
      %p44 = scmp.eq.s32.totalorder %s15, 7
      %p45 = por %p43, %p44
      %p46 = scmp.ne.s32.totalorder %s35, %s36
      %p47 = scmp.eq.s32.totalorder %s15, 0
      %p48 = por %p46, %p47
      %p49 = scmp.ne.s32.totalorder %s35, %s36
      %p50 = scmp.eq.s32.totalorder %s16, 7
      %p51 = por %p49, %p50
      %p53 = scmp.ne.s32.totalorder %s36, %s52
      %p54 = scmp.eq.s32.totalorder %s16, 0
      %p55 = por %p53, %p54
      %s56 = ssub.s32 %s18, %s25
      %s57 = ssub.s32 %s17, %s29
      %s58 = sor.u32 %s56, %s57
      %p59 = scmp.eq.s32.totalorder %s58, 0
      %s61 = sadd.s32 %s60, 1
      %s62 = scalar_select %p59, %s60, %s61
      %p65 = pneg %p59
      %p66 = scmp.eq.s32.totalorder %s10, 7
      %p67 = por %p65, %p66
      %p68 = scmp.ne.s32.totalorder %s60, %s63
      %p69 = scmp.eq.s32.totalorder %s10, 0
      %p70 = por %p68, %p69
      %p71 = scmp.ne.s32.totalorder %s60, %s63
      %p72 = scmp.eq.s32.totalorder %s15, 7
      %p73 = por %p71, %p72
      %p74 = scmp.ne.s32.totalorder %s63, %s64
      %p75 = scmp.eq.s32.totalorder %s15, 0
      %p76 = por %p74, %p75
      %p77 = scmp.ne.s32.totalorder %s63, %s64
      %p78 = scmp.eq.s32.totalorder %s16, 7
      %p79 = por %p77, %p78
      %p81 = scmp.ne.s32.totalorder %s64, %s80
      %p82 = scmp.eq.s32.totalorder %s16, 0
      %p83 = por %p81, %p82
      %s84 = ssub.s32 %s17, %s29
      %p85 = scmp.eq.s32.totalorder %s84, 0
      %s87 = sadd.s32 %s86, 1
      %s88 = scalar_select %p85, %s86, %s87
      %p91 = pneg %p85
      %p92 = scmp.eq.s32.totalorder %s10, 7
      %p93 = por %p91, %p92
      %p94 = scmp.ne.s32.totalorder %s86, %s89
      %p95 = scmp.eq.s32.totalorder %s10, 0
      %p96 = por %p94, %p95
      %p97 = scmp.ne.s32.totalorder %s86, %s89
      %p98 = scmp.eq.s32.totalorder %s15, 7
      %p99 = por %p97, %p98
      %p100 = scmp.ne.s32.totalorder %s89, %s90
      %p101 = scmp.eq.s32.totalorder %s15, 0
      %p102 = por %p100, %p101
      %p103 = scmp.ne.s32.totalorder %s89, %s90
      %p104 = scmp.eq.s32.totalorder %s16, 7
      %p105 = por %p103, %p104
      %p107 = scmp.ne.s32.totalorder %s90, %s106
      %p108 = scmp.eq.s32.totalorder %s16, 0
      %p109 = por %p107, %p108
      %s110 = ssub.s32 %s17, %s29
      %p111 = scmp.eq.s32.totalorder %s110, 0
      %s113 = sadd.s32 %s112, 1
      %s114 = scalar_select %p111, %s112, %s113
      %p117 = pneg %p111
      %p118 = scmp.eq.s32.totalorder %s10, 7
      %p119 = por %p117, %p118
      %p120 = scmp.ne.s32.totalorder %s112, %s115
      %p121 = scmp.eq.s32.totalorder %s10, 0
      %p122 = por %p120, %p121
      %p123 = scmp.ne.s32.totalorder %s112, %s115
      %p124 = scmp.eq.s32.totalorder %s15, 7
      %p125 = por %p123, %p124
      %p126 = scmp.ne.s32.totalorder %s115, %s116
      %p127 = scmp.eq.s32.totalorder %s15, 0
      %p128 = por %p126, %p127
      %p129 = scmp.ne.s32.totalorder %s115, %s116
      %p130 = scmp.eq.s32.totalorder %s16, 7
      %p131 = por %p129, %p130
      %p133 = scmp.ne.s32.totalorder %s116, %s132
      %p134 = scmp.eq.s32.totalorder %s16, 0
      %p135 = por %p133, %p134
      %s136 = ssub.s32 %s17, %s29
      %p137 = scmp.eq.s32.totalorder %s136, 0
      %s139 = sadd.s32 %s138, 1
      %s140 = scalar_select %p137, %s138, %s139
      %p143 = pneg %p137
      %p144 = scmp.eq.s32.totalorder %s10, 7
      %p145 = por %p143, %p144
      %p146 = scmp.ne.s32.totalorder %s138, %s141
      %p147 = scmp.eq.s32.totalorder %s10, 0
      %p148 = por %p146, %p147
      %p149 = scmp.ne.s32.totalorder %s138, %s141
      %p150 = scmp.eq.s32.totalorder %s15, 7
      %p151 = por %p149, %p150
      %p152 = scmp.ne.s32.totalorder %s141, %s142
      %p153 = scmp.eq.s32.totalorder %s15, 0
      %p154 = por %p152, %p153
      %p155 = scmp.ne.s32.totalorder %s141, %s142
      %p156 = scmp.eq.s32.totalorder %s16, 7
      %p157 = por %p155, %p156
      %p159 = scmp.ne.s32.totalorder %s142, %s158
      %p160 = scmp.eq.s32.totalorder %s16, 0
      %p161 = por %p159, %p160
      %p162 = scmp.le.s32.totalorder 1, %s10
      %p163 = scmp.lt.s32.totalorder %s10, 9
      %p164 = pnand %p162, %p163
      %p165 = pneg %p164
      // Predicated region
      $region9: #{net_d_forward.6} parent=5 // pred_check
        _
      $region10: #{net_d_forward.6} parent=5 // pred_check_branch
        %167 = sbr.rel (%p164) target = $region12
      $region11: #{net_d_forward.6} parent=5 // pred_region
        %s168 = ssub.s32 %s10, 1
      $region12: #{net_d_forward.6} parent=5 // pred_fallthru
        _
      %p169 = scmp.lt.s32.totalorder %s10, 8
      // Predicated region
      $region13: #{net_d_forward.6} parent=5 // pred_check
        %p170 = pneg %p169
      $region14: #{net_d_forward.6} parent=5 // pred_check_branch
        %172 = sbr.rel (%p170) target = $region16
      $region15: #{net_d_forward.6} parent=5 // pred_region
        // Predicated region
        $region17: #{net_d_forward.6} parent=15 // pred_check
          %p173 = pneg %p42
        $region18: #{net_d_forward.6} parent=15 // pred_check_branch
          %175 = sbr.rel (%p173) target = $region20
        $region19: #{net_d_forward.6} parent=15 // pred_region
          %s176 = sand.u32 %s32, 1
          %s177 = sand.u32 %s32, 1
          %s178 = smul.addr %s177, 256
          %s179 = scalar_lea.vmem [#allocation3], %s178
          %s180 = smul.u32 4, %s18
          %s181 = smul.addr %s180, 4
          %s182 = scalar_lea.vmem %s0, %s181
          // Predicated region
          $region21: #{net_d_forward.6} parent=19 // pred_check
            _
          $region22: #{net_d_forward.6} parent=19 // pred_check_branch
            %184 = sbr.rel (0) target = $region24
          $region23: #{net_d_forward.6} parent=19 // pred_region
            // Predicated region
            $region25: #{net_d_forward.6} parent=23 // pred_check
              _
            $region26: #{net_d_forward.6} parent=23 // pred_check_branch
              %186 = sbr.rel (0) target = $region28
            $region27: #{net_d_forward.6} parent=23 // pred_region
              loop: start=0, step=1, limit=1
              $region29: #{net_d_forward.6} parent=27 // loop_pre_header
                _
              $region30: #{net_d_forward.6} parent=27 // loop_header
                %s188 = sphi 0, %s192
                %p189 = scmp.ge.s32.totalorder %s188, 1
                %s193 = sphi %s182, %s182
                %s194 = sphi %s179, %s179
              $region31: #{net_d_forward.6} parent=27 // loop_header_branch
                %191 = sbr.rel (%p189) target = $region35
              $region32: #{net_d_forward.6} parent=27 // loop_body
                %v195 = vld [vmem:[%s193] sm:$0xff]
                %196 = vst [vmem:[%s194] sm:$0xff] %v195
                %v197 = vld [vmem:[%s193 + $0x8] sm:$0xff]
                %198 = vst [vmem:[%s194 + $0x8] sm:$0xff] %v197
                %v199 = vld [vmem:[%s193 + $0x40] sm:$0xff]
                %200 = vst [vmem:[%s194 + $0x10] sm:$0xff] %v199
                %v201 = vld [vmem:[%s193 + $0x48] sm:$0xff]
                %202 = vst [vmem:[%s194 + $0x18] sm:$0xff] %v201
                %v203 = vld [vmem:[%s193 + $0x80] sm:$0xff]
                %204 = vst [vmem:[%s194 + $0x20] sm:$0xff] %v203
                %v205 = vld [vmem:[%s193 + $0x88] sm:$0xff]
                %206 = vst [vmem:[%s194 + $0x28] sm:$0xff] %v205
                %v207 = vld [vmem:[%s193 + $0xc0] sm:$0xff]
                %208 = vst [vmem:[%s194 + $0x30] sm:$0xff] %v207
                %v209 = vld [vmem:[%s193 + $0xc8] sm:$0xff]
                %210 = vst [vmem:[%s194 + $0x38] sm:$0xff] %v209
                %v211 = vld [vmem:[%s193 + $0x100] sm:$0xff]
                %212 = vst [vmem:[%s194 + $0x40] sm:$0xff] %v211
                %v213 = vld [vmem:[%s193 + $0x108] sm:$0xff]
                %214 = vst [vmem:[%s194 + $0x48] sm:$0xff] %v213
                %v215 = vld [vmem:[%s193 + $0x140] sm:$0xff]
                %216 = vst [vmem:[%s194 + $0x50] sm:$0xff] %v215
                %v217 = vld [vmem:[%s193 + $0x148] sm:$0xff]
                %218 = vst [vmem:[%s194 + $0x58] sm:$0xff] %v217
                %v219 = vld [vmem:[%s193 + $0x180] sm:$0xff]
                %220 = vst [vmem:[%s194 + $0x60] sm:$0xff] %v219
                %v221 = vld [vmem:[%s193 + $0x188] sm:$0xff]
                %222 = vst [vmem:[%s194 + $0x68] sm:$0xff] %v221
                %v223 = vld [vmem:[%s193 + $0x1c0] sm:$0xff]
                %224 = vst [vmem:[%s194 + $0x70] sm:$0xff] %v223
                %v225 = vld [vmem:[%s193 + $0x1c8] sm:$0xff]
                %226 = vst [vmem:[%s194 + $0x78] sm:$0xff] %v225
                %v227 = vld [vmem:[%s193 + $0x200] sm:$0xff]
                %228 = vst [vmem:[%s194 + $0x80] sm:$0xff] %v227
                %v229 = vld [vmem:[%s193 + $0x208] sm:$0xff]
                %230 = vst [vmem:[%s194 + $0x88] sm:$0xff] %v229
                %v231 = vld [vmem:[%s193 + $0x240] sm:$0xff]
                %232 = vst [vmem:[%s194 + $0x90] sm:$0xff] %v231
                %v233 = vld [vmem:[%s193 + $0x248] sm:$0xff]
                %234 = vst [vmem:[%s194 + $0x98] sm:$0xff] %v233
                %v235 = vld [vmem:[%s193 + $0x280] sm:$0xff]
                %236 = vst [vmem:[%s194 + $0xa0] sm:$0xff] %v235
                %v237 = vld [vmem:[%s193 + $0x288] sm:$0xff]
                %238 = vst [vmem:[%s194 + $0xa8] sm:$0xff] %v237
                %v239 = vld [vmem:[%s193 + $0x2c0] sm:$0xff]
                %240 = vst [vmem:[%s194 + $0xb0] sm:$0xff] %v239
                %v241 = vld [vmem:[%s193 + $0x2c8] sm:$0xff]
                %242 = vst [vmem:[%s194 + $0xb8] sm:$0xff] %v241
                %v243 = vld [vmem:[%s193 + $0x300] sm:$0xff]
                %244 = vst [vmem:[%s194 + $0xc0] sm:$0xff] %v243
                %v245 = vld [vmem:[%s193 + $0x308] sm:$0xff]
                %246 = vst [vmem:[%s194 + $0xc8] sm:$0xff] %v245
                %v247 = vld [vmem:[%s193 + $0x340] sm:$0xff]
                %248 = vst [vmem:[%s194 + $0xd0] sm:$0xff] %v247
                %v249 = vld [vmem:[%s193 + $0x348] sm:$0xff]
                %250 = vst [vmem:[%s194 + $0xd8] sm:$0xff] %v249
                %v251 = vld [vmem:[%s193 + $0x380] sm:$0xff]
                %252 = vst [vmem:[%s194 + $0xe0] sm:$0xff] %v251
                %v253 = vld [vmem:[%s193 + $0x388] sm:$0xff]
                %254 = vst [vmem:[%s194 + $0xe8] sm:$0xff] %v253
                %v255 = vld [vmem:[%s193 + $0x3c0] sm:$0xff]
                %256 = vst [vmem:[%s194 + $0xf0] sm:$0xff] %v255
                %v257 = vld [vmem:[%s193 + $0x3c8] sm:$0xff]
                %258 = vst [vmem:[%s194 + $0xf8] sm:$0xff] %v257
              $region33: #{net_d_forward.6} parent=27 // loop_footer
                %s192 = sadd.s32 1, %s188
              $region34: #{net_d_forward.6} parent=27 // loop_footer_branch
                %187 = sbr.rel target = $region30
              $region35: #{net_d_forward.6} parent=27 // loop_exit
                _
            $region28: #{net_d_forward.6} parent=23 // pred_fallthru
              _
            // Predicated region
            $region36: #{net_d_forward.6} parent=23 // pred_check
              _
            $region37: #{net_d_forward.6} parent=23 // pred_check_branch
              %260 = sbr.rel target = $region39
            $region38: #{net_d_forward.6} parent=23 // pred_region
              _
            $region39: #{net_d_forward.6} parent=23 // pred_fallthru
              _
          $region24: #{net_d_forward.6} parent=19 // pred_fallthru
            _
          %261 = vnop
        $region20: #{net_d_forward.6} parent=15 // pred_fallthru
          _
        // Predicated region
        $region40: #{net_d_forward.6} parent=15 // pred_check
          %p262 = pneg %p70
        $region41: #{net_d_forward.6} parent=15 // pred_check_branch
          %264 = sbr.rel (%p262) target = $region43
        $region42: #{net_d_forward.6} parent=15 // pred_region
          %s265 = sand.u32 %s60, 1
          %s266 = sand.u32 %s60, 1
          %s267 = smul.addr %s266, 256
          %s268 = scalar_lea.vmem [#allocation4], %s267
          %s269 = smul.u32 64, %s18
          %s270 = smul.addr %s269, 2
          %s271 = sadd.s32 %s17, %s270
          %s272 = smul.addr %s271, 4
          %s273 = scalar_lea.vmem %s1, %s272
          // Predicated region
          $region44: #{net_d_forward.6} parent=42 // pred_check
            _
          $region45: #{net_d_forward.6} parent=42 // pred_check_branch
            %275 = sbr.rel (0) target = $region47
          $region46: #{net_d_forward.6} parent=42 // pred_region
            // Predicated region
            $region48: #{net_d_forward.6} parent=46 // pred_check
              _
            $region49: #{net_d_forward.6} parent=46 // pred_check_branch
              %277 = sbr.rel target = $region51
            $region50: #{net_d_forward.6} parent=46 // pred_region
              // Predicated region
              $region63: #{net_d_forward.6} parent=50 // pred_check
                _
              $region64: #{net_d_forward.6} parent=50 // pred_check_branch
                %419 = sbr.rel (0) target = $region66
              $region65: #{net_d_forward.6} parent=50 // pred_region
                loop: start=0, step=1, limit=1
                $region67: #{net_d_forward.6} parent=65 // loop_pre_header
                  _
                $region68: #{net_d_forward.6} parent=65 // loop_header
                  %s421 = sphi 0, %s425
                  %p422 = scmp.ge.s32.totalorder %s421, 1
                  %s426 = sphi %s273, %s273
                  %s427 = sphi %s268, %s268
                $region69: #{net_d_forward.6} parent=65 // loop_header_branch
                  %424 = sbr.rel (%p422) target = $region73
                $region70: #{net_d_forward.6} parent=65 // loop_body
                  _
                $region71: #{net_d_forward.6} parent=65 // loop_footer
                  %s425 = sadd.s32 1, %s421
                $region72: #{net_d_forward.6} parent=65 // loop_footer_branch
                  %420 = sbr.rel target = $region68
                $region73: #{net_d_forward.6} parent=65 // loop_exit
                  _
                %s429 = ssub.s32 16, 1
                loop: start=0, step=1, limit=1
                $region74: #{net_d_forward.6} parent=65 // loop_pre_header
                  _
                $region75: #{net_d_forward.6} parent=65 // loop_header
                  %s431 = sphi 0, %s435
                  %p432 = scmp.ge.s32.totalorder %s431, 1
                  %s436 = sphi %s273, %s273
                  %s437 = sphi %s268, %s268
                $region76: #{net_d_forward.6} parent=65 // loop_header_branch
                  %434 = sbr.rel (%p432) target = $region80
                $region77: #{net_d_forward.6} parent=65 // loop_body
                  %v438 = vld [vmem:[%s436] sm:%s429]
                  %439 = vst [vmem:[%s437] sm:%s429] %v438
                  %v440 = vld [vmem:[%s436 + $0x8] sm:%s429]
                  %441 = vst [vmem:[%s437 + $0x4] sm:%s429] %v440
                  %v442 = vld [vmem:[%s436 + $0x10] sm:%s429]
                  %443 = vst [vmem:[%s437 + $0x8] sm:%s429] %v442
                  %v444 = vld [vmem:[%s436 + $0x18] sm:%s429]
                  %445 = vst [vmem:[%s437 + $0xc] sm:%s429] %v444
                  %v446 = vld [vmem:[%s436 + $0x20] sm:%s429]
                  %447 = vst [vmem:[%s437 + $0x10] sm:%s429] %v446
                  %v448 = vld [vmem:[%s436 + $0x28] sm:%s429]
                  %449 = vst [vmem:[%s437 + $0x14] sm:%s429] %v448
                  %v450 = vld [vmem:[%s436 + $0x30] sm:%s429]
                  %451 = vst [vmem:[%s437 + $0x18] sm:%s429] %v450
                  %v452 = vld [vmem:[%s436 + $0x38] sm:%s429]
                  %453 = vst [vmem:[%s437 + $0x1c] sm:%s429] %v452
                  %v454 = vld [vmem:[%s436 + $0x40] sm:%s429]
                  %455 = vst [vmem:[%s437 + $0x20] sm:%s429] %v454
                  %v456 = vld [vmem:[%s436 + $0x48] sm:%s429]
                  %457 = vst [vmem:[%s437 + $0x24] sm:%s429] %v456
                  %v458 = vld [vmem:[%s436 + $0x50] sm:%s429]
                  %459 = vst [vmem:[%s437 + $0x28] sm:%s429] %v458
                  %v460 = vld [vmem:[%s436 + $0x58] sm:%s429]
                  %461 = vst [vmem:[%s437 + $0x2c] sm:%s429] %v460
                  %v462 = vld [vmem:[%s436 + $0x60] sm:%s429]
                  %463 = vst [vmem:[%s437 + $0x30] sm:%s429] %v462
                  %v464 = vld [vmem:[%s436 + $0x68] sm:%s429]
                  %465 = vst [vmem:[%s437 + $0x34] sm:%s429] %v464
                  %v466 = vld [vmem:[%s436 + $0x70] sm:%s429]
                  %467 = vst [vmem:[%s437 + $0x38] sm:%s429] %v466
                  %v468 = vld [vmem:[%s436 + $0x78] sm:%s429]
                  %469 = vst [vmem:[%s437 + $0x3c] sm:%s429] %v468
                  %v470 = vld [vmem:[%s436 + $0x80] sm:%s429]
                  %471 = vst [vmem:[%s437 + $0x40] sm:%s429] %v470
                  %v472 = vld [vmem:[%s436 + $0x88] sm:%s429]
                  %473 = vst [vmem:[%s437 + $0x44] sm:%s429] %v472
                  %v474 = vld [vmem:[%s436 + $0x90] sm:%s429]
                  %475 = vst [vmem:[%s437 + $0x48] sm:%s429] %v474
                  %v476 = vld [vmem:[%s436 + $0x98] sm:%s429]
                  %477 = vst [vmem:[%s437 + $0x4c] sm:%s429] %v476
                  %v478 = vld [vmem:[%s436 + $0xa0] sm:%s429]
                  %479 = vst [vmem:[%s437 + $0x50] sm:%s429] %v478
                  %v480 = vld [vmem:[%s436 + $0xa8] sm:%s429]
                  %481 = vst [vmem:[%s437 + $0x54] sm:%s429] %v480
                  %v482 = vld [vmem:[%s436 + $0xb0] sm:%s429]
                  %483 = vst [vmem:[%s437 + $0x58] sm:%s429] %v482
                  %v484 = vld [vmem:[%s436 + $0xb8] sm:%s429]
                  %485 = vst [vmem:[%s437 + $0x5c] sm:%s429] %v484
                  %v486 = vld [vmem:[%s436 + $0xc0] sm:%s429]
                  %487 = vst [vmem:[%s437 + $0x60] sm:%s429] %v486
                  %v488 = vld [vmem:[%s436 + $0xc8] sm:%s429]
                  %489 = vst [vmem:[%s437 + $0x64] sm:%s429] %v488
                  %v490 = vld [vmem:[%s436 + $0xd0] sm:%s429]
                  %491 = vst [vmem:[%s437 + $0x68] sm:%s429] %v490
                  %v492 = vld [vmem:[%s436 + $0xd8] sm:%s429]
                  %493 = vst [vmem:[%s437 + $0x6c] sm:%s429] %v492
                  %v494 = vld [vmem:[%s436 + $0xe0] sm:%s429]
                  %495 = vst [vmem:[%s437 + $0x70] sm:%s429] %v494
                  %v496 = vld [vmem:[%s436 + $0xe8] sm:%s429]
                  %497 = vst [vmem:[%s437 + $0x74] sm:%s429] %v496
                  %v498 = vld [vmem:[%s436 + $0xf0] sm:%s429]
                  %499 = vst [vmem:[%s437 + $0x78] sm:%s429] %v498
                  %v500 = vld [vmem:[%s436 + $0xf8] sm:%s429]
                  %501 = vst [vmem:[%s437 + $0x7c] sm:%s429] %v500
                  %v502 = vld [vmem:[%s436 + $0x100] sm:%s429]
                  %503 = vst [vmem:[%s437 + $0x80] sm:%s429] %v502
                  %v504 = vld [vmem:[%s436 + $0x108] sm:%s429]
                  %505 = vst [vmem:[%s437 + $0x84] sm:%s429] %v504
                  %v506 = vld [vmem:[%s436 + $0x110] sm:%s429]
                  %507 = vst [vmem:[%s437 + $0x88] sm:%s429] %v506
                  %v508 = vld [vmem:[%s436 + $0x118] sm:%s429]
                  %509 = vst [vmem:[%s437 + $0x8c] sm:%s429] %v508
                  %v510 = vld [vmem:[%s436 + $0x120] sm:%s429]
                  %511 = vst [vmem:[%s437 + $0x90] sm:%s429] %v510
                  %v512 = vld [vmem:[%s436 + $0x128] sm:%s429]
                  %513 = vst [vmem:[%s437 + $0x94] sm:%s429] %v512
                  %v514 = vld [vmem:[%s436 + $0x130] sm:%s429]
                  %515 = vst [vmem:[%s437 + $0x98] sm:%s429] %v514
                  %v516 = vld [vmem:[%s436 + $0x138] sm:%s429]
                  %517 = vst [vmem:[%s437 + $0x9c] sm:%s429] %v516
                  %v518 = vld [vmem:[%s436 + $0x140] sm:%s429]
                  %519 = vst [vmem:[%s437 + $0xa0] sm:%s429] %v518
                  %v520 = vld [vmem:[%s436 + $0x148] sm:%s429]
                  %521 = vst [vmem:[%s437 + $0xa4] sm:%s429] %v520
                  %v522 = vld [vmem:[%s436 + $0x150] sm:%s429]
                  %523 = vst [vmem:[%s437 + $0xa8] sm:%s429] %v522
                  %v524 = vld [vmem:[%s436 + $0x158] sm:%s429]
                  %525 = vst [vmem:[%s437 + $0xac] sm:%s429] %v524
                  %v526 = vld [vmem:[%s436 + $0x160] sm:%s429]
                  %527 = vst [vmem:[%s437 + $0xb0] sm:%s429] %v526
                  %v528 = vld [vmem:[%s436 + $0x168] sm:%s429]
                  %529 = vst [vmem:[%s437 + $0xb4] sm:%s429] %v528
                  %v530 = vld [vmem:[%s436 + $0x170] sm:%s429]
                  %531 = vst [vmem:[%s437 + $0xb8] sm:%s429] %v530
                  %v532 = vld [vmem:[%s436 + $0x178] sm:%s429]
                  %533 = vst [vmem:[%s437 + $0xbc] sm:%s429] %v532
                  %v534 = vld [vmem:[%s436 + $0x180] sm:%s429]
                  %535 = vst [vmem:[%s437 + $0xc0] sm:%s429] %v534
                  %v536 = vld [vmem:[%s436 + $0x188] sm:%s429]
                  %537 = vst [vmem:[%s437 + $0xc4] sm:%s429] %v536
                  %v538 = vld [vmem:[%s436 + $0x190] sm:%s429]
                  %539 = vst [vmem:[%s437 + $0xc8] sm:%s429] %v538
                  %v540 = vld [vmem:[%s436 + $0x198] sm:%s429]
                  %541 = vst [vmem:[%s437 + $0xcc] sm:%s429] %v540
                  %v542 = vld [vmem:[%s436 + $0x1a0] sm:%s429]
                  %543 = vst [vmem:[%s437 + $0xd0] sm:%s429] %v542
                  %v544 = vld [vmem:[%s436 + $0x1a8] sm:%s429]
                  %545 = vst [vmem:[%s437 + $0xd4] sm:%s429] %v544
                  %v546 = vld [vmem:[%s436 + $0x1b0] sm:%s429]
                  %547 = vst [vmem:[%s437 + $0xd8] sm:%s429] %v546
                  %v548 = vld [vmem:[%s436 + $0x1b8] sm:%s429]
                  %549 = vst [vmem:[%s437 + $0xdc] sm:%s429] %v548
                  %v550 = vld [vmem:[%s436 + $0x1c0] sm:%s429]
                  %551 = vst [vmem:[%s437 + $0xe0] sm:%s429] %v550
                  %v552 = vld [vmem:[%s436 + $0x1c8] sm:%s429]
                  %553 = vst [vmem:[%s437 + $0xe4] sm:%s429] %v552
                  %v554 = vld [vmem:[%s436 + $0x1d0] sm:%s429]
                  %555 = vst [vmem:[%s437 + $0xe8] sm:%s429] %v554
                  %v556 = vld [vmem:[%s436 + $0x1d8] sm:%s429]
                  %557 = vst [vmem:[%s437 + $0xec] sm:%s429] %v556
                  %v558 = vld [vmem:[%s436 + $0x1e0] sm:%s429]
                  %559 = vst [vmem:[%s437 + $0xf0] sm:%s429] %v558
                  %v560 = vld [vmem:[%s436 + $0x1e8] sm:%s429]
                  %561 = vst [vmem:[%s437 + $0xf4] sm:%s429] %v560
                  %v562 = vld [vmem:[%s436 + $0x1f0] sm:%s429]
                  %563 = vst [vmem:[%s437 + $0xf8] sm:%s429] %v562
                  %v564 = vld [vmem:[%s436 + $0x1f8] sm:%s429]
                  %565 = vst [vmem:[%s437 + $0xfc] sm:%s429] %v564
                $region78: #{net_d_forward.6} parent=65 // loop_footer
                  %s435 = sadd.s32 1, %s431
                $region79: #{net_d_forward.6} parent=65 // loop_footer_branch
                  %430 = sbr.rel target = $region75
                $region80: #{net_d_forward.6} parent=65 // loop_exit
                  _
              $region66: #{net_d_forward.6} parent=50 // pred_fallthru
                _
            $region51: #{net_d_forward.6} parent=46 // pred_fallthru
              _
            // Predicated region
            $region52: #{net_d_forward.6} parent=46 // pred_check
              _
            $region53: #{net_d_forward.6} parent=46 // pred_check_branch
              %279 = sbr.rel (0) target = $region55
            $region54: #{net_d_forward.6} parent=46 // pred_region
              %s281 = ssub.s32 16, 1
              loop: start=0, step=1, limit=1
              $region56: #{net_d_forward.6} parent=54 // loop_pre_header
                _
              $region57: #{net_d_forward.6} parent=54 // loop_header
                %s283 = sphi 0, %s287
                %p284 = scmp.ge.s32.totalorder %s283, 1
                %s288 = sphi %s273, %s273
                %s289 = sphi %s268, %s268
              $region58: #{net_d_forward.6} parent=54 // loop_header_branch
                %286 = sbr.rel (%p284) target = $region62
              $region59: #{net_d_forward.6} parent=54 // loop_body
                %v290 = vld [vmem:[%s288] sm:%s281]
                %291 = vst [vmem:[%s289] sm:%s281] %v290
                %v292 = vld [vmem:[%s288 + $0x8] sm:%s281]
                %293 = vst [vmem:[%s289 + $0x4] sm:%s281] %v292
                %v294 = vld [vmem:[%s288 + $0x10] sm:%s281]
                %295 = vst [vmem:[%s289 + $0x8] sm:%s281] %v294
                %v296 = vld [vmem:[%s288 + $0x18] sm:%s281]
                %297 = vst [vmem:[%s289 + $0xc] sm:%s281] %v296
                %v298 = vld [vmem:[%s288 + $0x20] sm:%s281]
                %299 = vst [vmem:[%s289 + $0x10] sm:%s281] %v298
                %v300 = vld [vmem:[%s288 + $0x28] sm:%s281]
                %301 = vst [vmem:[%s289 + $0x14] sm:%s281] %v300
                %v302 = vld [vmem:[%s288 + $0x30] sm:%s281]
                %303 = vst [vmem:[%s289 + $0x18] sm:%s281] %v302
                %v304 = vld [vmem:[%s288 + $0x38] sm:%s281]
                %305 = vst [vmem:[%s289 + $0x1c] sm:%s281] %v304
                %v306 = vld [vmem:[%s288 + $0x40] sm:%s281]
                %307 = vst [vmem:[%s289 + $0x20] sm:%s281] %v306
                %v308 = vld [vmem:[%s288 + $0x48] sm:%s281]
                %309 = vst [vmem:[%s289 + $0x24] sm:%s281] %v308
                %v310 = vld [vmem:[%s288 + $0x50] sm:%s281]
                %311 = vst [vmem:[%s289 + $0x28] sm:%s281] %v310
                %v312 = vld [vmem:[%s288 + $0x58] sm:%s281]
                %313 = vst [vmem:[%s289 + $0x2c] sm:%s281] %v312
                %v314 = vld [vmem:[%s288 + $0x60] sm:%s281]
                %315 = vst [vmem:[%s289 + $0x30] sm:%s281] %v314
                %v316 = vld [vmem:[%s288 + $0x68] sm:%s281]
                %317 = vst [vmem:[%s289 + $0x34] sm:%s281] %v316
                %v318 = vld [vmem:[%s288 + $0x70] sm:%s281]
                %319 = vst [vmem:[%s289 + $0x38] sm:%s281] %v318
                %v320 = vld [vmem:[%s288 + $0x78] sm:%s281]
                %321 = vst [vmem:[%s289 + $0x3c] sm:%s281] %v320
                %v322 = vld [vmem:[%s288 + $0x80] sm:%s281]
                %323 = vst [vmem:[%s289 + $0x40] sm:%s281] %v322
                %v324 = vld [vmem:[%s288 + $0x88] sm:%s281]
                %325 = vst [vmem:[%s289 + $0x44] sm:%s281] %v324
                %v326 = vld [vmem:[%s288 + $0x90] sm:%s281]
                %327 = vst [vmem:[%s289 + $0x48] sm:%s281] %v326
                %v328 = vld [vmem:[%s288 + $0x98] sm:%s281]
                %329 = vst [vmem:[%s289 + $0x4c] sm:%s281] %v328
                %v330 = vld [vmem:[%s288 + $0xa0] sm:%s281]
                %331 = vst [vmem:[%s289 + $0x50] sm:%s281] %v330
                %v332 = vld [vmem:[%s288 + $0xa8] sm:%s281]
                %333 = vst [vmem:[%s289 + $0x54] sm:%s281] %v332
                %v334 = vld [vmem:[%s288 + $0xb0] sm:%s281]
                %335 = vst [vmem:[%s289 + $0x58] sm:%s281] %v334
                %v336 = vld [vmem:[%s288 + $0xb8] sm:%s281]
                %337 = vst [vmem:[%s289 + $0x5c] sm:%s281] %v336
                %v338 = vld [vmem:[%s288 + $0xc0] sm:%s281]
                %339 = vst [vmem:[%s289 + $0x60] sm:%s281] %v338
                %v340 = vld [vmem:[%s288 + $0xc8] sm:%s281]
                %341 = vst [vmem:[%s289 + $0x64] sm:%s281] %v340
                %v342 = vld [vmem:[%s288 + $0xd0] sm:%s281]
                %343 = vst [vmem:[%s289 + $0x68] sm:%s281] %v342
                %v344 = vld [vmem:[%s288 + $0xd8] sm:%s281]
                %345 = vst [vmem:[%s289 + $0x6c] sm:%s281] %v344
                %v346 = vld [vmem:[%s288 + $0xe0] sm:%s281]
                %347 = vst [vmem:[%s289 + $0x70] sm:%s281] %v346
                %v348 = vld [vmem:[%s288 + $0xe8] sm:%s281]
                %349 = vst [vmem:[%s289 + $0x74] sm:%s281] %v348
                %v350 = vld [vmem:[%s288 + $0xf0] sm:%s281]
                %351 = vst [vmem:[%s289 + $0x78] sm:%s281] %v350
                %v352 = vld [vmem:[%s288 + $0xf8] sm:%s281]
                %353 = vst [vmem:[%s289 + $0x7c] sm:%s281] %v352
                %v354 = vld [vmem:[%s288 + $0x100] sm:%s281]
                %355 = vst [vmem:[%s289 + $0x80] sm:%s281] %v354
                %v356 = vld [vmem:[%s288 + $0x108] sm:%s281]
                %357 = vst [vmem:[%s289 + $0x84] sm:%s281] %v356
                %v358 = vld [vmem:[%s288 + $0x110] sm:%s281]
                %359 = vst [vmem:[%s289 + $0x88] sm:%s281] %v358
                %v360 = vld [vmem:[%s288 + $0x118] sm:%s281]
                %361 = vst [vmem:[%s289 + $0x8c] sm:%s281] %v360
                %v362 = vld [vmem:[%s288 + $0x120] sm:%s281]
                %363 = vst [vmem:[%s289 + $0x90] sm:%s281] %v362
                %v364 = vld [vmem:[%s288 + $0x128] sm:%s281]
                %365 = vst [vmem:[%s289 + $0x94] sm:%s281] %v364
                %v366 = vld [vmem:[%s288 + $0x130] sm:%s281]
                %367 = vst [vmem:[%s289 + $0x98] sm:%s281] %v366
                %v368 = vld [vmem:[%s288 + $0x138] sm:%s281]
                %369 = vst [vmem:[%s289 + $0x9c] sm:%s281] %v368
                %v370 = vld [vmem:[%s288 + $0x140] sm:%s281]
                %371 = vst [vmem:[%s289 + $0xa0] sm:%s281] %v370
                %v372 = vld [vmem:[%s288 + $0x148] sm:%s281]
                %373 = vst [vmem:[%s289 + $0xa4] sm:%s281] %v372
                %v374 = vld [vmem:[%s288 + $0x150] sm:%s281]
                %375 = vst [vmem:[%s289 + $0xa8] sm:%s281] %v374
                %v376 = vld [vmem:[%s288 + $0x158] sm:%s281]
                %377 = vst [vmem:[%s289 + $0xac] sm:%s281] %v376
                %v378 = vld [vmem:[%s288 + $0x160] sm:%s281]
                %379 = vst [vmem:[%s289 + $0xb0] sm:%s281] %v378
                %v380 = vld [vmem:[%s288 + $0x168] sm:%s281]
                %381 = vst [vmem:[%s289 + $0xb4] sm:%s281] %v380
                %v382 = vld [vmem:[%s288 + $0x170] sm:%s281]
                %383 = vst [vmem:[%s289 + $0xb8] sm:%s281] %v382
                %v384 = vld [vmem:[%s288 + $0x178] sm:%s281]
                %385 = vst [vmem:[%s289 + $0xbc] sm:%s281] %v384
                %v386 = vld [vmem:[%s288 + $0x180] sm:%s281]
                %387 = vst [vmem:[%s289 + $0xc0] sm:%s281] %v386
                %v388 = vld [vmem:[%s288 + $0x188] sm:%s281]
                %389 = vst [vmem:[%s289 + $0xc4] sm:%s281] %v388
                %v390 = vld [vmem:[%s288 + $0x190] sm:%s281]
                %391 = vst [vmem:[%s289 + $0xc8] sm:%s281] %v390
                %v392 = vld [vmem:[%s288 + $0x198] sm:%s281]
                %393 = vst [vmem:[%s289 + $0xcc] sm:%s281] %v392
                %v394 = vld [vmem:[%s288 + $0x1a0] sm:%s281]
                %395 = vst [vmem:[%s289 + $0xd0] sm:%s281] %v394
                %v396 = vld [vmem:[%s288 + $0x1a8] sm:%s281]
                %397 = vst [vmem:[%s289 + $0xd4] sm:%s281] %v396
                %v398 = vld [vmem:[%s288 + $0x1b0] sm:%s281]
                %399 = vst [vmem:[%s289 + $0xd8] sm:%s281] %v398
                %v400 = vld [vmem:[%s288 + $0x1b8] sm:%s281]
                %401 = vst [vmem:[%s289 + $0xdc] sm:%s281] %v400
                %v402 = vld [vmem:[%s288 + $0x1c0] sm:%s281]
                %403 = vst [vmem:[%s289 + $0xe0] sm:%s281] %v402
                %v404 = vld [vmem:[%s288 + $0x1c8] sm:%s281]
                %405 = vst [vmem:[%s289 + $0xe4] sm:%s281] %v404
                %v406 = vld [vmem:[%s288 + $0x1d0] sm:%s281]
                %407 = vst [vmem:[%s289 + $0xe8] sm:%s281] %v406
                %v408 = vld [vmem:[%s288 + $0x1d8] sm:%s281]
                %409 = vst [vmem:[%s289 + $0xec] sm:%s281] %v408
                %v410 = vld [vmem:[%s288 + $0x1e0] sm:%s281]
                %411 = vst [vmem:[%s289 + $0xf0] sm:%s281] %v410
                %v412 = vld [vmem:[%s288 + $0x1e8] sm:%s281]
                %413 = vst [vmem:[%s289 + $0xf4] sm:%s281] %v412
                %v414 = vld [vmem:[%s288 + $0x1f0] sm:%s281]
                %415 = vst [vmem:[%s289 + $0xf8] sm:%s281] %v414
                %v416 = vld [vmem:[%s288 + $0x1f8] sm:%s281]
                %417 = vst [vmem:[%s289 + $0xfc] sm:%s281] %v416
              $region60: #{net_d_forward.6} parent=54 // loop_footer
                %s287 = sadd.s32 1, %s283
              $region61: #{net_d_forward.6} parent=54 // loop_footer_branch
                %282 = sbr.rel target = $region57
              $region62: #{net_d_forward.6} parent=54 // loop_exit
                _
            $region55: #{net_d_forward.6} parent=46 // pred_fallthru
              _
          $region47: #{net_d_forward.6} parent=42 // pred_fallthru
            _
          %566 = vnop
        $region43: #{net_d_forward.6} parent=15 // pred_fallthru
          _
        // Predicated region
        $region81: #{net_d_forward.6} parent=15 // pred_check
          %p567 = pneg %p96
        $region82: #{net_d_forward.6} parent=15 // pred_check_branch
          %569 = sbr.rel (%p567) target = $region84
        $region83: #{net_d_forward.6} parent=15 // pred_region
          %p570 = scmp.lt.s32.totalorder %s17, 1
          %s571 = scalar_select %p570, %s17, 1
          %s572 = scalar_lea.vmem %s2, %s571
        $region84: #{net_d_forward.6} parent=15 // pred_fallthru
          _
        // Predicated region
        $region85: #{net_d_forward.6} parent=15 // pred_check
          %p573 = pneg %p122
        $region86: #{net_d_forward.6} parent=15 // pred_check_branch
          %575 = sbr.rel (%p573) target = $region88
        $region87: #{net_d_forward.6} parent=15 // pred_region
          %p576 = scmp.lt.s32.totalorder %s17, 1
          %s577 = scalar_select %p576, %s17, 1
          %s578 = scalar_lea.vmem %s3, %s577
        $region88: #{net_d_forward.6} parent=15 // pred_fallthru
          _
      $region16: #{net_d_forward.6} parent=5 // pred_fallthru
        _
      %p579 = scmp.le.s32.totalorder 1, %s10
      %p580 = scmp.lt.s32.totalorder %s10, 9
      %p581 = pnand %p579, %p580
      %p582 = pneg %p581
      // Predicated region
      $region89: #{net_d_forward.6} parent=5 // pred_check
        _
      $region90: #{net_d_forward.6} parent=5 // pred_check_branch
        %584 = sbr.rel (%p581) target = $region92
      $region91: #{net_d_forward.6} parent=5 // pred_region
        %s585 = ssub.s32 %s10, 1
        %s586 = sand.u32 %s35, 1
        %s587 = sand.u32 %s35, 1
        %s588 = smul.addr %s587, 256
        %s589 = scalar_lea.vmem [#allocation3], %s588
        // Predicated region
        $region93: #{net_d_forward.6} parent=91 // pred_check
          %p590 = pneg %p48
        $region94: #{net_d_forward.6} parent=91 // pred_check_branch
          %592 = sbr.rel (%p590) target = $region96
        $region95: #{net_d_forward.6} parent=91 // pred_region
          _
        $region96: #{net_d_forward.6} parent=91 // pred_fallthru
          _
        %s593 = sand.u32 %s63, 1
        %s594 = sand.u32 %s63, 1
        %s595 = smul.addr %s594, 256
        %s596 = scalar_lea.vmem [#allocation4], %s595
        // Predicated region
        $region97: #{net_d_forward.6} parent=91 // pred_check
          %p597 = pneg %p76
        $region98: #{net_d_forward.6} parent=91 // pred_check_branch
          %599 = sbr.rel (%p597) target = $region100
        $region99: #{net_d_forward.6} parent=91 // pred_region
          _
        $region100: #{net_d_forward.6} parent=91 // pred_fallthru
          _
        %s600 = sand.u32 %s35, 1
        %s601 = sand.u32 %s35, 1
        %s602 = smul.addr %s601, 256
        %s603 = scalar_lea.vmem [#allocation3], %s602
        %p604 = pneg %p48
        %p605 = pneg %p45
        %s606 = sand.u32 %s63, 1
        %s607 = sand.u32 %s63, 1
        %s608 = smul.addr %s607, 256
        %s609 = scalar_lea.vmem [#allocation4], %s608
        %p610 = pneg %p76
        %p611 = pneg %p73
        %p612 = scmp.lt.s32.totalorder %s19, 1
        %s613 = scalar_select %p612, %s19, 1
        %s614 = scalar_lea.vmem %s2, %s613
        %p615 = pneg %p102
        %p616 = pneg %p99
        %p617 = scmp.lt.s32.totalorder %s19, 1
        %s618 = scalar_select %p617, %s19, 1
        %s619 = scalar_lea.vmem %s3, %s618
        %p620 = pneg %p128
        %p621 = pneg %p125
        %p622 = pneg %p154
        %p623 = pneg %p151
        %s624 = sand.u32 %s141, 1
        %s625 = sand.u32 %s141, 1
        %s626 = smul.addr %s625, 64
        %s627 = scalar_lea.vmem [#allocation5], %s626
        %s628 = smul.u32 4, %s20
        %s629 = smul.u32 64, %s20
        %p630 = scmp.lt.s32.totalorder %s19, 1
        %s631 = scalar_select %p630, %s19, 1
        %s632 = scalar_lea.vmem %s2, %s631
        %p633 = scmp.lt.s32.totalorder %s19, 1
        %s634 = scalar_select %p633, %s19, 1
        %s635 = scalar_lea.vmem %s3, %s634
        %p636 = scmp.eq.s32.totalorder %s20, 0
        // Predicated region
        $region101: #{net_d_forward.6} parent=91 // pred_check
          %p637 = pneg %p636
        $region102: #{net_d_forward.6} parent=91 // pred_check_branch
          %639 = sbr.rel (%p637) target = $region104
        $region103: #{net_d_forward.6} parent=91 // pred_region
          %640 = vst [vmem:[#allocation2] sm:$0xff] 0.0
          %641 = vst [vmem:[#allocation2 + $0x8] sm:$0xff] 0.0
          %642 = vst [vmem:[#allocation2 + $0x10] sm:$0xff] 0.0
          %643 = vst [vmem:[#allocation2 + $0x18] sm:$0xff] 0.0
          %644 = vst [vmem:[#allocation2 + $0x20] sm:$0xff] 0.0
          %645 = vst [vmem:[#allocation2 + $0x28] sm:$0xff] 0.0
          %646 = vst [vmem:[#allocation2 + $0x30] sm:$0xff] 0.0
          %647 = vst [vmem:[#allocation2 + $0x38] sm:$0xff] 0.0
          %648 = vst [vmem:[#allocation2 + $0x40] sm:$0xff] 0.0
          %649 = vst [vmem:[#allocation2 + $0x48] sm:$0xff] 0.0
          %650 = vst [vmem:[#allocation2 + $0x50] sm:$0xff] 0.0
          %651 = vst [vmem:[#allocation2 + $0x58] sm:$0xff] 0.0
          %652 = vst [vmem:[#allocation2 + $0x60] sm:$0xff] 0.0
          %653 = vst [vmem:[#allocation2 + $0x68] sm:$0xff] 0.0
          %654 = vst [vmem:[#allocation2 + $0x70] sm:$0xff] 0.0
          %655 = vst [vmem:[#allocation2 + $0x78] sm:$0xff] 0.0
        $region104: #{net_d_forward.6} parent=91 // pred_fallthru
          _
        %v656 = vld [vmem:[#allocation2] sm:$0xff]
        %v657 = vld [vmem:[#allocation2 + $0x8] sm:$0xff]
        %v658 = vld [vmem:[#allocation2 + $0x10] sm:$0xff]
        %v659 = vld [vmem:[#allocation2 + $0x18] sm:$0xff]
        %v660 = vld [vmem:[#allocation2 + $0x20] sm:$0xff]
        %v661 = vld [vmem:[#allocation2 + $0x28] sm:$0xff]
        %v662 = vld [vmem:[#allocation2 + $0x30] sm:$0xff]
        %v663 = vld [vmem:[#allocation2 + $0x38] sm:$0xff]
        %v664 = vld [vmem:[#allocation2 + $0x40] sm:$0xff]
        %v665 = vld [vmem:[#allocation2 + $0x48] sm:$0xff]
        %v666 = vld [vmem:[#allocation2 + $0x50] sm:$0xff]
        %v667 = vld [vmem:[#allocation2 + $0x58] sm:$0xff]
        %v668 = vld [vmem:[#allocation2 + $0x60] sm:$0xff]
        %v669 = vld [vmem:[#allocation2 + $0x68] sm:$0xff]
        %v670 = vld [vmem:[#allocation2 + $0x70] sm:$0xff]
        %v671 = vld [vmem:[#allocation2 + $0x78] sm:$0xff]
        %v672 = vld [vmem:[%s589] sm:$0xff]
        %v673 = vld [vmem:[%s589 + $0x8] sm:$0xff]
        %v674 = vld [vmem:[%s589 + $0x10] sm:$0xff]
        %v675 = vld [vmem:[%s589 + $0x18] sm:$0xff]
        %v676 = vld [vmem:[%s589 + $0x20] sm:$0xff]
        %v677 = vld [vmem:[%s589 + $0x28] sm:$0xff]
        %v678 = vld [vmem:[%s589 + $0x30] sm:$0xff]
        %v679 = vld [vmem:[%s589 + $0x38] sm:$0xff]
        %v680 = vld [vmem:[%s589 + $0x40] sm:$0xff]
        %v681 = vld [vmem:[%s589 + $0x48] sm:$0xff]
        %v682 = vld [vmem:[%s589 + $0x50] sm:$0xff]
        %v683 = vld [vmem:[%s589 + $0x58] sm:$0xff]
        %v684 = vld [vmem:[%s589 + $0x60] sm:$0xff]
        %v685 = vld [vmem:[%s589 + $0x68] sm:$0xff]
        %v686 = vld [vmem:[%s589 + $0x70] sm:$0xff]
        %v687 = vld [vmem:[%s589 + $0x78] sm:$0xff]
        %v688 = vld [vmem:[%s589 + $0x80] sm:$0xff]
        %v689 = vld [vmem:[%s589 + $0x88] sm:$0xff]
        %v690 = vld [vmem:[%s589 + $0x90] sm:$0xff]
        %v691 = vld [vmem:[%s589 + $0x98] sm:$0xff]
        %v692 = vld [vmem:[%s589 + $0xa0] sm:$0xff]
        %v693 = vld [vmem:[%s589 + $0xa8] sm:$0xff]
        %v694 = vld [vmem:[%s589 + $0xb0] sm:$0xff]
        %v695 = vld [vmem:[%s589 + $0xb8] sm:$0xff]
        %v696 = vld [vmem:[%s589 + $0xc0] sm:$0xff]
        %v697 = vld [vmem:[%s589 + $0xc8] sm:$0xff]
        %v698 = vld [vmem:[%s589 + $0xd0] sm:$0xff]
        %v699 = vld [vmem:[%s589 + $0xd8] sm:$0xff]
        %v700 = vld [vmem:[%s589 + $0xe0] sm:$0xff]
        %v701 = vld [vmem:[%s589 + $0xe8] sm:$0xff]
        %v702 = vld [vmem:[%s589 + $0xf0] sm:$0xff]
        %v703 = vld [vmem:[%s589 + $0xf8] sm:$0xff]
        %v704 = vld [vmem:[%s596] sm:$0xf]
        %v705 = vld [vmem:[%s596 + $0x4] sm:$0xf]
        %v706 = vld [vmem:[%s596 + $0x8] sm:$0xf]
        %v707 = vld [vmem:[%s596 + $0xc] sm:$0xf]
        %v708 = vld [vmem:[%s596 + $0x10] sm:$0xf]
        %v709 = vld [vmem:[%s596 + $0x14] sm:$0xf]
        %v710 = vld [vmem:[%s596 + $0x18] sm:$0xf]
        %v711 = vld [vmem:[%s596 + $0x1c] sm:$0xf]
        %v712 = vld [vmem:[%s596 + $0x20] sm:$0xf]
        %v713 = vld [vmem:[%s596 + $0x24] sm:$0xf]
        %v714 = vld [vmem:[%s596 + $0x28] sm:$0xf]
        %v715 = vld [vmem:[%s596 + $0x2c] sm:$0xf]
        %v716 = vld [vmem:[%s596 + $0x30] sm:$0xf]
        %v717 = vld [vmem:[%s596 + $0x34] sm:$0xf]
        %v718 = vld [vmem:[%s596 + $0x38] sm:$0xf]
        %v719 = vld [vmem:[%s596 + $0x3c] sm:$0xf]
        %v720 = vld [vmem:[%s596 + $0x40] sm:$0xf]
        %v721 = vld [vmem:[%s596 + $0x44] sm:$0xf]
        %v722 = vld [vmem:[%s596 + $0x48] sm:$0xf]
        %v723 = vld [vmem:[%s596 + $0x4c] sm:$0xf]
        %v724 = vld [vmem:[%s596 + $0x50] sm:$0xf]
        %v725 = vld [vmem:[%s596 + $0x54] sm:$0xf]
        %v726 = vld [vmem:[%s596 + $0x58] sm:$0xf]
        %v727 = vld [vmem:[%s596 + $0x5c] sm:$0xf]
        %v728 = vld [vmem:[%s596 + $0x60] sm:$0xf]
        %v729 = vld [vmem:[%s596 + $0x64] sm:$0xf]
        %v730 = vld [vmem:[%s596 + $0x68] sm:$0xf]
        %v731 = vld [vmem:[%s596 + $0x6c] sm:$0xf]
        %v732 = vld [vmem:[%s596 + $0x70] sm:$0xf]
        %v733 = vld [vmem:[%s596 + $0x74] sm:$0xf]
        %v734 = vld [vmem:[%s596 + $0x78] sm:$0xf]
        %v735 = vld [vmem:[%s596 + $0x7c] sm:$0xf]
        %v736 = vld [vmem:[%s596 + $0x80] sm:$0xf]
        %v737 = vld [vmem:[%s596 + $0x84] sm:$0xf]
        %v738 = vld [vmem:[%s596 + $0x88] sm:$0xf]
        %v739 = vld [vmem:[%s596 + $0x8c] sm:$0xf]
        %v740 = vld [vmem:[%s596 + $0x90] sm:$0xf]
        %v741 = vld [vmem:[%s596 + $0x94] sm:$0xf]
        %v742 = vld [vmem:[%s596 + $0x98] sm:$0xf]
        %v743 = vld [vmem:[%s596 + $0x9c] sm:$0xf]
        %v744 = vld [vmem:[%s596 + $0xa0] sm:$0xf]
        %v745 = vld [vmem:[%s596 + $0xa4] sm:$0xf]
        %v746 = vld [vmem:[%s596 + $0xa8] sm:$0xf]
        %v747 = vld [vmem:[%s596 + $0xac] sm:$0xf]
        %v748 = vld [vmem:[%s596 + $0xb0] sm:$0xf]
        %v749 = vld [vmem:[%s596 + $0xb4] sm:$0xf]
        %v750 = vld [vmem:[%s596 + $0xb8] sm:$0xf]
        %v751 = vld [vmem:[%s596 + $0xbc] sm:$0xf]
        %v752 = vld [vmem:[%s596 + $0xc0] sm:$0xf]
        %v753 = vld [vmem:[%s596 + $0xc4] sm:$0xf]
        %v754 = vld [vmem:[%s596 + $0xc8] sm:$0xf]
        %v755 = vld [vmem:[%s596 + $0xcc] sm:$0xf]
        %v756 = vld [vmem:[%s596 + $0xd0] sm:$0xf]
        %v757 = vld [vmem:[%s596 + $0xd4] sm:$0xf]
        %v758 = vld [vmem:[%s596 + $0xd8] sm:$0xf]
        %v759 = vld [vmem:[%s596 + $0xdc] sm:$0xf]
        %v760 = vld [vmem:[%s596 + $0xe0] sm:$0xf]
        %v761 = vld [vmem:[%s596 + $0xe4] sm:$0xf]
        %v762 = vld [vmem:[%s596 + $0xe8] sm:$0xf]
        %v763 = vld [vmem:[%s596 + $0xec] sm:$0xf]
        %v764 = vld [vmem:[%s596 + $0xf0] sm:$0xf]
        %v765 = vld [vmem:[%s596 + $0xf4] sm:$0xf]
        %v766 = vld [vmem:[%s596 + $0xf8] sm:$0xf]
        %v767 = vld [vmem:[%s596 + $0xfc] sm:$0xf]
        %v800 = vunpack.c.l.b16 %v672
        %v801 = vunpack.c.h.b16 %v672
        %v802 = vunpack.c.l.b16 %v673
        %v803 = vunpack.c.h.b16 %v673
        %v804 = vunpack.c.l.b16 %v674
        %v805 = vunpack.c.h.b16 %v674
        %v806 = vunpack.c.l.b16 %v675
        %v807 = vunpack.c.h.b16 %v675
        %v808 = vunpack.c.l.b16 %v676
        %v809 = vunpack.c.h.b16 %v676
        %v810 = vunpack.c.l.b16 %v677
        %v811 = vunpack.c.h.b16 %v677
        %v812 = vunpack.c.l.b16 %v678
        %v813 = vunpack.c.h.b16 %v678
        %v814 = vunpack.c.l.b16 %v679
        %v815 = vunpack.c.h.b16 %v679
        %v816 = vunpack.c.l.b16 %v680
        %v817 = vunpack.c.h.b16 %v680
        %v818 = vunpack.c.l.b16 %v681
        %v819 = vunpack.c.h.b16 %v681
        %v820 = vunpack.c.l.b16 %v682
        %v821 = vunpack.c.h.b16 %v682
        %v822 = vunpack.c.l.b16 %v683
        %v823 = vunpack.c.h.b16 %v683
        %v824 = vunpack.c.l.b16 %v684
        %v825 = vunpack.c.h.b16 %v684
        %v826 = vunpack.c.l.b16 %v685
        %v827 = vunpack.c.h.b16 %v685
        %v828 = vunpack.c.l.b16 %v686
        %v829 = vunpack.c.h.b16 %v686
        %v830 = vunpack.c.l.b16 %v687
        %v831 = vunpack.c.h.b16 %v687
        %v832 = vunpack.c.l.b16 %v688
        %v833 = vunpack.c.h.b16 %v688
        %v834 = vunpack.c.l.b16 %v689
        %v835 = vunpack.c.h.b16 %v689
        %v836 = vunpack.c.l.b16 %v690
        %v837 = vunpack.c.h.b16 %v690
        %v838 = vunpack.c.l.b16 %v691
        %v839 = vunpack.c.h.b16 %v691
        %v840 = vunpack.c.l.b16 %v692
        %v841 = vunpack.c.h.b16 %v692
        %v842 = vunpack.c.l.b16 %v693
        %v843 = vunpack.c.h.b16 %v693
        %v844 = vunpack.c.l.b16 %v694
        %v845 = vunpack.c.h.b16 %v694
        %v846 = vunpack.c.l.b16 %v695
        %v847 = vunpack.c.h.b16 %v695
        %v848 = vunpack.c.l.b16 %v696
        %v849 = vunpack.c.h.b16 %v696
        %v850 = vunpack.c.l.b16 %v697
        %v851 = vunpack.c.h.b16 %v697
        %v852 = vunpack.c.l.b16 %v698
        %v853 = vunpack.c.h.b16 %v698
        %v854 = vunpack.c.l.b16 %v699
        %v855 = vunpack.c.h.b16 %v699
        %v856 = vunpack.c.l.b16 %v700
        %v857 = vunpack.c.h.b16 %v700
        %v858 = vunpack.c.l.b16 %v701
        %v859 = vunpack.c.h.b16 %v701
        %v860 = vunpack.c.l.b16 %v702
        %v861 = vunpack.c.h.b16 %v702
        %v862 = vunpack.c.l.b16 %v703
        %v863 = vunpack.c.h.b16 %v703
        %v864 = vpack.c.b16 %v804, %v800
        %v865 = vpack.c.b16 %v805, %v801
        %v866 = vpack.c.b16 %v806, %v802
        %v867 = vpack.c.b16 %v807, %v803
        %v868 = vpack.c.b16 %v812, %v808
        %v869 = vpack.c.b16 %v813, %v809
        %v870 = vpack.c.b16 %v814, %v810
        %v871 = vpack.c.b16 %v815, %v811
        %v872 = vpack.c.b16 %v820, %v816
        %v873 = vpack.c.b16 %v821, %v817
        %v874 = vpack.c.b16 %v822, %v818
        %v875 = vpack.c.b16 %v823, %v819
        %v876 = vpack.c.b16 %v828, %v824
        %v877 = vpack.c.b16 %v829, %v825
        %v878 = vpack.c.b16 %v830, %v826
        %v879 = vpack.c.b16 %v831, %v827
        %v880 = vpack.c.b16 %v836, %v832
        %v881 = vpack.c.b16 %v837, %v833
        %v882 = vpack.c.b16 %v838, %v834
        %v883 = vpack.c.b16 %v839, %v835
        %v884 = vpack.c.b16 %v844, %v840
        %v885 = vpack.c.b16 %v845, %v841
        %v886 = vpack.c.b16 %v846, %v842
        %v887 = vpack.c.b16 %v847, %v843
        %v888 = vpack.c.b16 %v852, %v848
        %v889 = vpack.c.b16 %v853, %v849
        %v890 = vpack.c.b16 %v854, %v850
        %v891 = vpack.c.b16 %v855, %v851
        %v892 = vpack.c.b16 %v860, %v856
        %v893 = vpack.c.b16 %v861, %v857
        %v894 = vpack.c.b16 %v862, %v858
        %v895 = vpack.c.b16 %v863, %v859
        %v992 = vunpack.c.l.b16 %v704
        %v993 = vunpack.c.l.b16 %v705
        %v994 = vunpack.c.l.b16 %v706
        %v995 = vunpack.c.l.b16 %v707
        %v996 = vunpack.c.l.b16 %v708
        %v997 = vunpack.c.l.b16 %v709
        %v998 = vunpack.c.l.b16 %v710
        %v999 = vunpack.c.l.b16 %v711
        %v1000 = vunpack.c.l.b16 %v712
        %v1001 = vunpack.c.l.b16 %v713
        %v1002 = vunpack.c.l.b16 %v714
        %v1003 = vunpack.c.l.b16 %v715
        %v1004 = vunpack.c.l.b16 %v716
        %v1005 = vunpack.c.l.b16 %v717
        %v1006 = vunpack.c.l.b16 %v718
        %v1007 = vunpack.c.l.b16 %v719
        %v1008 = vunpack.c.l.b16 %v720
        %v1009 = vunpack.c.l.b16 %v721
        %v1010 = vunpack.c.l.b16 %v722
        %v1011 = vunpack.c.l.b16 %v723
        %v1012 = vunpack.c.l.b16 %v724
        %v1013 = vunpack.c.l.b16 %v725
        %v1014 = vunpack.c.l.b16 %v726
        %v1015 = vunpack.c.l.b16 %v727
        %v1016 = vunpack.c.l.b16 %v728
        %v1017 = vunpack.c.l.b16 %v729
        %v1018 = vunpack.c.l.b16 %v730
        %v1019 = vunpack.c.l.b16 %v731
        %v1020 = vunpack.c.l.b16 %v732
        %v1021 = vunpack.c.l.b16 %v733
        %v1022 = vunpack.c.l.b16 %v734
        %v1023 = vunpack.c.l.b16 %v735
        %v1024 = vunpack.c.l.b16 %v736
        %v1025 = vunpack.c.l.b16 %v737
        %v1026 = vunpack.c.l.b16 %v738
        %v1027 = vunpack.c.l.b16 %v739
        %v1028 = vunpack.c.l.b16 %v740
        %v1029 = vunpack.c.l.b16 %v741
        %v1030 = vunpack.c.l.b16 %v742
        %v1031 = vunpack.c.l.b16 %v743
        %v1032 = vunpack.c.l.b16 %v744
        %v1033 = vunpack.c.l.b16 %v745
        %v1034 = vunpack.c.l.b16 %v746
        %v1035 = vunpack.c.l.b16 %v747
        %v1036 = vunpack.c.l.b16 %v748
        %v1037 = vunpack.c.l.b16 %v749
        %v1038 = vunpack.c.l.b16 %v750
        %v1039 = vunpack.c.l.b16 %v751
        %v1040 = vunpack.c.l.b16 %v752
        %v1041 = vunpack.c.l.b16 %v753
        %v1042 = vunpack.c.l.b16 %v754
        %v1043 = vunpack.c.l.b16 %v755
        %v1044 = vunpack.c.l.b16 %v756
        %v1045 = vunpack.c.l.b16 %v757
        %v1046 = vunpack.c.l.b16 %v758
        %v1047 = vunpack.c.l.b16 %v759
        %v1048 = vunpack.c.l.b16 %v760
        %v1049 = vunpack.c.l.b16 %v761
        %v1050 = vunpack.c.l.b16 %v762
        %v1051 = vunpack.c.l.b16 %v763
        %v1052 = vunpack.c.l.b16 %v764
        %v1053 = vunpack.c.l.b16 %v765
        %v1054 = vunpack.c.l.b16 %v766
        %v1055 = vunpack.c.l.b16 %v767
        %v1056 = vpack.c.b16 %v993, %v992
        %v1057 = vpack.c.b16 %v995, %v994
        %v1058 = vpack.c.b16 %v997, %v996
        %v1059 = vpack.c.b16 %v999, %v998
        %v1060 = vpack.c.b16 %v1001, %v1000
        %v1061 = vpack.c.b16 %v1003, %v1002
        %v1062 = vpack.c.b16 %v1005, %v1004
        %v1063 = vpack.c.b16 %v1007, %v1006
        %v1064 = vpack.c.b16 %v1009, %v1008
        %v1065 = vpack.c.b16 %v1011, %v1010
        %v1066 = vpack.c.b16 %v1013, %v1012
        %v1067 = vpack.c.b16 %v1015, %v1014
        %v1068 = vpack.c.b16 %v1017, %v1016
        %v1069 = vpack.c.b16 %v1019, %v1018
        %v1070 = vpack.c.b16 %v1021, %v1020
        %v1071 = vpack.c.b16 %v1023, %v1022
        %v1072 = vpack.c.b16 %v1025, %v1024
        %v1073 = vpack.c.b16 %v1027, %v1026
        %v1074 = vpack.c.b16 %v1029, %v1028
        %v1075 = vpack.c.b16 %v1031, %v1030
        %v1076 = vpack.c.b16 %v1033, %v1032
        %v1077 = vpack.c.b16 %v1035, %v1034
        %v1078 = vpack.c.b16 %v1037, %v1036
        %v1079 = vpack.c.b16 %v1039, %v1038
        %v1080 = vpack.c.b16 %v1041, %v1040
        %v1081 = vpack.c.b16 %v1043, %v1042
        %v1082 = vpack.c.b16 %v1045, %v1044
        %v1083 = vpack.c.b16 %v1047, %v1046
        %v1084 = vpack.c.b16 %v1049, %v1048
        %v1085 = vpack.c.b16 %v1051, %v1050
        %v1086 = vpack.c.b16 %v1053, %v1052
        %v1087 = vpack.c.b16 %v1055, %v1054
        %1120 = vmatpush.bf16.msra.mxu0 %v1063
        %1121 = vmatpush.bf16.msra.mxu0 %v1062
        %1122 = vmatpush.bf16.msra.mxu0 %v1061
        %1123 = vmatpush.bf16.msra.mxu0 %v1060
        %1124 = vmatpush.bf16.msra.mxu0 %v1059
        %1125 = vmatpush.bf16.msra.mxu0 %v1058
        %1126 = vmatpush.bf16.msra.mxu0 %v1057
        %1127 = vmatpush.bf16.msra.mxu0 %v1056
        %1128 = vmatmul.bf16.gmra.mxu0 %v864
        %v1129 = vpop.f32.mrf.mxu0
        %v1130 = vadd.f32 0.0, %v1129
        %v1131 = vpop.f32.mrf.mxu0
        %v1132 = vadd.f32 0.0, %v1131
        %1133 = vmatmul.bf16.gmra.mxu0 %v868
        %v1134 = vpop.f32.mrf.mxu0
        %v1135 = vadd.f32 0.0, %v1134
        %v1136 = vpop.f32.mrf.mxu0
        %v1137 = vadd.f32 0.0, %v1136
        %1138 = vmatmul.bf16.gmra.mxu0 %v872
        %v1139 = vpop.f32.mrf.mxu0
        %v1140 = vadd.f32 0.0, %v1139
        %v1141 = vpop.f32.mrf.mxu0
        %v1142 = vadd.f32 0.0, %v1141
        %1143 = vmatmul.bf16.gmra.mxu0 %v876
        %v1144 = vpop.f32.mrf.mxu0
        %v1145 = vadd.f32 0.0, %v1144
        %v1146 = vpop.f32.mrf.mxu0
        %v1147 = vadd.f32 0.0, %v1146
        %1148 = vmatmul.bf16.gmra.mxu0 %v880
        %v1149 = vpop.f32.mrf.mxu0
        %v1150 = vadd.f32 0.0, %v1149
        %v1151 = vpop.f32.mrf.mxu0
        %v1152 = vadd.f32 0.0, %v1151
        %1153 = vmatmul.bf16.gmra.mxu0 %v884
        %v1154 = vpop.f32.mrf.mxu0
        %v1155 = vadd.f32 0.0, %v1154
        %v1156 = vpop.f32.mrf.mxu0
        %v1157 = vadd.f32 0.0, %v1156
        %1158 = vmatmul.bf16.gmra.mxu0 %v888
        %v1159 = vpop.f32.mrf.mxu0
        %v1160 = vadd.f32 0.0, %v1159
        %v1161 = vpop.f32.mrf.mxu0
        %v1162 = vadd.f32 0.0, %v1161
        %1163 = vmatmul.bf16.gmra.mxu0 %v892
        %v1164 = vpop.f32.mrf.mxu0
        %v1165 = vadd.f32 0.0, %v1164
        %v1166 = vpop.f32.mrf.mxu0
        %v1167 = vadd.f32 0.0, %v1166
        %1168 = vdwg.mxu0
        %1169 = vmatpush.bf16.msra.mxu0 %v1071
        %1170 = vmatpush.bf16.msra.mxu0 %v1070
        %1171 = vmatpush.bf16.msra.mxu0 %v1069
        %1172 = vmatpush.bf16.msra.mxu0 %v1068
        %1173 = vmatpush.bf16.msra.mxu0 %v1067
        %1174 = vmatpush.bf16.msra.mxu0 %v1066
        %1175 = vmatpush.bf16.msra.mxu0 %v1065
        %1176 = vmatpush.bf16.msra.mxu0 %v1064
        %1177 = vmatmul.bf16.gmra.mxu0 %v865
        %v1178 = vpop.f32.mrf.mxu0
        %v1179 = vadd.f32 %v1130, %v1178
        %v1180 = vpop.f32.mrf.mxu0
        %v1181 = vadd.f32 %v1132, %v1180
        %1182 = vmatmul.bf16.gmra.mxu0 %v869
        %v1183 = vpop.f32.mrf.mxu0
        %v1184 = vadd.f32 %v1135, %v1183
        %v1185 = vpop.f32.mrf.mxu0
        %v1186 = vadd.f32 %v1137, %v1185
        %1187 = vmatmul.bf16.gmra.mxu0 %v873
        %v1188 = vpop.f32.mrf.mxu0
        %v1189 = vadd.f32 %v1140, %v1188
        %v1190 = vpop.f32.mrf.mxu0
        %v1191 = vadd.f32 %v1142, %v1190
        %1192 = vmatmul.bf16.gmra.mxu0 %v877
        %v1193 = vpop.f32.mrf.mxu0
        %v1194 = vadd.f32 %v1145, %v1193
        %v1195 = vpop.f32.mrf.mxu0
        %v1196 = vadd.f32 %v1147, %v1195
        %1197 = vmatmul.bf16.gmra.mxu0 %v881
        %v1198 = vpop.f32.mrf.mxu0
        %v1199 = vadd.f32 %v1150, %v1198
        %v1200 = vpop.f32.mrf.mxu0
        %v1201 = vadd.f32 %v1152, %v1200
        %1202 = vmatmul.bf16.gmra.mxu0 %v885
        %v1203 = vpop.f32.mrf.mxu0
        %v1204 = vadd.f32 %v1155, %v1203
        %v1205 = vpop.f32.mrf.mxu0
        %v1206 = vadd.f32 %v1157, %v1205
        %1207 = vmatmul.bf16.gmra.mxu0 %v889
        %v1208 = vpop.f32.mrf.mxu0
        %v1209 = vadd.f32 %v1160, %v1208
        %v1210 = vpop.f32.mrf.mxu0
        %v1211 = vadd.f32 %v1162, %v1210
        %1212 = vmatmul.bf16.gmra.mxu0 %v893
        %v1213 = vpop.f32.mrf.mxu0
        %v1214 = vadd.f32 %v1165, %v1213
        %v1215 = vpop.f32.mrf.mxu0
        %v1216 = vadd.f32 %v1167, %v1215
        %1217 = vdwg.mxu0
        %1218 = vmatpush.bf16.msra.mxu0 %v1079
        %1219 = vmatpush.bf16.msra.mxu0 %v1078
        %1220 = vmatpush.bf16.msra.mxu0 %v1077
        %1221 = vmatpush.bf16.msra.mxu0 %v1076
        %1222 = vmatpush.bf16.msra.mxu0 %v1075
        %1223 = vmatpush.bf16.msra.mxu0 %v1074
        %1224 = vmatpush.bf16.msra.mxu0 %v1073
        %1225 = vmatpush.bf16.msra.mxu0 %v1072
        %1226 = vmatmul.bf16.gmra.mxu0 %v866
        %v1227 = vpop.f32.mrf.mxu0
        %v1228 = vadd.f32 %v1179, %v1227
        %v1229 = vpop.f32.mrf.mxu0
        %v1230 = vadd.f32 %v1181, %v1229
        %1231 = vmatmul.bf16.gmra.mxu0 %v870
        %v1232 = vpop.f32.mrf.mxu0
        %v1233 = vadd.f32 %v1184, %v1232
        %v1234 = vpop.f32.mrf.mxu0
        %v1235 = vadd.f32 %v1186, %v1234
        %1236 = vmatmul.bf16.gmra.mxu0 %v874
        %v1237 = vpop.f32.mrf.mxu0
        %v1238 = vadd.f32 %v1189, %v1237
        %v1239 = vpop.f32.mrf.mxu0
        %v1240 = vadd.f32 %v1191, %v1239
        %1241 = vmatmul.bf16.gmra.mxu0 %v878
        %v1242 = vpop.f32.mrf.mxu0
        %v1243 = vadd.f32 %v1194, %v1242
        %v1244 = vpop.f32.mrf.mxu0
        %v1245 = vadd.f32 %v1196, %v1244
        %1246 = vmatmul.bf16.gmra.mxu0 %v882
        %v1247 = vpop.f32.mrf.mxu0
        %v1248 = vadd.f32 %v1199, %v1247
        %v1249 = vpop.f32.mrf.mxu0
        %v1250 = vadd.f32 %v1201, %v1249
        %1251 = vmatmul.bf16.gmra.mxu0 %v886
        %v1252 = vpop.f32.mrf.mxu0
        %v1253 = vadd.f32 %v1204, %v1252
        %v1254 = vpop.f32.mrf.mxu0
        %v1255 = vadd.f32 %v1206, %v1254
        %1256 = vmatmul.bf16.gmra.mxu0 %v890
        %v1257 = vpop.f32.mrf.mxu0
        %v1258 = vadd.f32 %v1209, %v1257
        %v1259 = vpop.f32.mrf.mxu0
        %v1260 = vadd.f32 %v1211, %v1259
        %1261 = vmatmul.bf16.gmra.mxu0 %v894
        %v1262 = vpop.f32.mrf.mxu0
        %v1263 = vadd.f32 %v1214, %v1262
        %v1264 = vpop.f32.mrf.mxu0
        %v1265 = vadd.f32 %v1216, %v1264
        %1266 = vdwg.mxu0
        %1267 = vmatpush.bf16.msra.mxu0 %v1087
        %1268 = vmatpush.bf16.msra.mxu0 %v1086
        %1269 = vmatpush.bf16.msra.mxu0 %v1085
        %1270 = vmatpush.bf16.msra.mxu0 %v1084
        %1271 = vmatpush.bf16.msra.mxu0 %v1083
        %1272 = vmatpush.bf16.msra.mxu0 %v1082
        %1273 = vmatpush.bf16.msra.mxu0 %v1081
        %1274 = vmatpush.bf16.msra.mxu0 %v1080
        %1275 = vmatmul.bf16.gmra.mxu0 %v867
        %v1276 = vpop.f32.mrf.mxu0
        %v1277 = vadd.f32 %v1228, %v1276
        %v1278 = vpop.f32.mrf.mxu0
        %v1279 = vadd.f32 %v1230, %v1278
        %1280 = vmatmul.bf16.gmra.mxu0 %v871
        %v1281 = vpop.f32.mrf.mxu0
        %v1282 = vadd.f32 %v1233, %v1281
        %v1283 = vpop.f32.mrf.mxu0
        %v1284 = vadd.f32 %v1235, %v1283
        %1285 = vmatmul.bf16.gmra.mxu0 %v875
        %v1286 = vpop.f32.mrf.mxu0
        %v1287 = vadd.f32 %v1238, %v1286
        %v1288 = vpop.f32.mrf.mxu0
        %v1289 = vadd.f32 %v1240, %v1288
        %1290 = vmatmul.bf16.gmra.mxu0 %v879
        %v1291 = vpop.f32.mrf.mxu0
        %v1292 = vadd.f32 %v1243, %v1291
        %v1293 = vpop.f32.mrf.mxu0
        %v1294 = vadd.f32 %v1245, %v1293
        %1295 = vmatmul.bf16.gmra.mxu0 %v883
        %v1296 = vpop.f32.mrf.mxu0
        %v1297 = vadd.f32 %v1248, %v1296
        %v1298 = vpop.f32.mrf.mxu0
        %v1299 = vadd.f32 %v1250, %v1298
        %1300 = vmatmul.bf16.gmra.mxu0 %v887
        %v1301 = vpop.f32.mrf.mxu0
        %v1302 = vadd.f32 %v1253, %v1301
        %v1303 = vpop.f32.mrf.mxu0
        %v1304 = vadd.f32 %v1255, %v1303
        %1305 = vmatmul.bf16.gmra.mxu0 %v891
        %v1306 = vpop.f32.mrf.mxu0
        %v1307 = vadd.f32 %v1258, %v1306
        %v1308 = vpop.f32.mrf.mxu0
        %v1309 = vadd.f32 %v1260, %v1308
        %1310 = vmatmul.bf16.gmra.mxu0 %v895
        %v1311 = vpop.f32.mrf.mxu0
        %v1312 = vadd.f32 %v1263, %v1311
        %v1313 = vpop.f32.mrf.mxu0
        %v1314 = vadd.f32 %v1265, %v1313
        %1315 = vdwg.mxu0
        %v1316 = vadd.f32 %v656, %v1277
        %v1317 = vadd.f32 %v657, %v1279
        %v1318 = vadd.f32 %v658, %v1282
        %v1319 = vadd.f32 %v659, %v1284
        %v1320 = vadd.f32 %v660, %v1287
        %v1321 = vadd.f32 %v661, %v1289
        %v1322 = vadd.f32 %v662, %v1292
        %v1323 = vadd.f32 %v663, %v1294
        %v1324 = vadd.f32 %v664, %v1297
        %v1325 = vadd.f32 %v665, %v1299
        %v1326 = vadd.f32 %v666, %v1302
        %v1327 = vadd.f32 %v667, %v1304
        %v1328 = vadd.f32 %v668, %v1307
        %v1329 = vadd.f32 %v669, %v1309
        %v1330 = vadd.f32 %v670, %v1312
        %v1331 = vadd.f32 %v671, %v1314
        %1332 = vst [vmem:[#allocation2] sm:$0xff] %v1316
        %1333 = vst [vmem:[#allocation2 + $0x8] sm:$0xff] %v1317
        %1334 = vst [vmem:[#allocation2 + $0x10] sm:$0xff] %v1318
        %1335 = vst [vmem:[#allocation2 + $0x18] sm:$0xff] %v1319
        %1336 = vst [vmem:[#allocation2 + $0x20] sm:$0xff] %v1320
        %1337 = vst [vmem:[#allocation2 + $0x28] sm:$0xff] %v1321
        %1338 = vst [vmem:[#allocation2 + $0x30] sm:$0xff] %v1322
        %1339 = vst [vmem:[#allocation2 + $0x38] sm:$0xff] %v1323
        %1340 = vst [vmem:[#allocation2 + $0x40] sm:$0xff] %v1324
        %1341 = vst [vmem:[#allocation2 + $0x48] sm:$0xff] %v1325
        %1342 = vst [vmem:[#allocation2 + $0x50] sm:$0xff] %v1326
        %1343 = vst [vmem:[#allocation2 + $0x58] sm:$0xff] %v1327
        %1344 = vst [vmem:[#allocation2 + $0x60] sm:$0xff] %v1328
        %1345 = vst [vmem:[#allocation2 + $0x68] sm:$0xff] %v1329
        %1346 = vst [vmem:[#allocation2 + $0x70] sm:$0xff] %v1330
        %1347 = vst [vmem:[#allocation2 + $0x78] sm:$0xff] %v1331
        %p1348 = scmp.eq.s32.totalorder %s20, 3
        // Predicated region
        $region105: #{net_d_forward.6} parent=91 // pred_check
          %p1349 = pneg %p1348
        $region106: #{net_d_forward.6} parent=91 // pred_check_branch
          %1351 = sbr.rel (%p1349) target = $region108
        $region107: #{net_d_forward.6} parent=91 // pred_region
          %v1352 = vld [vmem:[#allocation2] sm:$0xff]
          %v1353 = vld [vmem:[#allocation2 + $0x8] sm:$0xff]
          %v1354 = vld [vmem:[#allocation2 + $0x10] sm:$0xff]
          %v1355 = vld [vmem:[#allocation2 + $0x18] sm:$0xff]
          %v1356 = vld [vmem:[#allocation2 + $0x20] sm:$0xff]
          %v1357 = vld [vmem:[#allocation2 + $0x28] sm:$0xff]
          %v1358 = vld [vmem:[#allocation2 + $0x30] sm:$0xff]
          %v1359 = vld [vmem:[#allocation2 + $0x38] sm:$0xff]
          %v1360 = vld [vmem:[#allocation2 + $0x40] sm:$0xff]
          %v1361 = vld [vmem:[#allocation2 + $0x48] sm:$0xff]
          %v1362 = vld [vmem:[#allocation2 + $0x50] sm:$0xff]
          %v1363 = vld [vmem:[#allocation2 + $0x58] sm:$0xff]
          %v1364 = vld [vmem:[#allocation2 + $0x60] sm:$0xff]
          %v1365 = vld [vmem:[#allocation2 + $0x68] sm:$0xff]
          %v1366 = vld [vmem:[#allocation2 + $0x70] sm:$0xff]
          %v1367 = vld [vmem:[#allocation2 + $0x78] sm:$0xff]
          %v1368 = vadd.f32 %v1352, %v1353
          %v1369 = vadd.f32 %v1368, %v1354
          %v1370 = vadd.f32 %v1369, %v1355
          %v1371 = vadd.f32 %v1370, %v1356
          %v1372 = vadd.f32 %v1371, %v1357
          %v1373 = vadd.f32 %v1372, %v1358
          %v1374 = vadd.f32 %v1373, %v1359
          %v1375 = vadd.f32 %v1374, %v1360
          %v1376 = vadd.f32 %v1375, %v1361
          %v1377 = vadd.f32 %v1376, %v1362
          %v1378 = vadd.f32 %v1377, %v1363
          %v1379 = vadd.f32 %v1378, %v1364
          %v1380 = vadd.f32 %v1379, %v1365
          %v1381 = vadd.f32 %v1380, %v1366
          %v1382 = vadd.f32 %v1381, %v1367
          %v1383 = vrot.slane %v1382, 4
          %v1384 = vadd.f32 %v1382, %v1383
          %v1385 = vrot.slane %v1384, 2
          %v1386 = vadd.f32 %v1384, %v1385
          %v1387 = vrot.slane %v1386, 1
          %v1388 = vadd.f32 %v1386, %v1387
          %v1389 = vrcp.pop 128.0
          %v1390 = vmul.f32 128.0, %v1389
          %v1391 = vsub.f32 1.0, %v1390
          %v1392 = vmul.f32 %v1389, %v1391
          %v1393 = vadd.f32 %v1389, %v1392
          %vm1394 = vweird.f32 %v1389
          %v1395 = vsel %vm1394, %v1389, %v1393
          %v1396 = vmul.f32 %v1388, %v1395
          %v1397 = vsub.f32 %v1352, %v1396
          %v1398 = vsub.f32 %v1353, %v1396
          %v1399 = vsub.f32 %v1354, %v1396
          %v1400 = vsub.f32 %v1355, %v1396
          %v1401 = vsub.f32 %v1356, %v1396
          %v1402 = vsub.f32 %v1357, %v1396
          %v1403 = vsub.f32 %v1358, %v1396
          %v1404 = vsub.f32 %v1359, %v1396
          %v1405 = vsub.f32 %v1360, %v1396
          %v1406 = vsub.f32 %v1361, %v1396
          %v1407 = vsub.f32 %v1362, %v1396
          %v1408 = vsub.f32 %v1363, %v1396
          %v1409 = vsub.f32 %v1364, %v1396
          %v1410 = vsub.f32 %v1365, %v1396
          %v1411 = vsub.f32 %v1366, %v1396
          %v1412 = vsub.f32 %v1367, %v1396
          %v1413 = vmul.f32 %v1397, %v1397
          %v1414 = vmul.f32 %v1398, %v1398
          %v1415 = vmul.f32 %v1399, %v1399
          %v1416 = vmul.f32 %v1400, %v1400
          %v1417 = vmul.f32 %v1401, %v1401
          %v1418 = vmul.f32 %v1402, %v1402
          %v1419 = vmul.f32 %v1403, %v1403
          %v1420 = vmul.f32 %v1404, %v1404
          %v1421 = vmul.f32 %v1405, %v1405
          %v1422 = vmul.f32 %v1406, %v1406
          %v1423 = vmul.f32 %v1407, %v1407
          %v1424 = vmul.f32 %v1408, %v1408
          %v1425 = vmul.f32 %v1409, %v1409
          %v1426 = vmul.f32 %v1410, %v1410
          %v1427 = vmul.f32 %v1411, %v1411
          %v1428 = vmul.f32 %v1412, %v1412
          %v1429 = vadd.f32 %v1413, %v1414
          %v1430 = vadd.f32 %v1429, %v1415
          %v1431 = vadd.f32 %v1430, %v1416
          %v1432 = vadd.f32 %v1431, %v1417
          %v1433 = vadd.f32 %v1432, %v1418
          %v1434 = vadd.f32 %v1433, %v1419
          %v1435 = vadd.f32 %v1434, %v1420
          %v1436 = vadd.f32 %v1435, %v1421
          %v1437 = vadd.f32 %v1436, %v1422
          %v1438 = vadd.f32 %v1437, %v1423
          %v1439 = vadd.f32 %v1438, %v1424
          %v1440 = vadd.f32 %v1439, %v1425
          %v1441 = vadd.f32 %v1440, %v1426
          %v1442 = vadd.f32 %v1441, %v1427
          %v1443 = vadd.f32 %v1442, %v1428
          %v1444 = vrot.slane %v1443, 4
          %v1445 = vadd.f32 %v1443, %v1444
          %v1446 = vrot.slane %v1445, 2
          %v1447 = vadd.f32 %v1445, %v1446
          %v1448 = vrot.slane %v1447, 1
          %v1449 = vadd.f32 %v1447, %v1448
          %v1450 = vmul.f32 %v1449, %v1395
          %v1451 = vadd.f32 %v1450, 1e-05
          %v1452 = vrsqrt.pop %v1451
          %v1453 = vmul.f32 %v1452, %v1451
          %v1454 = vmul.f32 %v1453, %v1452
          %v1455 = vmul.f32 0.5, %v1454
          %v1456 = vsub.f32 1.5, %v1455
          %v1457 = vmul.f32 %v1452, %v1456
          %vm1458 = vweird.f32 %v1451
          %vm1459 = vweird.f32 %v1452
          %vm1460 = vmor %vm1458, %vm1459
          %v1461 = vsel %vm1460, %v1452, %v1457
          %v1462 = vmul.f32 %v1397, %v1461
          %v1463 = vmul.f32 %v1398, %v1461
          %v1464 = vmul.f32 %v1399, %v1461
          %v1465 = vmul.f32 %v1400, %v1461
          %v1466 = vmul.f32 %v1401, %v1461
          %v1467 = vmul.f32 %v1402, %v1461
          %v1468 = vmul.f32 %v1403, %v1461
          %v1469 = vmul.f32 %v1404, %v1461
          %v1470 = vmul.f32 %v1405, %v1461
          %v1471 = vmul.f32 %v1406, %v1461
          %v1472 = vmul.f32 %v1407, %v1461
          %v1473 = vmul.f32 %v1408, %v1461
          %v1474 = vmul.f32 %v1409, %v1461
          %v1475 = vmul.f32 %v1410, %v1461
          %v1476 = vmul.f32 %v1411, %v1461
          %v1477 = vmul.f32 %v1412, %v1461
          %v1478 = vld [vmem:[%s632] sm:$0x1]
          %v1480 = vperm.slane %v1478, 0
          %v1482 = vmul.f32 %v1462, %v1480
          %v1483 = vmul.f32 %v1463, %v1480
          %v1484 = vmul.f32 %v1464, %v1480
          %v1485 = vmul.f32 %v1465, %v1480
          %v1486 = vmul.f32 %v1466, %v1480
          %v1487 = vmul.f32 %v1467, %v1480
          %v1488 = vmul.f32 %v1468, %v1480
          %v1489 = vmul.f32 %v1469, %v1480
          %v1490 = vmul.f32 %v1470, %v1480
          %v1491 = vmul.f32 %v1471, %v1480
          %v1492 = vmul.f32 %v1472, %v1480
          %v1493 = vmul.f32 %v1473, %v1480
          %v1494 = vmul.f32 %v1474, %v1480
          %v1495 = vmul.f32 %v1475, %v1480
          %v1496 = vmul.f32 %v1476, %v1480
          %v1497 = vmul.f32 %v1477, %v1480
          %v1498 = vld [vmem:[%s635] sm:$0x1]
          %v1500 = vperm.slane %v1498, 0
          %v1502 = vadd.f32 %v1482, %v1500
          %v1503 = vadd.f32 %v1483, %v1500
          %v1504 = vadd.f32 %v1484, %v1500
          %v1505 = vadd.f32 %v1485, %v1500
          %v1506 = vadd.f32 %v1486, %v1500
          %v1507 = vadd.f32 %v1487, %v1500
          %v1508 = vadd.f32 %v1488, %v1500
          %v1509 = vadd.f32 %v1489, %v1500
          %v1510 = vadd.f32 %v1490, %v1500
          %v1511 = vadd.f32 %v1491, %v1500
          %v1512 = vadd.f32 %v1492, %v1500
          %v1513 = vadd.f32 %v1493, %v1500
          %v1514 = vadd.f32 %v1494, %v1500
          %v1515 = vadd.f32 %v1495, %v1500
          %v1516 = vadd.f32 %v1496, %v1500
          %v1517 = vadd.f32 %v1497, %v1500
          %vm1518 = vcmp.gt.f32.partialorder %v1502, 0.0
          %vm1519 = vcmp.gt.f32.partialorder %v1503, 0.0
          %vm1520 = vcmp.gt.f32.partialorder %v1504, 0.0
          %vm1521 = vcmp.gt.f32.partialorder %v1505, 0.0
          %vm1522 = vcmp.gt.f32.partialorder %v1506, 0.0
          %vm1523 = vcmp.gt.f32.partialorder %v1507, 0.0
          %vm1524 = vcmp.gt.f32.partialorder %v1508, 0.0
          %vm1525 = vcmp.gt.f32.partialorder %v1509, 0.0
          %vm1526 = vcmp.gt.f32.partialorder %v1510, 0.0
          %vm1527 = vcmp.gt.f32.partialorder %v1511, 0.0
          %vm1528 = vcmp.gt.f32.partialorder %v1512, 0.0
          %vm1529 = vcmp.gt.f32.partialorder %v1513, 0.0
          %vm1530 = vcmp.gt.f32.partialorder %v1514, 0.0
          %vm1531 = vcmp.gt.f32.partialorder %v1515, 0.0
          %vm1532 = vcmp.gt.f32.partialorder %v1516, 0.0
          %vm1533 = vcmp.gt.f32.partialorder %v1517, 0.0
          %v1534 = vmul.f32 %v1502, 0.2
          %v1535 = vmul.f32 %v1503, 0.2
          %v1536 = vmul.f32 %v1504, 0.2
          %v1537 = vmul.f32 %v1505, 0.2
          %v1538 = vmul.f32 %v1506, 0.2
          %v1539 = vmul.f32 %v1507, 0.2
          %v1540 = vmul.f32 %v1508, 0.2
          %v1541 = vmul.f32 %v1509, 0.2
          %v1542 = vmul.f32 %v1510, 0.2
          %v1543 = vmul.f32 %v1511, 0.2
          %v1544 = vmul.f32 %v1512, 0.2
          %v1545 = vmul.f32 %v1513, 0.2
          %v1546 = vmul.f32 %v1514, 0.2
          %v1547 = vmul.f32 %v1515, 0.2
          %v1548 = vmul.f32 %v1516, 0.2
          %v1549 = vmul.f32 %v1517, 0.2
          %v1550 = vsel %vm1518, %v1502, %v1534
          %v1551 = vsel %vm1519, %v1503, %v1535
          %v1552 = vsel %vm1520, %v1504, %v1536
          %v1553 = vsel %vm1521, %v1505, %v1537
          %v1554 = vsel %vm1522, %v1506, %v1538
          %v1555 = vsel %vm1523, %v1507, %v1539
          %v1556 = vsel %vm1524, %v1508, %v1540
          %v1557 = vsel %vm1525, %v1509, %v1541
          %v1558 = vsel %vm1526, %v1510, %v1542
          %v1559 = vsel %vm1527, %v1511, %v1543
          %v1560 = vsel %vm1528, %v1512, %v1544
          %v1561 = vsel %vm1529, %v1513, %v1545
          %v1562 = vsel %vm1530, %v1514, %v1546
          %v1563 = vsel %vm1531, %v1515, %v1547
          %v1564 = vsel %vm1532, %v1516, %v1548
          %v1565 = vsel %vm1533, %v1517, %v1549
          %v1566 = vpack.c.bf16 %v1550, %v1550
          %v1567 = vpack.c.bf16 %v1551, %v1551
          %v1568 = vpack.c.bf16 %v1552, %v1552
          %v1569 = vpack.c.bf16 %v1553, %v1553
          %v1570 = vpack.c.bf16 %v1554, %v1554
          %v1571 = vpack.c.bf16 %v1555, %v1555
          %v1572 = vpack.c.bf16 %v1556, %v1556
          %v1573 = vpack.c.bf16 %v1557, %v1557
          %v1574 = vpack.c.bf16 %v1558, %v1558
          %v1575 = vpack.c.bf16 %v1559, %v1559
          %v1576 = vpack.c.bf16 %v1560, %v1560
          %v1577 = vpack.c.bf16 %v1561, %v1561
          %v1578 = vpack.c.bf16 %v1562, %v1562
          %v1579 = vpack.c.bf16 %v1563, %v1563
          %v1580 = vpack.c.bf16 %v1564, %v1564
          %v1581 = vpack.c.bf16 %v1565, %v1565
          %1582 = vst [vmem:[%s627] sm:$0xf] %v1566
          %1583 = vst [vmem:[%s627 + $0x4] sm:$0xf] %v1567
          %1584 = vst [vmem:[%s627 + $0x8] sm:$0xf] %v1568
          %1585 = vst [vmem:[%s627 + $0xc] sm:$0xf] %v1569
          %1586 = vst [vmem:[%s627 + $0x10] sm:$0xf] %v1570
          %1587 = vst [vmem:[%s627 + $0x14] sm:$0xf] %v1571
          %1588 = vst [vmem:[%s627 + $0x18] sm:$0xf] %v1572
          %1589 = vst [vmem:[%s627 + $0x1c] sm:$0xf] %v1573
          %1590 = vst [vmem:[%s627 + $0x20] sm:$0xf] %v1574
          %1591 = vst [vmem:[%s627 + $0x24] sm:$0xf] %v1575
          %1592 = vst [vmem:[%s627 + $0x28] sm:$0xf] %v1576
          %1593 = vst [vmem:[%s627 + $0x2c] sm:$0xf] %v1577
          %1594 = vst [vmem:[%s627 + $0x30] sm:$0xf] %v1578
          %1595 = vst [vmem:[%s627 + $0x34] sm:$0xf] %v1579
          %1596 = vst [vmem:[%s627 + $0x38] sm:$0xf] %v1580
          %1597 = vst [vmem:[%s627 + $0x3c] sm:$0xf] %v1581
        $region108: #{net_d_forward.6} parent=91 // pred_fallthru
          _
        %s1598 = sand.u32 %s141, 1
        %s1599 = sand.u32 %s141, 1
        %s1600 = smul.addr %s1599, 64
        %s1601 = scalar_lea.vmem [#allocation5], %s1600
        // Predicated region
        $region109: #{net_d_forward.6} parent=91 // pred_check
          %p1602 = pneg %p151
        $region110: #{net_d_forward.6} parent=91 // pred_check_branch
          %1604 = sbr.rel (%p1602) target = $region112
        $region111: #{net_d_forward.6} parent=91 // pred_region
          %s1605 = smul.addr %s19, 4
          %s1606 = scalar_lea.vmem %s4, %s1605
          // Predicated region
          $region113: #{net_d_forward.6} parent=111 // pred_check
            _
          $region114: #{net_d_forward.6} parent=111 // pred_check_branch
            %1608 = sbr.rel (0) target = $region116
          $region115: #{net_d_forward.6} parent=111 // pred_region
            // Predicated region
            $region117: #{net_d_forward.6} parent=115 // pred_check
              _
            $region118: #{net_d_forward.6} parent=115 // pred_check_branch
              %1610 = sbr.rel target = $region120
            $region119: #{net_d_forward.6} parent=115 // pred_region
              // Predicated region
              $region132: #{net_d_forward.6} parent=119 // pred_check
                _
              $region133: #{net_d_forward.6} parent=119 // pred_check_branch
                %1656 = sbr.rel (0) target = $region135
              $region134: #{net_d_forward.6} parent=119 // pred_region
                loop: start=0, step=1, limit=1
                $region136: #{net_d_forward.6} parent=134 // loop_pre_header
                  _
                $region137: #{net_d_forward.6} parent=134 // loop_header
                  %s1658 = sphi 0, %s1662
                  %p1659 = scmp.ge.s32.totalorder %s1658, 1
                  %s1663 = sphi %s1601, %s1601
                  %s1664 = sphi %s1606, %s1606
                $region138: #{net_d_forward.6} parent=134 // loop_header_branch
                  %1661 = sbr.rel (%p1659) target = $region142
                $region139: #{net_d_forward.6} parent=134 // loop_body
                  _
                $region140: #{net_d_forward.6} parent=134 // loop_footer
                  %s1662 = sadd.s32 1, %s1658
                $region141: #{net_d_forward.6} parent=134 // loop_footer_branch
                  %1657 = sbr.rel target = $region137
                $region142: #{net_d_forward.6} parent=134 // loop_exit
                  _
                %s1666 = ssub.s32 16, 1
                loop: start=0, step=1, limit=1
                $region143: #{net_d_forward.6} parent=134 // loop_pre_header
                  _
                $region144: #{net_d_forward.6} parent=134 // loop_header
                  %s1668 = sphi 0, %s1672
                  %p1669 = scmp.ge.s32.totalorder %s1668, 1
                  %s1673 = sphi %s1601, %s1601
                  %s1674 = sphi %s1606, %s1606
                $region145: #{net_d_forward.6} parent=134 // loop_header_branch
                  %1671 = sbr.rel (%p1669) target = $region149
                $region146: #{net_d_forward.6} parent=134 // loop_body
                  %v1675 = vld [vmem:[%s1673] sm:%s1666]
                  %1676 = vst [vmem:[%s1674] sm:%s1666] %v1675
                  %v1677 = vld [vmem:[%s1673 + $0x4] sm:%s1666]
                  %1678 = vst [vmem:[%s1674 + $0x8] sm:%s1666] %v1677
                  %v1679 = vld [vmem:[%s1673 + $0x8] sm:%s1666]
                  %1680 = vst [vmem:[%s1674 + $0x10] sm:%s1666] %v1679
                  %v1681 = vld [vmem:[%s1673 + $0xc] sm:%s1666]
                  %1682 = vst [vmem:[%s1674 + $0x18] sm:%s1666] %v1681
                  %v1683 = vld [vmem:[%s1673 + $0x10] sm:%s1666]
                  %1684 = vst [vmem:[%s1674 + $0x20] sm:%s1666] %v1683
                  %v1685 = vld [vmem:[%s1673 + $0x14] sm:%s1666]
                  %1686 = vst [vmem:[%s1674 + $0x28] sm:%s1666] %v1685
                  %v1687 = vld [vmem:[%s1673 + $0x18] sm:%s1666]
                  %1688 = vst [vmem:[%s1674 + $0x30] sm:%s1666] %v1687
                  %v1689 = vld [vmem:[%s1673 + $0x1c] sm:%s1666]
                  %1690 = vst [vmem:[%s1674 + $0x38] sm:%s1666] %v1689
                  %v1691 = vld [vmem:[%s1673 + $0x20] sm:%s1666]
                  %1692 = vst [vmem:[%s1674 + $0x40] sm:%s1666] %v1691
                  %v1693 = vld [vmem:[%s1673 + $0x24] sm:%s1666]
                  %1694 = vst [vmem:[%s1674 + $0x48] sm:%s1666] %v1693
                  %v1695 = vld [vmem:[%s1673 + $0x28] sm:%s1666]
                  %1696 = vst [vmem:[%s1674 + $0x50] sm:%s1666] %v1695
                  %v1697 = vld [vmem:[%s1673 + $0x2c] sm:%s1666]
                  %1698 = vst [vmem:[%s1674 + $0x58] sm:%s1666] %v1697
                  %v1699 = vld [vmem:[%s1673 + $0x30] sm:%s1666]
                  %1700 = vst [vmem:[%s1674 + $0x60] sm:%s1666] %v1699
                  %v1701 = vld [vmem:[%s1673 + $0x34] sm:%s1666]
                  %1702 = vst [vmem:[%s1674 + $0x68] sm:%s1666] %v1701
                  %v1703 = vld [vmem:[%s1673 + $0x38] sm:%s1666]
                  %1704 = vst [vmem:[%s1674 + $0x70] sm:%s1666] %v1703
                  %v1705 = vld [vmem:[%s1673 + $0x3c] sm:%s1666]
                  %1706 = vst [vmem:[%s1674 + $0x78] sm:%s1666] %v1705
                $region147: #{net_d_forward.6} parent=134 // loop_footer
                  %s1672 = sadd.s32 1, %s1668
                $region148: #{net_d_forward.6} parent=134 // loop_footer_branch
                  %1667 = sbr.rel target = $region144
                $region149: #{net_d_forward.6} parent=134 // loop_exit
                  _
              $region135: #{net_d_forward.6} parent=119 // pred_fallthru
                _
            $region120: #{net_d_forward.6} parent=115 // pred_fallthru
              _
            // Predicated region
            $region121: #{net_d_forward.6} parent=115 // pred_check
              _
            $region122: #{net_d_forward.6} parent=115 // pred_check_branch
              %1612 = sbr.rel (0) target = $region124
            $region123: #{net_d_forward.6} parent=115 // pred_region
              %s1614 = ssub.s32 16, 1
              loop: start=0, step=1, limit=1
              $region125: #{net_d_forward.6} parent=123 // loop_pre_header
                _
              $region126: #{net_d_forward.6} parent=123 // loop_header
                %s1616 = sphi 0, %s1620
                %p1617 = scmp.ge.s32.totalorder %s1616, 1
                %s1621 = sphi %s1601, %s1601
                %s1622 = sphi %s1606, %s1606
              $region127: #{net_d_forward.6} parent=123 // loop_header_branch
                %1619 = sbr.rel (%p1617) target = $region131
              $region128: #{net_d_forward.6} parent=123 // loop_body
                %v1623 = vld [vmem:[%s1621] sm:%s1614]
                %1624 = vst [vmem:[%s1622] sm:%s1614] %v1623
                %v1625 = vld [vmem:[%s1621 + $0x4] sm:%s1614]
                %1626 = vst [vmem:[%s1622 + $0x8] sm:%s1614] %v1625
                %v1627 = vld [vmem:[%s1621 + $0x8] sm:%s1614]
                %1628 = vst [vmem:[%s1622 + $0x10] sm:%s1614] %v1627
                %v1629 = vld [vmem:[%s1621 + $0xc] sm:%s1614]
                %1630 = vst [vmem:[%s1622 + $0x18] sm:%s1614] %v1629
                %v1631 = vld [vmem:[%s1621 + $0x10] sm:%s1614]
                %1632 = vst [vmem:[%s1622 + $0x20] sm:%s1614] %v1631
                %v1633 = vld [vmem:[%s1621 + $0x14] sm:%s1614]
                %1634 = vst [vmem:[%s1622 + $0x28] sm:%s1614] %v1633
                %v1635 = vld [vmem:[%s1621 + $0x18] sm:%s1614]
                %1636 = vst [vmem:[%s1622 + $0x30] sm:%s1614] %v1635
                %v1637 = vld [vmem:[%s1621 + $0x1c] sm:%s1614]
                %1638 = vst [vmem:[%s1622 + $0x38] sm:%s1614] %v1637
                %v1639 = vld [vmem:[%s1621 + $0x20] sm:%s1614]
                %1640 = vst [vmem:[%s1622 + $0x40] sm:%s1614] %v1639
                %v1641 = vld [vmem:[%s1621 + $0x24] sm:%s1614]
                %1642 = vst [vmem:[%s1622 + $0x48] sm:%s1614] %v1641
                %v1643 = vld [vmem:[%s1621 + $0x28] sm:%s1614]
                %1644 = vst [vmem:[%s1622 + $0x50] sm:%s1614] %v1643
                %v1645 = vld [vmem:[%s1621 + $0x2c] sm:%s1614]
                %1646 = vst [vmem:[%s1622 + $0x58] sm:%s1614] %v1645
                %v1647 = vld [vmem:[%s1621 + $0x30] sm:%s1614]
                %1648 = vst [vmem:[%s1622 + $0x60] sm:%s1614] %v1647
                %v1649 = vld [vmem:[%s1621 + $0x34] sm:%s1614]
                %1650 = vst [vmem:[%s1622 + $0x68] sm:%s1614] %v1649
                %v1651 = vld [vmem:[%s1621 + $0x38] sm:%s1614]
                %1652 = vst [vmem:[%s1622 + $0x70] sm:%s1614] %v1651
                %v1653 = vld [vmem:[%s1621 + $0x3c] sm:%s1614]
                %1654 = vst [vmem:[%s1622 + $0x78] sm:%s1614] %v1653
              $region129: #{net_d_forward.6} parent=123 // loop_footer
                %s1620 = sadd.s32 1, %s1616
              $region130: #{net_d_forward.6} parent=123 // loop_footer_branch
                %1615 = sbr.rel target = $region126
              $region131: #{net_d_forward.6} parent=123 // loop_exit
                _
            $region124: #{net_d_forward.6} parent=115 // pred_fallthru
              _
          $region116: #{net_d_forward.6} parent=111 // pred_fallthru
            _
          %1707 = vnop
        $region112: #{net_d_forward.6} parent=91 // pred_fallthru
          _
      $region92: #{net_d_forward.6} parent=5 // pred_fallthru
        _
      %p1708 = scmp.le.s32.totalorder 2, %s10
      // Predicated region
      $region150: #{net_d_forward.6} parent=5 // pred_check
        %p1709 = pneg %p1708
      $region151: #{net_d_forward.6} parent=5 // pred_check_branch
        %1711 = sbr.rel (%p1709) target = $region153
      $region152: #{net_d_forward.6} parent=5 // pred_region
        %s1712 = ssub.s32 %s10, 2
        // Predicated region
        $region154: #{net_d_forward.6} parent=152 // pred_check
          %p1713 = pneg %p157
        $region155: #{net_d_forward.6} parent=152 // pred_check_branch
          %1715 = sbr.rel (%p1713) target = $region157
        $region156: #{net_d_forward.6} parent=152 // pred_region
          %s1716 = sand.u32 %s142, 1
          %s1717 = sand.u32 %s142, 1
          %s1718 = smul.addr %s1717, 64
          %s1719 = scalar_lea.vmem [#allocation5], %s1718
        $region157: #{net_d_forward.6} parent=152 // pred_fallthru
          _
      $region153: #{net_d_forward.6} parent=5 // pred_fallthru
        _
    $region6: #{net_d_forward.6} parent=1 // loop_footer
      %s14 = sadd.s32 1, %s10
    $region7: #{net_d_forward.6} parent=1 // loop_footer_branch
      %9 = sbr.rel target = $region3
    $region8: #{net_d_forward.6} parent=1 // loop_exit
      _

// kernel: net_d_forward.7
$region0: #{net_d_forward.7}
  #allocation0 [shape = 'u32[]', space=smem, size = 0x4, offset = 0x4, fixed_abs, tag = 'smem constant byte address 0x4 - core index']
  #allocation1 [shape = 'u32[72,128]{1,0:T(1,128)}', space=vmem, size = 0x9000, scoped, tag = 'internal scratch']
  #allocation2 [shape = 'f32[32,512]{1,0:T(8,128)}', space=vmem, size = 0x10000, scoped, tag = 'scratch operand']
  %s0 = inlined_call_operand.vmem [shape: bf16[32,4096], index: 0, kind: input, shape index: {}]
  %s1 = inlined_call_operand.vmem [shape: bf16[4096,512], index: 1, kind: input, shape index: {}]
  %s2 = inlined_call_operand.vmem [shape: f32[1,512], index: 2, kind: input, shape index: {}]
  %s3 = inlined_call_operand.vmem [shape: f32[1,512], index: 3, kind: input, shape index: {}]
  %s4 = inlined_call_operand.vmem [shape: bf16[16,512], index: 4, kind: input, shape index: {}]
  %s5 = inlined_call_operand.vmem [shape: f32[2,1], index: 5, kind: output, shape index: {}]
  %s6 = sld [smem:[#allocation0]]
  $region84: #{net_d_forward.7} parent=0
    _
  %s8 = ssub.s32 1, %s6
  %s9 = scalar_select 0, %s8, %s6
  $region1: #{net_d_forward.7} parent=0
    #allocation3 [shape = 'u8[131072]{0}', space=vmem, size = 0x20000, scoped, tag = 'input window, operand 0']
    loop: start=0, step=1, limit=6
    $region2: #{net_d_forward.7} parent=1 // loop_pre_header
      _
    $region3: #{net_d_forward.7} parent=1 // loop_header
      %s11 = sphi 0, %s15
      %p12 = scmp.ge.s32.totalorder %s11, 6
      %s21 = sphi 0, %s23
      %s24 = sphi 0, %s21
      %s25 = sphi 0, %s24
      %s41 = sphi 0, %s25
      %s47 = sphi 0, %s49
      %s50 = sphi 0, %s47
      %s51 = sphi 0, %s50
      %s67 = sphi 0, %s51
      %s71 = sphi 0, %s71
      %s73 = sphi 0, %s71
      %s74 = sphi 0, %s73
      %s88 = sphi 0, %s74
      %s92 = sphi 0, %s92
      %s94 = sphi 0, %s92
      %s95 = sphi 0, %s94
      %s109 = sphi 0, %s95
      %s113 = sphi 0, %s113
      %s115 = sphi 0, %s113
      %s116 = sphi 0, %s115
      %s130 = sphi 0, %s116
      %s134 = sphi 0, %s134
      %s136 = sphi 0, %s134
      %s137 = sphi 0, %s136
      %s151 = sphi 0, %s137
    $region4: #{net_d_forward.7} parent=1 // loop_header_branch
      %14 = sbr.rel (%p12) target = $region8
    $region5: #{net_d_forward.7} parent=1 // loop_body
      %s16 = ssub.s32 %s11, 1
      %s17 = ssub.s32 %s11, 2
      %s18 = sadd.s32 %s11, 1
      %s19 = ssub.s32 %s11, %s18
      %p20 = scmp.eq.s32.totalorder %s19, 0
      %s22 = sadd.s32 %s21, 1
      %s23 = scalar_select %p20, %s21, %s22
      %p26 = pneg %p20
      %p27 = scmp.eq.s32.totalorder %s11, 3
      %p28 = por %p26, %p27
      %p29 = scmp.ne.s32.totalorder %s21, %s24
      %p30 = scmp.eq.s32.totalorder %s11, 0
      %p31 = por %p29, %p30
      %p32 = scmp.ne.s32.totalorder %s21, %s24
      %p33 = scmp.eq.s32.totalorder %s16, 3
      %p34 = por %p32, %p33
      %p35 = scmp.ne.s32.totalorder %s24, %s25
      %p36 = scmp.eq.s32.totalorder %s16, 0
      %p37 = por %p35, %p36
      %p38 = scmp.ne.s32.totalorder %s24, %s25
      %p39 = scmp.eq.s32.totalorder %s17, 3
      %p40 = por %p38, %p39
      %p42 = scmp.ne.s32.totalorder %s25, %s41
      %p43 = scmp.eq.s32.totalorder %s17, 0
      %p44 = por %p42, %p43
      %s45 = ssub.s32 %s11, %s18
      %p46 = scmp.eq.s32.totalorder %s45, 0
      %s48 = sadd.s32 %s47, 1
      %s49 = scalar_select %p46, %s47, %s48
      %p52 = pneg %p46
      %p53 = scmp.eq.s32.totalorder %s11, 3
      %p54 = por %p52, %p53
      %p55 = scmp.ne.s32.totalorder %s47, %s50
      %p56 = scmp.eq.s32.totalorder %s11, 0
      %p57 = por %p55, %p56
      %p58 = scmp.ne.s32.totalorder %s47, %s50
      %p59 = scmp.eq.s32.totalorder %s16, 3
      %p60 = por %p58, %p59
      %p61 = scmp.ne.s32.totalorder %s50, %s51
      %p62 = scmp.eq.s32.totalorder %s16, 0
      %p63 = por %p61, %p62
      %p64 = scmp.ne.s32.totalorder %s50, %s51
      %p65 = scmp.eq.s32.totalorder %s17, 3
      %p66 = por %p64, %p65
      %p68 = scmp.ne.s32.totalorder %s51, %s67
      %p69 = scmp.eq.s32.totalorder %s17, 0
      %p70 = por %p68, %p69
      %s72 = sadd.s32 %s71, 1
      %p75 = scmp.eq.s32.totalorder %s11, 3
      %p76 = scmp.ne.s32.totalorder %s71, %s73
      %p77 = scmp.eq.s32.totalorder %s11, 0
      %p78 = por %p76, %p77
      %p79 = scmp.ne.s32.totalorder %s71, %s73
      %p80 = scmp.eq.s32.totalorder %s16, 3
      %p81 = por %p79, %p80
      %p82 = scmp.ne.s32.totalorder %s73, %s74
      %p83 = scmp.eq.s32.totalorder %s16, 0
      %p84 = por %p82, %p83
      %p85 = scmp.ne.s32.totalorder %s73, %s74
      %p86 = scmp.eq.s32.totalorder %s17, 3
      %p87 = por %p85, %p86
      %p89 = scmp.ne.s32.totalorder %s74, %s88
      %p90 = scmp.eq.s32.totalorder %s17, 0
      %p91 = por %p89, %p90
      %s93 = sadd.s32 %s92, 1
      %p96 = scmp.eq.s32.totalorder %s11, 3
      %p97 = scmp.ne.s32.totalorder %s92, %s94
      %p98 = scmp.eq.s32.totalorder %s11, 0
      %p99 = por %p97, %p98
      %p100 = scmp.ne.s32.totalorder %s92, %s94
      %p101 = scmp.eq.s32.totalorder %s16, 3
      %p102 = por %p100, %p101
      %p103 = scmp.ne.s32.totalorder %s94, %s95
      %p104 = scmp.eq.s32.totalorder %s16, 0
      %p105 = por %p103, %p104
      %p106 = scmp.ne.s32.totalorder %s94, %s95
      %p107 = scmp.eq.s32.totalorder %s17, 3
      %p108 = por %p106, %p107
      %p110 = scmp.ne.s32.totalorder %s95, %s109
      %p111 = scmp.eq.s32.totalorder %s17, 0
      %p112 = por %p110, %p111
      %s114 = sadd.s32 %s113, 1
      %p117 = scmp.eq.s32.totalorder %s11, 3
      %p118 = scmp.ne.s32.totalorder %s113, %s115
      %p119 = scmp.eq.s32.totalorder %s11, 0
      %p120 = por %p118, %p119
      %p121 = scmp.ne.s32.totalorder %s113, %s115
      %p122 = scmp.eq.s32.totalorder %s16, 3
      %p123 = por %p121, %p122
      %p124 = scmp.ne.s32.totalorder %s115, %s116
      %p125 = scmp.eq.s32.totalorder %s16, 0
      %p126 = por %p124, %p125
      %p127 = scmp.ne.s32.totalorder %s115, %s116
      %p128 = scmp.eq.s32.totalorder %s17, 3
      %p129 = por %p127, %p128
      %p131 = scmp.ne.s32.totalorder %s116, %s130
      %p132 = scmp.eq.s32.totalorder %s17, 0
      %p133 = por %p131, %p132
      %s135 = sadd.s32 %s134, 1
      %p138 = scmp.eq.s32.totalorder %s11, 3
      %p139 = scmp.ne.s32.totalorder %s134, %s136
      %p140 = scmp.eq.s32.totalorder %s11, 0
      %p141 = por %p139, %p140
      %p142 = scmp.ne.s32.totalorder %s134, %s136
      %p143 = scmp.eq.s32.totalorder %s16, 3
      %p144 = por %p142, %p143
      %p145 = scmp.ne.s32.totalorder %s136, %s137
      %p146 = scmp.eq.s32.totalorder %s16, 0
      %p147 = por %p145, %p146
      %p148 = scmp.ne.s32.totalorder %s136, %s137
      %p149 = scmp.eq.s32.totalorder %s17, 3
      %p150 = por %p148, %p149
      %p152 = scmp.ne.s32.totalorder %s137, %s151
      %p153 = scmp.eq.s32.totalorder %s17, 0
      %p154 = por %p152, %p153
      %p155 = scmp.le.s32.totalorder 1, %s11
      %p156 = scmp.lt.s32.totalorder %s11, 5
      %p157 = pnand %p155, %p156
      %p158 = pneg %p157
      // Predicated region
      $region9: #{net_d_forward.7} parent=5 // pred_check
        _
      $region10: #{net_d_forward.7} parent=5 // pred_check_branch
        %160 = sbr.rel (%p157) target = $region12
      $region11: #{net_d_forward.7} parent=5 // pred_region
        %s161 = ssub.s32 %s11, 1
        // Predicated region
        $region13: #{net_d_forward.7} parent=11 // pred_check
          %p162 = pneg %p84
        $region14: #{net_d_forward.7} parent=11 // pred_check_branch
          %164 = sbr.rel (%p162) target = $region16
        $region15: #{net_d_forward.7} parent=11 // pred_region
          _
        $region16: #{net_d_forward.7} parent=11 // pred_fallthru
          _
        // Predicated region
        $region17: #{net_d_forward.7} parent=11 // pred_check
          %p165 = pneg %p105
        $region18: #{net_d_forward.7} parent=11 // pred_check_branch
          %167 = sbr.rel (%p165) target = $region20
        $region19: #{net_d_forward.7} parent=11 // pred_region
          _
        $region20: #{net_d_forward.7} parent=11 // pred_fallthru
          _
        // Predicated region
        $region21: #{net_d_forward.7} parent=11 // pred_check
          %p168 = pneg %p126
        $region22: #{net_d_forward.7} parent=11 // pred_check_branch
          %170 = sbr.rel (%p168) target = $region24
        $region23: #{net_d_forward.7} parent=11 // pred_region
          _
        $region24: #{net_d_forward.7} parent=11 // pred_fallthru
          _
      $region12: #{net_d_forward.7} parent=5 // pred_fallthru
        _
      %p171 = scmp.lt.s32.totalorder %s11, 4
      // Predicated region
      $region25: #{net_d_forward.7} parent=5 // pred_check
        %p172 = pneg %p171
      $region26: #{net_d_forward.7} parent=5 // pred_check_branch
        %174 = sbr.rel (%p172) target = $region28
      $region27: #{net_d_forward.7} parent=5 // pred_region
        // Predicated region
        $region29: #{net_d_forward.7} parent=27 // pred_check
          %p175 = pneg %p31
        $region30: #{net_d_forward.7} parent=27 // pred_check_branch
          %177 = sbr.rel (%p175) target = $region32
        $region31: #{net_d_forward.7} parent=27 // pred_region
          %s178 = sand.u32 %s21, 1
          %s179 = sand.u32 %s21, 1
          %s180 = smul.addr %s179, 128
          %s181 = scalar_lea.vmem [#allocation3], %s180
          %s182 = smul.u32 8, %s11
          %s183 = smul.addr %s182, 4
          %s184 = scalar_lea.vmem %s0, %s183
          // Predicated region
          $region33: #{net_d_forward.7} parent=31 // pred_check
            _
          $region34: #{net_d_forward.7} parent=31 // pred_check_branch
            %186 = sbr.rel (0) target = $region36
          $region35: #{net_d_forward.7} parent=31 // pred_region
            // Predicated region
            $region37: #{net_d_forward.7} parent=35 // pred_check
              _
            $region38: #{net_d_forward.7} parent=35 // pred_check_branch
              %188 = sbr.rel (0) target = $region40
            $region39: #{net_d_forward.7} parent=35 // pred_region
              loop: start=0, step=1, limit=1
              $region41: #{net_d_forward.7} parent=39 // loop_pre_header
                _
              $region42: #{net_d_forward.7} parent=39 // loop_header
                %s190 = sphi 0, %s194
                %p191 = scmp.ge.s32.totalorder %s190, 1
                %s195 = sphi %s184, %s184
                %s196 = sphi %s181, %s181
              $region43: #{net_d_forward.7} parent=39 // loop_header_branch
                %193 = sbr.rel (%p191) target = $region47
              $region44: #{net_d_forward.7} parent=39 // loop_body
                %v197 = vld [vmem:[%s195] sm:$0xff]
                %198 = vst [vmem:[%s196] sm:$0xff] %v197
                %v199 = vld [vmem:[%s195 + $0x8] sm:$0xff]
                %200 = vst [vmem:[%s196 + $0x8] sm:$0xff] %v199
                %v201 = vld [vmem:[%s195 + $0x10] sm:$0xff]
                %202 = vst [vmem:[%s196 + $0x10] sm:$0xff] %v201
                %v203 = vld [vmem:[%s195 + $0x18] sm:$0xff]
                %204 = vst [vmem:[%s196 + $0x18] sm:$0xff] %v203
                %v205 = vld [vmem:[%s195 + $0x80] sm:$0xff]
                %206 = vst [vmem:[%s196 + $0x20] sm:$0xff] %v205
                %v207 = vld [vmem:[%s195 + $0x88] sm:$0xff]
                %208 = vst [vmem:[%s196 + $0x28] sm:$0xff] %v207
                %v209 = vld [vmem:[%s195 + $0x90] sm:$0xff]
                %210 = vst [vmem:[%s196 + $0x30] sm:$0xff] %v209
                %v211 = vld [vmem:[%s195 + $0x98] sm:$0xff]
                %212 = vst [vmem:[%s196 + $0x38] sm:$0xff] %v211
                %v213 = vld [vmem:[%s195 + $0x100] sm:$0xff]
                %214 = vst [vmem:[%s196 + $0x40] sm:$0xff] %v213
                %v215 = vld [vmem:[%s195 + $0x108] sm:$0xff]
                %216 = vst [vmem:[%s196 + $0x48] sm:$0xff] %v215
                %v217 = vld [vmem:[%s195 + $0x110] sm:$0xff]
                %218 = vst [vmem:[%s196 + $0x50] sm:$0xff] %v217
                %v219 = vld [vmem:[%s195 + $0x118] sm:$0xff]
                %220 = vst [vmem:[%s196 + $0x58] sm:$0xff] %v219
                %v221 = vld [vmem:[%s195 + $0x180] sm:$0xff]
                %222 = vst [vmem:[%s196 + $0x60] sm:$0xff] %v221
                %v223 = vld [vmem:[%s195 + $0x188] sm:$0xff]
                %224 = vst [vmem:[%s196 + $0x68] sm:$0xff] %v223
                %v225 = vld [vmem:[%s195 + $0x190] sm:$0xff]
                %226 = vst [vmem:[%s196 + $0x70] sm:$0xff] %v225
                %v227 = vld [vmem:[%s195 + $0x198] sm:$0xff]
                %228 = vst [vmem:[%s196 + $0x78] sm:$0xff] %v227
              $region45: #{net_d_forward.7} parent=39 // loop_footer
                %s194 = sadd.s32 1, %s190
              $region46: #{net_d_forward.7} parent=39 // loop_footer_branch
                %189 = sbr.rel target = $region42
              $region47: #{net_d_forward.7} parent=39 // loop_exit
                _
            $region40: #{net_d_forward.7} parent=35 // pred_fallthru
              _
            // Predicated region
            $region48: #{net_d_forward.7} parent=35 // pred_check
              _
            $region49: #{net_d_forward.7} parent=35 // pred_check_branch
              %230 = sbr.rel target = $region51
            $region50: #{net_d_forward.7} parent=35 // pred_region
              _
            $region51: #{net_d_forward.7} parent=35 // pred_fallthru
              _
          $region36: #{net_d_forward.7} parent=31 // pred_fallthru
            _
          %231 = vnop
        $region32: #{net_d_forward.7} parent=27 // pred_fallthru
          _
        // Predicated region
        $region52: #{net_d_forward.7} parent=27 // pred_check
          %p232 = pneg %p57
        $region53: #{net_d_forward.7} parent=27 // pred_check_branch
          %234 = sbr.rel (%p232) target = $region55
        $region54: #{net_d_forward.7} parent=27 // pred_region
          %s235 = smul.u32 128, %s11
          %p236 = scmp.lt.s32.totalorder %s235, 511
          %s237 = scalar_select %p236, %s235, 511
          %s238 = smul.addr %s237, 4
          %s239 = smul.addr %s238, 4
          %s240 = scalar_lea.vmem %s1, %s239
          %s241 = smul.u32 128, %s11
        $region55: #{net_d_forward.7} parent=27 // pred_fallthru
          _
      $region28: #{net_d_forward.7} parent=5 // pred_fallthru
        _
      %p242 = scmp.le.s32.totalorder 1, %s11
      %p243 = scmp.lt.s32.totalorder %s11, 5
      %p244 = pnand %p242, %p243
      %p245 = pneg %p244
      // Predicated region
      $region56: #{net_d_forward.7} parent=5 // pred_check
        _
      $region57: #{net_d_forward.7} parent=5 // pred_check_branch
        %247 = sbr.rel (%p244) target = $region59
      $region58: #{net_d_forward.7} parent=5 // pred_region
        %s248 = ssub.s32 %s11, 1
        %s249 = sand.u32 %s24, 1
        %s250 = sand.u32 %s24, 1
        %s251 = smul.addr %s250, 128
        %s252 = scalar_lea.vmem [#allocation3], %s251
        // Predicated region
        $region60: #{net_d_forward.7} parent=58 // pred_check
          %p253 = pneg %p37
        $region61: #{net_d_forward.7} parent=58 // pred_check_branch
          %255 = sbr.rel (%p253) target = $region63
        $region62: #{net_d_forward.7} parent=58 // pred_region
          _
        $region63: #{net_d_forward.7} parent=58 // pred_fallthru
          _
        %s256 = sand.u32 %s24, 1
        %s257 = sand.u32 %s24, 1
        %s258 = smul.addr %s257, 128
        %s259 = scalar_lea.vmem [#allocation3], %s258
        %p260 = pneg %p37
        %p261 = pneg %p34
        %s262 = smul.u32 128, %s16
        %p263 = scmp.lt.s32.totalorder %s262, 511
        %s264 = scalar_select %p263, %s262, 511
        %s265 = smul.addr %s264, 4
        %s266 = smul.addr %s265, 4
        %s267 = scalar_lea.vmem %s1, %s266
        %p268 = pneg %p63
        %p269 = pneg %p60
        %p270 = pneg %p84
        %p271 = pneg %p81
        %p272 = pneg %p105
        %p273 = pneg %p102
        %p274 = pneg %p126
        %p275 = pneg %p123
        %p276 = pneg %p147
        %p277 = pneg %p144
        %s278 = smul.u32 8, %s16
        %s279 = smul.u32 128, %s16
        %p280 = scmp.lt.s32.totalorder %s279, 511
        %s281 = scalar_select %p280, %s279, 511
        %s282 = smul.addr %s281, 4
        %s283 = smul.addr %s282, 4
        %s284 = scalar_lea.vmem %s1, %s283
        %s285 = smul.u32 128, %s16
        %p286 = scmp.eq.s32.totalorder %s16, 0
        // Predicated region
        $region64: #{net_d_forward.7} parent=58 // pred_check
          %p287 = pneg %p286
        $region65: #{net_d_forward.7} parent=58 // pred_check_branch
          %289 = sbr.rel (%p287) target = $region67
        $region66: #{net_d_forward.7} parent=58 // pred_region
          %290 = vst [vmem:[#allocation2] sm:$0xff] 0.0
          %291 = vst [vmem:[#allocation2 + $0x8] sm:$0xff] 0.0
          %292 = vst [vmem:[#allocation2 + $0x10] sm:$0xff] 0.0
          %293 = vst [vmem:[#allocation2 + $0x18] sm:$0xff] 0.0
          %294 = vst [vmem:[#allocation2 + $0x20] sm:$0xff] 0.0
          %295 = vst [vmem:[#allocation2 + $0x28] sm:$0xff] 0.0
          %296 = vst [vmem:[#allocation2 + $0x30] sm:$0xff] 0.0
          %297 = vst [vmem:[#allocation2 + $0x38] sm:$0xff] 0.0
          %298 = vst [vmem:[#allocation2 + $0x40] sm:$0xff] 0.0
          %299 = vst [vmem:[#allocation2 + $0x48] sm:$0xff] 0.0
          %300 = vst [vmem:[#allocation2 + $0x50] sm:$0xff] 0.0
          %301 = vst [vmem:[#allocation2 + $0x58] sm:$0xff] 0.0
          %302 = vst [vmem:[#allocation2 + $0x60] sm:$0xff] 0.0
          %303 = vst [vmem:[#allocation2 + $0x68] sm:$0xff] 0.0
          %304 = vst [vmem:[#allocation2 + $0x70] sm:$0xff] 0.0
          %305 = vst [vmem:[#allocation2 + $0x78] sm:$0xff] 0.0
        $region67: #{net_d_forward.7} parent=58 // pred_fallthru
          _
        %v306 = vld [vmem:[#allocation2] sm:$0xff]
        %v307 = vld [vmem:[#allocation2 + $0x8] sm:$0xff]
        %v308 = vld [vmem:[#allocation2 + $0x10] sm:$0xff]
        %v309 = vld [vmem:[#allocation2 + $0x18] sm:$0xff]
        %v310 = vld [vmem:[#allocation2 + $0x20] sm:$0xff]
        %v311 = vld [vmem:[#allocation2 + $0x28] sm:$0xff]
        %v312 = vld [vmem:[#allocation2 + $0x30] sm:$0xff]
        %v313 = vld [vmem:[#allocation2 + $0x38] sm:$0xff]
        %v314 = vld [vmem:[#allocation2 + $0x40] sm:$0xff]
        %v315 = vld [vmem:[#allocation2 + $0x48] sm:$0xff]
        %v316 = vld [vmem:[#allocation2 + $0x50] sm:$0xff]
        %v317 = vld [vmem:[#allocation2 + $0x58] sm:$0xff]
        %v318 = vld [vmem:[#allocation2 + $0x60] sm:$0xff]
        %v319 = vld [vmem:[#allocation2 + $0x68] sm:$0xff]
        %v320 = vld [vmem:[#allocation2 + $0x70] sm:$0xff]
        %v321 = vld [vmem:[#allocation2 + $0x78] sm:$0xff]
        %v322 = vld [vmem:[%s252] sm:$0xff]
        %v323 = vld [vmem:[%s252 + $0x8] sm:$0xff]
        %v324 = vld [vmem:[%s252 + $0x10] sm:$0xff]
        %v325 = vld [vmem:[%s252 + $0x18] sm:$0xff]
        %v326 = vld [vmem:[%s252 + $0x20] sm:$0xff]
        %v327 = vld [vmem:[%s252 + $0x28] sm:$0xff]
        %v328 = vld [vmem:[%s252 + $0x30] sm:$0xff]
        %v329 = vld [vmem:[%s252 + $0x38] sm:$0xff]
        %v330 = vld [vmem:[%s252 + $0x40] sm:$0xff]
        %v331 = vld [vmem:[%s252 + $0x48] sm:$0xff]
        %v332 = vld [vmem:[%s252 + $0x50] sm:$0xff]
        %v333 = vld [vmem:[%s252 + $0x58] sm:$0xff]
        %v334 = vld [vmem:[%s252 + $0x60] sm:$0xff]
        %v335 = vld [vmem:[%s252 + $0x68] sm:$0xff]
        %v336 = vld [vmem:[%s252 + $0x70] sm:$0xff]
        %v337 = vld [vmem:[%s252 + $0x78] sm:$0xff]
        %v338 = vld [vmem:[%s284] sm:$0xff]
        %v339 = vld [vmem:[%s284 + $0x8] sm:$0xff]
        %v340 = vld [vmem:[%s284 + $0x10] sm:$0xff]
        %v341 = vld [vmem:[%s284 + $0x18] sm:$0xff]
        %v342 = vld [vmem:[%s284 + $0x20] sm:$0xff]
        %v343 = vld [vmem:[%s284 + $0x28] sm:$0xff]
        %v344 = vld [vmem:[%s284 + $0x30] sm:$0xff]
        %v345 = vld [vmem:[%s284 + $0x38] sm:$0xff]
        %v346 = vld [vmem:[%s284 + $0x40] sm:$0xff]
        %v347 = vld [vmem:[%s284 + $0x48] sm:$0xff]
        %v348 = vld [vmem:[%s284 + $0x50] sm:$0xff]
        %v349 = vld [vmem:[%s284 + $0x58] sm:$0xff]
        %v350 = vld [vmem:[%s284 + $0x60] sm:$0xff]
        %v351 = vld [vmem:[%s284 + $0x68] sm:$0xff]
        %v352 = vld [vmem:[%s284 + $0x70] sm:$0xff]
        %v353 = vld [vmem:[%s284 + $0x78] sm:$0xff]
        %v354 = vld [vmem:[%s284 + $0x80] sm:$0xff]
        %v355 = vld [vmem:[%s284 + $0x88] sm:$0xff]
        %v356 = vld [vmem:[%s284 + $0x90] sm:$0xff]
        %v357 = vld [vmem:[%s284 + $0x98] sm:$0xff]
        %v358 = vld [vmem:[%s284 + $0xa0] sm:$0xff]
        %v359 = vld [vmem:[%s284 + $0xa8] sm:$0xff]
        %v360 = vld [vmem:[%s284 + $0xb0] sm:$0xff]
        %v361 = vld [vmem:[%s284 + $0xb8] sm:$0xff]
        %v362 = vld [vmem:[%s284 + $0xc0] sm:$0xff]
        %v363 = vld [vmem:[%s284 + $0xc8] sm:$0xff]
        %v364 = vld [vmem:[%s284 + $0xd0] sm:$0xff]
        %v365 = vld [vmem:[%s284 + $0xd8] sm:$0xff]
        %v366 = vld [vmem:[%s284 + $0xe0] sm:$0xff]
        %v367 = vld [vmem:[%s284 + $0xe8] sm:$0xff]
        %v368 = vld [vmem:[%s284 + $0xf0] sm:$0xff]
        %v369 = vld [vmem:[%s284 + $0xf8] sm:$0xff]
        %v370 = vld [vmem:[%s284 + $0x100] sm:$0xff]
        %v371 = vld [vmem:[%s284 + $0x108] sm:$0xff]
        %v372 = vld [vmem:[%s284 + $0x110] sm:$0xff]
        %v373 = vld [vmem:[%s284 + $0x118] sm:$0xff]
        %v374 = vld [vmem:[%s284 + $0x120] sm:$0xff]
        %v375 = vld [vmem:[%s284 + $0x128] sm:$0xff]
        %v376 = vld [vmem:[%s284 + $0x130] sm:$0xff]
        %v377 = vld [vmem:[%s284 + $0x138] sm:$0xff]
        %v378 = vld [vmem:[%s284 + $0x140] sm:$0xff]
        %v379 = vld [vmem:[%s284 + $0x148] sm:$0xff]
        %v380 = vld [vmem:[%s284 + $0x150] sm:$0xff]
        %v381 = vld [vmem:[%s284 + $0x158] sm:$0xff]
        %v382 = vld [vmem:[%s284 + $0x160] sm:$0xff]
        %v383 = vld [vmem:[%s284 + $0x168] sm:$0xff]
        %v384 = vld [vmem:[%s284 + $0x170] sm:$0xff]
        %v385 = vld [vmem:[%s284 + $0x178] sm:$0xff]
        %v386 = vld [vmem:[%s284 + $0x180] sm:$0xff]
        %v387 = vld [vmem:[%s284 + $0x188] sm:$0xff]
        %v388 = vld [vmem:[%s284 + $0x190] sm:$0xff]
        %v389 = vld [vmem:[%s284 + $0x198] sm:$0xff]
        %v390 = vld [vmem:[%s284 + $0x1a0] sm:$0xff]
        %v391 = vld [vmem:[%s284 + $0x1a8] sm:$0xff]
        %v392 = vld [vmem:[%s284 + $0x1b0] sm:$0xff]
        %v393 = vld [vmem:[%s284 + $0x1b8] sm:$0xff]
        %v394 = vld [vmem:[%s284 + $0x1c0] sm:$0xff]
        %v395 = vld [vmem:[%s284 + $0x1c8] sm:$0xff]
        %v396 = vld [vmem:[%s284 + $0x1d0] sm:$0xff]
        %v397 = vld [vmem:[%s284 + $0x1d8] sm:$0xff]
        %v398 = vld [vmem:[%s284 + $0x1e0] sm:$0xff]
        %v399 = vld [vmem:[%s284 + $0x1e8] sm:$0xff]
        %v400 = vld [vmem:[%s284 + $0x1f0] sm:$0xff]
        %v401 = vld [vmem:[%s284 + $0x1f8] sm:$0xff]
        %v402 = vld [vmem:[%s284 + $0x200] sm:$0xff]
        %v403 = vld [vmem:[%s284 + $0x208] sm:$0xff]
        %v404 = vld [vmem:[%s284 + $0x210] sm:$0xff]
        %v405 = vld [vmem:[%s284 + $0x218] sm:$0xff]
        %v406 = vld [vmem:[%s284 + $0x220] sm:$0xff]
        %v407 = vld [vmem:[%s284 + $0x228] sm:$0xff]
        %v408 = vld [vmem:[%s284 + $0x230] sm:$0xff]
        %v409 = vld [vmem:[%s284 + $0x238] sm:$0xff]
        %v410 = vld [vmem:[%s284 + $0x240] sm:$0xff]
        %v411 = vld [vmem:[%s284 + $0x248] sm:$0xff]
        %v412 = vld [vmem:[%s284 + $0x250] sm:$0xff]
        %v413 = vld [vmem:[%s284 + $0x258] sm:$0xff]
        %v414 = vld [vmem:[%s284 + $0x260] sm:$0xff]
        %v415 = vld [vmem:[%s284 + $0x268] sm:$0xff]
        %v416 = vld [vmem:[%s284 + $0x270] sm:$0xff]
        %v417 = vld [vmem:[%s284 + $0x278] sm:$0xff]
        %v418 = vld [vmem:[%s284 + $0x280] sm:$0xff]
        %v419 = vld [vmem:[%s284 + $0x288] sm:$0xff]
        %v420 = vld [vmem:[%s284 + $0x290] sm:$0xff]
        %v421 = vld [vmem:[%s284 + $0x298] sm:$0xff]
        %v422 = vld [vmem:[%s284 + $0x2a0] sm:$0xff]
        %v423 = vld [vmem:[%s284 + $0x2a8] sm:$0xff]
        %v424 = vld [vmem:[%s284 + $0x2b0] sm:$0xff]
        %v425 = vld [vmem:[%s284 + $0x2b8] sm:$0xff]
        %v426 = vld [vmem:[%s284 + $0x2c0] sm:$0xff]
        %v427 = vld [vmem:[%s284 + $0x2c8] sm:$0xff]
        %v428 = vld [vmem:[%s284 + $0x2d0] sm:$0xff]
        %v429 = vld [vmem:[%s284 + $0x2d8] sm:$0xff]
        %v430 = vld [vmem:[%s284 + $0x2e0] sm:$0xff]
        %v431 = vld [vmem:[%s284 + $0x2e8] sm:$0xff]
        %v432 = vld [vmem:[%s284 + $0x2f0] sm:$0xff]
        %v433 = vld [vmem:[%s284 + $0x2f8] sm:$0xff]
        %v434 = vld [vmem:[%s284 + $0x300] sm:$0xff]
        %v435 = vld [vmem:[%s284 + $0x308] sm:$0xff]
        %v436 = vld [vmem:[%s284 + $0x310] sm:$0xff]
        %v437 = vld [vmem:[%s284 + $0x318] sm:$0xff]
        %v438 = vld [vmem:[%s284 + $0x320] sm:$0xff]
        %v439 = vld [vmem:[%s284 + $0x328] sm:$0xff]
        %v440 = vld [vmem:[%s284 + $0x330] sm:$0xff]
        %v441 = vld [vmem:[%s284 + $0x338] sm:$0xff]
        %v442 = vld [vmem:[%s284 + $0x340] sm:$0xff]
        %v443 = vld [vmem:[%s284 + $0x348] sm:$0xff]
        %v444 = vld [vmem:[%s284 + $0x350] sm:$0xff]
        %v445 = vld [vmem:[%s284 + $0x358] sm:$0xff]
        %v446 = vld [vmem:[%s284 + $0x360] sm:$0xff]
        %v447 = vld [vmem:[%s284 + $0x368] sm:$0xff]
        %v448 = vld [vmem:[%s284 + $0x370] sm:$0xff]
        %v449 = vld [vmem:[%s284 + $0x378] sm:$0xff]
        %v450 = vld [vmem:[%s284 + $0x380] sm:$0xff]
        %v451 = vld [vmem:[%s284 + $0x388] sm:$0xff]
        %v452 = vld [vmem:[%s284 + $0x390] sm:$0xff]
        %v453 = vld [vmem:[%s284 + $0x398] sm:$0xff]
        %v454 = vld [vmem:[%s284 + $0x3a0] sm:$0xff]
        %v455 = vld [vmem:[%s284 + $0x3a8] sm:$0xff]
        %v456 = vld [vmem:[%s284 + $0x3b0] sm:$0xff]
        %v457 = vld [vmem:[%s284 + $0x3b8] sm:$0xff]
        %v458 = vld [vmem:[%s284 + $0x3c0] sm:$0xff]
        %v459 = vld [vmem:[%s284 + $0x3c8] sm:$0xff]
        %v460 = vld [vmem:[%s284 + $0x3d0] sm:$0xff]
        %v461 = vld [vmem:[%s284 + $0x3d8] sm:$0xff]
        %v462 = vld [vmem:[%s284 + $0x3e0] sm:$0xff]
        %v463 = vld [vmem:[%s284 + $0x3e8] sm:$0xff]
        %v464 = vld [vmem:[%s284 + $0x3f0] sm:$0xff]
        %v465 = vld [vmem:[%s284 + $0x3f8] sm:$0xff]
        %v466 = vld [vmem:[%s284 + $0x400] sm:$0xff]
        %v467 = vld [vmem:[%s284 + $0x408] sm:$0xff]
        %v468 = vld [vmem:[%s284 + $0x410] sm:$0xff]
        %v469 = vld [vmem:[%s284 + $0x418] sm:$0xff]
        %v470 = vld [vmem:[%s284 + $0x420] sm:$0xff]
        %v471 = vld [vmem:[%s284 + $0x428] sm:$0xff]
        %v472 = vld [vmem:[%s284 + $0x430] sm:$0xff]
        %v473 = vld [vmem:[%s284 + $0x438] sm:$0xff]
        %v474 = vld [vmem:[%s284 + $0x440] sm:$0xff]
        %v475 = vld [vmem:[%s284 + $0x448] sm:$0xff]
        %v476 = vld [vmem:[%s284 + $0x450] sm:$0xff]
        %v477 = vld [vmem:[%s284 + $0x458] sm:$0xff]
        %v478 = vld [vmem:[%s284 + $0x460] sm:$0xff]
        %v479 = vld [vmem:[%s284 + $0x468] sm:$0xff]
        %v480 = vld [vmem:[%s284 + $0x470] sm:$0xff]
        %v481 = vld [vmem:[%s284 + $0x478] sm:$0xff]
        %v482 = vld [vmem:[%s284 + $0x480] sm:$0xff]
        %v483 = vld [vmem:[%s284 + $0x488] sm:$0xff]
        %v484 = vld [vmem:[%s284 + $0x490] sm:$0xff]
        %v485 = vld [vmem:[%s284 + $0x498] sm:$0xff]
        %v486 = vld [vmem:[%s284 + $0x4a0] sm:$0xff]
        %v487 = vld [vmem:[%s284 + $0x4a8] sm:$0xff]
        %v488 = vld [vmem:[%s284 + $0x4b0] sm:$0xff]
        %v489 = vld [vmem:[%s284 + $0x4b8] sm:$0xff]
        %v490 = vld [vmem:[%s284 + $0x4c0] sm:$0xff]
        %v491 = vld [vmem:[%s284 + $0x4c8] sm:$0xff]
        %v492 = vld [vmem:[%s284 + $0x4d0] sm:$0xff]
        %v493 = vld [vmem:[%s284 + $0x4d8] sm:$0xff]
        %v494 = vld [vmem:[%s284 + $0x4e0] sm:$0xff]
        %v495 = vld [vmem:[%s284 + $0x4e8] sm:$0xff]
        %v496 = vld [vmem:[%s284 + $0x4f0] sm:$0xff]
        %v497 = vld [vmem:[%s284 + $0x4f8] sm:$0xff]
        %v498 = vld [vmem:[%s284 + $0x500] sm:$0xff]
        %v499 = vld [vmem:[%s284 + $0x508] sm:$0xff]
        %v500 = vld [vmem:[%s284 + $0x510] sm:$0xff]
        %v501 = vld [vmem:[%s284 + $0x518] sm:$0xff]
        %v502 = vld [vmem:[%s284 + $0x520] sm:$0xff]
        %v503 = vld [vmem:[%s284 + $0x528] sm:$0xff]
        %v504 = vld [vmem:[%s284 + $0x530] sm:$0xff]
        %v505 = vld [vmem:[%s284 + $0x538] sm:$0xff]
        %v506 = vld [vmem:[%s284 + $0x540] sm:$0xff]
        %v507 = vld [vmem:[%s284 + $0x548] sm:$0xff]
        %v508 = vld [vmem:[%s284 + $0x550] sm:$0xff]
        %v509 = vld [vmem:[%s284 + $0x558] sm:$0xff]
        %v510 = vld [vmem:[%s284 + $0x560] sm:$0xff]
        %v511 = vld [vmem:[%s284 + $0x568] sm:$0xff]
        %v512 = vld [vmem:[%s284 + $0x570] sm:$0xff]
        %v513 = vld [vmem:[%s284 + $0x578] sm:$0xff]
        %v514 = vld [vmem:[%s284 + $0x580] sm:$0xff]
        %v515 = vld [vmem:[%s284 + $0x588] sm:$0xff]
        %v516 = vld [vmem:[%s284 + $0x590] sm:$0xff]
        %v517 = vld [vmem:[%s284 + $0x598] sm:$0xff]
        %v518 = vld [vmem:[%s284 + $0x5a0] sm:$0xff]
        %v519 = vld [vmem:[%s284 + $0x5a8] sm:$0xff]
        %v520 = vld [vmem:[%s284 + $0x5b0] sm:$0xff]
        %v521 = vld [vmem:[%s284 + $0x5b8] sm:$0xff]
        %v522 = vld [vmem:[%s284 + $0x5c0] sm:$0xff]
        %v523 = vld [vmem:[%s284 + $0x5c8] sm:$0xff]
        %v524 = vld [vmem:[%s284 + $0x5d0] sm:$0xff]
        %v525 = vld [vmem:[%s284 + $0x5d8] sm:$0xff]
        %v526 = vld [vmem:[%s284 + $0x5e0] sm:$0xff]
        %v527 = vld [vmem:[%s284 + $0x5e8] sm:$0xff]
        %v528 = vld [vmem:[%s284 + $0x5f0] sm:$0xff]
        %v529 = vld [vmem:[%s284 + $0x5f8] sm:$0xff]
        %v530 = vld [vmem:[%s284 + $0x600] sm:$0xff]
        %v531 = vld [vmem:[%s284 + $0x608] sm:$0xff]
        %v532 = vld [vmem:[%s284 + $0x610] sm:$0xff]
        %v533 = vld [vmem:[%s284 + $0x618] sm:$0xff]
        %v534 = vld [vmem:[%s284 + $0x620] sm:$0xff]
        %v535 = vld [vmem:[%s284 + $0x628] sm:$0xff]
        %v536 = vld [vmem:[%s284 + $0x630] sm:$0xff]
        %v537 = vld [vmem:[%s284 + $0x638] sm:$0xff]
        %v538 = vld [vmem:[%s284 + $0x640] sm:$0xff]
        %v539 = vld [vmem:[%s284 + $0x648] sm:$0xff]
        %v540 = vld [vmem:[%s284 + $0x650] sm:$0xff]
        %v541 = vld [vmem:[%s284 + $0x658] sm:$0xff]
        %v542 = vld [vmem:[%s284 + $0x660] sm:$0xff]
        %v543 = vld [vmem:[%s284 + $0x668] sm:$0xff]
        %v544 = vld [vmem:[%s284 + $0x670] sm:$0xff]
        %v545 = vld [vmem:[%s284 + $0x678] sm:$0xff]
        %v546 = vld [vmem:[%s284 + $0x680] sm:$0xff]
        %v547 = vld [vmem:[%s284 + $0x688] sm:$0xff]
        %v548 = vld [vmem:[%s284 + $0x690] sm:$0xff]
        %v549 = vld [vmem:[%s284 + $0x698] sm:$0xff]
        %v550 = vld [vmem:[%s284 + $0x6a0] sm:$0xff]
        %v551 = vld [vmem:[%s284 + $0x6a8] sm:$0xff]
        %v552 = vld [vmem:[%s284 + $0x6b0] sm:$0xff]
        %v553 = vld [vmem:[%s284 + $0x6b8] sm:$0xff]
        %v554 = vld [vmem:[%s284 + $0x6c0] sm:$0xff]
        %v555 = vld [vmem:[%s284 + $0x6c8] sm:$0xff]
        %v556 = vld [vmem:[%s284 + $0x6d0] sm:$0xff]
        %v557 = vld [vmem:[%s284 + $0x6d8] sm:$0xff]
        %v558 = vld [vmem:[%s284 + $0x6e0] sm:$0xff]
        %v559 = vld [vmem:[%s284 + $0x6e8] sm:$0xff]
        %v560 = vld [vmem:[%s284 + $0x6f0] sm:$0xff]
        %v561 = vld [vmem:[%s284 + $0x6f8] sm:$0xff]
        %v562 = vld [vmem:[%s284 + $0x700] sm:$0xff]
        %v563 = vld [vmem:[%s284 + $0x708] sm:$0xff]
        %v564 = vld [vmem:[%s284 + $0x710] sm:$0xff]
        %v565 = vld [vmem:[%s284 + $0x718] sm:$0xff]
        %v566 = vld [vmem:[%s284 + $0x720] sm:$0xff]
        %v567 = vld [vmem:[%s284 + $0x728] sm:$0xff]
        %v568 = vld [vmem:[%s284 + $0x730] sm:$0xff]
        %v569 = vld [vmem:[%s284 + $0x738] sm:$0xff]
        %v570 = vld [vmem:[%s284 + $0x740] sm:$0xff]
        %v571 = vld [vmem:[%s284 + $0x748] sm:$0xff]
        %v572 = vld [vmem:[%s284 + $0x750] sm:$0xff]
        %v573 = vld [vmem:[%s284 + $0x758] sm:$0xff]
        %v574 = vld [vmem:[%s284 + $0x760] sm:$0xff]
        %v575 = vld [vmem:[%s284 + $0x768] sm:$0xff]
        %v576 = vld [vmem:[%s284 + $0x770] sm:$0xff]
        %v577 = vld [vmem:[%s284 + $0x778] sm:$0xff]
        %v578 = vld [vmem:[%s284 + $0x780] sm:$0xff]
        %v579 = vld [vmem:[%s284 + $0x788] sm:$0xff]
        %v580 = vld [vmem:[%s284 + $0x790] sm:$0xff]
        %v581 = vld [vmem:[%s284 + $0x798] sm:$0xff]
        %v582 = vld [vmem:[%s284 + $0x7a0] sm:$0xff]
        %v583 = vld [vmem:[%s284 + $0x7a8] sm:$0xff]
        %v584 = vld [vmem:[%s284 + $0x7b0] sm:$0xff]
        %v585 = vld [vmem:[%s284 + $0x7b8] sm:$0xff]
        %v586 = vld [vmem:[%s284 + $0x7c0] sm:$0xff]
        %v587 = vld [vmem:[%s284 + $0x7c8] sm:$0xff]
        %v588 = vld [vmem:[%s284 + $0x7d0] sm:$0xff]
        %v589 = vld [vmem:[%s284 + $0x7d8] sm:$0xff]
        %v590 = vld [vmem:[%s284 + $0x7e0] sm:$0xff]
        %v591 = vld [vmem:[%s284 + $0x7e8] sm:$0xff]
        %v592 = vld [vmem:[%s284 + $0x7f0] sm:$0xff]
        %v593 = vld [vmem:[%s284 + $0x7f8] sm:$0xff]
        %v610 = vunpack.c.l.b16 %v322
        %v611 = vunpack.c.h.b16 %v322
        %v612 = vunpack.c.l.b16 %v323
        %v613 = vunpack.c.h.b16 %v323
        %v614 = vunpack.c.l.b16 %v324
        %v615 = vunpack.c.h.b16 %v324
        %v616 = vunpack.c.l.b16 %v325
        %v617 = vunpack.c.h.b16 %v325
        %v618 = vunpack.c.l.b16 %v326
        %v619 = vunpack.c.h.b16 %v326
        %v620 = vunpack.c.l.b16 %v327
        %v621 = vunpack.c.h.b16 %v327
        %v622 = vunpack.c.l.b16 %v328
        %v623 = vunpack.c.h.b16 %v328
        %v624 = vunpack.c.l.b16 %v329
        %v625 = vunpack.c.h.b16 %v329
        %v626 = vunpack.c.l.b16 %v330
        %v627 = vunpack.c.h.b16 %v330
        %v628 = vunpack.c.l.b16 %v331
        %v629 = vunpack.c.h.b16 %v331
        %v630 = vunpack.c.l.b16 %v332
        %v631 = vunpack.c.h.b16 %v332
        %v632 = vunpack.c.l.b16 %v333
        %v633 = vunpack.c.h.b16 %v333
        %v634 = vunpack.c.l.b16 %v334
        %v635 = vunpack.c.h.b16 %v334
        %v636 = vunpack.c.l.b16 %v335
        %v637 = vunpack.c.h.b16 %v335
        %v638 = vunpack.c.l.b16 %v336
        %v639 = vunpack.c.h.b16 %v336
        %v640 = vunpack.c.l.b16 %v337
        %v641 = vunpack.c.h.b16 %v337
        %v642 = vpack.c.b16 %v618, %v610
        %v643 = vpack.c.b16 %v619, %v611
        %v644 = vpack.c.b16 %v620, %v612
        %v645 = vpack.c.b16 %v621, %v613
        %v646 = vpack.c.b16 %v622, %v614
        %v647 = vpack.c.b16 %v623, %v615
        %v648 = vpack.c.b16 %v624, %v616
        %v649 = vpack.c.b16 %v625, %v617
        %v650 = vpack.c.b16 %v634, %v626
        %v651 = vpack.c.b16 %v635, %v627
        %v652 = vpack.c.b16 %v636, %v628
        %v653 = vpack.c.b16 %v637, %v629
        %v654 = vpack.c.b16 %v638, %v630
        %v655 = vpack.c.b16 %v639, %v631
        %v656 = vpack.c.b16 %v640, %v632
        %v657 = vpack.c.b16 %v641, %v633
        %v930 = vunpack.c.l.b16 %v338
        %v931 = vunpack.c.h.b16 %v338
        %v932 = vunpack.c.l.b16 %v339
        %v933 = vunpack.c.h.b16 %v339
        %v934 = vunpack.c.l.b16 %v340
        %v935 = vunpack.c.h.b16 %v340
        %v936 = vunpack.c.l.b16 %v341
        %v937 = vunpack.c.h.b16 %v341
        %v938 = vunpack.c.l.b16 %v342
        %v939 = vunpack.c.h.b16 %v342
        %v940 = vunpack.c.l.b16 %v343
        %v941 = vunpack.c.h.b16 %v343
        %v942 = vunpack.c.l.b16 %v344
        %v943 = vunpack.c.h.b16 %v344
        %v944 = vunpack.c.l.b16 %v345
        %v945 = vunpack.c.h.b16 %v345
        %v946 = vunpack.c.l.b16 %v346
        %v947 = vunpack.c.h.b16 %v346
        %v948 = vunpack.c.l.b16 %v347
        %v949 = vunpack.c.h.b16 %v347
        %v950 = vunpack.c.l.b16 %v348
        %v951 = vunpack.c.h.b16 %v348
        %v952 = vunpack.c.l.b16 %v349
        %v953 = vunpack.c.h.b16 %v349
        %v954 = vunpack.c.l.b16 %v350
        %v955 = vunpack.c.h.b16 %v350
        %v956 = vunpack.c.l.b16 %v351
        %v957 = vunpack.c.h.b16 %v351
        %v958 = vunpack.c.l.b16 %v352
        %v959 = vunpack.c.h.b16 %v352
        %v960 = vunpack.c.l.b16 %v353
        %v961 = vunpack.c.h.b16 %v353
        %v962 = vunpack.c.l.b16 %v354
        %v963 = vunpack.c.h.b16 %v354
        %v964 = vunpack.c.l.b16 %v355
        %v965 = vunpack.c.h.b16 %v355
        %v966 = vunpack.c.l.b16 %v356
        %v967 = vunpack.c.h.b16 %v356
        %v968 = vunpack.c.l.b16 %v357
        %v969 = vunpack.c.h.b16 %v357
        %v970 = vunpack.c.l.b16 %v358
        %v971 = vunpack.c.h.b16 %v358
        %v972 = vunpack.c.l.b16 %v359
        %v973 = vunpack.c.h.b16 %v359
        %v974 = vunpack.c.l.b16 %v360
        %v975 = vunpack.c.h.b16 %v360
        %v976 = vunpack.c.l.b16 %v361
        %v977 = vunpack.c.h.b16 %v361
        %v978 = vunpack.c.l.b16 %v362
        %v979 = vunpack.c.h.b16 %v362
        %v980 = vunpack.c.l.b16 %v363
        %v981 = vunpack.c.h.b16 %v363
        %v982 = vunpack.c.l.b16 %v364
        %v983 = vunpack.c.h.b16 %v364
        %v984 = vunpack.c.l.b16 %v365
        %v985 = vunpack.c.h.b16 %v365
        %v986 = vunpack.c.l.b16 %v366
        %v987 = vunpack.c.h.b16 %v366
        %v988 = vunpack.c.l.b16 %v367
        %v989 = vunpack.c.h.b16 %v367
        %v990 = vunpack.c.l.b16 %v368
        %v991 = vunpack.c.h.b16 %v368
        %v992 = vunpack.c.l.b16 %v369
        %v993 = vunpack.c.h.b16 %v369
        %v994 = vunpack.c.l.b16 %v370
        %v995 = vunpack.c.h.b16 %v370
        %v996 = vunpack.c.l.b16 %v371
        %v997 = vunpack.c.h.b16 %v371
        %v998 = vunpack.c.l.b16 %v372
        %v999 = vunpack.c.h.b16 %v372
        %v1000 = vunpack.c.l.b16 %v373
        %v1001 = vunpack.c.h.b16 %v373
        %v1002 = vunpack.c.l.b16 %v374
        %v1003 = vunpack.c.h.b16 %v374
        %v1004 = vunpack.c.l.b16 %v375
        %v1005 = vunpack.c.h.b16 %v375
        %v1006 = vunpack.c.l.b16 %v376
        %v1007 = vunpack.c.h.b16 %v376
        %v1008 = vunpack.c.l.b16 %v377
        %v1009 = vunpack.c.h.b16 %v377
        %v1010 = vunpack.c.l.b16 %v378
        %v1011 = vunpack.c.h.b16 %v378
        %v1012 = vunpack.c.l.b16 %v379
        %v1013 = vunpack.c.h.b16 %v379
        %v1014 = vunpack.c.l.b16 %v380
        %v1015 = vunpack.c.h.b16 %v380
        %v1016 = vunpack.c.l.b16 %v381
        %v1017 = vunpack.c.h.b16 %v381
        %v1018 = vunpack.c.l.b16 %v382
        %v1019 = vunpack.c.h.b16 %v382
        %v1020 = vunpack.c.l.b16 %v383
        %v1021 = vunpack.c.h.b16 %v383
        %v1022 = vunpack.c.l.b16 %v384
        %v1023 = vunpack.c.h.b16 %v384
        %v1024 = vunpack.c.l.b16 %v385
        %v1025 = vunpack.c.h.b16 %v385
        %v1026 = vunpack.c.l.b16 %v386
        %v1027 = vunpack.c.h.b16 %v386
        %v1028 = vunpack.c.l.b16 %v387
        %v1029 = vunpack.c.h.b16 %v387
        %v1030 = vunpack.c.l.b16 %v388
        %v1031 = vunpack.c.h.b16 %v388
        %v1032 = vunpack.c.l.b16 %v389
        %v1033 = vunpack.c.h.b16 %v389
        %v1034 = vunpack.c.l.b16 %v390
        %v1035 = vunpack.c.h.b16 %v390
        %v1036 = vunpack.c.l.b16 %v391
        %v1037 = vunpack.c.h.b16 %v391
        %v1038 = vunpack.c.l.b16 %v392
        %v1039 = vunpack.c.h.b16 %v392
        %v1040 = vunpack.c.l.b16 %v393
        %v1041 = vunpack.c.h.b16 %v393
        %v1042 = vunpack.c.l.b16 %v394
        %v1043 = vunpack.c.h.b16 %v394
        %v1044 = vunpack.c.l.b16 %v395
        %v1045 = vunpack.c.h.b16 %v395
        %v1046 = vunpack.c.l.b16 %v396
        %v1047 = vunpack.c.h.b16 %v396
        %v1048 = vunpack.c.l.b16 %v397
        %v1049 = vunpack.c.h.b16 %v397
        %v1050 = vunpack.c.l.b16 %v398
        %v1051 = vunpack.c.h.b16 %v398
        %v1052 = vunpack.c.l.b16 %v399
        %v1053 = vunpack.c.h.b16 %v399
        %v1054 = vunpack.c.l.b16 %v400
        %v1055 = vunpack.c.h.b16 %v400
        %v1056 = vunpack.c.l.b16 %v401
        %v1057 = vunpack.c.h.b16 %v401
        %v1058 = vunpack.c.l.b16 %v402
        %v1059 = vunpack.c.h.b16 %v402
        %v1060 = vunpack.c.l.b16 %v403
        %v1061 = vunpack.c.h.b16 %v403
        %v1062 = vunpack.c.l.b16 %v404
        %v1063 = vunpack.c.h.b16 %v404
        %v1064 = vunpack.c.l.b16 %v405
        %v1065 = vunpack.c.h.b16 %v405
        %v1066 = vunpack.c.l.b16 %v406
        %v1067 = vunpack.c.h.b16 %v406
        %v1068 = vunpack.c.l.b16 %v407
        %v1069 = vunpack.c.h.b16 %v407
        %v1070 = vunpack.c.l.b16 %v408
        %v1071 = vunpack.c.h.b16 %v408
        %v1072 = vunpack.c.l.b16 %v409
        %v1073 = vunpack.c.h.b16 %v409
        %v1074 = vunpack.c.l.b16 %v410
        %v1075 = vunpack.c.h.b16 %v410
        %v1076 = vunpack.c.l.b16 %v411
        %v1077 = vunpack.c.h.b16 %v411
        %v1078 = vunpack.c.l.b16 %v412
        %v1079 = vunpack.c.h.b16 %v412
        %v1080 = vunpack.c.l.b16 %v413
        %v1081 = vunpack.c.h.b16 %v413
        %v1082 = vunpack.c.l.b16 %v414
        %v1083 = vunpack.c.h.b16 %v414
        %v1084 = vunpack.c.l.b16 %v415
        %v1085 = vunpack.c.h.b16 %v415
        %v1086 = vunpack.c.l.b16 %v416
        %v1087 = vunpack.c.h.b16 %v416
        %v1088 = vunpack.c.l.b16 %v417
        %v1089 = vunpack.c.h.b16 %v417
        %v1090 = vunpack.c.l.b16 %v418
        %v1091 = vunpack.c.h.b16 %v418
        %v1092 = vunpack.c.l.b16 %v419
        %v1093 = vunpack.c.h.b16 %v419
        %v1094 = vunpack.c.l.b16 %v420
        %v1095 = vunpack.c.h.b16 %v420
        %v1096 = vunpack.c.l.b16 %v421
        %v1097 = vunpack.c.h.b16 %v421
        %v1098 = vunpack.c.l.b16 %v422
        %v1099 = vunpack.c.h.b16 %v422
        %v1100 = vunpack.c.l.b16 %v423
        %v1101 = vunpack.c.h.b16 %v423
        %v1102 = vunpack.c.l.b16 %v424
        %v1103 = vunpack.c.h.b16 %v424
        %v1104 = vunpack.c.l.b16 %v425
        %v1105 = vunpack.c.h.b16 %v425
        %v1106 = vunpack.c.l.b16 %v426
        %v1107 = vunpack.c.h.b16 %v426
        %v1108 = vunpack.c.l.b16 %v427
        %v1109 = vunpack.c.h.b16 %v427
        %v1110 = vunpack.c.l.b16 %v428
        %v1111 = vunpack.c.h.b16 %v428
        %v1112 = vunpack.c.l.b16 %v429
        %v1113 = vunpack.c.h.b16 %v429
        %v1114 = vunpack.c.l.b16 %v430
        %v1115 = vunpack.c.h.b16 %v430
        %v1116 = vunpack.c.l.b16 %v431
        %v1117 = vunpack.c.h.b16 %v431
        %v1118 = vunpack.c.l.b16 %v432
        %v1119 = vunpack.c.h.b16 %v432
        %v1120 = vunpack.c.l.b16 %v433
        %v1121 = vunpack.c.h.b16 %v433
        %v1122 = vunpack.c.l.b16 %v434
        %v1123 = vunpack.c.h.b16 %v434
        %v1124 = vunpack.c.l.b16 %v435
        %v1125 = vunpack.c.h.b16 %v435
        %v1126 = vunpack.c.l.b16 %v436
        %v1127 = vunpack.c.h.b16 %v436
        %v1128 = vunpack.c.l.b16 %v437
        %v1129 = vunpack.c.h.b16 %v437
        %v1130 = vunpack.c.l.b16 %v438
        %v1131 = vunpack.c.h.b16 %v438
        %v1132 = vunpack.c.l.b16 %v439
        %v1133 = vunpack.c.h.b16 %v439
        %v1134 = vunpack.c.l.b16 %v440
        %v1135 = vunpack.c.h.b16 %v440
        %v1136 = vunpack.c.l.b16 %v441
        %v1137 = vunpack.c.h.b16 %v441
        %v1138 = vunpack.c.l.b16 %v442
        %v1139 = vunpack.c.h.b16 %v442
        %v1140 = vunpack.c.l.b16 %v443
        %v1141 = vunpack.c.h.b16 %v443
        %v1142 = vunpack.c.l.b16 %v444
        %v1143 = vunpack.c.h.b16 %v444
        %v1144 = vunpack.c.l.b16 %v445
        %v1145 = vunpack.c.h.b16 %v445
        %v1146 = vunpack.c.l.b16 %v446
        %v1147 = vunpack.c.h.b16 %v446
        %v1148 = vunpack.c.l.b16 %v447
        %v1149 = vunpack.c.h.b16 %v447
        %v1150 = vunpack.c.l.b16 %v448
        %v1151 = vunpack.c.h.b16 %v448
        %v1152 = vunpack.c.l.b16 %v449
        %v1153 = vunpack.c.h.b16 %v449
        %v1154 = vunpack.c.l.b16 %v450
        %v1155 = vunpack.c.h.b16 %v450
        %v1156 = vunpack.c.l.b16 %v451
        %v1157 = vunpack.c.h.b16 %v451
        %v1158 = vunpack.c.l.b16 %v452
        %v1159 = vunpack.c.h.b16 %v452
        %v1160 = vunpack.c.l.b16 %v453
        %v1161 = vunpack.c.h.b16 %v453
        %v1162 = vunpack.c.l.b16 %v454
        %v1163 = vunpack.c.h.b16 %v454
        %v1164 = vunpack.c.l.b16 %v455
        %v1165 = vunpack.c.h.b16 %v455
        %v1166 = vunpack.c.l.b16 %v456
        %v1167 = vunpack.c.h.b16 %v456
        %v1168 = vunpack.c.l.b16 %v457
        %v1169 = vunpack.c.h.b16 %v457
        %v1170 = vunpack.c.l.b16 %v458
        %v1171 = vunpack.c.h.b16 %v458
        %v1172 = vunpack.c.l.b16 %v459
        %v1173 = vunpack.c.h.b16 %v459
        %v1174 = vunpack.c.l.b16 %v460
        %v1175 = vunpack.c.h.b16 %v460
        %v1176 = vunpack.c.l.b16 %v461
        %v1177 = vunpack.c.h.b16 %v461
        %v1178 = vunpack.c.l.b16 %v462
        %v1179 = vunpack.c.h.b16 %v462
        %v1180 = vunpack.c.l.b16 %v463
        %v1181 = vunpack.c.h.b16 %v463
        %v1182 = vunpack.c.l.b16 %v464
        %v1183 = vunpack.c.h.b16 %v464
        %v1184 = vunpack.c.l.b16 %v465
        %v1185 = vunpack.c.h.b16 %v465
        %v1186 = vunpack.c.l.b16 %v466
        %v1187 = vunpack.c.h.b16 %v466
        %v1188 = vunpack.c.l.b16 %v467
        %v1189 = vunpack.c.h.b16 %v467
        %v1190 = vunpack.c.l.b16 %v468
        %v1191 = vunpack.c.h.b16 %v468
        %v1192 = vunpack.c.l.b16 %v469
        %v1193 = vunpack.c.h.b16 %v469
        %v1194 = vunpack.c.l.b16 %v470
        %v1195 = vunpack.c.h.b16 %v470
        %v1196 = vunpack.c.l.b16 %v471
        %v1197 = vunpack.c.h.b16 %v471
        %v1198 = vunpack.c.l.b16 %v472
        %v1199 = vunpack.c.h.b16 %v472
        %v1200 = vunpack.c.l.b16 %v473
        %v1201 = vunpack.c.h.b16 %v473
        %v1202 = vunpack.c.l.b16 %v474
        %v1203 = vunpack.c.h.b16 %v474
        %v1204 = vunpack.c.l.b16 %v475
        %v1205 = vunpack.c.h.b16 %v475
        %v1206 = vunpack.c.l.b16 %v476
        %v1207 = vunpack.c.h.b16 %v476
        %v1208 = vunpack.c.l.b16 %v477
        %v1209 = vunpack.c.h.b16 %v477
        %v1210 = vunpack.c.l.b16 %v478
        %v1211 = vunpack.c.h.b16 %v478
        %v1212 = vunpack.c.l.b16 %v479
        %v1213 = vunpack.c.h.b16 %v479
        %v1214 = vunpack.c.l.b16 %v480
        %v1215 = vunpack.c.h.b16 %v480
        %v1216 = vunpack.c.l.b16 %v481
        %v1217 = vunpack.c.h.b16 %v481
        %v1218 = vunpack.c.l.b16 %v482
        %v1219 = vunpack.c.h.b16 %v482
        %v1220 = vunpack.c.l.b16 %v483
        %v1221 = vunpack.c.h.b16 %v483
        %v1222 = vunpack.c.l.b16 %v484
        %v1223 = vunpack.c.h.b16 %v484
        %v1224 = vunpack.c.l.b16 %v485
        %v1225 = vunpack.c.h.b16 %v485
        %v1226 = vunpack.c.l.b16 %v486
        %v1227 = vunpack.c.h.b16 %v486
        %v1228 = vunpack.c.l.b16 %v487
        %v1229 = vunpack.c.h.b16 %v487
        %v1230 = vunpack.c.l.b16 %v488
        %v1231 = vunpack.c.h.b16 %v488
        %v1232 = vunpack.c.l.b16 %v489
        %v1233 = vunpack.c.h.b16 %v489
        %v1234 = vunpack.c.l.b16 %v490
        %v1235 = vunpack.c.h.b16 %v490
        %v1236 = vunpack.c.l.b16 %v491
        %v1237 = vunpack.c.h.b16 %v491
        %v1238 = vunpack.c.l.b16 %v492
        %v1239 = vunpack.c.h.b16 %v492
        %v1240 = vunpack.c.l.b16 %v493
        %v1241 = vunpack.c.h.b16 %v493
        %v1242 = vunpack.c.l.b16 %v494
        %v1243 = vunpack.c.h.b16 %v494
        %v1244 = vunpack.c.l.b16 %v495
        %v1245 = vunpack.c.h.b16 %v495
        %v1246 = vunpack.c.l.b16 %v496
        %v1247 = vunpack.c.h.b16 %v496
        %v1248 = vunpack.c.l.b16 %v497
        %v1249 = vunpack.c.h.b16 %v497
        %v1250 = vunpack.c.l.b16 %v498
        %v1251 = vunpack.c.h.b16 %v498
        %v1252 = vunpack.c.l.b16 %v499
        %v1253 = vunpack.c.h.b16 %v499
        %v1254 = vunpack.c.l.b16 %v500
        %v1255 = vunpack.c.h.b16 %v500
        %v1256 = vunpack.c.l.b16 %v501
        %v1257 = vunpack.c.h.b16 %v501
        %v1258 = vunpack.c.l.b16 %v502
        %v1259 = vunpack.c.h.b16 %v502
        %v1260 = vunpack.c.l.b16 %v503
        %v1261 = vunpack.c.h.b16 %v503
        %v1262 = vunpack.c.l.b16 %v504
        %v1263 = vunpack.c.h.b16 %v504
        %v1264 = vunpack.c.l.b16 %v505
        %v1265 = vunpack.c.h.b16 %v505
        %v1266 = vunpack.c.l.b16 %v506
        %v1267 = vunpack.c.h.b16 %v506
        %v1268 = vunpack.c.l.b16 %v507
        %v1269 = vunpack.c.h.b16 %v507
        %v1270 = vunpack.c.l.b16 %v508
        %v1271 = vunpack.c.h.b16 %v508
        %v1272 = vunpack.c.l.b16 %v509
        %v1273 = vunpack.c.h.b16 %v509
        %v1274 = vunpack.c.l.b16 %v510
        %v1275 = vunpack.c.h.b16 %v510
        %v1276 = vunpack.c.l.b16 %v511
        %v1277 = vunpack.c.h.b16 %v511
        %v1278 = vunpack.c.l.b16 %v512
        %v1279 = vunpack.c.h.b16 %v512
        %v1280 = vunpack.c.l.b16 %v513
        %v1281 = vunpack.c.h.b16 %v513
        %v1282 = vunpack.c.l.b16 %v514
        %v1283 = vunpack.c.h.b16 %v514
        %v1284 = vunpack.c.l.b16 %v515
        %v1285 = vunpack.c.h.b16 %v515
        %v1286 = vunpack.c.l.b16 %v516
        %v1287 = vunpack.c.h.b16 %v516
        %v1288 = vunpack.c.l.b16 %v517
        %v1289 = vunpack.c.h.b16 %v517
        %v1290 = vunpack.c.l.b16 %v518
        %v1291 = vunpack.c.h.b16 %v518
        %v1292 = vunpack.c.l.b16 %v519
        %v1293 = vunpack.c.h.b16 %v519
        %v1294 = vunpack.c.l.b16 %v520
        %v1295 = vunpack.c.h.b16 %v520
        %v1296 = vunpack.c.l.b16 %v521
        %v1297 = vunpack.c.h.b16 %v521
        %v1298 = vunpack.c.l.b16 %v522
        %v1299 = vunpack.c.h.b16 %v522
        %v1300 = vunpack.c.l.b16 %v523
        %v1301 = vunpack.c.h.b16 %v523
        %v1302 = vunpack.c.l.b16 %v524
        %v1303 = vunpack.c.h.b16 %v524
        %v1304 = vunpack.c.l.b16 %v525
        %v1305 = vunpack.c.h.b16 %v525
        %v1306 = vunpack.c.l.b16 %v526
        %v1307 = vunpack.c.h.b16 %v526
        %v1308 = vunpack.c.l.b16 %v527
        %v1309 = vunpack.c.h.b16 %v527
        %v1310 = vunpack.c.l.b16 %v528
        %v1311 = vunpack.c.h.b16 %v528
        %v1312 = vunpack.c.l.b16 %v529
        %v1313 = vunpack.c.h.b16 %v529
        %v1314 = vunpack.c.l.b16 %v530
        %v1315 = vunpack.c.h.b16 %v530
        %v1316 = vunpack.c.l.b16 %v531
        %v1317 = vunpack.c.h.b16 %v531
        %v1318 = vunpack.c.l.b16 %v532
        %v1319 = vunpack.c.h.b16 %v532
        %v1320 = vunpack.c.l.b16 %v533
        %v1321 = vunpack.c.h.b16 %v533
        %v1322 = vunpack.c.l.b16 %v534
        %v1323 = vunpack.c.h.b16 %v534
        %v1324 = vunpack.c.l.b16 %v535
        %v1325 = vunpack.c.h.b16 %v535
        %v1326 = vunpack.c.l.b16 %v536
        %v1327 = vunpack.c.h.b16 %v536
        %v1328 = vunpack.c.l.b16 %v537
        %v1329 = vunpack.c.h.b16 %v537
        %v1330 = vunpack.c.l.b16 %v538
        %v1331 = vunpack.c.h.b16 %v538
        %v1332 = vunpack.c.l.b16 %v539
        %v1333 = vunpack.c.h.b16 %v539
        %v1334 = vunpack.c.l.b16 %v540
        %v1335 = vunpack.c.h.b16 %v540
        %v1336 = vunpack.c.l.b16 %v541
        %v1337 = vunpack.c.h.b16 %v541
        %v1338 = vunpack.c.l.b16 %v542
        %v1339 = vunpack.c.h.b16 %v542
        %v1340 = vunpack.c.l.b16 %v543
        %v1341 = vunpack.c.h.b16 %v543
        %v1342 = vunpack.c.l.b16 %v544
        %v1343 = vunpack.c.h.b16 %v544
        %v1344 = vunpack.c.l.b16 %v545
        %v1345 = vunpack.c.h.b16 %v545
        %v1346 = vunpack.c.l.b16 %v546
        %v1347 = vunpack.c.h.b16 %v546
        %v1348 = vunpack.c.l.b16 %v547
        %v1349 = vunpack.c.h.b16 %v547
        %v1350 = vunpack.c.l.b16 %v548
        %v1351 = vunpack.c.h.b16 %v548
        %v1352 = vunpack.c.l.b16 %v549
        %v1353 = vunpack.c.h.b16 %v549
        %v1354 = vunpack.c.l.b16 %v550
        %v1355 = vunpack.c.h.b16 %v550
        %v1356 = vunpack.c.l.b16 %v551
        %v1357 = vunpack.c.h.b16 %v551
        %v1358 = vunpack.c.l.b16 %v552
        %v1359 = vunpack.c.h.b16 %v552
        %v1360 = vunpack.c.l.b16 %v553
        %v1361 = vunpack.c.h.b16 %v553
        %v1362 = vunpack.c.l.b16 %v554
        %v1363 = vunpack.c.h.b16 %v554
        %v1364 = vunpack.c.l.b16 %v555
        %v1365 = vunpack.c.h.b16 %v555
        %v1366 = vunpack.c.l.b16 %v556
        %v1367 = vunpack.c.h.b16 %v556
        %v1368 = vunpack.c.l.b16 %v557
        %v1369 = vunpack.c.h.b16 %v557
        %v1370 = vunpack.c.l.b16 %v558
        %v1371 = vunpack.c.h.b16 %v558
        %v1372 = vunpack.c.l.b16 %v559
        %v1373 = vunpack.c.h.b16 %v559
        %v1374 = vunpack.c.l.b16 %v560
        %v1375 = vunpack.c.h.b16 %v560
        %v1376 = vunpack.c.l.b16 %v561
        %v1377 = vunpack.c.h.b16 %v561
        %v1378 = vunpack.c.l.b16 %v562
        %v1379 = vunpack.c.h.b16 %v562
        %v1380 = vunpack.c.l.b16 %v563
        %v1381 = vunpack.c.h.b16 %v563
        %v1382 = vunpack.c.l.b16 %v564
        %v1383 = vunpack.c.h.b16 %v564
        %v1384 = vunpack.c.l.b16 %v565
        %v1385 = vunpack.c.h.b16 %v565
        %v1386 = vunpack.c.l.b16 %v566
        %v1387 = vunpack.c.h.b16 %v566
        %v1388 = vunpack.c.l.b16 %v567
        %v1389 = vunpack.c.h.b16 %v567
        %v1390 = vunpack.c.l.b16 %v568
        %v1391 = vunpack.c.h.b16 %v568
        %v1392 = vunpack.c.l.b16 %v569
        %v1393 = vunpack.c.h.b16 %v569
        %v1394 = vunpack.c.l.b16 %v570
        %v1395 = vunpack.c.h.b16 %v570
        %v1396 = vunpack.c.l.b16 %v571
        %v1397 = vunpack.c.h.b16 %v571
        %v1398 = vunpack.c.l.b16 %v572
        %v1399 = vunpack.c.h.b16 %v572
        %v1400 = vunpack.c.l.b16 %v573
        %v1401 = vunpack.c.h.b16 %v573
        %v1402 = vunpack.c.l.b16 %v574
        %v1403 = vunpack.c.h.b16 %v574
        %v1404 = vunpack.c.l.b16 %v575
        %v1405 = vunpack.c.h.b16 %v575
        %v1406 = vunpack.c.l.b16 %v576
        %v1407 = vunpack.c.h.b16 %v576
        %v1408 = vunpack.c.l.b16 %v577
        %v1409 = vunpack.c.h.b16 %v577
        %v1410 = vunpack.c.l.b16 %v578
        %v1411 = vunpack.c.h.b16 %v578
        %v1412 = vunpack.c.l.b16 %v579
        %v1413 = vunpack.c.h.b16 %v579
        %v1414 = vunpack.c.l.b16 %v580
        %v1415 = vunpack.c.h.b16 %v580
        %v1416 = vunpack.c.l.b16 %v581
        %v1417 = vunpack.c.h.b16 %v581
        %v1418 = vunpack.c.l.b16 %v582
        %v1419 = vunpack.c.h.b16 %v582
        %v1420 = vunpack.c.l.b16 %v583
        %v1421 = vunpack.c.h.b16 %v583
        %v1422 = vunpack.c.l.b16 %v584
        %v1423 = vunpack.c.h.b16 %v584
        %v1424 = vunpack.c.l.b16 %v585
        %v1425 = vunpack.c.h.b16 %v585
        %v1426 = vunpack.c.l.b16 %v586
        %v1427 = vunpack.c.h.b16 %v586
        %v1428 = vunpack.c.l.b16 %v587
        %v1429 = vunpack.c.h.b16 %v587
        %v1430 = vunpack.c.l.b16 %v588
        %v1431 = vunpack.c.h.b16 %v588
        %v1432 = vunpack.c.l.b16 %v589
        %v1433 = vunpack.c.h.b16 %v589
        %v1434 = vunpack.c.l.b16 %v590
        %v1435 = vunpack.c.h.b16 %v590
        %v1436 = vunpack.c.l.b16 %v591
        %v1437 = vunpack.c.h.b16 %v591
        %v1438 = vunpack.c.l.b16 %v592
        %v1439 = vunpack.c.h.b16 %v592
        %v1440 = vunpack.c.l.b16 %v593
        %v1441 = vunpack.c.h.b16 %v593
        %v1442 = vpack.c.b16 %v934, %v930
        %v1443 = vpack.c.b16 %v935, %v931
        %v1444 = vpack.c.b16 %v936, %v932
        %v1445 = vpack.c.b16 %v937, %v933
        %v1446 = vpack.c.b16 %v942, %v938
        %v1447 = vpack.c.b16 %v943, %v939
        %v1448 = vpack.c.b16 %v944, %v940
        %v1449 = vpack.c.b16 %v945, %v941
        %v1450 = vpack.c.b16 %v950, %v946
        %v1451 = vpack.c.b16 %v951, %v947
        %v1452 = vpack.c.b16 %v952, %v948
        %v1453 = vpack.c.b16 %v953, %v949
        %v1454 = vpack.c.b16 %v958, %v954
        %v1455 = vpack.c.b16 %v959, %v955
        %v1456 = vpack.c.b16 %v960, %v956
        %v1457 = vpack.c.b16 %v961, %v957
        %v1458 = vpack.c.b16 %v966, %v962
        %v1459 = vpack.c.b16 %v967, %v963
        %v1460 = vpack.c.b16 %v968, %v964
        %v1461 = vpack.c.b16 %v969, %v965
        %v1462 = vpack.c.b16 %v974, %v970
        %v1463 = vpack.c.b16 %v975, %v971
        %v1464 = vpack.c.b16 %v976, %v972
        %v1465 = vpack.c.b16 %v977, %v973
        %v1466 = vpack.c.b16 %v982, %v978
        %v1467 = vpack.c.b16 %v983, %v979
        %v1468 = vpack.c.b16 %v984, %v980
        %v1469 = vpack.c.b16 %v985, %v981
        %v1470 = vpack.c.b16 %v990, %v986
        %v1471 = vpack.c.b16 %v991, %v987
        %v1472 = vpack.c.b16 %v992, %v988
        %v1473 = vpack.c.b16 %v993, %v989
        %v1474 = vpack.c.b16 %v998, %v994
        %v1475 = vpack.c.b16 %v999, %v995
        %v1476 = vpack.c.b16 %v1000, %v996
        %v1477 = vpack.c.b16 %v1001, %v997
        %v1478 = vpack.c.b16 %v1006, %v1002
        %v1479 = vpack.c.b16 %v1007, %v1003
        %v1480 = vpack.c.b16 %v1008, %v1004
        %v1481 = vpack.c.b16 %v1009, %v1005
        %v1482 = vpack.c.b16 %v1014, %v1010
        %v1483 = vpack.c.b16 %v1015, %v1011
        %v1484 = vpack.c.b16 %v1016, %v1012
        %v1485 = vpack.c.b16 %v1017, %v1013
        %v1486 = vpack.c.b16 %v1022, %v1018
        %v1487 = vpack.c.b16 %v1023, %v1019
        %v1488 = vpack.c.b16 %v1024, %v1020
        %v1489 = vpack.c.b16 %v1025, %v1021
        %v1490 = vpack.c.b16 %v1030, %v1026
        %v1491 = vpack.c.b16 %v1031, %v1027
        %v1492 = vpack.c.b16 %v1032, %v1028
        %v1493 = vpack.c.b16 %v1033, %v1029
        %v1494 = vpack.c.b16 %v1038, %v1034
        %v1495 = vpack.c.b16 %v1039, %v1035
        %v1496 = vpack.c.b16 %v1040, %v1036
        %v1497 = vpack.c.b16 %v1041, %v1037
        %v1498 = vpack.c.b16 %v1046, %v1042
        %v1499 = vpack.c.b16 %v1047, %v1043
        %v1500 = vpack.c.b16 %v1048, %v1044
        %v1501 = vpack.c.b16 %v1049, %v1045
        %v1502 = vpack.c.b16 %v1054, %v1050
        %v1503 = vpack.c.b16 %v1055, %v1051
        %v1504 = vpack.c.b16 %v1056, %v1052
        %v1505 = vpack.c.b16 %v1057, %v1053
        %v1506 = vpack.c.b16 %v1062, %v1058
        %v1507 = vpack.c.b16 %v1063, %v1059
        %v1508 = vpack.c.b16 %v1064, %v1060
        %v1509 = vpack.c.b16 %v1065, %v1061
        %v1510 = vpack.c.b16 %v1070, %v1066
        %v1511 = vpack.c.b16 %v1071, %v1067
        %v1512 = vpack.c.b16 %v1072, %v1068
        %v1513 = vpack.c.b16 %v1073, %v1069
        %v1514 = vpack.c.b16 %v1078, %v1074
        %v1515 = vpack.c.b16 %v1079, %v1075
        %v1516 = vpack.c.b16 %v1080, %v1076
        %v1517 = vpack.c.b16 %v1081, %v1077
        %v1518 = vpack.c.b16 %v1086, %v1082
        %v1519 = vpack.c.b16 %v1087, %v1083
        %v1520 = vpack.c.b16 %v1088, %v1084
        %v1521 = vpack.c.b16 %v1089, %v1085
        %v1522 = vpack.c.b16 %v1094, %v1090
        %v1523 = vpack.c.b16 %v1095, %v1091
        %v1524 = vpack.c.b16 %v1096, %v1092
        %v1525 = vpack.c.b16 %v1097, %v1093
        %v1526 = vpack.c.b16 %v1102, %v1098
        %v1527 = vpack.c.b16 %v1103, %v1099
        %v1528 = vpack.c.b16 %v1104, %v1100
        %v1529 = vpack.c.b16 %v1105, %v1101
        %v1530 = vpack.c.b16 %v1110, %v1106
        %v1531 = vpack.c.b16 %v1111, %v1107
        %v1532 = vpack.c.b16 %v1112, %v1108
        %v1533 = vpack.c.b16 %v1113, %v1109
        %v1534 = vpack.c.b16 %v1118, %v1114
        %v1535 = vpack.c.b16 %v1119, %v1115
        %v1536 = vpack.c.b16 %v1120, %v1116
        %v1537 = vpack.c.b16 %v1121, %v1117
        %v1538 = vpack.c.b16 %v1126, %v1122
        %v1539 = vpack.c.b16 %v1127, %v1123
        %v1540 = vpack.c.b16 %v1128, %v1124
        %v1541 = vpack.c.b16 %v1129, %v1125
        %v1542 = vpack.c.b16 %v1134, %v1130
        %v1543 = vpack.c.b16 %v1135, %v1131
        %v1544 = vpack.c.b16 %v1136, %v1132
        %v1545 = vpack.c.b16 %v1137, %v1133
        %v1546 = vpack.c.b16 %v1142, %v1138
        %v1547 = vpack.c.b16 %v1143, %v1139
        %v1548 = vpack.c.b16 %v1144, %v1140
        %v1549 = vpack.c.b16 %v1145, %v1141
        %v1550 = vpack.c.b16 %v1150, %v1146
        %v1551 = vpack.c.b16 %v1151, %v1147
        %v1552 = vpack.c.b16 %v1152, %v1148
        %v1553 = vpack.c.b16 %v1153, %v1149
        %v1554 = vpack.c.b16 %v1158, %v1154
        %v1555 = vpack.c.b16 %v1159, %v1155
        %v1556 = vpack.c.b16 %v1160, %v1156
        %v1557 = vpack.c.b16 %v1161, %v1157
        %v1558 = vpack.c.b16 %v1166, %v1162
        %v1559 = vpack.c.b16 %v1167, %v1163
        %v1560 = vpack.c.b16 %v1168, %v1164
        %v1561 = vpack.c.b16 %v1169, %v1165
        %v1562 = vpack.c.b16 %v1174, %v1170
        %v1563 = vpack.c.b16 %v1175, %v1171
        %v1564 = vpack.c.b16 %v1176, %v1172
        %v1565 = vpack.c.b16 %v1177, %v1173
        %v1566 = vpack.c.b16 %v1182, %v1178
        %v1567 = vpack.c.b16 %v1183, %v1179
        %v1568 = vpack.c.b16 %v1184, %v1180
        %v1569 = vpack.c.b16 %v1185, %v1181
        %v1570 = vpack.c.b16 %v1190, %v1186
        %v1571 = vpack.c.b16 %v1191, %v1187
        %v1572 = vpack.c.b16 %v1192, %v1188
        %v1573 = vpack.c.b16 %v1193, %v1189
        %v1574 = vpack.c.b16 %v1198, %v1194
        %v1575 = vpack.c.b16 %v1199, %v1195
        %v1576 = vpack.c.b16 %v1200, %v1196
        %v1577 = vpack.c.b16 %v1201, %v1197
        %v1578 = vpack.c.b16 %v1206, %v1202
        %v1579 = vpack.c.b16 %v1207, %v1203
        %v1580 = vpack.c.b16 %v1208, %v1204
        %v1581 = vpack.c.b16 %v1209, %v1205
        %v1582 = vpack.c.b16 %v1214, %v1210
        %v1583 = vpack.c.b16 %v1215, %v1211
        %v1584 = vpack.c.b16 %v1216, %v1212
        %v1585 = vpack.c.b16 %v1217, %v1213
        %v1586 = vpack.c.b16 %v1222, %v1218
        %v1587 = vpack.c.b16 %v1223, %v1219
        %v1588 = vpack.c.b16 %v1224, %v1220
        %v1589 = vpack.c.b16 %v1225, %v1221
        %v1590 = vpack.c.b16 %v1230, %v1226
        %v1591 = vpack.c.b16 %v1231, %v1227
        %v1592 = vpack.c.b16 %v1232, %v1228
        %v1593 = vpack.c.b16 %v1233, %v1229
        %v1594 = vpack.c.b16 %v1238, %v1234
        %v1595 = vpack.c.b16 %v1239, %v1235
        %v1596 = vpack.c.b16 %v1240, %v1236
        %v1597 = vpack.c.b16 %v1241, %v1237
        %v1598 = vpack.c.b16 %v1246, %v1242
        %v1599 = vpack.c.b16 %v1247, %v1243
        %v1600 = vpack.c.b16 %v1248, %v1244
        %v1601 = vpack.c.b16 %v1249, %v1245
        %v1602 = vpack.c.b16 %v1254, %v1250
        %v1603 = vpack.c.b16 %v1255, %v1251
        %v1604 = vpack.c.b16 %v1256, %v1252
        %v1605 = vpack.c.b16 %v1257, %v1253
        %v1606 = vpack.c.b16 %v1262, %v1258
        %v1607 = vpack.c.b16 %v1263, %v1259
        %v1608 = vpack.c.b16 %v1264, %v1260
        %v1609 = vpack.c.b16 %v1265, %v1261
        %v1610 = vpack.c.b16 %v1270, %v1266
        %v1611 = vpack.c.b16 %v1271, %v1267
        %v1612 = vpack.c.b16 %v1272, %v1268
        %v1613 = vpack.c.b16 %v1273, %v1269
        %v1614 = vpack.c.b16 %v1278, %v1274
        %v1615 = vpack.c.b16 %v1279, %v1275
        %v1616 = vpack.c.b16 %v1280, %v1276
        %v1617 = vpack.c.b16 %v1281, %v1277
        %v1618 = vpack.c.b16 %v1286, %v1282
        %v1619 = vpack.c.b16 %v1287, %v1283
        %v1620 = vpack.c.b16 %v1288, %v1284
        %v1621 = vpack.c.b16 %v1289, %v1285
        %v1622 = vpack.c.b16 %v1294, %v1290
        %v1623 = vpack.c.b16 %v1295, %v1291
        %v1624 = vpack.c.b16 %v1296, %v1292
        %v1625 = vpack.c.b16 %v1297, %v1293
        %v1626 = vpack.c.b16 %v1302, %v1298
        %v1627 = vpack.c.b16 %v1303, %v1299
        %v1628 = vpack.c.b16 %v1304, %v1300
        %v1629 = vpack.c.b16 %v1305, %v1301
        %v1630 = vpack.c.b16 %v1310, %v1306
        %v1631 = vpack.c.b16 %v1311, %v1307
        %v1632 = vpack.c.b16 %v1312, %v1308
        %v1633 = vpack.c.b16 %v1313, %v1309
        %v1634 = vpack.c.b16 %v1318, %v1314
        %v1635 = vpack.c.b16 %v1319, %v1315
        %v1636 = vpack.c.b16 %v1320, %v1316
        %v1637 = vpack.c.b16 %v1321, %v1317
        %v1638 = vpack.c.b16 %v1326, %v1322
        %v1639 = vpack.c.b16 %v1327, %v1323
        %v1640 = vpack.c.b16 %v1328, %v1324
        %v1641 = vpack.c.b16 %v1329, %v1325
        %v1642 = vpack.c.b16 %v1334, %v1330
        %v1643 = vpack.c.b16 %v1335, %v1331
        %v1644 = vpack.c.b16 %v1336, %v1332
        %v1645 = vpack.c.b16 %v1337, %v1333
        %v1646 = vpack.c.b16 %v1342, %v1338
        %v1647 = vpack.c.b16 %v1343, %v1339
        %v1648 = vpack.c.b16 %v1344, %v1340
        %v1649 = vpack.c.b16 %v1345, %v1341
        %v1650 = vpack.c.b16 %v1350, %v1346
        %v1651 = vpack.c.b16 %v1351, %v1347
        %v1652 = vpack.c.b16 %v1352, %v1348
        %v1653 = vpack.c.b16 %v1353, %v1349
        %v1654 = vpack.c.b16 %v1358, %v1354
        %v1655 = vpack.c.b16 %v1359, %v1355
        %v1656 = vpack.c.b16 %v1360, %v1356
        %v1657 = vpack.c.b16 %v1361, %v1357
        %v1658 = vpack.c.b16 %v1366, %v1362
        %v1659 = vpack.c.b16 %v1367, %v1363
        %v1660 = vpack.c.b16 %v1368, %v1364
        %v1661 = vpack.c.b16 %v1369, %v1365
        %v1662 = vpack.c.b16 %v1374, %v1370
        %v1663 = vpack.c.b16 %v1375, %v1371
        %v1664 = vpack.c.b16 %v1376, %v1372
        %v1665 = vpack.c.b16 %v1377, %v1373
        %v1666 = vpack.c.b16 %v1382, %v1378
        %v1667 = vpack.c.b16 %v1383, %v1379
        %v1668 = vpack.c.b16 %v1384, %v1380
        %v1669 = vpack.c.b16 %v1385, %v1381
        %v1670 = vpack.c.b16 %v1390, %v1386
        %v1671 = vpack.c.b16 %v1391, %v1387
        %v1672 = vpack.c.b16 %v1392, %v1388
        %v1673 = vpack.c.b16 %v1393, %v1389
        %v1674 = vpack.c.b16 %v1398, %v1394
        %v1675 = vpack.c.b16 %v1399, %v1395
        %v1676 = vpack.c.b16 %v1400, %v1396
        %v1677 = vpack.c.b16 %v1401, %v1397
        %v1678 = vpack.c.b16 %v1406, %v1402
        %v1679 = vpack.c.b16 %v1407, %v1403
        %v1680 = vpack.c.b16 %v1408, %v1404
        %v1681 = vpack.c.b16 %v1409, %v1405
        %v1682 = vpack.c.b16 %v1414, %v1410
        %v1683 = vpack.c.b16 %v1415, %v1411
        %v1684 = vpack.c.b16 %v1416, %v1412
        %v1685 = vpack.c.b16 %v1417, %v1413
        %v1686 = vpack.c.b16 %v1422, %v1418
        %v1687 = vpack.c.b16 %v1423, %v1419
        %v1688 = vpack.c.b16 %v1424, %v1420
        %v1689 = vpack.c.b16 %v1425, %v1421
        %v1690 = vpack.c.b16 %v1430, %v1426
        %v1691 = vpack.c.b16 %v1431, %v1427
        %v1692 = vpack.c.b16 %v1432, %v1428
        %v1693 = vpack.c.b16 %v1433, %v1429
        %v1694 = vpack.c.b16 %v1438, %v1434
        %v1695 = vpack.c.b16 %v1439, %v1435
        %v1696 = vpack.c.b16 %v1440, %v1436
        %v1697 = vpack.c.b16 %v1441, %v1437
        %1954 = vmatpush.bf16.msra.mxu0 %v1470
        %1955 = vmatpush.bf16.msra.mxu0 %v1466
        %1956 = vmatpush.bf16.msra.mxu0 %v1462
        %1957 = vmatpush.bf16.msra.mxu0 %v1458
        %1958 = vmatpush.bf16.msra.mxu0 %v1454
        %1959 = vmatpush.bf16.msra.mxu0 %v1450
        %1960 = vmatpush.bf16.msra.mxu0 %v1446
        %1961 = vmatpush.bf16.msra.mxu0 %v1442
        %1962 = vmatmul.bf16.gmra.mxu0 %v642
        %v1963 = vpop.f32.mrf.mxu0
        %v1964 = vadd.f32 0.0, %v1963
        %v1965 = vpop.f32.mrf.mxu0
        %v1966 = vadd.f32 0.0, %v1965
        %1967 = vmatmul.bf16.gmra.mxu0 %v650
        %v1968 = vpop.f32.mrf.mxu0
        %v1969 = vadd.f32 0.0, %v1968
        %v1970 = vpop.f32.mrf.mxu0
        %v1971 = vadd.f32 0.0, %v1970
        %1972 = vdwg.mxu0
        %1973 = vmatpush.bf16.msra.mxu0 %v1502
        %1974 = vmatpush.bf16.msra.mxu0 %v1498
        %1975 = vmatpush.bf16.msra.mxu0 %v1494
        %1976 = vmatpush.bf16.msra.mxu0 %v1490
        %1977 = vmatpush.bf16.msra.mxu0 %v1486
        %1978 = vmatpush.bf16.msra.mxu0 %v1482
        %1979 = vmatpush.bf16.msra.mxu0 %v1478
        %1980 = vmatpush.bf16.msra.mxu0 %v1474
        %1981 = vmatmul.bf16.gmra.mxu0 %v643
        %v1982 = vpop.f32.mrf.mxu0
        %v1983 = vadd.f32 %v1964, %v1982
        %v1984 = vpop.f32.mrf.mxu0
        %v1985 = vadd.f32 %v1966, %v1984
        %1986 = vmatmul.bf16.gmra.mxu0 %v651
        %v1987 = vpop.f32.mrf.mxu0
        %v1988 = vadd.f32 %v1969, %v1987
        %v1989 = vpop.f32.mrf.mxu0
        %v1990 = vadd.f32 %v1971, %v1989
        %1991 = vdwg.mxu0
        %1992 = vmatpush.bf16.msra.mxu0 %v1534
        %1993 = vmatpush.bf16.msra.mxu0 %v1530
        %1994 = vmatpush.bf16.msra.mxu0 %v1526
        %1995 = vmatpush.bf16.msra.mxu0 %v1522
        %1996 = vmatpush.bf16.msra.mxu0 %v1518
        %1997 = vmatpush.bf16.msra.mxu0 %v1514
        %1998 = vmatpush.bf16.msra.mxu0 %v1510
        %1999 = vmatpush.bf16.msra.mxu0 %v1506
        %2000 = vmatmul.bf16.gmra.mxu0 %v644
        %v2001 = vpop.f32.mrf.mxu0
        %v2002 = vadd.f32 %v1983, %v2001
        %v2003 = vpop.f32.mrf.mxu0
        %v2004 = vadd.f32 %v1985, %v2003
        %2005 = vmatmul.bf16.gmra.mxu0 %v652
        %v2006 = vpop.f32.mrf.mxu0
        %v2007 = vadd.f32 %v1988, %v2006
        %v2008 = vpop.f32.mrf.mxu0
        %v2009 = vadd.f32 %v1990, %v2008
        %2010 = vdwg.mxu0
        %2011 = vmatpush.bf16.msra.mxu0 %v1566
        %2012 = vmatpush.bf16.msra.mxu0 %v1562
        %2013 = vmatpush.bf16.msra.mxu0 %v1558
        %2014 = vmatpush.bf16.msra.mxu0 %v1554
        %2015 = vmatpush.bf16.msra.mxu0 %v1550
        %2016 = vmatpush.bf16.msra.mxu0 %v1546
        %2017 = vmatpush.bf16.msra.mxu0 %v1542
        %2018 = vmatpush.bf16.msra.mxu0 %v1538
        %2019 = vmatmul.bf16.gmra.mxu0 %v645
        %v2020 = vpop.f32.mrf.mxu0
        %v2021 = vadd.f32 %v2002, %v2020
        %v2022 = vpop.f32.mrf.mxu0
        %v2023 = vadd.f32 %v2004, %v2022
        %2024 = vmatmul.bf16.gmra.mxu0 %v653
        %v2025 = vpop.f32.mrf.mxu0
        %v2026 = vadd.f32 %v2007, %v2025
        %v2027 = vpop.f32.mrf.mxu0
        %v2028 = vadd.f32 %v2009, %v2027
        %2029 = vdwg.mxu0
        %2030 = vmatpush.bf16.msra.mxu0 %v1598
        %2031 = vmatpush.bf16.msra.mxu0 %v1594
        %2032 = vmatpush.bf16.msra.mxu0 %v1590
        %2033 = vmatpush.bf16.msra.mxu0 %v1586
        %2034 = vmatpush.bf16.msra.mxu0 %v1582
        %2035 = vmatpush.bf16.msra.mxu0 %v1578
        %2036 = vmatpush.bf16.msra.mxu0 %v1574
        %2037 = vmatpush.bf16.msra.mxu0 %v1570
        %2038 = vmatmul.bf16.gmra.mxu0 %v646
        %v2039 = vpop.f32.mrf.mxu0
        %v2040 = vadd.f32 %v2021, %v2039
        %v2041 = vpop.f32.mrf.mxu0
        %v2042 = vadd.f32 %v2023, %v2041
        %2043 = vmatmul.bf16.gmra.mxu0 %v654
        %v2044 = vpop.f32.mrf.mxu0
        %v2045 = vadd.f32 %v2026, %v2044
        %v2046 = vpop.f32.mrf.mxu0
        %v2047 = vadd.f32 %v2028, %v2046
        %2048 = vdwg.mxu0
        %2049 = vmatpush.bf16.msra.mxu0 %v1630
        %2050 = vmatpush.bf16.msra.mxu0 %v1626
        %2051 = vmatpush.bf16.msra.mxu0 %v1622
        %2052 = vmatpush.bf16.msra.mxu0 %v1618
        %2053 = vmatpush.bf16.msra.mxu0 %v1614
        %2054 = vmatpush.bf16.msra.mxu0 %v1610
        %2055 = vmatpush.bf16.msra.mxu0 %v1606
        %2056 = vmatpush.bf16.msra.mxu0 %v1602
        %2057 = vmatmul.bf16.gmra.mxu0 %v647
        %v2058 = vpop.f32.mrf.mxu0
        %v2059 = vadd.f32 %v2040, %v2058
        %v2060 = vpop.f32.mrf.mxu0
        %v2061 = vadd.f32 %v2042, %v2060
        %2062 = vmatmul.bf16.gmra.mxu0 %v655
        %v2063 = vpop.f32.mrf.mxu0
        %v2064 = vadd.f32 %v2045, %v2063
        %v2065 = vpop.f32.mrf.mxu0
        %v2066 = vadd.f32 %v2047, %v2065
        %2067 = vdwg.mxu0
        %2068 = vmatpush.bf16.msra.mxu0 %v1662
        %2069 = vmatpush.bf16.msra.mxu0 %v1658
        %2070 = vmatpush.bf16.msra.mxu0 %v1654
        %2071 = vmatpush.bf16.msra.mxu0 %v1650
        %2072 = vmatpush.bf16.msra.mxu0 %v1646
        %2073 = vmatpush.bf16.msra.mxu0 %v1642
        %2074 = vmatpush.bf16.msra.mxu0 %v1638
        %2075 = vmatpush.bf16.msra.mxu0 %v1634
        %2076 = vmatmul.bf16.gmra.mxu0 %v648
        %v2077 = vpop.f32.mrf.mxu0
        %v2078 = vadd.f32 %v2059, %v2077
        %v2079 = vpop.f32.mrf.mxu0
        %v2080 = vadd.f32 %v2061, %v2079
        %2081 = vmatmul.bf16.gmra.mxu0 %v656
        %v2082 = vpop.f32.mrf.mxu0
        %v2083 = vadd.f32 %v2064, %v2082
        %v2084 = vpop.f32.mrf.mxu0
        %v2085 = vadd.f32 %v2066, %v2084
        %2086 = vdwg.mxu0
        %2087 = vmatpush.bf16.msra.mxu0 %v1694
        %2088 = vmatpush.bf16.msra.mxu0 %v1690
        %2089 = vmatpush.bf16.msra.mxu0 %v1686
        %2090 = vmatpush.bf16.msra.mxu0 %v1682
        %2091 = vmatpush.bf16.msra.mxu0 %v1678
        %2092 = vmatpush.bf16.msra.mxu0 %v1674
        %2093 = vmatpush.bf16.msra.mxu0 %v1670
        %2094 = vmatpush.bf16.msra.mxu0 %v1666
        %2095 = vmatmul.bf16.gmra.mxu0 %v649
        %v2096 = vpop.f32.mrf.mxu0
        %v2097 = vadd.f32 %v2078, %v2096
        %v2098 = vpop.f32.mrf.mxu0
        %v2099 = vadd.f32 %v2080, %v2098
        %2100 = vmatmul.bf16.gmra.mxu0 %v657
        %v2101 = vpop.f32.mrf.mxu0
        %v2102 = vadd.f32 %v2083, %v2101
        %v2103 = vpop.f32.mrf.mxu0
        %v2104 = vadd.f32 %v2085, %v2103
        %2105 = vdwg.mxu0
        %2106 = vmatpush.bf16.msra.mxu0 %v1471
        %2107 = vmatpush.bf16.msra.mxu0 %v1467
        %2108 = vmatpush.bf16.msra.mxu0 %v1463
        %2109 = vmatpush.bf16.msra.mxu0 %v1459
        %2110 = vmatpush.bf16.msra.mxu0 %v1455
        %2111 = vmatpush.bf16.msra.mxu0 %v1451
        %2112 = vmatpush.bf16.msra.mxu0 %v1447
        %2113 = vmatpush.bf16.msra.mxu0 %v1443
        %2114 = vmatmul.bf16.gmra.mxu0 %v642
        %v2115 = vpop.f32.mrf.mxu0
        %v2116 = vadd.f32 0.0, %v2115
        %v2117 = vpop.f32.mrf.mxu0
        %v2118 = vadd.f32 0.0, %v2117
        %2119 = vmatmul.bf16.gmra.mxu0 %v650
        %v2120 = vpop.f32.mrf.mxu0
        %v2121 = vadd.f32 0.0, %v2120
        %v2122 = vpop.f32.mrf.mxu0
        %v2123 = vadd.f32 0.0, %v2122
        %2124 = vdwg.mxu0
        %2125 = vmatpush.bf16.msra.mxu0 %v1503
        %2126 = vmatpush.bf16.msra.mxu0 %v1499
        %2127 = vmatpush.bf16.msra.mxu0 %v1495
        %2128 = vmatpush.bf16.msra.mxu0 %v1491
        %2129 = vmatpush.bf16.msra.mxu0 %v1487
        %2130 = vmatpush.bf16.msra.mxu0 %v1483
        %2131 = vmatpush.bf16.msra.mxu0 %v1479
        %2132 = vmatpush.bf16.msra.mxu0 %v1475
        %2133 = vmatmul.bf16.gmra.mxu0 %v643
        %v2134 = vpop.f32.mrf.mxu0
        %v2135 = vadd.f32 %v2116, %v2134
        %v2136 = vpop.f32.mrf.mxu0
        %v2137 = vadd.f32 %v2118, %v2136
        %2138 = vmatmul.bf16.gmra.mxu0 %v651
        %v2139 = vpop.f32.mrf.mxu0
        %v2140 = vadd.f32 %v2121, %v2139
        %v2141 = vpop.f32.mrf.mxu0
        %v2142 = vadd.f32 %v2123, %v2141
        %2143 = vdwg.mxu0
        %2144 = vmatpush.bf16.msra.mxu0 %v1535
        %2145 = vmatpush.bf16.msra.mxu0 %v1531
        %2146 = vmatpush.bf16.msra.mxu0 %v1527
        %2147 = vmatpush.bf16.msra.mxu0 %v1523
        %2148 = vmatpush.bf16.msra.mxu0 %v1519
        %2149 = vmatpush.bf16.msra.mxu0 %v1515
        %2150 = vmatpush.bf16.msra.mxu0 %v1511
        %2151 = vmatpush.bf16.msra.mxu0 %v1507
        %2152 = vmatmul.bf16.gmra.mxu0 %v644
        %v2153 = vpop.f32.mrf.mxu0
        %v2154 = vadd.f32 %v2135, %v2153
        %v2155 = vpop.f32.mrf.mxu0
        %v2156 = vadd.f32 %v2137, %v2155
        %2157 = vmatmul.bf16.gmra.mxu0 %v652
        %v2158 = vpop.f32.mrf.mxu0
        %v2159 = vadd.f32 %v2140, %v2158
        %v2160 = vpop.f32.mrf.mxu0
        %v2161 = vadd.f32 %v2142, %v2160
        %2162 = vdwg.mxu0
        %2163 = vmatpush.bf16.msra.mxu0 %v1567
        %2164 = vmatpush.bf16.msra.mxu0 %v1563
        %2165 = vmatpush.bf16.msra.mxu0 %v1559
        %2166 = vmatpush.bf16.msra.mxu0 %v1555
        %2167 = vmatpush.bf16.msra.mxu0 %v1551
        %2168 = vmatpush.bf16.msra.mxu0 %v1547
        %2169 = vmatpush.bf16.msra.mxu0 %v1543
        %2170 = vmatpush.bf16.msra.mxu0 %v1539
        %2171 = vmatmul.bf16.gmra.mxu0 %v645
        %v2172 = vpop.f32.mrf.mxu0
        %v2173 = vadd.f32 %v2154, %v2172
        %v2174 = vpop.f32.mrf.mxu0
        %v2175 = vadd.f32 %v2156, %v2174
        %2176 = vmatmul.bf16.gmra.mxu0 %v653
        %v2177 = vpop.f32.mrf.mxu0
        %v2178 = vadd.f32 %v2159, %v2177
        %v2179 = vpop.f32.mrf.mxu0
        %v2180 = vadd.f32 %v2161, %v2179
        %2181 = vdwg.mxu0
        %2182 = vmatpush.bf16.msra.mxu0 %v1599
        %2183 = vmatpush.bf16.msra.mxu0 %v1595
        %2184 = vmatpush.bf16.msra.mxu0 %v1591
        %2185 = vmatpush.bf16.msra.mxu0 %v1587
        %2186 = vmatpush.bf16.msra.mxu0 %v1583
        %2187 = vmatpush.bf16.msra.mxu0 %v1579
        %2188 = vmatpush.bf16.msra.mxu0 %v1575
        %2189 = vmatpush.bf16.msra.mxu0 %v1571
        %2190 = vmatmul.bf16.gmra.mxu0 %v646
        %v2191 = vpop.f32.mrf.mxu0
        %v2192 = vadd.f32 %v2173, %v2191
        %v2193 = vpop.f32.mrf.mxu0
        %v2194 = vadd.f32 %v2175, %v2193
        %2195 = vmatmul.bf16.gmra.mxu0 %v654
        %v2196 = vpop.f32.mrf.mxu0
        %v2197 = vadd.f32 %v2178, %v2196
        %v2198 = vpop.f32.mrf.mxu0
        %v2199 = vadd.f32 %v2180, %v2198
        %2200 = vdwg.mxu0
        %2201 = vmatpush.bf16.msra.mxu0 %v1631
        %2202 = vmatpush.bf16.msra.mxu0 %v1627
        %2203 = vmatpush.bf16.msra.mxu0 %v1623
        %2204 = vmatpush.bf16.msra.mxu0 %v1619
        %2205 = vmatpush.bf16.msra.mxu0 %v1615
        %2206 = vmatpush.bf16.msra.mxu0 %v1611
        %2207 = vmatpush.bf16.msra.mxu0 %v1607
        %2208 = vmatpush.bf16.msra.mxu0 %v1603
        %2209 = vmatmul.bf16.gmra.mxu0 %v647
        %v2210 = vpop.f32.mrf.mxu0
        %v2211 = vadd.f32 %v2192, %v2210
        %v2212 = vpop.f32.mrf.mxu0
        %v2213 = vadd.f32 %v2194, %v2212
        %2214 = vmatmul.bf16.gmra.mxu0 %v655
        %v2215 = vpop.f32.mrf.mxu0
        %v2216 = vadd.f32 %v2197, %v2215
        %v2217 = vpop.f32.mrf.mxu0
        %v2218 = vadd.f32 %v2199, %v2217
        %2219 = vdwg.mxu0
        %2220 = vmatpush.bf16.msra.mxu0 %v1663
        %2221 = vmatpush.bf16.msra.mxu0 %v1659
        %2222 = vmatpush.bf16.msra.mxu0 %v1655
        %2223 = vmatpush.bf16.msra.mxu0 %v1651
        %2224 = vmatpush.bf16.msra.mxu0 %v1647
        %2225 = vmatpush.bf16.msra.mxu0 %v1643
        %2226 = vmatpush.bf16.msra.mxu0 %v1639
        %2227 = vmatpush.bf16.msra.mxu0 %v1635
        %2228 = vmatmul.bf16.gmra.mxu0 %v648
        %v2229 = vpop.f32.mrf.mxu0
        %v2230 = vadd.f32 %v2211, %v2229
        %v2231 = vpop.f32.mrf.mxu0
        %v2232 = vadd.f32 %v2213, %v2231
        %2233 = vmatmul.bf16.gmra.mxu0 %v656
        %v2234 = vpop.f32.mrf.mxu0
        %v2235 = vadd.f32 %v2216, %v2234
        %v2236 = vpop.f32.mrf.mxu0
        %v2237 = vadd.f32 %v2218, %v2236
        %2238 = vdwg.mxu0
        %2239 = vmatpush.bf16.msra.mxu0 %v1695
        %2240 = vmatpush.bf16.msra.mxu0 %v1691
        %2241 = vmatpush.bf16.msra.mxu0 %v1687
        %2242 = vmatpush.bf16.msra.mxu0 %v1683
        %2243 = vmatpush.bf16.msra.mxu0 %v1679
        %2244 = vmatpush.bf16.msra.mxu0 %v1675
        %2245 = vmatpush.bf16.msra.mxu0 %v1671
        %2246 = vmatpush.bf16.msra.mxu0 %v1667
        %2247 = vmatmul.bf16.gmra.mxu0 %v649
        %v2248 = vpop.f32.mrf.mxu0
        %v2249 = vadd.f32 %v2230, %v2248
        %v2250 = vpop.f32.mrf.mxu0
        %v2251 = vadd.f32 %v2232, %v2250
        %2252 = vmatmul.bf16.gmra.mxu0 %v657
        %v2253 = vpop.f32.mrf.mxu0
        %v2254 = vadd.f32 %v2235, %v2253
        %v2255 = vpop.f32.mrf.mxu0
        %v2256 = vadd.f32 %v2237, %v2255
        %2257 = vdwg.mxu0
        %2258 = vmatpush.bf16.msra.mxu0 %v1472
        %2259 = vmatpush.bf16.msra.mxu0 %v1468
        %2260 = vmatpush.bf16.msra.mxu0 %v1464
        %2261 = vmatpush.bf16.msra.mxu0 %v1460
        %2262 = vmatpush.bf16.msra.mxu0 %v1456
        %2263 = vmatpush.bf16.msra.mxu0 %v1452
        %2264 = vmatpush.bf16.msra.mxu0 %v1448
        %2265 = vmatpush.bf16.msra.mxu0 %v1444
        %2266 = vmatmul.bf16.gmra.mxu0 %v642
        %v2267 = vpop.f32.mrf.mxu0
        %v2268 = vadd.f32 0.0, %v2267
        %v2269 = vpop.f32.mrf.mxu0
        %v2270 = vadd.f32 0.0, %v2269
        %2271 = vmatmul.bf16.gmra.mxu0 %v650
        %v2272 = vpop.f32.mrf.mxu0
        %v2273 = vadd.f32 0.0, %v2272
        %v2274 = vpop.f32.mrf.mxu0
        %v2275 = vadd.f32 0.0, %v2274
        %2276 = vdwg.mxu0
        %2277 = vmatpush.bf16.msra.mxu0 %v1504
        %2278 = vmatpush.bf16.msra.mxu0 %v1500
        %2279 = vmatpush.bf16.msra.mxu0 %v1496
        %2280 = vmatpush.bf16.msra.mxu0 %v1492
        %2281 = vmatpush.bf16.msra.mxu0 %v1488
        %2282 = vmatpush.bf16.msra.mxu0 %v1484
        %2283 = vmatpush.bf16.msra.mxu0 %v1480
        %2284 = vmatpush.bf16.msra.mxu0 %v1476
        %2285 = vmatmul.bf16.gmra.mxu0 %v643
        %v2286 = vpop.f32.mrf.mxu0
        %v2287 = vadd.f32 %v2268, %v2286
        %v2288 = vpop.f32.mrf.mxu0
        %v2289 = vadd.f32 %v2270, %v2288
        %2290 = vmatmul.bf16.gmra.mxu0 %v651
        %v2291 = vpop.f32.mrf.mxu0
        %v2292 = vadd.f32 %v2273, %v2291
        %v2293 = vpop.f32.mrf.mxu0
        %v2294 = vadd.f32 %v2275, %v2293
        %2295 = vdwg.mxu0
        %2296 = vmatpush.bf16.msra.mxu0 %v1536
        %2297 = vmatpush.bf16.msra.mxu0 %v1532
        %2298 = vmatpush.bf16.msra.mxu0 %v1528
        %2299 = vmatpush.bf16.msra.mxu0 %v1524
        %2300 = vmatpush.bf16.msra.mxu0 %v1520
        %2301 = vmatpush.bf16.msra.mxu0 %v1516
        %2302 = vmatpush.bf16.msra.mxu0 %v1512
        %2303 = vmatpush.bf16.msra.mxu0 %v1508
        %2304 = vmatmul.bf16.gmra.mxu0 %v644
        %v2305 = vpop.f32.mrf.mxu0
        %v2306 = vadd.f32 %v2287, %v2305
        %v2307 = vpop.f32.mrf.mxu0
        %v2308 = vadd.f32 %v2289, %v2307
        %2309 = vmatmul.bf16.gmra.mxu0 %v652
        %v2310 = vpop.f32.mrf.mxu0
        %v2311 = vadd.f32 %v2292, %v2310
        %v2312 = vpop.f32.mrf.mxu0
        %v2313 = vadd.f32 %v2294, %v2312
        %2314 = vdwg.mxu0
        %2315 = vmatpush.bf16.msra.mxu0 %v1568
        %2316 = vmatpush.bf16.msra.mxu0 %v1564
        %2317 = vmatpush.bf16.msra.mxu0 %v1560
        %2318 = vmatpush.bf16.msra.mxu0 %v1556
        %2319 = vmatpush.bf16.msra.mxu0 %v1552
        %2320 = vmatpush.bf16.msra.mxu0 %v1548
        %2321 = vmatpush.bf16.msra.mxu0 %v1544
        %2322 = vmatpush.bf16.msra.mxu0 %v1540
        %2323 = vmatmul.bf16.gmra.mxu0 %v645
        %v2324 = vpop.f32.mrf.mxu0
        %v2325 = vadd.f32 %v2306, %v2324
        %v2326 = vpop.f32.mrf.mxu0
        %v2327 = vadd.f32 %v2308, %v2326
        %2328 = vmatmul.bf16.gmra.mxu0 %v653
        %v2329 = vpop.f32.mrf.mxu0
        %v2330 = vadd.f32 %v2311, %v2329
        %v2331 = vpop.f32.mrf.mxu0
        %v2332 = vadd.f32 %v2313, %v2331
        %2333 = vdwg.mxu0
        %2334 = vmatpush.bf16.msra.mxu0 %v1600
        %2335 = vmatpush.bf16.msra.mxu0 %v1596
        %2336 = vmatpush.bf16.msra.mxu0 %v1592
        %2337 = vmatpush.bf16.msra.mxu0 %v1588
        %2338 = vmatpush.bf16.msra.mxu0 %v1584
        %2339 = vmatpush.bf16.msra.mxu0 %v1580
        %2340 = vmatpush.bf16.msra.mxu0 %v1576
        %2341 = vmatpush.bf16.msra.mxu0 %v1572
        %2342 = vmatmul.bf16.gmra.mxu0 %v646
        %v2343 = vpop.f32.mrf.mxu0
        %v2344 = vadd.f32 %v2325, %v2343
        %v2345 = vpop.f32.mrf.mxu0
        %v2346 = vadd.f32 %v2327, %v2345
        %2347 = vmatmul.bf16.gmra.mxu0 %v654
        %v2348 = vpop.f32.mrf.mxu0
        %v2349 = vadd.f32 %v2330, %v2348
        %v2350 = vpop.f32.mrf.mxu0
        %v2351 = vadd.f32 %v2332, %v2350
        %2352 = vdwg.mxu0
        %2353 = vmatpush.bf16.msra.mxu0 %v1632
        %2354 = vmatpush.bf16.msra.mxu0 %v1628
        %2355 = vmatpush.bf16.msra.mxu0 %v1624
        %2356 = vmatpush.bf16.msra.mxu0 %v1620
        %2357 = vmatpush.bf16.msra.mxu0 %v1616
        %2358 = vmatpush.bf16.msra.mxu0 %v1612
        %2359 = vmatpush.bf16.msra.mxu0 %v1608
        %2360 = vmatpush.bf16.msra.mxu0 %v1604
        %2361 = vmatmul.bf16.gmra.mxu0 %v647
        %v2362 = vpop.f32.mrf.mxu0
        %v2363 = vadd.f32 %v2344, %v2362
        %v2364 = vpop.f32.mrf.mxu0
        %v2365 = vadd.f32 %v2346, %v2364
        %2366 = vmatmul.bf16.gmra.mxu0 %v655
        %v2367 = vpop.f32.mrf.mxu0
        %v2368 = vadd.f32 %v2349, %v2367
        %v2369 = vpop.f32.mrf.mxu0
        %v2370 = vadd.f32 %v2351, %v2369
        %2371 = vdwg.mxu0
        %2372 = vmatpush.bf16.msra.mxu0 %v1664
        %2373 = vmatpush.bf16.msra.mxu0 %v1660
        %2374 = vmatpush.bf16.msra.mxu0 %v1656
        %2375 = vmatpush.bf16.msra.mxu0 %v1652
        %2376 = vmatpush.bf16.msra.mxu0 %v1648
        %2377 = vmatpush.bf16.msra.mxu0 %v1644
        %2378 = vmatpush.bf16.msra.mxu0 %v1640
        %2379 = vmatpush.bf16.msra.mxu0 %v1636
        %2380 = vmatmul.bf16.gmra.mxu0 %v648
        %v2381 = vpop.f32.mrf.mxu0
        %v2382 = vadd.f32 %v2363, %v2381
        %v2383 = vpop.f32.mrf.mxu0
        %v2384 = vadd.f32 %v2365, %v2383
        %2385 = vmatmul.bf16.gmra.mxu0 %v656
        %v2386 = vpop.f32.mrf.mxu0
        %v2387 = vadd.f32 %v2368, %v2386
        %v2388 = vpop.f32.mrf.mxu0
        %v2389 = vadd.f32 %v2370, %v2388
        %2390 = vdwg.mxu0
        %2391 = vmatpush.bf16.msra.mxu0 %v1696
        %2392 = vmatpush.bf16.msra.mxu0 %v1692
        %2393 = vmatpush.bf16.msra.mxu0 %v1688
        %2394 = vmatpush.bf16.msra.mxu0 %v1684
        %2395 = vmatpush.bf16.msra.mxu0 %v1680
        %2396 = vmatpush.bf16.msra.mxu0 %v1676
        %2397 = vmatpush.bf16.msra.mxu0 %v1672
        %2398 = vmatpush.bf16.msra.mxu0 %v1668
        %2399 = vmatmul.bf16.gmra.mxu0 %v649
        %v2400 = vpop.f32.mrf.mxu0
        %v2401 = vadd.f32 %v2382, %v2400
        %v2402 = vpop.f32.mrf.mxu0
        %v2403 = vadd.f32 %v2384, %v2402
        %2404 = vmatmul.bf16.gmra.mxu0 %v657
        %v2405 = vpop.f32.mrf.mxu0
        %v2406 = vadd.f32 %v2387, %v2405
        %v2407 = vpop.f32.mrf.mxu0
        %v2408 = vadd.f32 %v2389, %v2407
        %2409 = vdwg.mxu0
        %2410 = vmatpush.bf16.msra.mxu0 %v1473
        %2411 = vmatpush.bf16.msra.mxu0 %v1469
        %2412 = vmatpush.bf16.msra.mxu0 %v1465
        %2413 = vmatpush.bf16.msra.mxu0 %v1461
        %2414 = vmatpush.bf16.msra.mxu0 %v1457
        %2415 = vmatpush.bf16.msra.mxu0 %v1453
        %2416 = vmatpush.bf16.msra.mxu0 %v1449
        %2417 = vmatpush.bf16.msra.mxu0 %v1445
        %2418 = vmatmul.bf16.gmra.mxu0 %v642
        %v2419 = vpop.f32.mrf.mxu0
        %v2420 = vadd.f32 0.0, %v2419
        %v2421 = vpop.f32.mrf.mxu0
        %v2422 = vadd.f32 0.0, %v2421
        %2423 = vmatmul.bf16.gmra.mxu0 %v650
        %v2424 = vpop.f32.mrf.mxu0
        %v2425 = vadd.f32 0.0, %v2424
        %v2426 = vpop.f32.mrf.mxu0
        %v2427 = vadd.f32 0.0, %v2426
        %2428 = vdwg.mxu0
        %2429 = vmatpush.bf16.msra.mxu0 %v1505
        %2430 = vmatpush.bf16.msra.mxu0 %v1501
        %2431 = vmatpush.bf16.msra.mxu0 %v1497
        %2432 = vmatpush.bf16.msra.mxu0 %v1493
        %2433 = vmatpush.bf16.msra.mxu0 %v1489
        %2434 = vmatpush.bf16.msra.mxu0 %v1485
        %2435 = vmatpush.bf16.msra.mxu0 %v1481
        %2436 = vmatpush.bf16.msra.mxu0 %v1477
        %2437 = vmatmul.bf16.gmra.mxu0 %v643
        %v2438 = vpop.f32.mrf.mxu0
        %v2439 = vadd.f32 %v2420, %v2438
        %v2440 = vpop.f32.mrf.mxu0
        %v2441 = vadd.f32 %v2422, %v2440
        %2442 = vmatmul.bf16.gmra.mxu0 %v651
        %v2443 = vpop.f32.mrf.mxu0
        %v2444 = vadd.f32 %v2425, %v2443
        %v2445 = vpop.f32.mrf.mxu0
        %v2446 = vadd.f32 %v2427, %v2445
        %2447 = vdwg.mxu0
        %2448 = vmatpush.bf16.msra.mxu0 %v1537
        %2449 = vmatpush.bf16.msra.mxu0 %v1533
        %2450 = vmatpush.bf16.msra.mxu0 %v1529
        %2451 = vmatpush.bf16.msra.mxu0 %v1525
        %2452 = vmatpush.bf16.msra.mxu0 %v1521
        %2453 = vmatpush.bf16.msra.mxu0 %v1517
        %2454 = vmatpush.bf16.msra.mxu0 %v1513
        %2455 = vmatpush.bf16.msra.mxu0 %v1509
        %2456 = vmatmul.bf16.gmra.mxu0 %v644
        %v2457 = vpop.f32.mrf.mxu0
        %v2458 = vadd.f32 %v2439, %v2457
        %v2459 = vpop.f32.mrf.mxu0
        %v2460 = vadd.f32 %v2441, %v2459
        %2461 = vmatmul.bf16.gmra.mxu0 %v652
        %v2462 = vpop.f32.mrf.mxu0
        %v2463 = vadd.f32 %v2444, %v2462
        %v2464 = vpop.f32.mrf.mxu0
        %v2465 = vadd.f32 %v2446, %v2464
        %2466 = vdwg.mxu0
        %2467 = vmatpush.bf16.msra.mxu0 %v1569
        %2468 = vmatpush.bf16.msra.mxu0 %v1565
        %2469 = vmatpush.bf16.msra.mxu0 %v1561
        %2470 = vmatpush.bf16.msra.mxu0 %v1557
        %2471 = vmatpush.bf16.msra.mxu0 %v1553
        %2472 = vmatpush.bf16.msra.mxu0 %v1549
        %2473 = vmatpush.bf16.msra.mxu0 %v1545
        %2474 = vmatpush.bf16.msra.mxu0 %v1541
        %2475 = vmatmul.bf16.gmra.mxu0 %v645
        %v2476 = vpop.f32.mrf.mxu0
        %v2477 = vadd.f32 %v2458, %v2476
        %v2478 = vpop.f32.mrf.mxu0
        %v2479 = vadd.f32 %v2460, %v2478
        %2480 = vmatmul.bf16.gmra.mxu0 %v653
        %v2481 = vpop.f32.mrf.mxu0
        %v2482 = vadd.f32 %v2463, %v2481
        %v2483 = vpop.f32.mrf.mxu0
        %v2484 = vadd.f32 %v2465, %v2483
        %2485 = vdwg.mxu0
        %2486 = vmatpush.bf16.msra.mxu0 %v1601
        %2487 = vmatpush.bf16.msra.mxu0 %v1597
        %2488 = vmatpush.bf16.msra.mxu0 %v1593
        %2489 = vmatpush.bf16.msra.mxu0 %v1589
        %2490 = vmatpush.bf16.msra.mxu0 %v1585
        %2491 = vmatpush.bf16.msra.mxu0 %v1581
        %2492 = vmatpush.bf16.msra.mxu0 %v1577
        %2493 = vmatpush.bf16.msra.mxu0 %v1573
        %2494 = vmatmul.bf16.gmra.mxu0 %v646
        %v2495 = vpop.f32.mrf.mxu0
        %v2496 = vadd.f32 %v2477, %v2495
        %v2497 = vpop.f32.mrf.mxu0
        %v2498 = vadd.f32 %v2479, %v2497
        %2499 = vmatmul.bf16.gmra.mxu0 %v654
        %v2500 = vpop.f32.mrf.mxu0
        %v2501 = vadd.f32 %v2482, %v2500
        %v2502 = vpop.f32.mrf.mxu0
        %v2503 = vadd.f32 %v2484, %v2502
        %2504 = vdwg.mxu0
        %2505 = vmatpush.bf16.msra.mxu0 %v1633
        %2506 = vmatpush.bf16.msra.mxu0 %v1629
        %2507 = vmatpush.bf16.msra.mxu0 %v1625
        %2508 = vmatpush.bf16.msra.mxu0 %v1621
        %2509 = vmatpush.bf16.msra.mxu0 %v1617
        %2510 = vmatpush.bf16.msra.mxu0 %v1613
        %2511 = vmatpush.bf16.msra.mxu0 %v1609
        %2512 = vmatpush.bf16.msra.mxu0 %v1605
        %2513 = vmatmul.bf16.gmra.mxu0 %v647
        %v2514 = vpop.f32.mrf.mxu0
        %v2515 = vadd.f32 %v2496, %v2514
        %v2516 = vpop.f32.mrf.mxu0
        %v2517 = vadd.f32 %v2498, %v2516
        %2518 = vmatmul.bf16.gmra.mxu0 %v655
        %v2519 = vpop.f32.mrf.mxu0
        %v2520 = vadd.f32 %v2501, %v2519
        %v2521 = vpop.f32.mrf.mxu0
        %v2522 = vadd.f32 %v2503, %v2521
        %2523 = vdwg.mxu0
        %2524 = vmatpush.bf16.msra.mxu0 %v1665
        %2525 = vmatpush.bf16.msra.mxu0 %v1661
        %2526 = vmatpush.bf16.msra.mxu0 %v1657
        %2527 = vmatpush.bf16.msra.mxu0 %v1653
        %2528 = vmatpush.bf16.msra.mxu0 %v1649
        %2529 = vmatpush.bf16.msra.mxu0 %v1645
        %2530 = vmatpush.bf16.msra.mxu0 %v1641
        %2531 = vmatpush.bf16.msra.mxu0 %v1637
        %2532 = vmatmul.bf16.gmra.mxu0 %v648
        %v2533 = vpop.f32.mrf.mxu0
        %v2534 = vadd.f32 %v2515, %v2533
        %v2535 = vpop.f32.mrf.mxu0
        %v2536 = vadd.f32 %v2517, %v2535
        %2537 = vmatmul.bf16.gmra.mxu0 %v656
        %v2538 = vpop.f32.mrf.mxu0
        %v2539 = vadd.f32 %v2520, %v2538
        %v2540 = vpop.f32.mrf.mxu0
        %v2541 = vadd.f32 %v2522, %v2540
        %2542 = vdwg.mxu0
        %2543 = vmatpush.bf16.msra.mxu0 %v1697
        %2544 = vmatpush.bf16.msra.mxu0 %v1693
        %2545 = vmatpush.bf16.msra.mxu0 %v1689
        %2546 = vmatpush.bf16.msra.mxu0 %v1685
        %2547 = vmatpush.bf16.msra.mxu0 %v1681
        %2548 = vmatpush.bf16.msra.mxu0 %v1677
        %2549 = vmatpush.bf16.msra.mxu0 %v1673
        %2550 = vmatpush.bf16.msra.mxu0 %v1669
        %2551 = vmatmul.bf16.gmra.mxu0 %v649
        %v2552 = vpop.f32.mrf.mxu0
        %v2553 = vadd.f32 %v2534, %v2552
        %v2554 = vpop.f32.mrf.mxu0
        %v2555 = vadd.f32 %v2536, %v2554
        %2556 = vmatmul.bf16.gmra.mxu0 %v657
        %v2557 = vpop.f32.mrf.mxu0
        %v2558 = vadd.f32 %v2539, %v2557
        %v2559 = vpop.f32.mrf.mxu0
        %v2560 = vadd.f32 %v2541, %v2559
        %2561 = vdwg.mxu0
        %v2562 = vadd.f32 %v306, %v2097
        %v2563 = vadd.f32 %v307, %v2249
        %v2564 = vadd.f32 %v308, %v2401
        %v2565 = vadd.f32 %v309, %v2553
        %v2566 = vadd.f32 %v310, %v2099
        %v2567 = vadd.f32 %v311, %v2251
        %v2568 = vadd.f32 %v312, %v2403
        %v2569 = vadd.f32 %v313, %v2555
        %v2570 = vadd.f32 %v314, %v2102
        %v2571 = vadd.f32 %v315, %v2254
        %v2572 = vadd.f32 %v316, %v2406
        %v2573 = vadd.f32 %v317, %v2558
        %v2574 = vadd.f32 %v318, %v2104
        %v2575 = vadd.f32 %v319, %v2256
        %v2576 = vadd.f32 %v320, %v2408
        %v2577 = vadd.f32 %v321, %v2560
        %2578 = vst [vmem:[#allocation2] sm:$0xff] %v2562
        %2579 = vst [vmem:[#allocation2 + $0x8] sm:$0xff] %v2563
        %2580 = vst [vmem:[#allocation2 + $0x10] sm:$0xff] %v2564
        %2581 = vst [vmem:[#allocation2 + $0x18] sm:$0xff] %v2565
        %2582 = vst [vmem:[#allocation2 + $0x20] sm:$0xff] %v2566
        %2583 = vst [vmem:[#allocation2 + $0x28] sm:$0xff] %v2567
        %2584 = vst [vmem:[#allocation2 + $0x30] sm:$0xff] %v2568
        %2585 = vst [vmem:[#allocation2 + $0x38] sm:$0xff] %v2569
        %2586 = vst [vmem:[#allocation2 + $0x40] sm:$0xff] %v2570
        %2587 = vst [vmem:[#allocation2 + $0x48] sm:$0xff] %v2571
        %2588 = vst [vmem:[#allocation2 + $0x50] sm:$0xff] %v2572
        %2589 = vst [vmem:[#allocation2 + $0x58] sm:$0xff] %v2573
        %2590 = vst [vmem:[#allocation2 + $0x60] sm:$0xff] %v2574
        %2591 = vst [vmem:[#allocation2 + $0x68] sm:$0xff] %v2575
        %2592 = vst [vmem:[#allocation2 + $0x70] sm:$0xff] %v2576
        %2593 = vst [vmem:[#allocation2 + $0x78] sm:$0xff] %v2577
        %p2594 = scmp.eq.s32.totalorder %s16, 3
        // Predicated region
        $region68: #{net_d_forward.7} parent=58 // pred_check
          %p2595 = pneg %p2594
        $region69: #{net_d_forward.7} parent=58 // pred_check_branch
          %2597 = sbr.rel (%p2595) target = $region71
        $region70: #{net_d_forward.7} parent=58 // pred_region
          %v2598 = vld [vmem:[#allocation2] sm:$0xff]
          %v2599 = vld [vmem:[#allocation2 + $0x8] sm:$0xff]
          %v2600 = vld [vmem:[#allocation2 + $0x10] sm:$0xff]
          %v2601 = vld [vmem:[#allocation2 + $0x18] sm:$0xff]
          %v2602 = vld [vmem:[#allocation2 + $0x20] sm:$0xff]
          %v2603 = vld [vmem:[#allocation2 + $0x28] sm:$0xff]
          %v2604 = vld [vmem:[#allocation2 + $0x30] sm:$0xff]
          %v2605 = vld [vmem:[#allocation2 + $0x38] sm:$0xff]
          %v2606 = vld [vmem:[#allocation2 + $0x40] sm:$0xff]
          %v2607 = vld [vmem:[#allocation2 + $0x48] sm:$0xff]
          %v2608 = vld [vmem:[#allocation2 + $0x50] sm:$0xff]
          %v2609 = vld [vmem:[#allocation2 + $0x58] sm:$0xff]
          %v2610 = vld [vmem:[#allocation2 + $0x60] sm:$0xff]
          %v2611 = vld [vmem:[#allocation2 + $0x68] sm:$0xff]
          %v2612 = vld [vmem:[#allocation2 + $0x70] sm:$0xff]
          %v2613 = vld [vmem:[#allocation2 + $0x78] sm:$0xff]
          %v2614 = vadd.f32 %v2598, %v2602
          %v2615 = vadd.f32 %v2614, %v2606
          %v2616 = vadd.f32 %v2615, %v2610
          %v2617 = vrot.slane %v2616, 4
          %v2618 = vadd.f32 %v2616, %v2617
          %v2619 = vrot.slane %v2618, 2
          %v2620 = vadd.f32 %v2618, %v2619
          %v2621 = vrot.slane %v2620, 1
          %v2622 = vadd.f32 %v2620, %v2621
          %v2623 = vadd.f32 %v2599, %v2603
          %v2624 = vadd.f32 %v2623, %v2607
          %v2625 = vadd.f32 %v2624, %v2611
          %v2626 = vrot.slane %v2625, 4
          %v2627 = vadd.f32 %v2625, %v2626
          %v2628 = vrot.slane %v2627, 2
          %v2629 = vadd.f32 %v2627, %v2628
          %v2630 = vrot.slane %v2629, 1
          %v2631 = vadd.f32 %v2629, %v2630
          %v2632 = vadd.f32 %v2600, %v2604
          %v2633 = vadd.f32 %v2632, %v2608
          %v2634 = vadd.f32 %v2633, %v2612
          %v2635 = vrot.slane %v2634, 4
          %v2636 = vadd.f32 %v2634, %v2635
          %v2637 = vrot.slane %v2636, 2
          %v2638 = vadd.f32 %v2636, %v2637
          %v2639 = vrot.slane %v2638, 1
          %v2640 = vadd.f32 %v2638, %v2639
          %v2641 = vadd.f32 %v2601, %v2605
          %v2642 = vadd.f32 %v2641, %v2609
          %v2643 = vadd.f32 %v2642, %v2613
          %v2644 = vrot.slane %v2643, 4
          %v2645 = vadd.f32 %v2643, %v2644
          %v2646 = vrot.slane %v2645, 2
          %v2647 = vadd.f32 %v2645, %v2646
          %v2648 = vrot.slane %v2647, 1
          %v2649 = vadd.f32 %v2647, %v2648
          %v2650 = vrcp.pop 32.0
          %v2651 = vmul.f32 32.0, %v2650
          %v2652 = vsub.f32 1.0, %v2651
          %v2653 = vmul.f32 %v2650, %v2652
          %v2654 = vadd.f32 %v2650, %v2653
          %vm2655 = vweird.f32 %v2650
          %v2656 = vsel %vm2655, %v2650, %v2654
          %v2657 = vmul.f32 %v2622, %v2656
          %v2658 = vmul.f32 %v2631, %v2656
          %v2659 = vmul.f32 %v2640, %v2656
          %v2660 = vmul.f32 %v2649, %v2656
          %v2661 = vsub.f32 %v2598, %v2657
          %v2662 = vsub.f32 %v2599, %v2658
          %v2663 = vsub.f32 %v2600, %v2659
          %v2664 = vsub.f32 %v2601, %v2660
          %v2665 = vsub.f32 %v2602, %v2657
          %v2666 = vsub.f32 %v2603, %v2658
          %v2667 = vsub.f32 %v2604, %v2659
          %v2668 = vsub.f32 %v2605, %v2660
          %v2669 = vsub.f32 %v2606, %v2657
          %v2670 = vsub.f32 %v2607, %v2658
          %v2671 = vsub.f32 %v2608, %v2659
          %v2672 = vsub.f32 %v2609, %v2660
          %v2673 = vsub.f32 %v2610, %v2657
          %v2674 = vsub.f32 %v2611, %v2658
          %v2675 = vsub.f32 %v2612, %v2659
          %v2676 = vsub.f32 %v2613, %v2660
          %v2677 = vmul.f32 %v2661, %v2661
          %v2678 = vmul.f32 %v2662, %v2662
          %v2679 = vmul.f32 %v2663, %v2663
          %v2680 = vmul.f32 %v2664, %v2664
          %v2681 = vmul.f32 %v2665, %v2665
          %v2682 = vmul.f32 %v2666, %v2666
          %v2683 = vmul.f32 %v2667, %v2667
          %v2684 = vmul.f32 %v2668, %v2668
          %v2685 = vmul.f32 %v2669, %v2669
          %v2686 = vmul.f32 %v2670, %v2670
          %v2687 = vmul.f32 %v2671, %v2671
          %v2688 = vmul.f32 %v2672, %v2672
          %v2689 = vmul.f32 %v2673, %v2673
          %v2690 = vmul.f32 %v2674, %v2674
          %v2691 = vmul.f32 %v2675, %v2675
          %v2692 = vmul.f32 %v2676, %v2676
          %v2693 = vadd.f32 %v2677, %v2681
          %v2694 = vadd.f32 %v2693, %v2685
          %v2695 = vadd.f32 %v2694, %v2689
          %v2696 = vrot.slane %v2695, 4
          %v2697 = vadd.f32 %v2695, %v2696
          %v2698 = vrot.slane %v2697, 2
          %v2699 = vadd.f32 %v2697, %v2698
          %v2700 = vrot.slane %v2699, 1
          %v2701 = vadd.f32 %v2699, %v2700
          %v2702 = vadd.f32 %v2678, %v2682
          %v2703 = vadd.f32 %v2702, %v2686
          %v2704 = vadd.f32 %v2703, %v2690
          %v2705 = vrot.slane %v2704, 4
          %v2706 = vadd.f32 %v2704, %v2705
          %v2707 = vrot.slane %v2706, 2
          %v2708 = vadd.f32 %v2706, %v2707
          %v2709 = vrot.slane %v2708, 1
          %v2710 = vadd.f32 %v2708, %v2709
          %v2711 = vadd.f32 %v2679, %v2683
          %v2712 = vadd.f32 %v2711, %v2687
          %v2713 = vadd.f32 %v2712, %v2691
          %v2714 = vrot.slane %v2713, 4
          %v2715 = vadd.f32 %v2713, %v2714
          %v2716 = vrot.slane %v2715, 2
          %v2717 = vadd.f32 %v2715, %v2716
          %v2718 = vrot.slane %v2717, 1
          %v2719 = vadd.f32 %v2717, %v2718
          %v2720 = vadd.f32 %v2680, %v2684
          %v2721 = vadd.f32 %v2720, %v2688
          %v2722 = vadd.f32 %v2721, %v2692
          %v2723 = vrot.slane %v2722, 4
          %v2724 = vadd.f32 %v2722, %v2723
          %v2725 = vrot.slane %v2724, 2
          %v2726 = vadd.f32 %v2724, %v2725
          %v2727 = vrot.slane %v2726, 1
          %v2728 = vadd.f32 %v2726, %v2727
          %v2729 = vmul.f32 %v2701, %v2656
          %v2730 = vmul.f32 %v2710, %v2656
          %v2731 = vmul.f32 %v2719, %v2656
          %v2732 = vmul.f32 %v2728, %v2656
          %v2733 = vadd.f32 %v2729, 1e-05
          %v2734 = vadd.f32 %v2730, 1e-05
          %v2735 = vadd.f32 %v2731, 1e-05
          %v2736 = vadd.f32 %v2732, 1e-05
          %v2737 = vrsqrt.pop %v2733
          %v2738 = vmul.f32 %v2737, %v2733
          %v2739 = vmul.f32 %v2738, %v2737
          %v2740 = vmul.f32 0.5, %v2739
          %v2741 = vsub.f32 1.5, %v2740
          %v2742 = vmul.f32 %v2737, %v2741
          %vm2743 = vweird.f32 %v2733
          %vm2744 = vweird.f32 %v2737
          %vm2745 = vmor %vm2743, %vm2744
          %v2746 = vsel %vm2745, %v2737, %v2742
          %v2747 = vrsqrt.pop %v2734
          %v2748 = vmul.f32 %v2747, %v2734
          %v2749 = vmul.f32 %v2748, %v2747
          %v2750 = vmul.f32 0.5, %v2749
          %v2751 = vsub.f32 1.5, %v2750
          %v2752 = vmul.f32 %v2747, %v2751
          %vm2753 = vweird.f32 %v2734
          %vm2754 = vweird.f32 %v2747
          %vm2755 = vmor %vm2753, %vm2754
          %v2756 = vsel %vm2755, %v2747, %v2752
          %v2757 = vrsqrt.pop %v2735
          %v2758 = vmul.f32 %v2757, %v2735
          %v2759 = vmul.f32 %v2758, %v2757
          %v2760 = vmul.f32 0.5, %v2759
          %v2761 = vsub.f32 1.5, %v2760
          %v2762 = vmul.f32 %v2757, %v2761
          %vm2763 = vweird.f32 %v2735
          %vm2764 = vweird.f32 %v2757
          %vm2765 = vmor %vm2763, %vm2764
          %v2766 = vsel %vm2765, %v2757, %v2762
          %v2767 = vrsqrt.pop %v2736
          %v2768 = vmul.f32 %v2767, %v2736
          %v2769 = vmul.f32 %v2768, %v2767
          %v2770 = vmul.f32 0.5, %v2769
          %v2771 = vsub.f32 1.5, %v2770
          %v2772 = vmul.f32 %v2767, %v2771
          %vm2773 = vweird.f32 %v2736
          %vm2774 = vweird.f32 %v2767
          %vm2775 = vmor %vm2773, %vm2774
          %v2776 = vsel %vm2775, %v2767, %v2772
          %v2777 = vmul.f32 %v2661, %v2746
          %v2778 = vmul.f32 %v2662, %v2756
          %v2779 = vmul.f32 %v2663, %v2766
          %v2780 = vmul.f32 %v2664, %v2776
          %v2781 = vmul.f32 %v2665, %v2746
          %v2782 = vmul.f32 %v2666, %v2756
          %v2783 = vmul.f32 %v2667, %v2766
          %v2784 = vmul.f32 %v2668, %v2776
          %v2785 = vmul.f32 %v2669, %v2746
          %v2786 = vmul.f32 %v2670, %v2756
          %v2787 = vmul.f32 %v2671, %v2766
          %v2788 = vmul.f32 %v2672, %v2776
          %v2789 = vmul.f32 %v2673, %v2746
          %v2790 = vmul.f32 %v2674, %v2756
          %v2791 = vmul.f32 %v2675, %v2766
          %v2792 = vmul.f32 %v2676, %v2776
          %v2793 = vld [vmem:[%s2] sm:$0xf]
          %v2795 = vperm.slane %v2793, 0
          %v2796 = vperm.slane %v2793, 1
          %v2797 = vperm.slane %v2793, 2
          %v2798 = vperm.slane %v2793, 3
          %v2803 = vmul.f32 %v2777, %v2795
          %v2804 = vmul.f32 %v2778, %v2796
          %v2805 = vmul.f32 %v2779, %v2797
          %v2806 = vmul.f32 %v2780, %v2798
          %v2807 = vmul.f32 %v2781, %v2795
          %v2808 = vmul.f32 %v2782, %v2796
          %v2809 = vmul.f32 %v2783, %v2797
          %v2810 = vmul.f32 %v2784, %v2798
          %v2811 = vmul.f32 %v2785, %v2795
          %v2812 = vmul.f32 %v2786, %v2796
          %v2813 = vmul.f32 %v2787, %v2797
          %v2814 = vmul.f32 %v2788, %v2798
          %v2815 = vmul.f32 %v2789, %v2795
          %v2816 = vmul.f32 %v2790, %v2796
          %v2817 = vmul.f32 %v2791, %v2797
          %v2818 = vmul.f32 %v2792, %v2798
          %v2819 = vld [vmem:[%s3] sm:$0xf]
          %v2821 = vperm.slane %v2819, 0
          %v2822 = vperm.slane %v2819, 1
          %v2823 = vperm.slane %v2819, 2
          %v2824 = vperm.slane %v2819, 3
          %v2829 = vadd.f32 %v2803, %v2821
          %v2830 = vadd.f32 %v2804, %v2822
          %v2831 = vadd.f32 %v2805, %v2823
          %v2832 = vadd.f32 %v2806, %v2824
          %v2833 = vadd.f32 %v2807, %v2821
          %v2834 = vadd.f32 %v2808, %v2822
          %v2835 = vadd.f32 %v2809, %v2823
          %v2836 = vadd.f32 %v2810, %v2824
          %v2837 = vadd.f32 %v2811, %v2821
          %v2838 = vadd.f32 %v2812, %v2822
          %v2839 = vadd.f32 %v2813, %v2823
          %v2840 = vadd.f32 %v2814, %v2824
          %v2841 = vadd.f32 %v2815, %v2821
          %v2842 = vadd.f32 %v2816, %v2822
          %v2843 = vadd.f32 %v2817, %v2823
          %v2844 = vadd.f32 %v2818, %v2824
          %vm2845 = vcmp.gt.f32.partialorder %v2829, 0.0
          %vm2846 = vcmp.gt.f32.partialorder %v2830, 0.0
          %vm2847 = vcmp.gt.f32.partialorder %v2831, 0.0
          %vm2848 = vcmp.gt.f32.partialorder %v2832, 0.0
          %vm2849 = vcmp.gt.f32.partialorder %v2833, 0.0
          %vm2850 = vcmp.gt.f32.partialorder %v2834, 0.0
          %vm2851 = vcmp.gt.f32.partialorder %v2835, 0.0
          %vm2852 = vcmp.gt.f32.partialorder %v2836, 0.0
          %vm2853 = vcmp.gt.f32.partialorder %v2837, 0.0
          %vm2854 = vcmp.gt.f32.partialorder %v2838, 0.0
          %vm2855 = vcmp.gt.f32.partialorder %v2839, 0.0
          %vm2856 = vcmp.gt.f32.partialorder %v2840, 0.0
          %vm2857 = vcmp.gt.f32.partialorder %v2841, 0.0
          %vm2858 = vcmp.gt.f32.partialorder %v2842, 0.0
          %vm2859 = vcmp.gt.f32.partialorder %v2843, 0.0
          %vm2860 = vcmp.gt.f32.partialorder %v2844, 0.0
          %v2861 = vmul.f32 %v2829, 0.2
          %v2862 = vmul.f32 %v2830, 0.2
          %v2863 = vmul.f32 %v2831, 0.2
          %v2864 = vmul.f32 %v2832, 0.2
          %v2865 = vmul.f32 %v2833, 0.2
          %v2866 = vmul.f32 %v2834, 0.2
          %v2867 = vmul.f32 %v2835, 0.2
          %v2868 = vmul.f32 %v2836, 0.2
          %v2869 = vmul.f32 %v2837, 0.2
          %v2870 = vmul.f32 %v2838, 0.2
          %v2871 = vmul.f32 %v2839, 0.2
          %v2872 = vmul.f32 %v2840, 0.2
          %v2873 = vmul.f32 %v2841, 0.2
          %v2874 = vmul.f32 %v2842, 0.2
          %v2875 = vmul.f32 %v2843, 0.2
          %v2876 = vmul.f32 %v2844, 0.2
          %v2877 = vsel %vm2845, %v2829, %v2861
          %v2878 = vsel %vm2846, %v2830, %v2862
          %v2879 = vsel %vm2847, %v2831, %v2863
          %v2880 = vsel %vm2848, %v2832, %v2864
          %v2881 = vsel %vm2849, %v2833, %v2865
          %v2882 = vsel %vm2850, %v2834, %v2866
          %v2883 = vsel %vm2851, %v2835, %v2867
          %v2884 = vsel %vm2852, %v2836, %v2868
          %v2885 = vsel %vm2853, %v2837, %v2869
          %v2886 = vsel %vm2854, %v2838, %v2870
          %v2887 = vsel %vm2855, %v2839, %v2871
          %v2888 = vsel %vm2856, %v2840, %v2872
          %v2889 = vsel %vm2857, %v2841, %v2873
          %v2890 = vsel %vm2858, %v2842, %v2874
          %v2891 = vsel %vm2859, %v2843, %v2875
          %v2892 = vsel %vm2860, %v2844, %v2876
          %v2893 = vld [vmem:[%s4] sm:$0xff]
          %v2894 = vld [vmem:[%s4 + $0x8] sm:$0xff]
          %v2895 = vld [vmem:[%s4 + $0x10] sm:$0xff]
          %v2896 = vld [vmem:[%s4 + $0x18] sm:$0xff]
          %v2897 = vunpack.c.l.bf16 %v2893
          %v2898 = vunpack.c.h.bf16 %v2893
          %v2899 = vunpack.c.l.bf16 %v2894
          %v2900 = vunpack.c.h.bf16 %v2894
          %v2901 = vunpack.c.l.bf16 %v2895
          %v2902 = vunpack.c.h.bf16 %v2895
          %v2903 = vunpack.c.l.bf16 %v2896
          %v2904 = vunpack.c.h.bf16 %v2896
          %v2905 = vmul.f32 %v2877, %v2897
          %v2906 = vmul.f32 %v2878, %v2898
          %v2907 = vmul.f32 %v2879, %v2899
          %v2908 = vmul.f32 %v2880, %v2900
          %v2909 = vmul.f32 %v2881, %v2901
          %v2910 = vmul.f32 %v2882, %v2902
          %v2911 = vmul.f32 %v2883, %v2903
          %v2912 = vmul.f32 %v2884, %v2904
          %v2913 = vmul.f32 %v2885, %v2897
          %v2914 = vmul.f32 %v2886, %v2898
          %v2915 = vmul.f32 %v2887, %v2899
          %v2916 = vmul.f32 %v2888, %v2900
          %v2917 = vmul.f32 %v2889, %v2901
          %v2918 = vmul.f32 %v2890, %v2902
          %v2919 = vmul.f32 %v2891, %v2903
          %v2920 = vmul.f32 %v2892, %v2904
          %v2921 = vadd.f32 %v2905, %v2906
          %v2922 = vadd.f32 %v2921, %v2907
          %v2923 = vadd.f32 %v2922, %v2908
          %2924 = vadd.xlane.f32.xlu0 %v2923
          %v2925 = vpop.xlane.xlu0 %2924
          %v2926 = vadd.f32 %v2909, %v2910
          %v2927 = vadd.f32 %v2926, %v2911
          %v2928 = vadd.f32 %v2927, %v2912
          %2929 = vadd.xlane.f32.xlu0 %v2928
          %v2930 = vpop.xlane.xlu0 %2929
          %v2931 = vadd.f32 %v2913, %v2914
          %v2932 = vadd.f32 %v2931, %v2915
          %v2933 = vadd.f32 %v2932, %v2916
          %2934 = vadd.xlane.f32.xlu0 %v2933
          %v2935 = vpop.xlane.xlu0 %2934
          %v2936 = vadd.f32 %v2917, %v2918
          %v2937 = vadd.f32 %v2936, %v2919
          %v2938 = vadd.f32 %v2937, %v2920
          %2939 = vadd.xlane.f32.xlu0 %v2938
          %v2940 = vpop.xlane.xlu0 %2939
          %v2945 = vlaneseq
          %v2946 = vand.u32 %v2945, 127
          %v2947 = vperm.slane %v2925, %v2946
          %v2948 = vadd.s32 %v2946, 4294967288
          %v2949 = vperm.slane %v2930, %v2948
          %vm2950 = vcmask 130112
          %v2951 = vsel %vm2950, %v2949, %v2947
          %v2952 = vperm.slane %v2935, %v2946
          %v2953 = vperm.slane %v2940, %v2948
          %v2954 = vsel %vm2950, %v2953, %v2952
          %vm2955 = vcmask 1041409
          %v2956 = vsel %vm2955, %v2954, %v2951
          %vm2958 = vcmask 123904
          %v2959 = vsel %vm2958, %v2956, 0.0
          %2960 = vadd.xlane.f32.xlu0 %v2959
          %v2961 = vpop.xlane.xlu0 %2960
          %v2962 = vmax.f32 %v2961, 0.0
          %v2963 = vand.u32 2147483647, %v2961
          %v2964 = vsub.f32 0.0, %v2963
          %v2965 = vmul.f32 %v2964, 1.442695
          %v2966 = vpow.pop %v2965
          %v2967 = vadd.f32 %v2966, 1.0
          %v2968 = vlog2.pop %v2967
          %v2969 = vmul.f32 %v2968, 0.6931472
          %v2970 = vadd.f32 %v2962, %v2969
          %vm2971 = vcmask 1024
          %2972 = vst.msk [vmem:[%s5] sm:$0x3] %vm2971, %v2970
        $region71: #{net_d_forward.7} parent=58 // pred_fallthru
          _
        // Predicated region
        $region72: #{net_d_forward.7} parent=58 // pred_check
          %p2973 = pneg %p144
        $region73: #{net_d_forward.7} parent=58 // pred_check_branch
          %2975 = sbr.rel (%p2973) target = $region75
        $region74: #{net_d_forward.7} parent=58 // pred_region
          _
        $region75: #{net_d_forward.7} parent=58 // pred_fallthru
          _
        // Predicated region
        $region76: #{net_d_forward.7} parent=58 // pred_check
          %p2976 = pneg %p144
        $region77: #{net_d_forward.7} parent=58 // pred_check_branch
          %2978 = sbr.rel (%p2976) target = $region79
        $region78: #{net_d_forward.7} parent=58 // pred_region
          _
        $region79: #{net_d_forward.7} parent=58 // pred_fallthru
          _
      $region59: #{net_d_forward.7} parent=5 // pred_fallthru
        _
      %p2979 = scmp.le.s32.totalorder 2, %s11
      // Predicated region
      $region80: #{net_d_forward.7} parent=5 // pred_check
        %p2980 = pneg %p2979
      $region81: #{net_d_forward.7} parent=5 // pred_check_branch
        %2982 = sbr.rel (%p2980) target = $region83
      $region82: #{net_d_forward.7} parent=5 // pred_region
        %s2983 = ssub.s32 %s11, 2
      $region83: #{net_d_forward.7} parent=5 // pred_fallthru
        _
    $region6: #{net_d_forward.7} parent=1 // loop_footer
      %s15 = sadd.s32 1, %s11
    $region7: #{net_d_forward.7} parent=1 // loop_footer_branch
      %10 = sbr.rel target = $region3
    $region8: #{net_d_forward.7} parent=1 // loop_exit
      _

</llo_original>
